<compile_context>
chip_gen: v7x
topology: tpu7x:2x2x1
jax: 0.10.0
libtpu: 0.0.40
codegen_flags: <defaults>
</compile_context>

<pallas_src>
import numpy as np
import jax
import jax.numpy as jnp
from jax.experimental import pallas as pl
from jax.experimental.pallas import tpu as pltpu

# ----------------------------- architecture constants ------------------------
KSZ = 7                      # deconv kernel size
PAD = KSZ - 1                # 6
C1, H1, W1 = 6, 16, 16       # after linear + view(-1, 6, 16, 16)
C2, H2, W2 = 12, 22, 22      # after deconv1
C3, H3, W3 = 1, 28, 28       # after deconv2
HP2 = H1 + 2 * PAD           # 28  H-halo-padded deconv1 input rows
HP3 = H2 + 2 * PAD           # 34  H-halo-padded deconv2 tap-product rows
LIN_OUT = H1 * W1 * C1       # 1536 (kernel keeps columns in (h, w, c) order)
ROW1 = W1 * C1               # 96   deconv1 matmul K (W padding folded into weights)
ROW2 = W2 * C2               # 264  deconv1 matmul N / deconv2 matmul K
ROW3 = KSZ * W3              # 196  deconv2 matmul N, columns ordered (kh, ow)
OUT_LANES = H3 * W3          # 784  lane-dense output row width


# --------------------------------- kernel ------------------------------------

def _decoder_kernel(x_ref, w1_ref, b1_ref, w2_ref, b2_ref, w3_ref, b3_ref,
                    o_ref, xp2_scr, zp_scr):
    """One batch chunk end-to-end, everything resident in VMEM."""
    bc = x_ref.shape[0]                      # batch chunk size (multiple of 8)

    # ---- linear1 + relu: (bc,5)@(5,1536); columns already in (h, w, c) order.
    h1 = jnp.dot(x_ref[...], w1_ref[...], preferred_element_type=jnp.float32)
    h1 = jnp.maximum(h1 + b1_ref[...], 0.0)                  # (bc, 1536)

    # ---- deconv1 input: rows=(h_pad, b), lanes=(w, c).  Only the H halo needs
    #      zeros (W padding lives in the weights); interior is rewritten below.
    halo1 = jnp.zeros((PAD * bc, ROW1), jnp.float32)
    xp2_scr[0:PAD * bc, :] = halo1
    xp2_scr[(PAD + H1) * bc:HP2 * bc, :] = halo1
    for h in range(H1):                      # 16 full-width (bc, 96) row stores
        xp2_scr[(PAD + h) * bc:(PAD + h + 1) * bc, :] = h1[:, h * ROW1:(h + 1) * ROW1]

    # ---- deconv1 + relu: 7 tap matmuls (22*bc, 96) @ (96, 264), rows=(oh, b).
    acc2 = jnp.dot(xp2_scr[0:H2 * bc, :], w2_ref[0],
                   preferred_element_type=jnp.float32)
    for kh in range(1, KSZ):
        acc2 = acc2 + jnp.dot(xp2_scr[kh * bc:(kh + H2) * bc, :], w2_ref[kh],
                              preferred_element_type=jnp.float32)
    acc2 = jnp.maximum(acc2 + b2_ref[...], 0.0)               # (22*bc, 264)

    # ---- deconv2, input-stationary: ONE matmul (22*bc, 264) @ (264, 196).
    #      z[h, (kh, ow)] = contribution of input row h to output row h+kh.
    halo2 = jnp.zeros((PAD * bc, ROW3), jnp.float32)
    zp_scr[0:PAD * bc, :] = halo2
    zp_scr[(PAD + H2) * bc:HP3 * bc, :] = halo2
    zp_scr[PAD * bc:(PAD + H2) * bc, :] = jnp.dot(
        acc2, w3_ref[...], preferred_element_type=jnp.float32)

    # ---- combine the 7 kh taps via shifted row reads (VPU adds), add bias,
    #      sigmoid, and write a lane-dense (bc, 784) output (rows=b, lanes=(oh,ow)).
    b3 = b3_ref[...]                                          # (1, 1)
    for oh in range(H3):
        y = zp_scr[(oh + PAD) * bc:(oh + PAD + 1) * bc, 0:W3]
        for kh in range(1, KSZ):
            y = y + zp_scr[(oh + PAD - kh) * bc:(oh + PAD - kh + 1) * bc,
                           kh * W3:(kh + 1) * W3]
        o_ref[:, oh * W3:(oh + 1) * W3] = jax.nn.sigmoid(y + b3)


# ------------------------------ host-side wrapper -----------------------------

def prepare_params(params):
    """One-time re-layout of PyTorch-layout weights into kernel-friendly matrices."""
    w1 = np.asarray(params["w1"], np.float32)            # (1536, 5)  (out, in)
    b1 = np.asarray(params["b1"], np.float32)            # (1536,)
    w2 = np.asarray(params["w2"], np.float32)            # (6, 12, 7, 7)
    b2 = np.asarray(params["b2"], np.float32)            # (12,)
    w3 = np.asarray(params["w3"], np.float32)            # (12, 1, 7, 7)
    b3 = np.asarray(params["b3"], np.float32)            # (1,)

    # Linear: (out,in)->(in,out) and permute output columns CHW -> HWC so the
    # kernel's padded-scratch writes are plain row-major slices.
    w1p = w1.T.reshape(5, C1, H1, W1).transpose(0, 2, 3, 1).reshape(5, LIN_OUT)
    b1p = b1.reshape(C1, H1, W1).transpose(1, 2, 0).reshape(1, LIN_OUT)

    # Deconv1 (output-stationary over kh): one (W1*C1, W2*C2) = (96, 264) matrix
    # per kh tap; the kw taps, channel mixing AND W-direction zero padding are
    # all folded in.  M[kh][(w, c1), (ow, c2)] = w2[c1, c2, 6-kh, ow-w].
    w2p = np.zeros((KSZ, ROW1, ROW2), np.float32)
    for kh in range(KSZ):
        for wi in range(W1):
            for kw in range(KSZ):
                ow = wi + kw
                w2p[kh, wi * C1:(wi + 1) * C1,
                    ow * C2:(ow + 1) * C2] = w2[:, :, KSZ - 1 - kh, kw]
    b2p = np.tile(b2, W2).reshape(1, ROW2)                # (1, 264): (ow, c2) order

    # Deconv2 (input-stationary): one (W2*C2, KSZ*W3) = (264, 196) matrix.
    # Wbig[(ow2, c2), (kh, ow3)] = w3[c2, 0, kh, ow3-ow2].
    w3p = np.zeros((ROW2, ROW3), np.float32)
    for wi in range(W2):
        for kw in range(KSZ):
            ow = wi + kw
            for kh in range(KSZ):
                w3p[wi * C2:(wi + 1) * C2, kh * W3 + ow] = w3[:, 0, kh, kw]
    b3p = b3.reshape(1, 1)

    return {k: jnp.asarray(v) for k, v in
            dict(w1=w1p, b1=b1p, w2=w2p, b2=b2p, w3=w3p, b3=b3p).items()}


def vae_decoder_forward(x, kparams, *, block_b=None, vmem_limit_bytes=None):
    """x: (B, 5) -> (B, 1, 28, 28), matching the PyTorch VAEDecoder forward.

    block_b: examples per grid step (multiple of 8).  Defaults to min(64, B
    rounded up to 8) which fits every generation's default scoped VMEM.
    Suggested: 64 (v5e), 128-256 (v6e), ~128 (v7x, 64 MiB VMEM); ensure
    B >= 2*block_b on v7x so both TensorCores get work.
    """
    b = x.shape[0]
    if block_b is None:
        block_b = min(64, max(8, -(-b // 8) * 8))
    assert block_b % 8 == 0
    n_chunks = pl.cdiv(b, block_b)
    bpad = n_chunks * block_b
    if bpad != b:
        x = jnp.pad(x, ((0, bpad - b), (0, 0)))

    if vmem_limit_bytes is None and block_b > 64:
        vmem_limit_bytes = 48 * 1024 * 1024   # headroom for big chunks (v7x-safe)
    cp_kwargs = dict(dimension_semantics=("parallel",))
    if vmem_limit_bytes is not None:
        cp_kwargs["vmem_limit_bytes"] = int(vmem_limit_bytes)

    out = pl.pallas_call(
        _decoder_kernel,
        out_shape=jax.ShapeDtypeStruct((bpad, OUT_LANES), jnp.float32),
        grid_spec=pltpu.PrefetchScalarGridSpec(
            num_scalar_prefetch=0,
            grid=(n_chunks,),
            in_specs=[
                pl.BlockSpec((block_b, 5), lambda i: (i, 0)),
                # constant index maps: weights/biases DMA'd once, stay resident
                pl.BlockSpec((5, LIN_OUT), lambda i: (0, 0)),
                pl.BlockSpec((1, LIN_OUT), lambda i: (0, 0)),
                pl.BlockSpec((KSZ, ROW1, ROW2), lambda i: (0, 0, 0)),
                pl.BlockSpec((1, ROW2), lambda i: (0, 0)),
                pl.BlockSpec((ROW2, ROW3), lambda i: (0, 0)),
                pl.BlockSpec((1, 1), lambda i: (0, 0)),
            ],
            out_specs=pl.BlockSpec((block_b, OUT_LANES), lambda i: (i, 0)),
            scratch_shapes=[
                pltpu.VMEM((HP2 * block_b, ROW1), jnp.float32),   # padded deconv1 in
                pltpu.VMEM((HP3 * block_b, ROW3), jnp.float32),   # padded deconv2 taps
            ],
        ),
        compiler_params=pltpu.CompilerParams(**cp_kwargs),
    )(x, kparams["w1"], kparams["b1"], kparams["w2"], kparams["b2"],
      kparams["w3"], kparams["b3"])

    # rows are already (b); lanes are (oh, ow) -> just slice and reshape to NCHW.
    return out[:b].reshape(b, C3, H3, W3)


# ----------------------------- pure-JAX reference -----------------------------

def _conv_transpose_ref(x, w, b):
    """Scatter-form ConvTranspose2d, stride=1, pad=0. x NCHW, w (Cin,Cout,K,K)."""
    B, Cin, H, W = x.shape
    _, Cout, K, _ = w.shape
    out = jnp.zeros((B, Cout, H + K - 1, W + K - 1), jnp.float32)
    for i in range(K):
        for j in range(K):
            out = out.at[:, :, i:i + H, j:j + W].add(
                jnp.einsum('bchw,co->bohw', x, w[:, :, i, j],
                           precision=jax.lax.Precision.HIGHEST))
    return out + b[None, :, None, None]


def vae_decoder_ref(x, params):
    B = x.shape[0]
    h = jnp.einsum('bk,ok->bo', x, params["w1"],
                   precision=jax.lax.Precision.HIGHEST) + params["b1"]
    h = jnp.maximum(h, 0.0).reshape(B, C1, H1, W1)
    h = jnp.maximum(_conv_transpose_ref(h, params["w2"], params["b2"]), 0.0)
    return jax.nn.sigmoid(_conv_transpose_ref(h, params["w3"], params["b3"]))


# --------------------------------- parameters ---------------------------------

def init_params(key):
    ks = jax.random.split(key, 6)

    def u(k, shape, fan_in):
        bound = 1.0 / np.sqrt(fan_in)
        return jax.random.uniform(k, shape, jnp.float32, -bound, bound)

    return {
        "w1": u(ks[0], (LIN_OUT, 5), 5),                  # nn.Linear(5, 1536): (out, in)
        "b1": u(ks[1], (LIN_OUT,), 5),
        "w2": u(ks[2], (C1, C2, KSZ, KSZ), C1 * KSZ * KSZ),  # ConvTranspose2d(6, 12, 7)
        "b2": u(ks[3], (C2,), C1 * KSZ * KSZ),
        "w3": u(ks[4], (C2, C3, KSZ, KSZ), C2 * KSZ * KSZ),  # ConvTranspose2d(12, 1, 7)
        "b3": u(ks[5], (C3,), C2 * KSZ * KSZ),
    }


if __name__ == "__main__":
    key = jax.random.PRNGKey(0)
    pkey, xkey = jax.random.split(key)
    params = init_params(pkey)
    x = jax.random.normal(xkey, (2, 5), dtype=jnp.float32)

    kparams = prepare_params(params)          # one-time weight re-layout (host)
    fwd = jax.jit(vae_decoder_forward)
    out = jax.block_until_ready(fwd(x, kparams))
    assert out.shape == (2, 1, 28, 28), out.shape

    ref = jax.block_until_ready(vae_decoder_ref(x, params))
    np.testing.assert_allclose(np.asarray(out), np.asarray(ref),
                               rtol=1e-3, atol=1e-3)
    print("KERNEL_OK")
</pallas_src>

<mosaic_0001>
module attributes {stable_mosaic.version = 11 : i64} {
  func.func @_decoder_kernel(%arg0: i32, %arg1: memref<8x5xf32, #tpu.memory_space<vmem>>, %arg2: memref<5x1536xf32, #tpu.memory_space<vmem>>, %arg3: memref<1x1536xf32, #tpu.memory_space<vmem>>, %arg4: memref<7x96x264xf32, #tpu.memory_space<vmem>>, %arg5: memref<1x264xf32, #tpu.memory_space<vmem>>, %arg6: memref<264x196xf32, #tpu.memory_space<vmem>>, %arg7: memref<1x1xf32, #tpu.memory_space<vmem>>, %arg8: memref<8x784xf32, #tpu.memory_space<vmem>>, %arg9: memref<224x96xf32, #tpu.memory_space<vmem>>, %arg10: memref<272x196xf32, #tpu.memory_space<vmem>>) attributes {dimension_semantics = [#tpu.dimension_semantics<parallel>], iteration_bounds = array<i64: 1>, scalar_prefetch = 0 : i64, scratch_operands = 2 : i64, tpu.core_type = #tpu.core_type<tc>, window_params = [{transform_indices = @transform_0, window_bounds = array<i64: 8, 5>}, {pipeline_mode = #tpu.pipeline_mode<synchronous>, transform_indices = @transform_1, window_bounds = array<i64: 5, 1536>}, {pipeline_mode = #tpu.pipeline_mode<synchronous>, transform_indices = @transform_2, window_bounds = array<i64: 1, 1536>}, {pipeline_mode = #tpu.pipeline_mode<synchronous>, transform_indices = @transform_3, window_bounds = array<i64: 7, 96, 264>}, {pipeline_mode = #tpu.pipeline_mode<synchronous>, transform_indices = @transform_4, window_bounds = array<i64: 1, 264>}, {pipeline_mode = #tpu.pipeline_mode<synchronous>, transform_indices = @transform_5, window_bounds = array<i64: 264, 196>}, {pipeline_mode = #tpu.pipeline_mode<synchronous>, transform_indices = @transform_6, window_bounds = array<i64: 1, 1>}, {transform_indices = @transform_7, window_bounds = array<i64: 8, 784>}]} {
    %c0 = arith.constant 0 : index
    %c0_0 = arith.constant 0 : index
    %0 = vector.load %arg1[%c0, %c0_0] : memref<8x5xf32, #tpu.memory_space<vmem>>, vector<8x5xf32>
    %c0_1 = arith.constant 0 : index
    %c0_2 = arith.constant 0 : index
    %1 = vector.load %arg2[%c0_1, %c0_2] : memref<5x1536xf32, #tpu.memory_space<vmem>>, vector<5x1536xf32>
    %cst = arith.constant dense<0.000000e+00> : vector<8x1536xf32>
    %2 = tpu.matmul %0, %1, %cst {dimension_numbers = #tpu.dot_dimension_numbers<[1], [0], [0], [1], [0, 0, 1, 1], [], []>} : vector<8x5xf32>, vector<5x1536xf32>, vector<8x1536xf32> -> vector<8x1536xf32>
    %c0_3 = arith.constant 0 : index
    %c0_4 = arith.constant 0 : index
    %3 = vector.load %arg3[%c0_3, %c0_4] : memref<1x1536xf32, #tpu.memory_space<vmem>>, vector<1x1536xf32>
    %4 = vector.broadcast %3 : vector<1x1536xf32> to vector<8x1536xf32>
    %5 = arith.addf %2, %4 : vector<8x1536xf32>
    %cst_5 = arith.constant 0.000000e+00 : f32
    %6 = vector.broadcast %cst_5 : f32 to vector<8x1536xf32>
    %7 = arith.maximumf %5, %6 : vector<8x1536xf32>
    %cst_6 = arith.constant 0.000000e+00 : f32
    %8 = vector.broadcast %cst_6 : f32 to vector<48x96xf32>
    %c0_7 = arith.constant 0 : index
    %c0_8 = arith.constant 0 : index
    %9 = vector.load %arg9[%c0_7, %c0_8] : memref<224x96xf32, #tpu.memory_space<vmem>>, vector<48x96xf32>
    tpu.vector_store %arg9[%c0_7, %c0_8], %8 {strides = array<i32>} : memref<224x96xf32, #tpu.memory_space<vmem>>, vector<48x96xf32>,
    %c176 = arith.constant 176 : index
    %c0_9 = arith.constant 0 : index
    %10 = vector.load %arg9[%c176, %c0_9] : memref<224x96xf32, #tpu.memory_space<vmem>>, vector<48x96xf32>
    tpu.vector_store %arg9[%c176, %c0_9], %8 {strides = array<i32>} : memref<224x96xf32, #tpu.memory_space<vmem>>, vector<48x96xf32>,
    %11 = vector.extract_strided_slice %7 {offsets = [0, 0], sizes = [8, 96], strides = [1, 1]} : vector<8x1536xf32> to vector<8x96xf32>
    %c48 = arith.constant 48 : index
    %c0_10 = arith.constant 0 : index
    %12 = vector.load %arg9[%c48, %c0_10] : memref<224x96xf32, #tpu.memory_space<vmem>>, vector<8x96xf32>
    tpu.vector_store %arg9[%c48, %c0_10], %11 {strides = array<i32>} : memref<224x96xf32, #tpu.memory_space<vmem>>, vector<8x96xf32>,
    %13 = vector.extract_strided_slice %7 {offsets = [0, 96], sizes = [8, 96], strides = [1, 1]} : vector<8x1536xf32> to vector<8x96xf32>
    %c56 = arith.constant 56 : index
    %c0_11 = arith.constant 0 : index
    %14 = vector.load %arg9[%c56, %c0_11] : memref<224x96xf32, #tpu.memory_space<vmem>>, vector<8x96xf32>
    tpu.vector_store %arg9[%c56, %c0_11], %13 {strides = array<i32>} : memref<224x96xf32, #tpu.memory_space<vmem>>, vector<8x96xf32>,
    %15 = vector.extract_strided_slice %7 {offsets = [0, 192], sizes = [8, 96], strides = [1, 1]} : vector<8x1536xf32> to vector<8x96xf32>
    %c64 = arith.constant 64 : index
    %c0_12 = arith.constant 0 : index
    %16 = vector.load %arg9[%c64, %c0_12] : memref<224x96xf32, #tpu.memory_space<vmem>>, vector<8x96xf32>
    tpu.vector_store %arg9[%c64, %c0_12], %15 {strides = array<i32>} : memref<224x96xf32, #tpu.memory_space<vmem>>, vector<8x96xf32>,
    %17 = vector.extract_strided_slice %7 {offsets = [0, 288], sizes = [8, 96], strides = [1, 1]} : vector<8x1536xf32> to vector<8x96xf32>
    %c72 = arith.constant 72 : index
    %c0_13 = arith.constant 0 : index
    %18 = vector.load %arg9[%c72, %c0_13] : memref<224x96xf32, #tpu.memory_space<vmem>>, vector<8x96xf32>
    tpu.vector_store %arg9[%c72, %c0_13], %17 {strides = array<i32>} : memref<224x96xf32, #tpu.memory_space<vmem>>, vector<8x96xf32>,
    %19 = vector.extract_strided_slice %7 {offsets = [0, 384], sizes = [8, 96], strides = [1, 1]} : vector<8x1536xf32> to vector<8x96xf32>
    %c80 = arith.constant 80 : index
    %c0_14 = arith.constant 0 : index
    %20 = vector.load %arg9[%c80, %c0_14] : memref<224x96xf32, #tpu.memory_space<vmem>>, vector<8x96xf32>
    tpu.vector_store %arg9[%c80, %c0_14], %19 {strides = array<i32>} : memref<224x96xf32, #tpu.memory_space<vmem>>, vector<8x96xf32>,
    %21 = vector.extract_strided_slice %7 {offsets = [0, 480], sizes = [8, 96], strides = [1, 1]} : vector<8x1536xf32> to vector<8x96xf32>
    %c88 = arith.constant 88 : index
    %c0_15 = arith.constant 0 : index
    %22 = vector.load %arg9[%c88, %c0_15] : memref<224x96xf32, #tpu.memory_space<vmem>>, vector<8x96xf32>
    tpu.vector_store %arg9[%c88, %c0_15], %21 {strides = array<i32>} : memref<224x96xf32, #tpu.memory_space<vmem>>, vector<8x96xf32>,
    %23 = vector.extract_strided_slice %7 {offsets = [0, 576], sizes = [8, 96], strides = [1, 1]} : vector<8x1536xf32> to vector<8x96xf32>
    %c96 = arith.constant 96 : index
    %c0_16 = arith.constant 0 : index
    %24 = vector.load %arg9[%c96, %c0_16] : memref<224x96xf32, #tpu.memory_space<vmem>>, vector<8x96xf32>
    tpu.vector_store %arg9[%c96, %c0_16], %23 {strides = array<i32>} : memref<224x96xf32, #tpu.memory_space<vmem>>, vector<8x96xf32>,
    %25 = vector.extract_strided_slice %7 {offsets = [0, 672], sizes = [8, 96], strides = [1, 1]} : vector<8x1536xf32> to vector<8x96xf32>
    %c104 = arith.constant 104 : index
    %c0_17 = arith.constant 0 : index
    %26 = vector.load %arg9[%c104, %c0_17] : memref<224x96xf32, #tpu.memory_space<vmem>>, vector<8x96xf32>
    tpu.vector_store %arg9[%c104, %c0_17], %25 {strides = array<i32>} : memref<224x96xf32, #tpu.memory_space<vmem>>, vector<8x96xf32>,
    %27 = vector.extract_strided_slice %7 {offsets = [0, 768], sizes = [8, 96], strides = [1, 1]} : vector<8x1536xf32> to vector<8x96xf32>
    %c112 = arith.constant 112 : index
    %c0_18 = arith.constant 0 : index
    %28 = vector.load %arg9[%c112, %c0_18] : memref<224x96xf32, #tpu.memory_space<vmem>>, vector<8x96xf32>
    tpu.vector_store %arg9[%c112, %c0_18], %27 {strides = array<i32>} : memref<224x96xf32, #tpu.memory_space<vmem>>, vector<8x96xf32>,
    %29 = vector.extract_strided_slice %7 {offsets = [0, 864], sizes = [8, 96], strides = [1, 1]} : vector<8x1536xf32> to vector<8x96xf32>
    %c120 = arith.constant 120 : index
    %c0_19 = arith.constant 0 : index
    %30 = vector.load %arg9[%c120, %c0_19] : memref<224x96xf32, #tpu.memory_space<vmem>>, vector<8x96xf32>
    tpu.vector_store %arg9[%c120, %c0_19], %29 {strides = array<i32>} : memref<224x96xf32, #tpu.memory_space<vmem>>, vector<8x96xf32>,
    %31 = vector.extract_strided_slice %7 {offsets = [0, 960], sizes = [8, 96], strides = [1, 1]} : vector<8x1536xf32> to vector<8x96xf32>
    %c128 = arith.constant 128 : index
    %c0_20 = arith.constant 0 : index
    %32 = vector.load %arg9[%c128, %c0_20] : memref<224x96xf32, #tpu.memory_space<vmem>>, vector<8x96xf32>
    tpu.vector_store %arg9[%c128, %c0_20], %31 {strides = array<i32>} : memref<224x96xf32, #tpu.memory_space<vmem>>, vector<8x96xf32>,
    %33 = vector.extract_strided_slice %7 {offsets = [0, 1056], sizes = [8, 96], strides = [1, 1]} : vector<8x1536xf32> to vector<8x96xf32>
    %c136 = arith.constant 136 : index
    %c0_21 = arith.constant 0 : index
    %34 = vector.load %arg9[%c136, %c0_21] : memref<224x96xf32, #tpu.memory_space<vmem>>, vector<8x96xf32>
    tpu.vector_store %arg9[%c136, %c0_21], %33 {strides = array<i32>} : memref<224x96xf32, #tpu.memory_space<vmem>>, vector<8x96xf32>,
    %35 = vector.extract_strided_slice %7 {offsets = [0, 1152], sizes = [8, 96], strides = [1, 1]} : vector<8x1536xf32> to vector<8x96xf32>
    %c144 = arith.constant 144 : index
    %c0_22 = arith.constant 0 : index
    %36 = vector.load %arg9[%c144, %c0_22] : memref<224x96xf32, #tpu.memory_space<vmem>>, vector<8x96xf32>
    tpu.vector_store %arg9[%c144, %c0_22], %35 {strides = array<i32>} : memref<224x96xf32, #tpu.memory_space<vmem>>, vector<8x96xf32>,
    %37 = vector.extract_strided_slice %7 {offsets = [0, 1248], sizes = [8, 96], strides = [1, 1]} : vector<8x1536xf32> to vector<8x96xf32>
    %c152 = arith.constant 152 : index
    %c0_23 = arith.constant 0 : index
    %38 = vector.load %arg9[%c152, %c0_23] : memref<224x96xf32, #tpu.memory_space<vmem>>, vector<8x96xf32>
    tpu.vector_store %arg9[%c152, %c0_23], %37 {strides = array<i32>} : memref<224x96xf32, #tpu.memory_space<vmem>>, vector<8x96xf32>,
    %39 = vector.extract_strided_slice %7 {offsets = [0, 1344], sizes = [8, 96], strides = [1, 1]} : vector<8x1536xf32> to vector<8x96xf32>
    %c160 = arith.constant 160 : index
    %c0_24 = arith.constant 0 : index
    %40 = vector.load %arg9[%c160, %c0_24] : memref<224x96xf32, #tpu.memory_space<vmem>>, vector<8x96xf32>
    tpu.vector_store %arg9[%c160, %c0_24], %39 {strides = array<i32>} : memref<224x96xf32, #tpu.memory_space<vmem>>, vector<8x96xf32>,
    %41 = vector.extract_strided_slice %7 {offsets = [0, 1440], sizes = [8, 96], strides = [1, 1]} : vector<8x1536xf32> to vector<8x96xf32>
    %c168 = arith.constant 168 : index
    %c0_25 = arith.constant 0 : index
    %42 = vector.load %arg9[%c168, %c0_25] : memref<224x96xf32, #tpu.memory_space<vmem>>, vector<8x96xf32>
    tpu.vector_store %arg9[%c168, %c0_25], %41 {strides = array<i32>} : memref<224x96xf32, #tpu.memory_space<vmem>>, vector<8x96xf32>,
    %c0_26 = arith.constant 0 : index
    %c0_27 = arith.constant 0 : index
    %43 = vector.load %arg9[%c0_26, %c0_27] : memref<224x96xf32, #tpu.memory_space<vmem>>, vector<176x96xf32>
    %c0_28 = arith.constant 0 : index
    %c0_29 = arith.constant 0 : index
    %c0_30 = arith.constant 0 : index
    %44 = vector.load %arg4[%c0_28, %c0_29, %c0_30] : memref<7x96x264xf32, #tpu.memory_space<vmem>>, vector<1x96x264xf32>
    %45 = vector.shape_cast %44 : vector<1x96x264xf32> to vector<96x264xf32>
    %cst_31 = arith.constant dense<0.000000e+00> : vector<176x264xf32>
    %46 = tpu.matmul %43, %45, %cst_31 {dimension_numbers = #tpu.dot_dimension_numbers<[1], [0], [0], [1], [0, 0, 1, 1], [], []>} : vector<176x96xf32>, vector<96x264xf32>, vector<176x264xf32> -> vector<176x264xf32>
    %c8 = arith.constant 8 : index
    %c0_32 = arith.constant 0 : index
    %47 = vector.load %arg9[%c8, %c0_32] : memref<224x96xf32, #tpu.memory_space<vmem>>, vector<176x96xf32>
    %c1 = arith.constant 1 : index
    %c0_33 = arith.constant 0 : index
    %c0_34 = arith.constant 0 : index
    %48 = vector.load %arg4[%c1, %c0_33, %c0_34] : memref<7x96x264xf32, #tpu.memory_space<vmem>>, vector<1x96x264xf32>
    %49 = vector.shape_cast %48 : vector<1x96x264xf32> to vector<96x264xf32>
    %cst_35 = arith.constant dense<0.000000e+00> : vector<176x264xf32>
    %50 = tpu.matmul %47, %49, %cst_35 {dimension_numbers = #tpu.dot_dimension_numbers<[1], [0], [0], [1], [0, 0, 1, 1], [], []>} : vector<176x96xf32>, vector<96x264xf32>, vector<176x264xf32> -> vector<176x264xf32>
    %51 = arith.addf %46, %50 : vector<176x264xf32>
    %c16 = arith.constant 16 : index
    %c0_36 = arith.constant 0 : index
    %52 = vector.load %arg9[%c16, %c0_36] : memref<224x96xf32, #tpu.memory_space<vmem>>, vector<176x96xf32>
    %c2 = arith.constant 2 : index
    %c0_37 = arith.constant 0 : index
    %c0_38 = arith.constant 0 : index
    %53 = vector.load %arg4[%c2, %c0_37, %c0_38] : memref<7x96x264xf32, #tpu.memory_space<vmem>>, vector<1x96x264xf32>
    %54 = vector.shape_cast %53 : vector<1x96x264xf32> to vector<96x264xf32>
    %cst_39 = arith.constant dense<0.000000e+00> : vector<176x264xf32>
    %55 = tpu.matmul %52, %54, %cst_39 {dimension_numbers = #tpu.dot_dimension_numbers<[1], [0], [0], [1], [0, 0, 1, 1], [], []>} : vector<176x96xf32>, vector<96x264xf32>, vector<176x264xf32> -> vector<176x264xf32>
    %56 = arith.addf %51, %55 : vector<176x264xf32>
    %c24 = arith.constant 24 : index
    %c0_40 = arith.constant 0 : index
    %57 = vector.load %arg9[%c24, %c0_40] : memref<224x96xf32, #tpu.memory_space<vmem>>, vector<176x96xf32>
    %c3 = arith.constant 3 : index
    %c0_41 = arith.constant 0 : index
    %c0_42 = arith.constant 0 : index
    %58 = vector.load %arg4[%c3, %c0_41, %c0_42] : memref<7x96x264xf32, #tpu.memory_space<vmem>>, vector<1x96x264xf32>
    %59 = vector.shape_cast %58 : vector<1x96x264xf32> to vector<96x264xf32>
    %cst_43 = arith.constant dense<0.000000e+00> : vector<176x264xf32>
    %60 = tpu.matmul %57, %59, %cst_43 {dimension_numbers = #tpu.dot_dimension_numbers<[1], [0], [0], [1], [0, 0, 1, 1], [], []>} : vector<176x96xf32>, vector<96x264xf32>, vector<176x264xf32> -> vector<176x264xf32>
    %61 = arith.addf %56, %60 : vector<176x264xf32>
    %c32 = arith.constant 32 : index
    %c0_44 = arith.constant 0 : index
    %62 = vector.load %arg9[%c32, %c0_44] : memref<224x96xf32, #tpu.memory_space<vmem>>, vector<176x96xf32>
    %c4 = arith.constant 4 : index
    %c0_45 = arith.constant 0 : index
    %c0_46 = arith.constant 0 : index
    %63 = vector.load %arg4[%c4, %c0_45, %c0_46] : memref<7x96x264xf32, #tpu.memory_space<vmem>>, vector<1x96x264xf32>
    %64 = vector.shape_cast %63 : vector<1x96x264xf32> to vector<96x264xf32>
    %cst_47 = arith.constant dense<0.000000e+00> : vector<176x264xf32>
    %65 = tpu.matmul %62, %64, %cst_47 {dimension_numbers = #tpu.dot_dimension_numbers<[1], [0], [0], [1], [0, 0, 1, 1], [], []>} : vector<176x96xf32>, vector<96x264xf32>, vector<176x264xf32> -> vector<176x264xf32>
    %66 = arith.addf %61, %65 : vector<176x264xf32>
    %c40 = arith.constant 40 : index
    %c0_48 = arith.constant 0 : index
    %67 = vector.load %arg9[%c40, %c0_48] : memref<224x96xf32, #tpu.memory_space<vmem>>, vector<176x96xf32>
    %c5 = arith.constant 5 : index
    %c0_49 = arith.constant 0 : index
    %c0_50 = arith.constant 0 : index
    %68 = vector.load %arg4[%c5, %c0_49, %c0_50] : memref<7x96x264xf32, #tpu.memory_space<vmem>>, vector<1x96x264xf32>
    %69 = vector.shape_cast %68 : vector<1x96x264xf32> to vector<96x264xf32>
    %cst_51 = arith.constant dense<0.000000e+00> : vector<176x264xf32>
    %70 = tpu.matmul %67, %69, %cst_51 {dimension_numbers = #tpu.dot_dimension_numbers<[1], [0], [0], [1], [0, 0, 1, 1], [], []>} : vector<176x96xf32>, vector<96x264xf32>, vector<176x264xf32> -> vector<176x264xf32>
    %71 = arith.addf %66, %70 : vector<176x264xf32>
    %c48_52 = arith.constant 48 : index
    %c0_53 = arith.constant 0 : index
    %72 = vector.load %arg9[%c48_52, %c0_53] : memref<224x96xf32, #tpu.memory_space<vmem>>, vector<176x96xf32>
    %c6 = arith.constant 6 : index
    %c0_54 = arith.constant 0 : index
    %c0_55 = arith.constant 0 : index
    %73 = vector.load %arg4[%c6, %c0_54, %c0_55] : memref<7x96x264xf32, #tpu.memory_space<vmem>>, vector<1x96x264xf32>
    %74 = vector.shape_cast %73 : vector<1x96x264xf32> to vector<96x264xf32>
    %cst_56 = arith.constant dense<0.000000e+00> : vector<176x264xf32>
    %75 = tpu.matmul %72, %74, %cst_56 {dimension_numbers = #tpu.dot_dimension_numbers<[1], [0], [0], [1], [0, 0, 1, 1], [], []>} : vector<176x96xf32>, vector<96x264xf32>, vector<176x264xf32> -> vector<176x264xf32>
    %76 = arith.addf %71, %75 : vector<176x264xf32>
    %c0_57 = arith.constant 0 : index
    %c0_58 = arith.constant 0 : index
    %77 = vector.load %arg5[%c0_57, %c0_58] : memref<1x264xf32, #tpu.memory_space<vmem>>, vector<1x264xf32>
    %78 = vector.broadcast %77 : vector<1x264xf32> to vector<176x264xf32>
    %79 = arith.addf %76, %78 : vector<176x264xf32>
    %cst_59 = arith.constant 0.000000e+00 : f32
    %80 = vector.broadcast %cst_59 : f32 to vector<176x264xf32>
    %81 = arith.maximumf %79, %80 : vector<176x264xf32>
    %cst_60 = arith.constant 0.000000e+00 : f32
    %82 = vector.broadcast %cst_60 : f32 to vector<48x196xf32>
    %c0_61 = arith.constant 0 : index
    %c0_62 = arith.constant 0 : index
    %83 = vector.load %arg10[%c0_61, %c0_62] : memref<272x196xf32, #tpu.memory_space<vmem>>, vector<48x196xf32>
    tpu.vector_store %arg10[%c0_61, %c0_62], %82 {strides = array<i32>} : memref<272x196xf32, #tpu.memory_space<vmem>>, vector<48x196xf32>,
    %c224 = arith.constant 224 : index
    %c0_63 = arith.constant 0 : index
    %84 = vector.load %arg10[%c224, %c0_63] : memref<272x196xf32, #tpu.memory_space<vmem>>, vector<48x196xf32>
    tpu.vector_store %arg10[%c224, %c0_63], %82 {strides = array<i32>} : memref<272x196xf32, #tpu.memory_space<vmem>>, vector<48x196xf32>,
    %c0_64 = arith.constant 0 : index
    %c0_65 = arith.constant 0 : index
    %85 = vector.load %arg6[%c0_64, %c0_65] : memref<264x196xf32, #tpu.memory_space<vmem>>, vector<264x196xf32>
    %cst_66 = arith.constant dense<0.000000e+00> : vector<176x196xf32>
    %86 = tpu.matmul %81, %85, %cst_66 {dimension_numbers = #tpu.dot_dimension_numbers<[1], [0], [0], [1], [0, 0, 1, 1], [], []>} : vector<176x264xf32>, vector<264x196xf32>, vector<176x196xf32> -> vector<176x196xf32>
    %c48_67 = arith.constant 48 : index
    %c0_68 = arith.constant 0 : index
    %87 = vector.load %arg10[%c48_67, %c0_68] : memref<272x196xf32, #tpu.memory_space<vmem>>, vector<176x196xf32>
    tpu.vector_store %arg10[%c48_67, %c0_68], %86 {strides = array<i32>} : memref<272x196xf32, #tpu.memory_space<vmem>>, vector<176x196xf32>,
    %c0_69 = arith.constant 0 : index
    %c0_70 = arith.constant 0 : index
    %88 = vector.load %arg7[%c0_69, %c0_70] : memref<1x1xf32, #tpu.memory_space<vmem>>, vector<1x1xf32>
    %c48_71 = arith.constant 48 : index
    %c0_72 = arith.constant 0 : index
    %89 = vector.load %arg10[%c48_71, %c0_72] : memref<272x196xf32, #tpu.memory_space<vmem>>, vector<8x28xf32>
    %c40_73 = arith.constant 40 : index
    %c28 = arith.constant 28 : index
    %90 = vector.load %arg10[%c40_73, %c28] : memref<272x196xf32, #tpu.memory_space<vmem>>, vector<8x28xf32>
    %91 = arith.addf %89, %90 : vector<8x28xf32>
    %c32_74 = arith.constant 32 : index
    %c56_75 = arith.constant 56 : index
    %92 = vector.load %arg10[%c32_74, %c56_75] : memref<272x196xf32, #tpu.memory_space<vmem>>, vector<8x28xf32>
    %93 = arith.addf %91, %92 : vector<8x28xf32>
    %c24_76 = arith.constant 24 : index
    %c84 = arith.constant 84 : index
    %94 = vector.load %arg10[%c24_76, %c84] : memref<272x196xf32, #tpu.memory_space<vmem>>, vector<8x28xf32>
    %95 = arith.addf %93, %94 : vector<8x28xf32>
    %c16_77 = arith.constant 16 : index
    %c112_78 = arith.constant 112 : index
    %96 = vector.load %arg10[%c16_77, %c112_78] : memref<272x196xf32, #tpu.memory_space<vmem>>, vector<8x28xf32>
    %97 = arith.addf %95, %96 : vector<8x28xf32>
    %c8_79 = arith.constant 8 : index
    %c140 = arith.constant 140 : index
    %98 = vector.load %arg10[%c8_79, %c140] : memref<272x196xf32, #tpu.memory_space<vmem>>, vector<8x28xf32>
    %99 = arith.addf %97, %98 : vector<8x28xf32>
    %c0_80 = arith.constant 0 : index
    %c168_81 = arith.constant 168 : index
    %100 = vector.load %arg10[%c0_80, %c168_81] : memref<272x196xf32, #tpu.memory_space<vmem>>, vector<8x28xf32>
    %101 = arith.addf %99, %100 : vector<8x28xf32>
    %102 = vector.broadcast %88 : vector<1x1xf32> to vector<8x28xf32>
    %103 = arith.addf %101, %102 : vector<8x28xf32>
    %104 = arith.negf %103 : vector<8x28xf32>
    %105 = math.exp %104 : vector<8x28xf32>
    %cst_82 = arith.constant 1.000000e+00 : f32
    %106 = vector.broadcast %cst_82 : f32 to vector<8x28xf32>
    %107 = arith.addf %106, %105 : vector<8x28xf32>
    %108 = arith.divf %106, %107 : vector<8x28xf32>
    %c0_83 = arith.constant 0 : index
    %c0_84 = arith.constant 0 : index
    %109 = vector.load %arg8[%c0_83, %c0_84] : memref<8x784xf32, #tpu.memory_space<vmem>>, vector<8x28xf32>
    tpu.vector_store %arg8[%c0_83, %c0_84], %108 {strides = array<i32>} : memref<8x784xf32, #tpu.memory_space<vmem>>, vector<8x28xf32>,
    %c56_85 = arith.constant 56 : index
    %c0_86 = arith.constant 0 : index
    %110 = vector.load %arg10[%c56_85, %c0_86] : memref<272x196xf32, #tpu.memory_space<vmem>>, vector<8x28xf32>
    %c48_87 = arith.constant 48 : index
    %c28_88 = arith.constant 28 : index
    %111 = vector.load %arg10[%c48_87, %c28_88] : memref<272x196xf32, #tpu.memory_space<vmem>>, vector<8x28xf32>
    %112 = arith.addf %110, %111 : vector<8x28xf32>
    %c40_89 = arith.constant 40 : index
    %c56_90 = arith.constant 56 : index
    %113 = vector.load %arg10[%c40_89, %c56_90] : memref<272x196xf32, #tpu.memory_space<vmem>>, vector<8x28xf32>
    %114 = arith.addf %112, %113 : vector<8x28xf32>
    %c32_91 = arith.constant 32 : index
    %c84_92 = arith.constant 84 : index
    %115 = vector.load %arg10[%c32_91, %c84_92] : memref<272x196xf32, #tpu.memory_space<vmem>>, vector<8x28xf32>
    %116 = arith.addf %114, %115 : vector<8x28xf32>
    %c24_93 = arith.constant 24 : index
    %c112_94 = arith.constant 112 : index
    %117 = vector.load %arg10[%c24_93, %c112_94] : memref<272x196xf32, #tpu.memory_space<vmem>>, vector<8x28xf32>
    %118 = arith.addf %116, %117 : vector<8x28xf32>
    %c16_95 = arith.constant 16 : index
    %c140_96 = arith.constant 140 : index
    %119 = vector.load %arg10[%c16_95, %c140_96] : memref<272x196xf32, #tpu.memory_space<vmem>>, vector<8x28xf32>
    %120 = arith.addf %118, %119 : vector<8x28xf32>
    %c8_97 = arith.constant 8 : index
    %c168_98 = arith.constant 168 : index
    %121 = vector.load %arg10[%c8_97, %c168_98] : memref<272x196xf32, #tpu.memory_space<vmem>>, vector<8x28xf32>
    %122 = arith.addf %120, %121 : vector<8x28xf32>
    %123 = vector.broadcast %88 : vector<1x1xf32> to vector<8x28xf32>
    %124 = arith.addf %122, %123 : vector<8x28xf32>
    %125 = arith.negf %124 : vector<8x28xf32>
    %126 = math.exp %125 : vector<8x28xf32>
    %cst_99 = arith.constant 1.000000e+00 : f32
    %127 = vector.broadcast %cst_99 : f32 to vector<8x28xf32>
    %128 = arith.addf %127, %126 : vector<8x28xf32>
    %129 = arith.divf %127, %128 : vector<8x28xf32>
    %c0_100 = arith.constant 0 : index
    %c28_101 = arith.constant 28 : index
    %130 = vector.load %arg8[%c0_100, %c28_101] : memref<8x784xf32, #tpu.memory_space<vmem>>, vector<8x28xf32>
    tpu.vector_store %arg8[%c0_100, %c28_101], %129 {strides = array<i32>} : memref<8x784xf32, #tpu.memory_space<vmem>>, vector<8x28xf32>,
    %c64_102 = arith.constant 64 : index
    %c0_103 = arith.constant 0 : index
    %131 = vector.load %arg10[%c64_102, %c0_103] : memref<272x196xf32, #tpu.memory_space<vmem>>, vector<8x28xf32>
    %c56_104 = arith.constant 56 : index
    %c28_105 = arith.constant 28 : index
    %132 = vector.load %arg10[%c56_104, %c28_105] : memref<272x196xf32, #tpu.memory_space<vmem>>, vector<8x28xf32>
    %133 = arith.addf %131, %132 : vector<8x28xf32>
    %c48_106 = arith.constant 48 : index
    %c56_107 = arith.constant 56 : index
    %134 = vector.load %arg10[%c48_106, %c56_107] : memref<272x196xf32, #tpu.memory_space<vmem>>, vector<8x28xf32>
    %135 = arith.addf %133, %134 : vector<8x28xf32>
    %c40_108 = arith.constant 40 : index
    %c84_109 = arith.constant 84 : index
    %136 = vector.load %arg10[%c40_108, %c84_109] : memref<272x196xf32, #tpu.memory_space<vmem>>, vector<8x28xf32>
    %137 = arith.addf %135, %136 : vector<8x28xf32>
    %c32_110 = arith.constant 32 : index
    %c112_111 = arith.constant 112 : index
    %138 = vector.load %arg10[%c32_110, %c112_111] : memref<272x196xf32, #tpu.memory_space<vmem>>, vector<8x28xf32>
    %139 = arith.addf %137, %138 : vector<8x28xf32>
    %c24_112 = arith.constant 24 : index
    %c140_113 = arith.constant 140 : index
    %140 = vector.load %arg10[%c24_112, %c140_113] : memref<272x196xf32, #tpu.memory_space<vmem>>, vector<8x28xf32>
    %141 = arith.addf %139, %140 : vector<8x28xf32>
    %c16_114 = arith.constant 16 : index
    %c168_115 = arith.constant 168 : index
    %142 = vector.load %arg10[%c16_114, %c168_115] : memref<272x196xf32, #tpu.memory_space<vmem>>, vector<8x28xf32>
    %143 = arith.addf %141, %142 : vector<8x28xf32>
    %144 = vector.broadcast %88 : vector<1x1xf32> to vector<8x28xf32>
    %145 = arith.addf %143, %144 : vector<8x28xf32>
    %146 = arith.negf %145 : vector<8x28xf32>
    %147 = math.exp %146 : vector<8x28xf32>
    %cst_116 = arith.constant 1.000000e+00 : f32
    %148 = vector.broadcast %cst_116 : f32 to vector<8x28xf32>
    %149 = arith.addf %148, %147 : vector<8x28xf32>
    %150 = arith.divf %148, %149 : vector<8x28xf32>
    %c0_117 = arith.constant 0 : index
    %c56_118 = arith.constant 56 : index
    %151 = vector.load %arg8[%c0_117, %c56_118] : memref<8x784xf32, #tpu.memory_space<vmem>>, vector<8x28xf32>
    tpu.vector_store %arg8[%c0_117, %c56_118], %150 {strides = array<i32>} : memref<8x784xf32, #tpu.memory_space<vmem>>, vector<8x28xf32>,
    %c72_119 = arith.constant 72 : index
    %c0_120 = arith.constant 0 : index
    %152 = vector.load %arg10[%c72_119, %c0_120] : memref<272x196xf32, #tpu.memory_space<vmem>>, vector<8x28xf32>
    %c64_121 = arith.constant 64 : index
    %c28_122 = arith.constant 28 : index
    %153 = vector.load %arg10[%c64_121, %c28_122] : memref<272x196xf32, #tpu.memory_space<vmem>>, vector<8x28xf32>
    %154 = arith.addf %152, %153 : vector<8x28xf32>
    %c56_123 = arith.constant 56 : index
    %c56_124 = arith.constant 56 : index
    %155 = vector.load %arg10[%c56_123, %c56_124] : memref<272x196xf32, #tpu.memory_space<vmem>>, vector<8x28xf32>
    %156 = arith.addf %154, %155 : vector<8x28xf32>
    %c48_125 = arith.constant 48 : index
    %c84_126 = arith.constant 84 : index
    %157 = vector.load %arg10[%c48_125, %c84_126] : memref<272x196xf32, #tpu.memory_space<vmem>>, vector<8x28xf32>
    %158 = arith.addf %156, %157 : vector<8x28xf32>
    %c40_127 = arith.constant 40 : index
    %c112_128 = arith.constant 112 : index
    %159 = vector.load %arg10[%c40_127, %c112_128] : memref<272x196xf32, #tpu.memory_space<vmem>>, vector<8x28xf32>
    %160 = arith.addf %158, %159 : vector<8x28xf32>
    %c32_129 = arith.constant 32 : index
    %c140_130 = arith.constant 140 : index
    %161 = vector.load %arg10[%c32_129, %c140_130] : memref<272x196xf32, #tpu.memory_space<vmem>>, vector<8x28xf32>
    %162 = arith.addf %160, %161 : vector<8x28xf32>
    %c24_131 = arith.constant 24 : index
    %c168_132 = arith.constant 168 : index
    %163 = vector.load %arg10[%c24_131, %c168_132] : memref<272x196xf32, #tpu.memory_space<vmem>>, vector<8x28xf32>
    %164 = arith.addf %162, %163 : vector<8x28xf32>
    %165 = vector.broadcast %88 : vector<1x1xf32> to vector<8x28xf32>
    %166 = arith.addf %164, %165 : vector<8x28xf32>
    %167 = arith.negf %166 : vector<8x28xf32>
    %168 = math.exp %167 : vector<8x28xf32>
    %cst_133 = arith.constant 1.000000e+00 : f32
    %169 = vector.broadcast %cst_133 : f32 to vector<8x28xf32>
    %170 = arith.addf %169, %168 : vector<8x28xf32>
    %171 = arith.divf %169, %170 : vector<8x28xf32>
    %c0_134 = arith.constant 0 : index
    %c84_135 = arith.constant 84 : index
    %172 = vector.load %arg8[%c0_134, %c84_135] : memref<8x784xf32, #tpu.memory_space<vmem>>, vector<8x28xf32>
    tpu.vector_store %arg8[%c0_134, %c84_135], %171 {strides = array<i32>} : memref<8x784xf32, #tpu.memory_space<vmem>>, vector<8x28xf32>,
    %c80_136 = arith.constant 80 : index
    %c0_137 = arith.constant 0 : index
    %173 = vector.load %arg10[%c80_136, %c0_137] : memref<272x196xf32, #tpu.memory_space<vmem>>, vector<8x28xf32>
    %c72_138 = arith.constant 72 : index
    %c28_139 = arith.constant 28 : index
    %174 = vector.load %arg10[%c72_138, %c28_139] : memref<272x196xf32, #tpu.memory_space<vmem>>, vector<8x28xf32>
    %175 = arith.addf %173, %174 : vector<8x28xf32>
    %c64_140 = arith.constant 64 : index
    %c56_141 = arith.constant 56 : index
    %176 = vector.load %arg10[%c64_140, %c56_141] : memref<272x196xf32, #tpu.memory_space<vmem>>, vector<8x28xf32>
    %177 = arith.addf %175, %176 : vector<8x28xf32>
    %c56_142 = arith.constant 56 : index
    %c84_143 = arith.constant 84 : index
    %178 = vector.load %arg10[%c56_142, %c84_143] : memref<272x196xf32, #tpu.memory_space<vmem>>, vector<8x28xf32>
    %179 = arith.addf %177, %178 : vector<8x28xf32>
    %c48_144 = arith.constant 48 : index
    %c112_145 = arith.constant 112 : index
    %180 = vector.load %arg10[%c48_144, %c112_145] : memref<272x196xf32, #tpu.memory_space<vmem>>, vector<8x28xf32>
    %181 = arith.addf %179, %180 : vector<8x28xf32>
    %c40_146 = arith.constant 40 : index
    %c140_147 = arith.constant 140 : index
    %182 = vector.load %arg10[%c40_146, %c140_147] : memref<272x196xf32, #tpu.memory_space<vmem>>, vector<8x28xf32>
    %183 = arith.addf %181, %182 : vector<8x28xf32>
    %c32_148 = arith.constant 32 : index
    %c168_149 = arith.constant 168 : index
    %184 = vector.load %arg10[%c32_148, %c168_149] : memref<272x196xf32, #tpu.memory_space<vmem>>, vector<8x28xf32>
    %185 = arith.addf %183, %184 : vector<8x28xf32>
    %186 = vector.broadcast %88 : vector<1x1xf32> to vector<8x28xf32>
    %187 = arith.addf %185, %186 : vector<8x28xf32>
    %188 = arith.negf %187 : vector<8x28xf32>
    %189 = math.exp %188 : vector<8x28xf32>
    %cst_150 = arith.constant 1.000000e+00 : f32
    %190 = vector.broadcast %cst_150 : f32 to vector<8x28xf32>
    %191 = arith.addf %190, %189 : vector<8x28xf32>
    %192 = arith.divf %190, %191 : vector<8x28xf32>
    %c0_151 = arith.constant 0 : index
    %c112_152 = arith.constant 112 : index
    %193 = vector.load %arg8[%c0_151, %c112_152] : memref<8x784xf32, #tpu.memory_space<vmem>>, vector<8x28xf32>
    tpu.vector_store %arg8[%c0_151, %c112_152], %192 {strides = array<i32>} : memref<8x784xf32, #tpu.memory_space<vmem>>, vector<8x28xf32>,
    %c88_153 = arith.constant 88 : index
    %c0_154 = arith.constant 0 : index
    %194 = vector.load %arg10[%c88_153, %c0_154] : memref<272x196xf32, #tpu.memory_space<vmem>>, vector<8x28xf32>
    %c80_155 = arith.constant 80 : index
    %c28_156 = arith.constant 28 : index
    %195 = vector.load %arg10[%c80_155, %c28_156] : memref<272x196xf32, #tpu.memory_space<vmem>>, vector<8x28xf32>
    %196 = arith.addf %194, %195 : vector<8x28xf32>
    %c72_157 = arith.constant 72 : index
    %c56_158 = arith.constant 56 : index
    %197 = vector.load %arg10[%c72_157, %c56_158] : memref<272x196xf32, #tpu.memory_space<vmem>>, vector<8x28xf32>
    %198 = arith.addf %196, %197 : vector<8x28xf32>
    %c64_159 = arith.constant 64 : index
    %c84_160 = arith.constant 84 : index
    %199 = vector.load %arg10[%c64_159, %c84_160] : memref<272x196xf32, #tpu.memory_space<vmem>>, vector<8x28xf32>
    %200 = arith.addf %198, %199 : vector<8x28xf32>
    %c56_161 = arith.constant 56 : index
    %c112_162 = arith.constant 112 : index
    %201 = vector.load %arg10[%c56_161, %c112_162] : memref<272x196xf32, #tpu.memory_space<vmem>>, vector<8x28xf32>
    %202 = arith.addf %200, %201 : vector<8x28xf32>
    %c48_163 = arith.constant 48 : index
    %c140_164 = arith.constant 140 : index
    %203 = vector.load %arg10[%c48_163, %c140_164] : memref<272x196xf32, #tpu.memory_space<vmem>>, vector<8x28xf32>
    %204 = arith.addf %202, %203 : vector<8x28xf32>
    %c40_165 = arith.constant 40 : index
    %c168_166 = arith.constant 168 : index
    %205 = vector.load %arg10[%c40_165, %c168_166] : memref<272x196xf32, #tpu.memory_space<vmem>>, vector<8x28xf32>
    %206 = arith.addf %204, %205 : vector<8x28xf32>
    %207 = vector.broadcast %88 : vector<1x1xf32> to vector<8x28xf32>
    %208 = arith.addf %206, %207 : vector<8x28xf32>
    %209 = arith.negf %208 : vector<8x28xf32>
    %210 = math.exp %209 : vector<8x28xf32>
    %cst_167 = arith.constant 1.000000e+00 : f32
    %211 = vector.broadcast %cst_167 : f32 to vector<8x28xf32>
    %212 = arith.addf %211, %210 : vector<8x28xf32>
    %213 = arith.divf %211, %212 : vector<8x28xf32>
    %c0_168 = arith.constant 0 : index
    %c140_169 = arith.constant 140 : index
    %214 = vector.load %arg8[%c0_168, %c140_169] : memref<8x784xf32, #tpu.memory_space<vmem>>, vector<8x28xf32>
    tpu.vector_store %arg8[%c0_168, %c140_169], %213 {strides = array<i32>} : memref<8x784xf32, #tpu.memory_space<vmem>>, vector<8x28xf32>,
    %c96_170 = arith.constant 96 : index
    %c0_171 = arith.constant 0 : index
    %215 = vector.load %arg10[%c96_170, %c0_171] : memref<272x196xf32, #tpu.memory_space<vmem>>, vector<8x28xf32>
    %c88_172 = arith.constant 88 : index
    %c28_173 = arith.constant 28 : index
    %216 = vector.load %arg10[%c88_172, %c28_173] : memref<272x196xf32, #tpu.memory_space<vmem>>, vector<8x28xf32>
    %217 = arith.addf %215, %216 : vector<8x28xf32>
    %c80_174 = arith.constant 80 : index
    %c56_175 = arith.constant 56 : index
    %218 = vector.load %arg10[%c80_174, %c56_175] : memref<272x196xf32, #tpu.memory_space<vmem>>, vector<8x28xf32>
    %219 = arith.addf %217, %218 : vector<8x28xf32>
    %c72_176 = arith.constant 72 : index
    %c84_177 = arith.constant 84 : index
    %220 = vector.load %arg10[%c72_176, %c84_177] : memref<272x196xf32, #tpu.memory_space<vmem>>, vector<8x28xf32>
    %221 = arith.addf %219, %220 : vector<8x28xf32>
    %c64_178 = arith.constant 64 : index
    %c112_179 = arith.constant 112 : index
    %222 = vector.load %arg10[%c64_178, %c112_179] : memref<272x196xf32, #tpu.memory_space<vmem>>, vector<8x28xf32>
    %223 = arith.addf %221, %222 : vector<8x28xf32>
    %c56_180 = arith.constant 56 : index
    %c140_181 = arith.constant 140 : index
    %224 = vector.load %arg10[%c56_180, %c140_181] : memref<272x196xf32, #tpu.memory_space<vmem>>, vector<8x28xf32>
    %225 = arith.addf %223, %224 : vector<8x28xf32>
    %c48_182 = arith.constant 48 : index
    %c168_183 = arith.constant 168 : index
    %226 = vector.load %arg10[%c48_182, %c168_183] : memref<272x196xf32, #tpu.memory_space<vmem>>, vector<8x28xf32>
    %227 = arith.addf %225, %226 : vector<8x28xf32>
    %228 = vector.broadcast %88 : vector<1x1xf32> to vector<8x28xf32>
    %229 = arith.addf %227, %228 : vector<8x28xf32>
    %230 = arith.negf %229 : vector<8x28xf32>
    %231 = math.exp %230 : vector<8x28xf32>
    %cst_184 = arith.constant 1.000000e+00 : f32
    %232 = vector.broadcast %cst_184 : f32 to vector<8x28xf32>
    %233 = arith.addf %232, %231 : vector<8x28xf32>
    %234 = arith.divf %232, %233 : vector<8x28xf32>
    %c0_185 = arith.constant 0 : index
    %c168_186 = arith.constant 168 : index
    %235 = vector.load %arg8[%c0_185, %c168_186] : memref<8x784xf32, #tpu.memory_space<vmem>>, vector<8x28xf32>
    tpu.vector_store %arg8[%c0_185, %c168_186], %234 {strides = array<i32>} : memref<8x784xf32, #tpu.memory_space<vmem>>, vector<8x28xf32>,
    %c104_187 = arith.constant 104 : index
    %c0_188 = arith.constant 0 : index
    %236 = vector.load %arg10[%c104_187, %c0_188] : memref<272x196xf32, #tpu.memory_space<vmem>>, vector<8x28xf32>
    %c96_189 = arith.constant 96 : index
    %c28_190 = arith.constant 28 : index
    %237 = vector.load %arg10[%c96_189, %c28_190] : memref<272x196xf32, #tpu.memory_space<vmem>>, vector<8x28xf32>
    %238 = arith.addf %236, %237 : vector<8x28xf32>
    %c88_191 = arith.constant 88 : index
    %c56_192 = arith.constant 56 : index
    %239 = vector.load %arg10[%c88_191, %c56_192] : memref<272x196xf32, #tpu.memory_space<vmem>>, vector<8x28xf32>
    %240 = arith.addf %238, %239 : vector<8x28xf32>
    %c80_193 = arith.constant 80 : index
    %c84_194 = arith.constant 84 : index
    %241 = vector.load %arg10[%c80_193, %c84_194] : memref<272x196xf32, #tpu.memory_space<vmem>>, vector<8x28xf32>
    %242 = arith.addf %240, %241 : vector<8x28xf32>
    %c72_195 = arith.constant 72 : index
    %c112_196 = arith.constant 112 : index
    %243 = vector.load %arg10[%c72_195, %c112_196] : memref<272x196xf32, #tpu.memory_space<vmem>>, vector<8x28xf32>
    %244 = arith.addf %242, %243 : vector<8x28xf32>
    %c64_197 = arith.constant 64 : index
    %c140_198 = arith.constant 140 : index
    %245 = vector.load %arg10[%c64_197, %c140_198] : memref<272x196xf32, #tpu.memory_space<vmem>>, vector<8x28xf32>
    %246 = arith.addf %244, %245 : vector<8x28xf32>
    %c56_199 = arith.constant 56 : index
    %c168_200 = arith.constant 168 : index
    %247 = vector.load %arg10[%c56_199, %c168_200] : memref<272x196xf32, #tpu.memory_space<vmem>>, vector<8x28xf32>
    %248 = arith.addf %246, %247 : vector<8x28xf32>
    %249 = vector.broadcast %88 : vector<1x1xf32> to vector<8x28xf32>
    %250 = arith.addf %248, %249 : vector<8x28xf32>
    %251 = arith.negf %250 : vector<8x28xf32>
    %252 = math.exp %251 : vector<8x28xf32>
    %cst_201 = arith.constant 1.000000e+00 : f32
    %253 = vector.broadcast %cst_201 : f32 to vector<8x28xf32>
    %254 = arith.addf %253, %252 : vector<8x28xf32>
    %255 = arith.divf %253, %254 : vector<8x28xf32>
    %c0_202 = arith.constant 0 : index
    %c196 = arith.constant 196 : index
    %256 = vector.load %arg8[%c0_202, %c196] : memref<8x784xf32, #tpu.memory_space<vmem>>, vector<8x28xf32>
    tpu.vector_store %arg8[%c0_202, %c196], %255 {strides = array<i32>} : memref<8x784xf32, #tpu.memory_space<vmem>>, vector<8x28xf32>,
    %c112_203 = arith.constant 112 : index
    %c0_204 = arith.constant 0 : index
    %257 = vector.load %arg10[%c112_203, %c0_204] : memref<272x196xf32, #tpu.memory_space<vmem>>, vector<8x28xf32>
    %c104_205 = arith.constant 104 : index
    %c28_206 = arith.constant 28 : index
    %258 = vector.load %arg10[%c104_205, %c28_206] : memref<272x196xf32, #tpu.memory_space<vmem>>, vector<8x28xf32>
    %259 = arith.addf %257, %258 : vector<8x28xf32>
    %c96_207 = arith.constant 96 : index
    %c56_208 = arith.constant 56 : index
    %260 = vector.load %arg10[%c96_207, %c56_208] : memref<272x196xf32, #tpu.memory_space<vmem>>, vector<8x28xf32>
    %261 = arith.addf %259, %260 : vector<8x28xf32>
    %c88_209 = arith.constant 88 : index
    %c84_210 = arith.constant 84 : index
    %262 = vector.load %arg10[%c88_209, %c84_210] : memref<272x196xf32, #tpu.memory_space<vmem>>, vector<8x28xf32>
    %263 = arith.addf %261, %262 : vector<8x28xf32>
    %c80_211 = arith.constant 80 : index
    %c112_212 = arith.constant 112 : index
    %264 = vector.load %arg10[%c80_211, %c112_212] : memref<272x196xf32, #tpu.memory_space<vmem>>, vector<8x28xf32>
    %265 = arith.addf %263, %264 : vector<8x28xf32>
    %c72_213 = arith.constant 72 : index
    %c140_214 = arith.constant 140 : index
    %266 = vector.load %arg10[%c72_213, %c140_214] : memref<272x196xf32, #tpu.memory_space<vmem>>, vector<8x28xf32>
    %267 = arith.addf %265, %266 : vector<8x28xf32>
    %c64_215 = arith.constant 64 : index
    %c168_216 = arith.constant 168 : index
    %268 = vector.load %arg10[%c64_215, %c168_216] : memref<272x196xf32, #tpu.memory_space<vmem>>, vector<8x28xf32>
    %269 = arith.addf %267, %268 : vector<8x28xf32>
    %270 = vector.broadcast %88 : vector<1x1xf32> to vector<8x28xf32>
    %271 = arith.addf %269, %270 : vector<8x28xf32>
    %272 = arith.negf %271 : vector<8x28xf32>
    %273 = math.exp %272 : vector<8x28xf32>
    %cst_217 = arith.constant 1.000000e+00 : f32
    %274 = vector.broadcast %cst_217 : f32 to vector<8x28xf32>
    %275 = arith.addf %274, %273 : vector<8x28xf32>
    %276 = arith.divf %274, %275 : vector<8x28xf32>
    %c0_218 = arith.constant 0 : index
    %c224_219 = arith.constant 224 : index
    %277 = vector.load %arg8[%c0_218, %c224_219] : memref<8x784xf32, #tpu.memory_space<vmem>>, vector<8x28xf32>
    tpu.vector_store %arg8[%c0_218, %c224_219], %276 {strides = array<i32>} : memref<8x784xf32, #tpu.memory_space<vmem>>, vector<8x28xf32>,
    %c120_220 = arith.constant 120 : index
    %c0_221 = arith.constant 0 : index
    %278 = vector.load %arg10[%c120_220, %c0_221] : memref<272x196xf32, #tpu.memory_space<vmem>>, vector<8x28xf32>
    %c112_222 = arith.constant 112 : index
    %c28_223 = arith.constant 28 : index
    %279 = vector.load %arg10[%c112_222, %c28_223] : memref<272x196xf32, #tpu.memory_space<vmem>>, vector<8x28xf32>
    %280 = arith.addf %278, %279 : vector<8x28xf32>
    %c104_224 = arith.constant 104 : index
    %c56_225 = arith.constant 56 : index
    %281 = vector.load %arg10[%c104_224, %c56_225] : memref<272x196xf32, #tpu.memory_space<vmem>>, vector<8x28xf32>
    %282 = arith.addf %280, %281 : vector<8x28xf32>
    %c96_226 = arith.constant 96 : index
    %c84_227 = arith.constant 84 : index
    %283 = vector.load %arg10[%c96_226, %c84_227] : memref<272x196xf32, #tpu.memory_space<vmem>>, vector<8x28xf32>
    %284 = arith.addf %282, %283 : vector<8x28xf32>
    %c88_228 = arith.constant 88 : index
    %c112_229 = arith.constant 112 : index
    %285 = vector.load %arg10[%c88_228, %c112_229] : memref<272x196xf32, #tpu.memory_space<vmem>>, vector<8x28xf32>
    %286 = arith.addf %284, %285 : vector<8x28xf32>
    %c80_230 = arith.constant 80 : index
    %c140_231 = arith.constant 140 : index
    %287 = vector.load %arg10[%c80_230, %c140_231] : memref<272x196xf32, #tpu.memory_space<vmem>>, vector<8x28xf32>
    %288 = arith.addf %286, %287 : vector<8x28xf32>
    %c72_232 = arith.constant 72 : index
    %c168_233 = arith.constant 168 : index
    %289 = vector.load %arg10[%c72_232, %c168_233] : memref<272x196xf32, #tpu.memory_space<vmem>>, vector<8x28xf32>
    %290 = arith.addf %288, %289 : vector<8x28xf32>
    %291 = vector.broadcast %88 : vector<1x1xf32> to vector<8x28xf32>
    %292 = arith.addf %290, %291 : vector<8x28xf32>
    %293 = arith.negf %292 : vector<8x28xf32>
    %294 = math.exp %293 : vector<8x28xf32>
    %cst_234 = arith.constant 1.000000e+00 : f32
    %295 = vector.broadcast %cst_234 : f32 to vector<8x28xf32>
    %296 = arith.addf %295, %294 : vector<8x28xf32>
    %297 = arith.divf %295, %296 : vector<8x28xf32>
    %c0_235 = arith.constant 0 : index
    %c252 = arith.constant 252 : index
    %298 = vector.load %arg8[%c0_235, %c252] : memref<8x784xf32, #tpu.memory_space<vmem>>, vector<8x28xf32>
    tpu.vector_store %arg8[%c0_235, %c252], %297 {strides = array<i32>} : memref<8x784xf32, #tpu.memory_space<vmem>>, vector<8x28xf32>,
    %c128_236 = arith.constant 128 : index
    %c0_237 = arith.constant 0 : index
    %299 = vector.load %arg10[%c128_236, %c0_237] : memref<272x196xf32, #tpu.memory_space<vmem>>, vector<8x28xf32>
    %c120_238 = arith.constant 120 : index
    %c28_239 = arith.constant 28 : index
    %300 = vector.load %arg10[%c120_238, %c28_239] : memref<272x196xf32, #tpu.memory_space<vmem>>, vector<8x28xf32>
    %301 = arith.addf %299, %300 : vector<8x28xf32>
    %c112_240 = arith.constant 112 : index
    %c56_241 = arith.constant 56 : index
    %302 = vector.load %arg10[%c112_240, %c56_241] : memref<272x196xf32, #tpu.memory_space<vmem>>, vector<8x28xf32>
    %303 = arith.addf %301, %302 : vector<8x28xf32>
    %c104_242 = arith.constant 104 : index
    %c84_243 = arith.constant 84 : index
    %304 = vector.load %arg10[%c104_242, %c84_243] : memref<272x196xf32, #tpu.memory_space<vmem>>, vector<8x28xf32>
    %305 = arith.addf %303, %304 : vector<8x28xf32>
    %c96_244 = arith.constant 96 : index
    %c112_245 = arith.constant 112 : index
    %306 = vector.load %arg10[%c96_244, %c112_245] : memref<272x196xf32, #tpu.memory_space<vmem>>, vector<8x28xf32>
    %307 = arith.addf %305, %306 : vector<8x28xf32>
    %c88_246 = arith.constant 88 : index
    %c140_247 = arith.constant 140 : index
    %308 = vector.load %arg10[%c88_246, %c140_247] : memref<272x196xf32, #tpu.memory_space<vmem>>, vector<8x28xf32>
    %309 = arith.addf %307, %308 : vector<8x28xf32>
    %c80_248 = arith.constant 80 : index
    %c168_249 = arith.constant 168 : index
    %310 = vector.load %arg10[%c80_248, %c168_249] : memref<272x196xf32, #tpu.memory_space<vmem>>, vector<8x28xf32>
    %311 = arith.addf %309, %310 : vector<8x28xf32>
    %312 = vector.broadcast %88 : vector<1x1xf32> to vector<8x28xf32>
    %313 = arith.addf %311, %312 : vector<8x28xf32>
    %314 = arith.negf %313 : vector<8x28xf32>
    %315 = math.exp %314 : vector<8x28xf32>
    %cst_250 = arith.constant 1.000000e+00 : f32
    %316 = vector.broadcast %cst_250 : f32 to vector<8x28xf32>
    %317 = arith.addf %316, %315 : vector<8x28xf32>
    %318 = arith.divf %316, %317 : vector<8x28xf32>
    %c0_251 = arith.constant 0 : index
    %c280 = arith.constant 280 : index
    %319 = vector.load %arg8[%c0_251, %c280] : memref<8x784xf32, #tpu.memory_space<vmem>>, vector<8x28xf32>
    tpu.vector_store %arg8[%c0_251, %c280], %318 {strides = array<i32>} : memref<8x784xf32, #tpu.memory_space<vmem>>, vector<8x28xf32>,
    %c136_252 = arith.constant 136 : index
    %c0_253 = arith.constant 0 : index
    %320 = vector.load %arg10[%c136_252, %c0_253] : memref<272x196xf32, #tpu.memory_space<vmem>>, vector<8x28xf32>
    %c128_254 = arith.constant 128 : index
    %c28_255 = arith.constant 28 : index
    %321 = vector.load %arg10[%c128_254, %c28_255] : memref<272x196xf32, #tpu.memory_space<vmem>>, vector<8x28xf32>
    %322 = arith.addf %320, %321 : vector<8x28xf32>
    %c120_256 = arith.constant 120 : index
    %c56_257 = arith.constant 56 : index
    %323 = vector.load %arg10[%c120_256, %c56_257] : memref<272x196xf32, #tpu.memory_space<vmem>>, vector<8x28xf32>
    %324 = arith.addf %322, %323 : vector<8x28xf32>
    %c112_258 = arith.constant 112 : index
    %c84_259 = arith.constant 84 : index
    %325 = vector.load %arg10[%c112_258, %c84_259] : memref<272x196xf32, #tpu.memory_space<vmem>>, vector<8x28xf32>
    %326 = arith.addf %324, %325 : vector<8x28xf32>
    %c104_260 = arith.constant 104 : index
    %c112_261 = arith.constant 112 : index
    %327 = vector.load %arg10[%c104_260, %c112_261] : memref<272x196xf32, #tpu.memory_space<vmem>>, vector<8x28xf32>
    %328 = arith.addf %326, %327 : vector<8x28xf32>
    %c96_262 = arith.constant 96 : index
    %c140_263 = arith.constant 140 : index
    %329 = vector.load %arg10[%c96_262, %c140_263] : memref<272x196xf32, #tpu.memory_space<vmem>>, vector<8x28xf32>
    %330 = arith.addf %328, %329 : vector<8x28xf32>
    %c88_264 = arith.constant 88 : index
    %c168_265 = arith.constant 168 : index
    %331 = vector.load %arg10[%c88_264, %c168_265] : memref<272x196xf32, #tpu.memory_space<vmem>>, vector<8x28xf32>
    %332 = arith.addf %330, %331 : vector<8x28xf32>
    %333 = vector.broadcast %88 : vector<1x1xf32> to vector<8x28xf32>
    %334 = arith.addf %332, %333 : vector<8x28xf32>
    %335 = arith.negf %334 : vector<8x28xf32>
    %336 = math.exp %335 : vector<8x28xf32>
    %cst_266 = arith.constant 1.000000e+00 : f32
    %337 = vector.broadcast %cst_266 : f32 to vector<8x28xf32>
    %338 = arith.addf %337, %336 : vector<8x28xf32>
    %339 = arith.divf %337, %338 : vector<8x28xf32>
    %c0_267 = arith.constant 0 : index
    %c308 = arith.constant 308 : index
    %340 = vector.load %arg8[%c0_267, %c308] : memref<8x784xf32, #tpu.memory_space<vmem>>, vector<8x28xf32>
    tpu.vector_store %arg8[%c0_267, %c308], %339 {strides = array<i32>} : memref<8x784xf32, #tpu.memory_space<vmem>>, vector<8x28xf32>,
    %c144_268 = arith.constant 144 : index
    %c0_269 = arith.constant 0 : index
    %341 = vector.load %arg10[%c144_268, %c0_269] : memref<272x196xf32, #tpu.memory_space<vmem>>, vector<8x28xf32>
    %c136_270 = arith.constant 136 : index
    %c28_271 = arith.constant 28 : index
    %342 = vector.load %arg10[%c136_270, %c28_271] : memref<272x196xf32, #tpu.memory_space<vmem>>, vector<8x28xf32>
    %343 = arith.addf %341, %342 : vector<8x28xf32>
    %c128_272 = arith.constant 128 : index
    %c56_273 = arith.constant 56 : index
    %344 = vector.load %arg10[%c128_272, %c56_273] : memref<272x196xf32, #tpu.memory_space<vmem>>, vector<8x28xf32>
    %345 = arith.addf %343, %344 : vector<8x28xf32>
    %c120_274 = arith.constant 120 : index
    %c84_275 = arith.constant 84 : index
    %346 = vector.load %arg10[%c120_274, %c84_275] : memref<272x196xf32, #tpu.memory_space<vmem>>, vector<8x28xf32>
    %347 = arith.addf %345, %346 : vector<8x28xf32>
    %c112_276 = arith.constant 112 : index
    %c112_277 = arith.constant 112 : index
    %348 = vector.load %arg10[%c112_276, %c112_277] : memref<272x196xf32, #tpu.memory_space<vmem>>, vector<8x28xf32>
    %349 = arith.addf %347, %348 : vector<8x28xf32>
    %c104_278 = arith.constant 104 : index
    %c140_279 = arith.constant 140 : index
    %350 = vector.load %arg10[%c104_278, %c140_279] : memref<272x196xf32, #tpu.memory_space<vmem>>, vector<8x28xf32>
    %351 = arith.addf %349, %350 : vector<8x28xf32>
    %c96_280 = arith.constant 96 : index
    %c168_281 = arith.constant 168 : index
    %352 = vector.load %arg10[%c96_280, %c168_281] : memref<272x196xf32, #tpu.memory_space<vmem>>, vector<8x28xf32>
    %353 = arith.addf %351, %352 : vector<8x28xf32>
    %354 = vector.broadcast %88 : vector<1x1xf32> to vector<8x28xf32>
    %355 = arith.addf %353, %354 : vector<8x28xf32>
    %356 = arith.negf %355 : vector<8x28xf32>
    %357 = math.exp %356 : vector<8x28xf32>
    %cst_282 = arith.constant 1.000000e+00 : f32
    %358 = vector.broadcast %cst_282 : f32 to vector<8x28xf32>
    %359 = arith.addf %358, %357 : vector<8x28xf32>
    %360 = arith.divf %358, %359 : vector<8x28xf32>
    %c0_283 = arith.constant 0 : index
    %c336 = arith.constant 336 : index
    %361 = vector.load %arg8[%c0_283, %c336] : memref<8x784xf32, #tpu.memory_space<vmem>>, vector<8x28xf32>
    tpu.vector_store %arg8[%c0_283, %c336], %360 {strides = array<i32>} : memref<8x784xf32, #tpu.memory_space<vmem>>, vector<8x28xf32>,
    %c152_284 = arith.constant 152 : index
    %c0_285 = arith.constant 0 : index
    %362 = vector.load %arg10[%c152_284, %c0_285] : memref<272x196xf32, #tpu.memory_space<vmem>>, vector<8x28xf32>
    %c144_286 = arith.constant 144 : index
    %c28_287 = arith.constant 28 : index
    %363 = vector.load %arg10[%c144_286, %c28_287] : memref<272x196xf32, #tpu.memory_space<vmem>>, vector<8x28xf32>
    %364 = arith.addf %362, %363 : vector<8x28xf32>
    %c136_288 = arith.constant 136 : index
    %c56_289 = arith.constant 56 : index
    %365 = vector.load %arg10[%c136_288, %c56_289] : memref<272x196xf32, #tpu.memory_space<vmem>>, vector<8x28xf32>
    %366 = arith.addf %364, %365 : vector<8x28xf32>
    %c128_290 = arith.constant 128 : index
    %c84_291 = arith.constant 84 : index
    %367 = vector.load %arg10[%c128_290, %c84_291] : memref<272x196xf32, #tpu.memory_space<vmem>>, vector<8x28xf32>
    %368 = arith.addf %366, %367 : vector<8x28xf32>
    %c120_292 = arith.constant 120 : index
    %c112_293 = arith.constant 112 : index
    %369 = vector.load %arg10[%c120_292, %c112_293] : memref<272x196xf32, #tpu.memory_space<vmem>>, vector<8x28xf32>
    %370 = arith.addf %368, %369 : vector<8x28xf32>
    %c112_294 = arith.constant 112 : index
    %c140_295 = arith.constant 140 : index
    %371 = vector.load %arg10[%c112_294, %c140_295] : memref<272x196xf32, #tpu.memory_space<vmem>>, vector<8x28xf32>
    %372 = arith.addf %370, %371 : vector<8x28xf32>
    %c104_296 = arith.constant 104 : index
    %c168_297 = arith.constant 168 : index
    %373 = vector.load %arg10[%c104_296, %c168_297] : memref<272x196xf32, #tpu.memory_space<vmem>>, vector<8x28xf32>
    %374 = arith.addf %372, %373 : vector<8x28xf32>
    %375 = vector.broadcast %88 : vector<1x1xf32> to vector<8x28xf32>
    %376 = arith.addf %374, %375 : vector<8x28xf32>
    %377 = arith.negf %376 : vector<8x28xf32>
    %378 = math.exp %377 : vector<8x28xf32>
    %cst_298 = arith.constant 1.000000e+00 : f32
    %379 = vector.broadcast %cst_298 : f32 to vector<8x28xf32>
    %380 = arith.addf %379, %378 : vector<8x28xf32>
    %381 = arith.divf %379, %380 : vector<8x28xf32>
    %c0_299 = arith.constant 0 : index
    %c364 = arith.constant 364 : index
    %382 = vector.load %arg8[%c0_299, %c364] : memref<8x784xf32, #tpu.memory_space<vmem>>, vector<8x28xf32>
    tpu.vector_store %arg8[%c0_299, %c364], %381 {strides = array<i32>} : memref<8x784xf32, #tpu.memory_space<vmem>>, vector<8x28xf32>,
    %c160_300 = arith.constant 160 : index
    %c0_301 = arith.constant 0 : index
    %383 = vector.load %arg10[%c160_300, %c0_301] : memref<272x196xf32, #tpu.memory_space<vmem>>, vector<8x28xf32>
    %c152_302 = arith.constant 152 : index
    %c28_303 = arith.constant 28 : index
    %384 = vector.load %arg10[%c152_302, %c28_303] : memref<272x196xf32, #tpu.memory_space<vmem>>, vector<8x28xf32>
    %385 = arith.addf %383, %384 : vector<8x28xf32>
    %c144_304 = arith.constant 144 : index
    %c56_305 = arith.constant 56 : index
    %386 = vector.load %arg10[%c144_304, %c56_305] : memref<272x196xf32, #tpu.memory_space<vmem>>, vector<8x28xf32>
    %387 = arith.addf %385, %386 : vector<8x28xf32>
    %c136_306 = arith.constant 136 : index
    %c84_307 = arith.constant 84 : index
    %388 = vector.load %arg10[%c136_306, %c84_307] : memref<272x196xf32, #tpu.memory_space<vmem>>, vector<8x28xf32>
    %389 = arith.addf %387, %388 : vector<8x28xf32>
    %c128_308 = arith.constant 128 : index
    %c112_309 = arith.constant 112 : index
    %390 = vector.load %arg10[%c128_308, %c112_309] : memref<272x196xf32, #tpu.memory_space<vmem>>, vector<8x28xf32>
    %391 = arith.addf %389, %390 : vector<8x28xf32>
    %c120_310 = arith.constant 120 : index
    %c140_311 = arith.constant 140 : index
    %392 = vector.load %arg10[%c120_310, %c140_311] : memref<272x196xf32, #tpu.memory_space<vmem>>, vector<8x28xf32>
    %393 = arith.addf %391, %392 : vector<8x28xf32>
    %c112_312 = arith.constant 112 : index
    %c168_313 = arith.constant 168 : index
    %394 = vector.load %arg10[%c112_312, %c168_313] : memref<272x196xf32, #tpu.memory_space<vmem>>, vector<8x28xf32>
    %395 = arith.addf %393, %394 : vector<8x28xf32>
    %396 = vector.broadcast %88 : vector<1x1xf32> to vector<8x28xf32>
    %397 = arith.addf %395, %396 : vector<8x28xf32>
    %398 = arith.negf %397 : vector<8x28xf32>
    %399 = math.exp %398 : vector<8x28xf32>
    %cst_314 = arith.constant 1.000000e+00 : f32
    %400 = vector.broadcast %cst_314 : f32 to vector<8x28xf32>
    %401 = arith.addf %400, %399 : vector<8x28xf32>
    %402 = arith.divf %400, %401 : vector<8x28xf32>
    %c0_315 = arith.constant 0 : index
    %c392 = arith.constant 392 : index
    %403 = vector.load %arg8[%c0_315, %c392] : memref<8x784xf32, #tpu.memory_space<vmem>>, vector<8x28xf32>
    tpu.vector_store %arg8[%c0_315, %c392], %402 {strides = array<i32>} : memref<8x784xf32, #tpu.memory_space<vmem>>, vector<8x28xf32>,
    %c168_316 = arith.constant 168 : index
    %c0_317 = arith.constant 0 : index
    %404 = vector.load %arg10[%c168_316, %c0_317] : memref<272x196xf32, #tpu.memory_space<vmem>>, vector<8x28xf32>
    %c160_318 = arith.constant 160 : index
    %c28_319 = arith.constant 28 : index
    %405 = vector.load %arg10[%c160_318, %c28_319] : memref<272x196xf32, #tpu.memory_space<vmem>>, vector<8x28xf32>
    %406 = arith.addf %404, %405 : vector<8x28xf32>
    %c152_320 = arith.constant 152 : index
    %c56_321 = arith.constant 56 : index
    %407 = vector.load %arg10[%c152_320, %c56_321] : memref<272x196xf32, #tpu.memory_space<vmem>>, vector<8x28xf32>
    %408 = arith.addf %406, %407 : vector<8x28xf32>
    %c144_322 = arith.constant 144 : index
    %c84_323 = arith.constant 84 : index
    %409 = vector.load %arg10[%c144_322, %c84_323] : memref<272x196xf32, #tpu.memory_space<vmem>>, vector<8x28xf32>
    %410 = arith.addf %408, %409 : vector<8x28xf32>
    %c136_324 = arith.constant 136 : index
    %c112_325 = arith.constant 112 : index
    %411 = vector.load %arg10[%c136_324, %c112_325] : memref<272x196xf32, #tpu.memory_space<vmem>>, vector<8x28xf32>
    %412 = arith.addf %410, %411 : vector<8x28xf32>
    %c128_326 = arith.constant 128 : index
    %c140_327 = arith.constant 140 : index
    %413 = vector.load %arg10[%c128_326, %c140_327] : memref<272x196xf32, #tpu.memory_space<vmem>>, vector<8x28xf32>
    %414 = arith.addf %412, %413 : vector<8x28xf32>
    %c120_328 = arith.constant 120 : index
    %c168_329 = arith.constant 168 : index
    %415 = vector.load %arg10[%c120_328, %c168_329] : memref<272x196xf32, #tpu.memory_space<vmem>>, vector<8x28xf32>
    %416 = arith.addf %414, %415 : vector<8x28xf32>
    %417 = vector.broadcast %88 : vector<1x1xf32> to vector<8x28xf32>
    %418 = arith.addf %416, %417 : vector<8x28xf32>
    %419 = arith.negf %418 : vector<8x28xf32>
    %420 = math.exp %419 : vector<8x28xf32>
    %cst_330 = arith.constant 1.000000e+00 : f32
    %421 = vector.broadcast %cst_330 : f32 to vector<8x28xf32>
    %422 = arith.addf %421, %420 : vector<8x28xf32>
    %423 = arith.divf %421, %422 : vector<8x28xf32>
    %c0_331 = arith.constant 0 : index
    %c420 = arith.constant 420 : index
    %424 = vector.load %arg8[%c0_331, %c420] : memref<8x784xf32, #tpu.memory_space<vmem>>, vector<8x28xf32>
    tpu.vector_store %arg8[%c0_331, %c420], %423 {strides = array<i32>} : memref<8x784xf32, #tpu.memory_space<vmem>>, vector<8x28xf32>,
    %c176_332 = arith.constant 176 : index
    %c0_333 = arith.constant 0 : index
    %425 = vector.load %arg10[%c176_332, %c0_333] : memref<272x196xf32, #tpu.memory_space<vmem>>, vector<8x28xf32>
    %c168_334 = arith.constant 168 : index
    %c28_335 = arith.constant 28 : index
    %426 = vector.load %arg10[%c168_334, %c28_335] : memref<272x196xf32, #tpu.memory_space<vmem>>, vector<8x28xf32>
    %427 = arith.addf %425, %426 : vector<8x28xf32>
    %c160_336 = arith.constant 160 : index
    %c56_337 = arith.constant 56 : index
    %428 = vector.load %arg10[%c160_336, %c56_337] : memref<272x196xf32, #tpu.memory_space<vmem>>, vector<8x28xf32>
    %429 = arith.addf %427, %428 : vector<8x28xf32>
    %c152_338 = arith.constant 152 : index
    %c84_339 = arith.constant 84 : index
    %430 = vector.load %arg10[%c152_338, %c84_339] : memref<272x196xf32, #tpu.memory_space<vmem>>, vector<8x28xf32>
    %431 = arith.addf %429, %430 : vector<8x28xf32>
    %c144_340 = arith.constant 144 : index
    %c112_341 = arith.constant 112 : index
    %432 = vector.load %arg10[%c144_340, %c112_341] : memref<272x196xf32, #tpu.memory_space<vmem>>, vector<8x28xf32>
    %433 = arith.addf %431, %432 : vector<8x28xf32>
    %c136_342 = arith.constant 136 : index
    %c140_343 = arith.constant 140 : index
    %434 = vector.load %arg10[%c136_342, %c140_343] : memref<272x196xf32, #tpu.memory_space<vmem>>, vector<8x28xf32>
    %435 = arith.addf %433, %434 : vector<8x28xf32>
    %c128_344 = arith.constant 128 : index
    %c168_345 = arith.constant 168 : index
    %436 = vector.load %arg10[%c128_344, %c168_345] : memref<272x196xf32, #tpu.memory_space<vmem>>, vector<8x28xf32>
    %437 = arith.addf %435, %436 : vector<8x28xf32>
    %438 = vector.broadcast %88 : vector<1x1xf32> to vector<8x28xf32>
    %439 = arith.addf %437, %438 : vector<8x28xf32>
    %440 = arith.negf %439 : vector<8x28xf32>
    %441 = math.exp %440 : vector<8x28xf32>
    %cst_346 = arith.constant 1.000000e+00 : f32
    %442 = vector.broadcast %cst_346 : f32 to vector<8x28xf32>
    %443 = arith.addf %442, %441 : vector<8x28xf32>
    %444 = arith.divf %442, %443 : vector<8x28xf32>
    %c0_347 = arith.constant 0 : index
    %c448 = arith.constant 448 : index
    %445 = vector.load %arg8[%c0_347, %c448] : memref<8x784xf32, #tpu.memory_space<vmem>>, vector<8x28xf32>
    tpu.vector_store %arg8[%c0_347, %c448], %444 {strides = array<i32>} : memref<8x784xf32, #tpu.memory_space<vmem>>, vector<8x28xf32>,
    %c184 = arith.constant 184 : index
    %c0_348 = arith.constant 0 : index
    %446 = vector.load %arg10[%c184, %c0_348] : memref<272x196xf32, #tpu.memory_space<vmem>>, vector<8x28xf32>
    %c176_349 = arith.constant 176 : index
    %c28_350 = arith.constant 28 : index
    %447 = vector.load %arg10[%c176_349, %c28_350] : memref<272x196xf32, #tpu.memory_space<vmem>>, vector<8x28xf32>
    %448 = arith.addf %446, %447 : vector<8x28xf32>
    %c168_351 = arith.constant 168 : index
    %c56_352 = arith.constant 56 : index
    %449 = vector.load %arg10[%c168_351, %c56_352] : memref<272x196xf32, #tpu.memory_space<vmem>>, vector<8x28xf32>
    %450 = arith.addf %448, %449 : vector<8x28xf32>
    %c160_353 = arith.constant 160 : index
    %c84_354 = arith.constant 84 : index
    %451 = vector.load %arg10[%c160_353, %c84_354] : memref<272x196xf32, #tpu.memory_space<vmem>>, vector<8x28xf32>
    %452 = arith.addf %450, %451 : vector<8x28xf32>
    %c152_355 = arith.constant 152 : index
    %c112_356 = arith.constant 112 : index
    %453 = vector.load %arg10[%c152_355, %c112_356] : memref<272x196xf32, #tpu.memory_space<vmem>>, vector<8x28xf32>
    %454 = arith.addf %452, %453 : vector<8x28xf32>
    %c144_357 = arith.constant 144 : index
    %c140_358 = arith.constant 140 : index
    %455 = vector.load %arg10[%c144_357, %c140_358] : memref<272x196xf32, #tpu.memory_space<vmem>>, vector<8x28xf32>
    %456 = arith.addf %454, %455 : vector<8x28xf32>
    %c136_359 = arith.constant 136 : index
    %c168_360 = arith.constant 168 : index
    %457 = vector.load %arg10[%c136_359, %c168_360] : memref<272x196xf32, #tpu.memory_space<vmem>>, vector<8x28xf32>
    %458 = arith.addf %456, %457 : vector<8x28xf32>
    %459 = vector.broadcast %88 : vector<1x1xf32> to vector<8x28xf32>
    %460 = arith.addf %458, %459 : vector<8x28xf32>
    %461 = arith.negf %460 : vector<8x28xf32>
    %462 = math.exp %461 : vector<8x28xf32>
    %cst_361 = arith.constant 1.000000e+00 : f32
    %463 = vector.broadcast %cst_361 : f32 to vector<8x28xf32>
    %464 = arith.addf %463, %462 : vector<8x28xf32>
    %465 = arith.divf %463, %464 : vector<8x28xf32>
    %c0_362 = arith.constant 0 : index
    %c476 = arith.constant 476 : index
    %466 = vector.load %arg8[%c0_362, %c476] : memref<8x784xf32, #tpu.memory_space<vmem>>, vector<8x28xf32>
    tpu.vector_store %arg8[%c0_362, %c476], %465 {strides = array<i32>} : memref<8x784xf32, #tpu.memory_space<vmem>>, vector<8x28xf32>,
    %c192 = arith.constant 192 : index
    %c0_363 = arith.constant 0 : index
    %467 = vector.load %arg10[%c192, %c0_363] : memref<272x196xf32, #tpu.memory_space<vmem>>, vector<8x28xf32>
    %c184_364 = arith.constant 184 : index
    %c28_365 = arith.constant 28 : index
    %468 = vector.load %arg10[%c184_364, %c28_365] : memref<272x196xf32, #tpu.memory_space<vmem>>, vector<8x28xf32>
    %469 = arith.addf %467, %468 : vector<8x28xf32>
    %c176_366 = arith.constant 176 : index
    %c56_367 = arith.constant 56 : index
    %470 = vector.load %arg10[%c176_366, %c56_367] : memref<272x196xf32, #tpu.memory_space<vmem>>, vector<8x28xf32>
    %471 = arith.addf %469, %470 : vector<8x28xf32>
    %c168_368 = arith.constant 168 : index
    %c84_369 = arith.constant 84 : index
    %472 = vector.load %arg10[%c168_368, %c84_369] : memref<272x196xf32, #tpu.memory_space<vmem>>, vector<8x28xf32>
    %473 = arith.addf %471, %472 : vector<8x28xf32>
    %c160_370 = arith.constant 160 : index
    %c112_371 = arith.constant 112 : index
    %474 = vector.load %arg10[%c160_370, %c112_371] : memref<272x196xf32, #tpu.memory_space<vmem>>, vector<8x28xf32>
    %475 = arith.addf %473, %474 : vector<8x28xf32>
    %c152_372 = arith.constant 152 : index
    %c140_373 = arith.constant 140 : index
    %476 = vector.load %arg10[%c152_372, %c140_373] : memref<272x196xf32, #tpu.memory_space<vmem>>, vector<8x28xf32>
    %477 = arith.addf %475, %476 : vector<8x28xf32>
    %c144_374 = arith.constant 144 : index
    %c168_375 = arith.constant 168 : index
    %478 = vector.load %arg10[%c144_374, %c168_375] : memref<272x196xf32, #tpu.memory_space<vmem>>, vector<8x28xf32>
    %479 = arith.addf %477, %478 : vector<8x28xf32>
    %480 = vector.broadcast %88 : vector<1x1xf32> to vector<8x28xf32>
    %481 = arith.addf %479, %480 : vector<8x28xf32>
    %482 = arith.negf %481 : vector<8x28xf32>
    %483 = math.exp %482 : vector<8x28xf32>
    %cst_376 = arith.constant 1.000000e+00 : f32
    %484 = vector.broadcast %cst_376 : f32 to vector<8x28xf32>
    %485 = arith.addf %484, %483 : vector<8x28xf32>
    %486 = arith.divf %484, %485 : vector<8x28xf32>
    %c0_377 = arith.constant 0 : index
    %c504 = arith.constant 504 : index
    %487 = vector.load %arg8[%c0_377, %c504] : memref<8x784xf32, #tpu.memory_space<vmem>>, vector<8x28xf32>
    tpu.vector_store %arg8[%c0_377, %c504], %486 {strides = array<i32>} : memref<8x784xf32, #tpu.memory_space<vmem>>, vector<8x28xf32>,
    %c200 = arith.constant 200 : index
    %c0_378 = arith.constant 0 : index
    %488 = vector.load %arg10[%c200, %c0_378] : memref<272x196xf32, #tpu.memory_space<vmem>>, vector<8x28xf32>
    %c192_379 = arith.constant 192 : index
    %c28_380 = arith.constant 28 : index
    %489 = vector.load %arg10[%c192_379, %c28_380] : memref<272x196xf32, #tpu.memory_space<vmem>>, vector<8x28xf32>
    %490 = arith.addf %488, %489 : vector<8x28xf32>
    %c184_381 = arith.constant 184 : index
    %c56_382 = arith.constant 56 : index
    %491 = vector.load %arg10[%c184_381, %c56_382] : memref<272x196xf32, #tpu.memory_space<vmem>>, vector<8x28xf32>
    %492 = arith.addf %490, %491 : vector<8x28xf32>
    %c176_383 = arith.constant 176 : index
    %c84_384 = arith.constant 84 : index
    %493 = vector.load %arg10[%c176_383, %c84_384] : memref<272x196xf32, #tpu.memory_space<vmem>>, vector<8x28xf32>
    %494 = arith.addf %492, %493 : vector<8x28xf32>
    %c168_385 = arith.constant 168 : index
    %c112_386 = arith.constant 112 : index
    %495 = vector.load %arg10[%c168_385, %c112_386] : memref<272x196xf32, #tpu.memory_space<vmem>>, vector<8x28xf32>
    %496 = arith.addf %494, %495 : vector<8x28xf32>
    %c160_387 = arith.constant 160 : index
    %c140_388 = arith.constant 140 : index
    %497 = vector.load %arg10[%c160_387, %c140_388] : memref<272x196xf32, #tpu.memory_space<vmem>>, vector<8x28xf32>
    %498 = arith.addf %496, %497 : vector<8x28xf32>
    %c152_389 = arith.constant 152 : index
    %c168_390 = arith.constant 168 : index
    %499 = vector.load %arg10[%c152_389, %c168_390] : memref<272x196xf32, #tpu.memory_space<vmem>>, vector<8x28xf32>
    %500 = arith.addf %498, %499 : vector<8x28xf32>
    %501 = vector.broadcast %88 : vector<1x1xf32> to vector<8x28xf32>
    %502 = arith.addf %500, %501 : vector<8x28xf32>
    %503 = arith.negf %502 : vector<8x28xf32>
    %504 = math.exp %503 : vector<8x28xf32>
    %cst_391 = arith.constant 1.000000e+00 : f32
    %505 = vector.broadcast %cst_391 : f32 to vector<8x28xf32>
    %506 = arith.addf %505, %504 : vector<8x28xf32>
    %507 = arith.divf %505, %506 : vector<8x28xf32>
    %c0_392 = arith.constant 0 : index
    %c532 = arith.constant 532 : index
    %508 = vector.load %arg8[%c0_392, %c532] : memref<8x784xf32, #tpu.memory_space<vmem>>, vector<8x28xf32>
    tpu.vector_store %arg8[%c0_392, %c532], %507 {strides = array<i32>} : memref<8x784xf32, #tpu.memory_space<vmem>>, vector<8x28xf32>,
    %c208 = arith.constant 208 : index
    %c0_393 = arith.constant 0 : index
    %509 = vector.load %arg10[%c208, %c0_393] : memref<272x196xf32, #tpu.memory_space<vmem>>, vector<8x28xf32>
    %c200_394 = arith.constant 200 : index
    %c28_395 = arith.constant 28 : index
    %510 = vector.load %arg10[%c200_394, %c28_395] : memref<272x196xf32, #tpu.memory_space<vmem>>, vector<8x28xf32>
    %511 = arith.addf %509, %510 : vector<8x28xf32>
    %c192_396 = arith.constant 192 : index
    %c56_397 = arith.constant 56 : index
    %512 = vector.load %arg10[%c192_396, %c56_397] : memref<272x196xf32, #tpu.memory_space<vmem>>, vector<8x28xf32>
    %513 = arith.addf %511, %512 : vector<8x28xf32>
    %c184_398 = arith.constant 184 : index
    %c84_399 = arith.constant 84 : index
    %514 = vector.load %arg10[%c184_398, %c84_399] : memref<272x196xf32, #tpu.memory_space<vmem>>, vector<8x28xf32>
    %515 = arith.addf %513, %514 : vector<8x28xf32>
    %c176_400 = arith.constant 176 : index
    %c112_401 = arith.constant 112 : index
    %516 = vector.load %arg10[%c176_400, %c112_401] : memref<272x196xf32, #tpu.memory_space<vmem>>, vector<8x28xf32>
    %517 = arith.addf %515, %516 : vector<8x28xf32>
    %c168_402 = arith.constant 168 : index
    %c140_403 = arith.constant 140 : index
    %518 = vector.load %arg10[%c168_402, %c140_403] : memref<272x196xf32, #tpu.memory_space<vmem>>, vector<8x28xf32>
    %519 = arith.addf %517, %518 : vector<8x28xf32>
    %c160_404 = arith.constant 160 : index
    %c168_405 = arith.constant 168 : index
    %520 = vector.load %arg10[%c160_404, %c168_405] : memref<272x196xf32, #tpu.memory_space<vmem>>, vector<8x28xf32>
    %521 = arith.addf %519, %520 : vector<8x28xf32>
    %522 = vector.broadcast %88 : vector<1x1xf32> to vector<8x28xf32>
    %523 = arith.addf %521, %522 : vector<8x28xf32>
    %524 = arith.negf %523 : vector<8x28xf32>
    %525 = math.exp %524 : vector<8x28xf32>
    %cst_406 = arith.constant 1.000000e+00 : f32
    %526 = vector.broadcast %cst_406 : f32 to vector<8x28xf32>
    %527 = arith.addf %526, %525 : vector<8x28xf32>
    %528 = arith.divf %526, %527 : vector<8x28xf32>
    %c0_407 = arith.constant 0 : index
    %c560 = arith.constant 560 : index
    %529 = vector.load %arg8[%c0_407, %c560] : memref<8x784xf32, #tpu.memory_space<vmem>>, vector<8x28xf32>
    tpu.vector_store %arg8[%c0_407, %c560], %528 {strides = array<i32>} : memref<8x784xf32, #tpu.memory_space<vmem>>, vector<8x28xf32>,
    %c216 = arith.constant 216 : index
    %c0_408 = arith.constant 0 : index
    %530 = vector.load %arg10[%c216, %c0_408] : memref<272x196xf32, #tpu.memory_space<vmem>>, vector<8x28xf32>
    %c208_409 = arith.constant 208 : index
    %c28_410 = arith.constant 28 : index
    %531 = vector.load %arg10[%c208_409, %c28_410] : memref<272x196xf32, #tpu.memory_space<vmem>>, vector<8x28xf32>
    %532 = arith.addf %530, %531 : vector<8x28xf32>
    %c200_411 = arith.constant 200 : index
    %c56_412 = arith.constant 56 : index
    %533 = vector.load %arg10[%c200_411, %c56_412] : memref<272x196xf32, #tpu.memory_space<vmem>>, vector<8x28xf32>
    %534 = arith.addf %532, %533 : vector<8x28xf32>
    %c192_413 = arith.constant 192 : index
    %c84_414 = arith.constant 84 : index
    %535 = vector.load %arg10[%c192_413, %c84_414] : memref<272x196xf32, #tpu.memory_space<vmem>>, vector<8x28xf32>
    %536 = arith.addf %534, %535 : vector<8x28xf32>
    %c184_415 = arith.constant 184 : index
    %c112_416 = arith.constant 112 : index
    %537 = vector.load %arg10[%c184_415, %c112_416] : memref<272x196xf32, #tpu.memory_space<vmem>>, vector<8x28xf32>
    %538 = arith.addf %536, %537 : vector<8x28xf32>
    %c176_417 = arith.constant 176 : index
    %c140_418 = arith.constant 140 : index
    %539 = vector.load %arg10[%c176_417, %c140_418] : memref<272x196xf32, #tpu.memory_space<vmem>>, vector<8x28xf32>
    %540 = arith.addf %538, %539 : vector<8x28xf32>
    %c168_419 = arith.constant 168 : index
    %c168_420 = arith.constant 168 : index
    %541 = vector.load %arg10[%c168_419, %c168_420] : memref<272x196xf32, #tpu.memory_space<vmem>>, vector<8x28xf32>
    %542 = arith.addf %540, %541 : vector<8x28xf32>
    %543 = vector.broadcast %88 : vector<1x1xf32> to vector<8x28xf32>
    %544 = arith.addf %542, %543 : vector<8x28xf32>
    %545 = arith.negf %544 : vector<8x28xf32>
    %546 = math.exp %545 : vector<8x28xf32>
    %cst_421 = arith.constant 1.000000e+00 : f32
    %547 = vector.broadcast %cst_421 : f32 to vector<8x28xf32>
    %548 = arith.addf %547, %546 : vector<8x28xf32>
    %549 = arith.divf %547, %548 : vector<8x28xf32>
    %c0_422 = arith.constant 0 : index
    %c588 = arith.constant 588 : index
    %550 = vector.load %arg8[%c0_422, %c588] : memref<8x784xf32, #tpu.memory_space<vmem>>, vector<8x28xf32>
    tpu.vector_store %arg8[%c0_422, %c588], %549 {strides = array<i32>} : memref<8x784xf32, #tpu.memory_space<vmem>>, vector<8x28xf32>,
    %c224_423 = arith.constant 224 : index
    %c0_424 = arith.constant 0 : index
    %551 = vector.load %arg10[%c224_423, %c0_424] : memref<272x196xf32, #tpu.memory_space<vmem>>, vector<8x28xf32>
    %c216_425 = arith.constant 216 : index
    %c28_426 = arith.constant 28 : index
    %552 = vector.load %arg10[%c216_425, %c28_426] : memref<272x196xf32, #tpu.memory_space<vmem>>, vector<8x28xf32>
    %553 = arith.addf %551, %552 : vector<8x28xf32>
    %c208_427 = arith.constant 208 : index
    %c56_428 = arith.constant 56 : index
    %554 = vector.load %arg10[%c208_427, %c56_428] : memref<272x196xf32, #tpu.memory_space<vmem>>, vector<8x28xf32>
    %555 = arith.addf %553, %554 : vector<8x28xf32>
    %c200_429 = arith.constant 200 : index
    %c84_430 = arith.constant 84 : index
    %556 = vector.load %arg10[%c200_429, %c84_430] : memref<272x196xf32, #tpu.memory_space<vmem>>, vector<8x28xf32>
    %557 = arith.addf %555, %556 : vector<8x28xf32>
    %c192_431 = arith.constant 192 : index
    %c112_432 = arith.constant 112 : index
    %558 = vector.load %arg10[%c192_431, %c112_432] : memref<272x196xf32, #tpu.memory_space<vmem>>, vector<8x28xf32>
    %559 = arith.addf %557, %558 : vector<8x28xf32>
    %c184_433 = arith.constant 184 : index
    %c140_434 = arith.constant 140 : index
    %560 = vector.load %arg10[%c184_433, %c140_434] : memref<272x196xf32, #tpu.memory_space<vmem>>, vector<8x28xf32>
    %561 = arith.addf %559, %560 : vector<8x28xf32>
    %c176_435 = arith.constant 176 : index
    %c168_436 = arith.constant 168 : index
    %562 = vector.load %arg10[%c176_435, %c168_436] : memref<272x196xf32, #tpu.memory_space<vmem>>, vector<8x28xf32>
    %563 = arith.addf %561, %562 : vector<8x28xf32>
    %564 = vector.broadcast %88 : vector<1x1xf32> to vector<8x28xf32>
    %565 = arith.addf %563, %564 : vector<8x28xf32>
    %566 = arith.negf %565 : vector<8x28xf32>
    %567 = math.exp %566 : vector<8x28xf32>
    %cst_437 = arith.constant 1.000000e+00 : f32
    %568 = vector.broadcast %cst_437 : f32 to vector<8x28xf32>
    %569 = arith.addf %568, %567 : vector<8x28xf32>
    %570 = arith.divf %568, %569 : vector<8x28xf32>
    %c0_438 = arith.constant 0 : index
    %c616 = arith.constant 616 : index
    %571 = vector.load %arg8[%c0_438, %c616] : memref<8x784xf32, #tpu.memory_space<vmem>>, vector<8x28xf32>
    tpu.vector_store %arg8[%c0_438, %c616], %570 {strides = array<i32>} : memref<8x784xf32, #tpu.memory_space<vmem>>, vector<8x28xf32>,
    %c232 = arith.constant 232 : index
    %c0_439 = arith.constant 0 : index
    %572 = vector.load %arg10[%c232, %c0_439] : memref<272x196xf32, #tpu.memory_space<vmem>>, vector<8x28xf32>
    %c224_440 = arith.constant 224 : index
    %c28_441 = arith.constant 28 : index
    %573 = vector.load %arg10[%c224_440, %c28_441] : memref<272x196xf32, #tpu.memory_space<vmem>>, vector<8x28xf32>
    %574 = arith.addf %572, %573 : vector<8x28xf32>
    %c216_442 = arith.constant 216 : index
    %c56_443 = arith.constant 56 : index
    %575 = vector.load %arg10[%c216_442, %c56_443] : memref<272x196xf32, #tpu.memory_space<vmem>>, vector<8x28xf32>
    %576 = arith.addf %574, %575 : vector<8x28xf32>
    %c208_444 = arith.constant 208 : index
    %c84_445 = arith.constant 84 : index
    %577 = vector.load %arg10[%c208_444, %c84_445] : memref<272x196xf32, #tpu.memory_space<vmem>>, vector<8x28xf32>
    %578 = arith.addf %576, %577 : vector<8x28xf32>
    %c200_446 = arith.constant 200 : index
    %c112_447 = arith.constant 112 : index
    %579 = vector.load %arg10[%c200_446, %c112_447] : memref<272x196xf32, #tpu.memory_space<vmem>>, vector<8x28xf32>
    %580 = arith.addf %578, %579 : vector<8x28xf32>
    %c192_448 = arith.constant 192 : index
    %c140_449 = arith.constant 140 : index
    %581 = vector.load %arg10[%c192_448, %c140_449] : memref<272x196xf32, #tpu.memory_space<vmem>>, vector<8x28xf32>
    %582 = arith.addf %580, %581 : vector<8x28xf32>
    %c184_450 = arith.constant 184 : index
    %c168_451 = arith.constant 168 : index
    %583 = vector.load %arg10[%c184_450, %c168_451] : memref<272x196xf32, #tpu.memory_space<vmem>>, vector<8x28xf32>
    %584 = arith.addf %582, %583 : vector<8x28xf32>
    %585 = vector.broadcast %88 : vector<1x1xf32> to vector<8x28xf32>
    %586 = arith.addf %584, %585 : vector<8x28xf32>
    %587 = arith.negf %586 : vector<8x28xf32>
    %588 = math.exp %587 : vector<8x28xf32>
    %cst_452 = arith.constant 1.000000e+00 : f32
    %589 = vector.broadcast %cst_452 : f32 to vector<8x28xf32>
    %590 = arith.addf %589, %588 : vector<8x28xf32>
    %591 = arith.divf %589, %590 : vector<8x28xf32>
    %c0_453 = arith.constant 0 : index
    %c644 = arith.constant 644 : index
    %592 = vector.load %arg8[%c0_453, %c644] : memref<8x784xf32, #tpu.memory_space<vmem>>, vector<8x28xf32>
    tpu.vector_store %arg8[%c0_453, %c644], %591 {strides = array<i32>} : memref<8x784xf32, #tpu.memory_space<vmem>>, vector<8x28xf32>,
    %c240 = arith.constant 240 : index
    %c0_454 = arith.constant 0 : index
    %593 = vector.load %arg10[%c240, %c0_454] : memref<272x196xf32, #tpu.memory_space<vmem>>, vector<8x28xf32>
    %c232_455 = arith.constant 232 : index
    %c28_456 = arith.constant 28 : index
    %594 = vector.load %arg10[%c232_455, %c28_456] : memref<272x196xf32, #tpu.memory_space<vmem>>, vector<8x28xf32>
    %595 = arith.addf %593, %594 : vector<8x28xf32>
    %c224_457 = arith.constant 224 : index
    %c56_458 = arith.constant 56 : index
    %596 = vector.load %arg10[%c224_457, %c56_458] : memref<272x196xf32, #tpu.memory_space<vmem>>, vector<8x28xf32>
    %597 = arith.addf %595, %596 : vector<8x28xf32>
    %c216_459 = arith.constant 216 : index
    %c84_460 = arith.constant 84 : index
    %598 = vector.load %arg10[%c216_459, %c84_460] : memref<272x196xf32, #tpu.memory_space<vmem>>, vector<8x28xf32>
    %599 = arith.addf %597, %598 : vector<8x28xf32>
    %c208_461 = arith.constant 208 : index
    %c112_462 = arith.constant 112 : index
    %600 = vector.load %arg10[%c208_461, %c112_462] : memref<272x196xf32, #tpu.memory_space<vmem>>, vector<8x28xf32>
    %601 = arith.addf %599, %600 : vector<8x28xf32>
    %c200_463 = arith.constant 200 : index
    %c140_464 = arith.constant 140 : index
    %602 = vector.load %arg10[%c200_463, %c140_464] : memref<272x196xf32, #tpu.memory_space<vmem>>, vector<8x28xf32>
    %603 = arith.addf %601, %602 : vector<8x28xf32>
    %c192_465 = arith.constant 192 : index
    %c168_466 = arith.constant 168 : index
    %604 = vector.load %arg10[%c192_465, %c168_466] : memref<272x196xf32, #tpu.memory_space<vmem>>, vector<8x28xf32>
    %605 = arith.addf %603, %604 : vector<8x28xf32>
    %606 = vector.broadcast %88 : vector<1x1xf32> to vector<8x28xf32>
    %607 = arith.addf %605, %606 : vector<8x28xf32>
    %608 = arith.negf %607 : vector<8x28xf32>
    %609 = math.exp %608 : vector<8x28xf32>
    %cst_467 = arith.constant 1.000000e+00 : f32
    %610 = vector.broadcast %cst_467 : f32 to vector<8x28xf32>
    %611 = arith.addf %610, %609 : vector<8x28xf32>
    %612 = arith.divf %610, %611 : vector<8x28xf32>
    %c0_468 = arith.constant 0 : index
    %c672 = arith.constant 672 : index
    %613 = vector.load %arg8[%c0_468, %c672] : memref<8x784xf32, #tpu.memory_space<vmem>>, vector<8x28xf32>
    tpu.vector_store %arg8[%c0_468, %c672], %612 {strides = array<i32>} : memref<8x784xf32, #tpu.memory_space<vmem>>, vector<8x28xf32>,
    %c248 = arith.constant 248 : index
    %c0_469 = arith.constant 0 : index
    %614 = vector.load %arg10[%c248, %c0_469] : memref<272x196xf32, #tpu.memory_space<vmem>>, vector<8x28xf32>
    %c240_470 = arith.constant 240 : index
    %c28_471 = arith.constant 28 : index
    %615 = vector.load %arg10[%c240_470, %c28_471] : memref<272x196xf32, #tpu.memory_space<vmem>>, vector<8x28xf32>
    %616 = arith.addf %614, %615 : vector<8x28xf32>
    %c232_472 = arith.constant 232 : index
    %c56_473 = arith.constant 56 : index
    %617 = vector.load %arg10[%c232_472, %c56_473] : memref<272x196xf32, #tpu.memory_space<vmem>>, vector<8x28xf32>
    %618 = arith.addf %616, %617 : vector<8x28xf32>
    %c224_474 = arith.constant 224 : index
    %c84_475 = arith.constant 84 : index
    %619 = vector.load %arg10[%c224_474, %c84_475] : memref<272x196xf32, #tpu.memory_space<vmem>>, vector<8x28xf32>
    %620 = arith.addf %618, %619 : vector<8x28xf32>
    %c216_476 = arith.constant 216 : index
    %c112_477 = arith.constant 112 : index
    %621 = vector.load %arg10[%c216_476, %c112_477] : memref<272x196xf32, #tpu.memory_space<vmem>>, vector<8x28xf32>
    %622 = arith.addf %620, %621 : vector<8x28xf32>
    %c208_478 = arith.constant 208 : index
    %c140_479 = arith.constant 140 : index
    %623 = vector.load %arg10[%c208_478, %c140_479] : memref<272x196xf32, #tpu.memory_space<vmem>>, vector<8x28xf32>
    %624 = arith.addf %622, %623 : vector<8x28xf32>
    %c200_480 = arith.constant 200 : index
    %c168_481 = arith.constant 168 : index
    %625 = vector.load %arg10[%c200_480, %c168_481] : memref<272x196xf32, #tpu.memory_space<vmem>>, vector<8x28xf32>
    %626 = arith.addf %624, %625 : vector<8x28xf32>
    %627 = vector.broadcast %88 : vector<1x1xf32> to vector<8x28xf32>
    %628 = arith.addf %626, %627 : vector<8x28xf32>
    %629 = arith.negf %628 : vector<8x28xf32>
    %630 = math.exp %629 : vector<8x28xf32>
    %cst_482 = arith.constant 1.000000e+00 : f32
    %631 = vector.broadcast %cst_482 : f32 to vector<8x28xf32>
    %632 = arith.addf %631, %630 : vector<8x28xf32>
    %633 = arith.divf %631, %632 : vector<8x28xf32>
    %c0_483 = arith.constant 0 : index
    %c700 = arith.constant 700 : index
    %634 = vector.load %arg8[%c0_483, %c700] : memref<8x784xf32, #tpu.memory_space<vmem>>, vector<8x28xf32>
    tpu.vector_store %arg8[%c0_483, %c700], %633 {strides = array<i32>} : memref<8x784xf32, #tpu.memory_space<vmem>>, vector<8x28xf32>,
    %c256 = arith.constant 256 : index
    %c0_484 = arith.constant 0 : index
    %635 = vector.load %arg10[%c256, %c0_484] : memref<272x196xf32, #tpu.memory_space<vmem>>, vector<8x28xf32>
    %c248_485 = arith.constant 248 : index
    %c28_486 = arith.constant 28 : index
    %636 = vector.load %arg10[%c248_485, %c28_486] : memref<272x196xf32, #tpu.memory_space<vmem>>, vector<8x28xf32>
    %637 = arith.addf %635, %636 : vector<8x28xf32>
    %c240_487 = arith.constant 240 : index
    %c56_488 = arith.constant 56 : index
    %638 = vector.load %arg10[%c240_487, %c56_488] : memref<272x196xf32, #tpu.memory_space<vmem>>, vector<8x28xf32>
    %639 = arith.addf %637, %638 : vector<8x28xf32>
    %c232_489 = arith.constant 232 : index
    %c84_490 = arith.constant 84 : index
    %640 = vector.load %arg10[%c232_489, %c84_490] : memref<272x196xf32, #tpu.memory_space<vmem>>, vector<8x28xf32>
    %641 = arith.addf %639, %640 : vector<8x28xf32>
    %c224_491 = arith.constant 224 : index
    %c112_492 = arith.constant 112 : index
    %642 = vector.load %arg10[%c224_491, %c112_492] : memref<272x196xf32, #tpu.memory_space<vmem>>, vector<8x28xf32>
    %643 = arith.addf %641, %642 : vector<8x28xf32>
    %c216_493 = arith.constant 216 : index
    %c140_494 = arith.constant 140 : index
    %644 = vector.load %arg10[%c216_493, %c140_494] : memref<272x196xf32, #tpu.memory_space<vmem>>, vector<8x28xf32>
    %645 = arith.addf %643, %644 : vector<8x28xf32>
    %c208_495 = arith.constant 208 : index
    %c168_496 = arith.constant 168 : index
    %646 = vector.load %arg10[%c208_495, %c168_496] : memref<272x196xf32, #tpu.memory_space<vmem>>, vector<8x28xf32>
    %647 = arith.addf %645, %646 : vector<8x28xf32>
    %648 = vector.broadcast %88 : vector<1x1xf32> to vector<8x28xf32>
    %649 = arith.addf %647, %648 : vector<8x28xf32>
    %650 = arith.negf %649 : vector<8x28xf32>
    %651 = math.exp %650 : vector<8x28xf32>
    %cst_497 = arith.constant 1.000000e+00 : f32
    %652 = vector.broadcast %cst_497 : f32 to vector<8x28xf32>
    %653 = arith.addf %652, %651 : vector<8x28xf32>
    %654 = arith.divf %652, %653 : vector<8x28xf32>
    %c0_498 = arith.constant 0 : index
    %c728 = arith.constant 728 : index
    %655 = vector.load %arg8[%c0_498, %c728] : memref<8x784xf32, #tpu.memory_space<vmem>>, vector<8x28xf32>
    tpu.vector_store %arg8[%c0_498, %c728], %654 {strides = array<i32>} : memref<8x784xf32, #tpu.memory_space<vmem>>, vector<8x28xf32>,
    %c264 = arith.constant 264 : index
    %c0_499 = arith.constant 0 : index
    %656 = vector.load %arg10[%c264, %c0_499] : memref<272x196xf32, #tpu.memory_space<vmem>>, vector<8x28xf32>
    %c256_500 = arith.constant 256 : index
    %c28_501 = arith.constant 28 : index
    %657 = vector.load %arg10[%c256_500, %c28_501] : memref<272x196xf32, #tpu.memory_space<vmem>>, vector<8x28xf32>
    %658 = arith.addf %656, %657 : vector<8x28xf32>
    %c248_502 = arith.constant 248 : index
    %c56_503 = arith.constant 56 : index
    %659 = vector.load %arg10[%c248_502, %c56_503] : memref<272x196xf32, #tpu.memory_space<vmem>>, vector<8x28xf32>
    %660 = arith.addf %658, %659 : vector<8x28xf32>
    %c240_504 = arith.constant 240 : index
    %c84_505 = arith.constant 84 : index
    %661 = vector.load %arg10[%c240_504, %c84_505] : memref<272x196xf32, #tpu.memory_space<vmem>>, vector<8x28xf32>
    %662 = arith.addf %660, %661 : vector<8x28xf32>
    %c232_506 = arith.constant 232 : index
    %c112_507 = arith.constant 112 : index
    %663 = vector.load %arg10[%c232_506, %c112_507] : memref<272x196xf32, #tpu.memory_space<vmem>>, vector<8x28xf32>
    %664 = arith.addf %662, %663 : vector<8x28xf32>
    %c224_508 = arith.constant 224 : index
    %c140_509 = arith.constant 140 : index
    %665 = vector.load %arg10[%c224_508, %c140_509] : memref<272x196xf32, #tpu.memory_space<vmem>>, vector<8x28xf32>
    %666 = arith.addf %664, %665 : vector<8x28xf32>
    %c216_510 = arith.constant 216 : index
    %c168_511 = arith.constant 168 : index
    %667 = vector.load %arg10[%c216_510, %c168_511] : memref<272x196xf32, #tpu.memory_space<vmem>>, vector<8x28xf32>
    %668 = arith.addf %666, %667 : vector<8x28xf32>
    %669 = vector.broadcast %88 : vector<1x1xf32> to vector<8x28xf32>
    %670 = arith.addf %668, %669 : vector<8x28xf32>
    %671 = arith.negf %670 : vector<8x28xf32>
    %672 = math.exp %671 : vector<8x28xf32>
    %cst_512 = arith.constant 1.000000e+00 : f32
    %673 = vector.broadcast %cst_512 : f32 to vector<8x28xf32>
    %674 = arith.addf %673, %672 : vector<8x28xf32>
    %675 = arith.divf %673, %674 : vector<8x28xf32>
    %c0_513 = arith.constant 0 : index
    %c756 = arith.constant 756 : index
    %676 = vector.load %arg8[%c0_513, %c756] : memref<8x784xf32, #tpu.memory_space<vmem>>, vector<8x28xf32>
    tpu.vector_store %arg8[%c0_513, %c756], %675 {strides = array<i32>} : memref<8x784xf32, #tpu.memory_space<vmem>>, vector<8x28xf32>,
    return
  }
  func.func @transform_0(%arg0: i32) -> (i32, i32) {
    %c0_i32 = arith.constant 0 : i32
    %c0_i32_0 = arith.constant 0 : i32
    return %arg0, %c0_i32 : i32, i32
  }
  func.func @transform_1(%arg0: i32) -> (i32, i32) {
    %c0_i32 = arith.constant 0 : i32
    %c0_i32_0 = arith.constant 0 : i32
    %c0_i32_1 = arith.constant 0 : i32
    return %c0_i32, %c0_i32_0 : i32, i32
  }
  func.func @transform_2(%arg0: i32) -> (i32, i32) {
    %c0_i32 = arith.constant 0 : i32
    %c0_i32_0 = arith.constant 0 : i32
    %c0_i32_1 = arith.constant 0 : i32
    return %c0_i32, %c0_i32_0 : i32, i32
  }
  func.func @transform_3(%arg0: i32) -> (i32, i32, i32) {
    %c0_i32 = arith.constant 0 : i32
    %c0_i32_0 = arith.constant 0 : i32
    %c0_i32_1 = arith.constant 0 : i32
    %c0_i32_2 = arith.constant 0 : i32
    return %c0_i32, %c0_i32_0, %c0_i32_1 : i32, i32, i32
  }
  func.func @transform_4(%arg0: i32) -> (i32, i32) {
    %c0_i32 = arith.constant 0 : i32
    %c0_i32_0 = arith.constant 0 : i32
    %c0_i32_1 = arith.constant 0 : i32
    return %c0_i32, %c0_i32_0 : i32, i32
  }
  func.func @transform_5(%arg0: i32) -> (i32, i32) {
    %c0_i32 = arith.constant 0 : i32
    %c0_i32_0 = arith.constant 0 : i32
    %c0_i32_1 = arith.constant 0 : i32
    return %c0_i32, %c0_i32_0 : i32, i32
  }
  func.func @transform_6(%arg0: i32) -> (i32, i32) {
    %c0_i32 = arith.constant 0 : i32
    %c0_i32_0 = arith.constant 0 : i32
    %c0_i32_1 = arith.constant 0 : i32
    return %c0_i32, %c0_i32_0 : i32, i32
  }
  func.func @transform_7(%arg0: i32) -> (i32, i32) {
    %c0_i32 = arith.constant 0 : i32
    %c0_i32_0 = arith.constant 0 : i32
    return %arg0, %c0_i32 : i32, i32
  }
}

</mosaic_0001>

<llo_original>
// kernel: vae_decoder_forward.1
$region0: #{vae_decoder_forward.1}
  #allocation0 [shape = 'u32[]', space=smem, size = 0x4, offset = 0x4, fixed_abs, tag = 'smem constant byte address 0x4 - core index']
  #allocation1 [shape = 'u32[144,128]{1,0:T(1,128)}', space=vmem, size = 0x12000, scoped, tag = 'internal scratch']
  #allocation2 [shape = 'f32[224,96]{1,0:T(8,128)}', space=vmem, size = 0x1c000, scoped, tag = 'scratch operand']
  #allocation3 [shape = 'f32[272,196]{1,0:T(8,128)}', space=vmem, size = 0x44000, scoped, tag = 'scratch operand']
  #allocation4 [shape = 'f32[1,1]{1,0:T(1,128)S(1)}', space=vmem, size = 0x200, scoped, tag = 'scoped memory for vae_decoder_forward.1']
  %s0 = inlined_call_operand.vmem [shape: f32[8,5], index: 0, kind: input, shape index: {}]
  %s1 = inlined_call_operand.vmem [shape: f32[5,1536], index: 1, kind: input, shape index: {}]
  %s2 = inlined_call_operand.vmem [shape: f32[1,1536], index: 2, kind: input, shape index: {}]
  %s3 = inlined_call_operand.vmem [shape: f32[7,96,264], index: 3, kind: input, shape index: {}]
  %s4 = inlined_call_operand.vmem [shape: f32[1,264], index: 4, kind: input, shape index: {}]
  %s5 = inlined_call_operand.vmem [shape: f32[264,196], index: 5, kind: input, shape index: {}]
  %s6 = inlined_call_operand.<no memory space> [shape: f32[1,1], index: 6, kind: input, shape index: {}]
  %s7 = inlined_call_operand.vmem [shape: f32[8,784], index: 7, kind: output, shape index: {}]
  %s8 = sld [smem:[#allocation0]]
  $region38: #{vae_decoder_forward.1} parent=0
    _
  %s10 = ssub.s32 1, %s8
  %s11 = scalar_select 0, %s10, %s8
  %v12 = vstv %s6
  %13 = vst [vmem:[#allocation4] sm:$0x1] %v12
  // Predicated region
  $region2: #{vae_decoder_forward.1} parent=0 // pred_check
    _
  $region3: #{vae_decoder_forward.1} parent=0 // pred_check_branch
    %15 = sbr.rel (0) target = $region5
  $region4: #{vae_decoder_forward.1} parent=0 // pred_region
    _
  $region5: #{vae_decoder_forward.1} parent=0 // pred_fallthru
    _
  // Predicated region
  $region6: #{vae_decoder_forward.1} parent=0 // pred_check
    _
  $region7: #{vae_decoder_forward.1} parent=0 // pred_check_branch
    %17 = sbr.rel (0) target = $region9
  $region8: #{vae_decoder_forward.1} parent=0 // pred_region
    _
  $region9: #{vae_decoder_forward.1} parent=0 // pred_fallthru
    _
  // Predicated region
  $region10: #{vae_decoder_forward.1} parent=0 // pred_check
    _
  $region11: #{vae_decoder_forward.1} parent=0 // pred_check_branch
    %19 = sbr.rel (0) target = $region13
  $region12: #{vae_decoder_forward.1} parent=0 // pred_region
    _
  $region13: #{vae_decoder_forward.1} parent=0 // pred_fallthru
    _
  // Predicated region
  $region14: #{vae_decoder_forward.1} parent=0 // pred_check
    _
  $region15: #{vae_decoder_forward.1} parent=0 // pred_check_branch
    %21 = sbr.rel (0) target = $region17
  $region16: #{vae_decoder_forward.1} parent=0 // pred_region
    _
  $region17: #{vae_decoder_forward.1} parent=0 // pred_fallthru
    _
  // Predicated region
  $region18: #{vae_decoder_forward.1} parent=0 // pred_check
    _
  $region19: #{vae_decoder_forward.1} parent=0 // pred_check_branch
    %23 = sbr.rel (0) target = $region21
  $region20: #{vae_decoder_forward.1} parent=0 // pred_region
    _
  $region21: #{vae_decoder_forward.1} parent=0 // pred_fallthru
    _
  // Predicated region
  $region22: #{vae_decoder_forward.1} parent=0 // pred_check
    _
  $region23: #{vae_decoder_forward.1} parent=0 // pred_check_branch
    %25 = sbr.rel (0) target = $region25
  $region24: #{vae_decoder_forward.1} parent=0 // pred_region
    _
  $region25: #{vae_decoder_forward.1} parent=0 // pred_fallthru
    _
  // Predicated region
  $region26: #{vae_decoder_forward.1} parent=0 // pred_check
    _
  $region27: #{vae_decoder_forward.1} parent=0 // pred_check_branch
    %27 = sbr.rel (0) target = $region29
  $region28: #{vae_decoder_forward.1} parent=0 // pred_region
    _
  $region29: #{vae_decoder_forward.1} parent=0 // pred_fallthru
    _
  %v28 = vld [vmem:[%s0] sm:$0xff]
  %v29 = vld [vmem:[%s1] sm:$0x1f]
  %v30 = vld [vmem:[%s1 + $0x8] sm:$0x1f]
  %v31 = vld [vmem:[%s1 + $0x10] sm:$0x1f]
  %v32 = vld [vmem:[%s1 + $0x18] sm:$0x1f]
  %v33 = vld [vmem:[%s1 + $0x20] sm:$0x1f]
  %v34 = vld [vmem:[%s1 + $0x28] sm:$0x1f]
  %v35 = vld [vmem:[%s1 + $0x30] sm:$0x1f]
  %v36 = vld [vmem:[%s1 + $0x38] sm:$0x1f]
  %v37 = vld [vmem:[%s1 + $0x40] sm:$0x1f]
  %v38 = vld [vmem:[%s1 + $0x48] sm:$0x1f]
  %v39 = vld [vmem:[%s1 + $0x50] sm:$0x1f]
  %v40 = vld [vmem:[%s1 + $0x58] sm:$0x1f]
  %v41 = vld [vmem:[%s2] sm:$0xff]
  %v42 = vld [vmem:[%s2 + $0x8] sm:$0xf]
  %v45 = vlaneseq
  %v46 = vshrl.u32 %v45, 7
  %v47 = vsub.s32 0, %v46
  %v48 = vrot.slane %v41, %v47
  %v49 = vlaneseq
  %v50 = vshrl.u32 %v49, 7
  %v51 = vsub.s32 1, %v50
  %v52 = vrot.slane %v41, %v51
  %v53 = vlaneseq
  %v54 = vshrl.u32 %v53, 7
  %v55 = vsub.s32 2, %v54
  %v56 = vrot.slane %v41, %v55
  %v57 = vlaneseq
  %v58 = vshrl.u32 %v57, 7
  %v59 = vsub.s32 3, %v58
  %v60 = vrot.slane %v41, %v59
  %v61 = vlaneseq
  %v62 = vshrl.u32 %v61, 7
  %v63 = vsub.s32 4, %v62
  %v64 = vrot.slane %v41, %v63
  %v65 = vlaneseq
  %v66 = vshrl.u32 %v65, 7
  %v67 = vsub.s32 5, %v66
  %v68 = vrot.slane %v41, %v67
  %v69 = vlaneseq
  %v70 = vshrl.u32 %v69, 7
  %v71 = vsub.s32 6, %v70
  %v72 = vrot.slane %v41, %v71
  %v73 = vlaneseq
  %v74 = vshrl.u32 %v73, 7
  %v75 = vsub.s32 7, %v74
  %v76 = vrot.slane %v41, %v75
  %v77 = vlaneseq
  %v78 = vshrl.u32 %v77, 7
  %v79 = vsub.s32 0, %v78
  %v80 = vrot.slane %v42, %v79
  %v81 = vlaneseq
  %v82 = vshrl.u32 %v81, 7
  %v83 = vsub.s32 1, %v82
  %v84 = vrot.slane %v42, %v83
  %v85 = vlaneseq
  %v86 = vshrl.u32 %v85, 7
  %v87 = vsub.s32 2, %v86
  %v88 = vrot.slane %v42, %v87
  %v89 = vlaneseq
  %v90 = vshrl.u32 %v89, 7
  %v91 = vsub.s32 3, %v90
  %v92 = vrot.slane %v42, %v91
  %vm105 = vcmask 39936
  %v107 = vsel %vm105, %v28, 0
  %vm109 = vcmask 1044480
  %v111 = vsel %vm109, %v29, 0
  %v114 = vsel %vm109, %v30, 0
  %v117 = vsel %vm109, %v31, 0
  %v120 = vsel %vm109, %v32, 0
  %v123 = vsel %vm109, %v33, 0
  %v126 = vsel %vm109, %v34, 0
  %v129 = vsel %vm109, %v35, 0
  %v132 = vsel %vm109, %v36, 0
  %v135 = vsel %vm109, %v37, 0
  %v138 = vsel %vm109, %v38, 0
  %v141 = vsel %vm109, %v39, 0
  %v144 = vsel %vm109, %v40, 0
  %146 = vmatprep.subr.mxu0 %v114
  %147 = vmatpush1.msra.mxu0 %v111
  %148 = vmatprep.subr.mxu0 0.0
  %149 = vmatpush1.msra.mxu0 0.0
  %150 = vmatprep.subr.mxu0 0.0
  %151 = vmatpush1.msra.mxu0 0.0
  %152 = vmatprep.subr.mxu0 0.0
  %153 = vmatpush1.msra.mxu0 0.0
  %154 = vmatprep.subr.mxu0 0.0
  %155 = vmatpush1.msra.mxu0 0.0
  %156 = vmatprep.subr.mxu0 0.0
  %157 = vmatpush1.msra.mxu0 0.0
  %158 = vmatprep.subr.mxu0 0.0
  %159 = vmatpush1.msra.mxu0 0.0
  %160 = vmatprep.subr.mxu0 0.0
  %161 = vmatpush1.msra.mxu0 0.0
  %162 = vmatprep.subr.mxu0 0.0
  %163 = vmatpush1.msra.mxu0 0.0
  %164 = vmatprep.subr.mxu0 0.0
  %165 = vmatpush1.msra.mxu0 0.0
  %166 = vmatprep.subr.mxu0 0.0
  %167 = vmatpush1.msra.mxu0 0.0
  %168 = vmatprep.subr.mxu0 0.0
  %169 = vmatpush1.msra.mxu0 0.0
  %170 = vmatprep.subr.mxu0 0.0
  %171 = vmatpush1.msra.mxu0 0.0
  %172 = vmatprep.subr.mxu0 0.0
  %173 = vmatpush1.msra.mxu0 0.0
  %174 = vmatprep.subr.mxu0 0.0
  %175 = vmatpush1.msra.mxu0 0.0
  %176 = vmatprep.subr.mxu0 0.0
  %177 = vmatpush1.msra.mxu0 0.0
  %178 = vmatprep.subr.mxu0 0.0
  %179 = vmatpush1.msra.mxu0 0.0
  %180 = vmatprep.subr.mxu0 0.0
  %181 = vmatpush1.msra.mxu0 0.0
  %182 = vmatprep.subr.mxu0 0.0
  %183 = vmatpush1.msra.mxu0 0.0
  %184 = vmatprep.subr.mxu0 0.0
  %185 = vmatpush1.msra.mxu0 0.0
  %186 = vmatprep.subr.mxu0 0.0
  %187 = vmatpush1.msra.mxu0 0.0
  %188 = vmatprep.subr.mxu0 0.0
  %189 = vmatpush1.msra.mxu0 0.0
  %190 = vmatprep.subr.mxu0 0.0
  %191 = vmatpush1.msra.mxu0 0.0
  %192 = vmatprep.subr.mxu0 0.0
  %193 = vmatpush1.msra.mxu0 0.0
  %194 = vmatprep.subr.mxu0 0.0
  %195 = vmatpush1.msra.mxu0 0.0
  %196 = vmatprep.subr.mxu0 0.0
  %197 = vmatpush1.msra.mxu0 0.0
  %198 = vmatprep.subr.mxu0 0.0
  %199 = vmatpush1.msra.mxu0 0.0
  %200 = vmatprep.subr.mxu0 0.0
  %201 = vmatpush1.msra.mxu0 0.0
  %202 = vmatprep.subr.mxu0 0.0
  %203 = vmatpush1.msra.mxu0 0.0
  %204 = vmatprep.subr.mxu0 0.0
  %205 = vmatpush1.msra.mxu0 0.0
  %206 = vmatprep.subr.mxu0 0.0
  %207 = vmatpush1.msra.mxu0 0.0
  %208 = vmatprep.subr.mxu0 0.0
  %209 = vmatpush1.msra.mxu0 0.0
  %210 = vmatprep.mubr.f32.mxu0 0.0
  %211 = vmatmul.mubr.f32.gmra.mrb[0].mxu0 %v107
  %v212 = vpop.f32.mrb[0].mxu0
  %v213 = vadd.f32 %v48, %v212
  %v214 = vpop.f32.mrb[0].mxu0
  %v215 = vadd.f32 %v52, %v214
  %216 = vdwg.mxu0
  %217 = vmatprep.subr.mxu0 %v120
  %218 = vmatpush1.msra.mxu0 %v117
  %219 = vmatprep.subr.mxu0 0.0
  %220 = vmatpush1.msra.mxu0 0.0
  %221 = vmatprep.subr.mxu0 0.0
  %222 = vmatpush1.msra.mxu0 0.0
  %223 = vmatprep.subr.mxu0 0.0
  %224 = vmatpush1.msra.mxu0 0.0
  %225 = vmatprep.subr.mxu0 0.0
  %226 = vmatpush1.msra.mxu0 0.0
  %227 = vmatprep.subr.mxu0 0.0
  %228 = vmatpush1.msra.mxu0 0.0
  %229 = vmatprep.subr.mxu0 0.0
  %230 = vmatpush1.msra.mxu0 0.0
  %231 = vmatprep.subr.mxu0 0.0
  %232 = vmatpush1.msra.mxu0 0.0
  %233 = vmatprep.subr.mxu0 0.0
  %234 = vmatpush1.msra.mxu0 0.0
  %235 = vmatprep.subr.mxu0 0.0
  %236 = vmatpush1.msra.mxu0 0.0
  %237 = vmatprep.subr.mxu0 0.0
  %238 = vmatpush1.msra.mxu0 0.0
  %239 = vmatprep.subr.mxu0 0.0
  %240 = vmatpush1.msra.mxu0 0.0
  %241 = vmatprep.subr.mxu0 0.0
  %242 = vmatpush1.msra.mxu0 0.0
  %243 = vmatprep.subr.mxu0 0.0
  %244 = vmatpush1.msra.mxu0 0.0
  %245 = vmatprep.subr.mxu0 0.0
  %246 = vmatpush1.msra.mxu0 0.0
  %247 = vmatprep.subr.mxu0 0.0
  %248 = vmatpush1.msra.mxu0 0.0
  %249 = vmatprep.subr.mxu0 0.0
  %250 = vmatpush1.msra.mxu0 0.0
  %251 = vmatprep.subr.mxu0 0.0
  %252 = vmatpush1.msra.mxu0 0.0
  %253 = vmatprep.subr.mxu0 0.0
  %254 = vmatpush1.msra.mxu0 0.0
  %255 = vmatprep.subr.mxu0 0.0
  %256 = vmatpush1.msra.mxu0 0.0
  %257 = vmatprep.subr.mxu0 0.0
  %258 = vmatpush1.msra.mxu0 0.0
  %259 = vmatprep.subr.mxu0 0.0
  %260 = vmatpush1.msra.mxu0 0.0
  %261 = vmatprep.subr.mxu0 0.0
  %262 = vmatpush1.msra.mxu0 0.0
  %263 = vmatprep.subr.mxu0 0.0
  %264 = vmatpush1.msra.mxu0 0.0
  %265 = vmatprep.subr.mxu0 0.0
  %266 = vmatpush1.msra.mxu0 0.0
  %267 = vmatprep.subr.mxu0 0.0
  %268 = vmatpush1.msra.mxu0 0.0
  %269 = vmatprep.subr.mxu0 0.0
  %270 = vmatpush1.msra.mxu0 0.0
  %271 = vmatprep.subr.mxu0 0.0
  %272 = vmatpush1.msra.mxu0 0.0
  %273 = vmatprep.subr.mxu0 0.0
  %274 = vmatpush1.msra.mxu0 0.0
  %275 = vmatprep.subr.mxu0 0.0
  %276 = vmatpush1.msra.mxu0 0.0
  %277 = vmatprep.subr.mxu0 0.0
  %278 = vmatpush1.msra.mxu0 0.0
  %279 = vmatprep.subr.mxu0 0.0
  %280 = vmatpush1.msra.mxu0 0.0
  %281 = vmatprep.mubr.f32.mxu0 0.0
  %282 = vmatmul.mubr.f32.gmra.mrb[0].mxu0 %v107
  %v283 = vpop.f32.mrb[0].mxu0
  %v284 = vadd.f32 %v56, %v283
  %v285 = vpop.f32.mrb[0].mxu0
  %v286 = vadd.f32 %v60, %v285
  %287 = vdwg.mxu0
  %288 = vmatprep.subr.mxu0 %v126
  %289 = vmatpush1.msra.mxu0 %v123
  %290 = vmatprep.subr.mxu0 0.0
  %291 = vmatpush1.msra.mxu0 0.0
  %292 = vmatprep.subr.mxu0 0.0
  %293 = vmatpush1.msra.mxu0 0.0
  %294 = vmatprep.subr.mxu0 0.0
  %295 = vmatpush1.msra.mxu0 0.0
  %296 = vmatprep.subr.mxu0 0.0
  %297 = vmatpush1.msra.mxu0 0.0
  %298 = vmatprep.subr.mxu0 0.0
  %299 = vmatpush1.msra.mxu0 0.0
  %300 = vmatprep.subr.mxu0 0.0
  %301 = vmatpush1.msra.mxu0 0.0
  %302 = vmatprep.subr.mxu0 0.0
  %303 = vmatpush1.msra.mxu0 0.0
  %304 = vmatprep.subr.mxu0 0.0
  %305 = vmatpush1.msra.mxu0 0.0
  %306 = vmatprep.subr.mxu0 0.0
  %307 = vmatpush1.msra.mxu0 0.0
  %308 = vmatprep.subr.mxu0 0.0
  %309 = vmatpush1.msra.mxu0 0.0
  %310 = vmatprep.subr.mxu0 0.0
  %311 = vmatpush1.msra.mxu0 0.0
  %312 = vmatprep.subr.mxu0 0.0
  %313 = vmatpush1.msra.mxu0 0.0
  %314 = vmatprep.subr.mxu0 0.0
  %315 = vmatpush1.msra.mxu0 0.0
  %316 = vmatprep.subr.mxu0 0.0
  %317 = vmatpush1.msra.mxu0 0.0
  %318 = vmatprep.subr.mxu0 0.0
  %319 = vmatpush1.msra.mxu0 0.0
  %320 = vmatprep.subr.mxu0 0.0
  %321 = vmatpush1.msra.mxu0 0.0
  %322 = vmatprep.subr.mxu0 0.0
  %323 = vmatpush1.msra.mxu0 0.0
  %324 = vmatprep.subr.mxu0 0.0
  %325 = vmatpush1.msra.mxu0 0.0
  %326 = vmatprep.subr.mxu0 0.0
  %327 = vmatpush1.msra.mxu0 0.0
  %328 = vmatprep.subr.mxu0 0.0
  %329 = vmatpush1.msra.mxu0 0.0
  %330 = vmatprep.subr.mxu0 0.0
  %331 = vmatpush1.msra.mxu0 0.0
  %332 = vmatprep.subr.mxu0 0.0
  %333 = vmatpush1.msra.mxu0 0.0
  %334 = vmatprep.subr.mxu0 0.0
  %335 = vmatpush1.msra.mxu0 0.0
  %336 = vmatprep.subr.mxu0 0.0
  %337 = vmatpush1.msra.mxu0 0.0
  %338 = vmatprep.subr.mxu0 0.0
  %339 = vmatpush1.msra.mxu0 0.0
  %340 = vmatprep.subr.mxu0 0.0
  %341 = vmatpush1.msra.mxu0 0.0
  %342 = vmatprep.subr.mxu0 0.0
  %343 = vmatpush1.msra.mxu0 0.0
  %344 = vmatprep.subr.mxu0 0.0
  %345 = vmatpush1.msra.mxu0 0.0
  %346 = vmatprep.subr.mxu0 0.0
  %347 = vmatpush1.msra.mxu0 0.0
  %348 = vmatprep.subr.mxu0 0.0
  %349 = vmatpush1.msra.mxu0 0.0
  %350 = vmatprep.subr.mxu0 0.0
  %351 = vmatpush1.msra.mxu0 0.0
  %352 = vmatprep.mubr.f32.mxu0 0.0
  %353 = vmatmul.mubr.f32.gmra.mrb[0].mxu0 %v107
  %v354 = vpop.f32.mrb[0].mxu0
  %v355 = vadd.f32 %v64, %v354
  %v356 = vpop.f32.mrb[0].mxu0
  %v357 = vadd.f32 %v68, %v356
  %358 = vdwg.mxu0
  %359 = vmatprep.subr.mxu0 %v132
  %360 = vmatpush1.msra.mxu0 %v129
  %361 = vmatprep.subr.mxu0 0.0
  %362 = vmatpush1.msra.mxu0 0.0
  %363 = vmatprep.subr.mxu0 0.0
  %364 = vmatpush1.msra.mxu0 0.0
  %365 = vmatprep.subr.mxu0 0.0
  %366 = vmatpush1.msra.mxu0 0.0
  %367 = vmatprep.subr.mxu0 0.0
  %368 = vmatpush1.msra.mxu0 0.0
  %369 = vmatprep.subr.mxu0 0.0
  %370 = vmatpush1.msra.mxu0 0.0
  %371 = vmatprep.subr.mxu0 0.0
  %372 = vmatpush1.msra.mxu0 0.0
  %373 = vmatprep.subr.mxu0 0.0
  %374 = vmatpush1.msra.mxu0 0.0
  %375 = vmatprep.subr.mxu0 0.0
  %376 = vmatpush1.msra.mxu0 0.0
  %377 = vmatprep.subr.mxu0 0.0
  %378 = vmatpush1.msra.mxu0 0.0
  %379 = vmatprep.subr.mxu0 0.0
  %380 = vmatpush1.msra.mxu0 0.0
  %381 = vmatprep.subr.mxu0 0.0
  %382 = vmatpush1.msra.mxu0 0.0
  %383 = vmatprep.subr.mxu0 0.0
  %384 = vmatpush1.msra.mxu0 0.0
  %385 = vmatprep.subr.mxu0 0.0
  %386 = vmatpush1.msra.mxu0 0.0
  %387 = vmatprep.subr.mxu0 0.0
  %388 = vmatpush1.msra.mxu0 0.0
  %389 = vmatprep.subr.mxu0 0.0
  %390 = vmatpush1.msra.mxu0 0.0
  %391 = vmatprep.subr.mxu0 0.0
  %392 = vmatpush1.msra.mxu0 0.0
  %393 = vmatprep.subr.mxu0 0.0
  %394 = vmatpush1.msra.mxu0 0.0
  %395 = vmatprep.subr.mxu0 0.0
  %396 = vmatpush1.msra.mxu0 0.0
  %397 = vmatprep.subr.mxu0 0.0
  %398 = vmatpush1.msra.mxu0 0.0
  %399 = vmatprep.subr.mxu0 0.0
  %400 = vmatpush1.msra.mxu0 0.0
  %401 = vmatprep.subr.mxu0 0.0
  %402 = vmatpush1.msra.mxu0 0.0
  %403 = vmatprep.subr.mxu0 0.0
  %404 = vmatpush1.msra.mxu0 0.0
  %405 = vmatprep.subr.mxu0 0.0
  %406 = vmatpush1.msra.mxu0 0.0
  %407 = vmatprep.subr.mxu0 0.0
  %408 = vmatpush1.msra.mxu0 0.0
  %409 = vmatprep.subr.mxu0 0.0
  %410 = vmatpush1.msra.mxu0 0.0
  %411 = vmatprep.subr.mxu0 0.0
  %412 = vmatpush1.msra.mxu0 0.0
  %413 = vmatprep.subr.mxu0 0.0
  %414 = vmatpush1.msra.mxu0 0.0
  %415 = vmatprep.subr.mxu0 0.0
  %416 = vmatpush1.msra.mxu0 0.0
  %417 = vmatprep.subr.mxu0 0.0
  %418 = vmatpush1.msra.mxu0 0.0
  %419 = vmatprep.subr.mxu0 0.0
  %420 = vmatpush1.msra.mxu0 0.0
  %421 = vmatprep.subr.mxu0 0.0
  %422 = vmatpush1.msra.mxu0 0.0
  %423 = vmatprep.mubr.f32.mxu0 0.0
  %424 = vmatmul.mubr.f32.gmra.mrb[0].mxu0 %v107
  %v425 = vpop.f32.mrb[0].mxu0
  %v426 = vadd.f32 %v72, %v425
  %v427 = vpop.f32.mrb[0].mxu0
  %v428 = vadd.f32 %v76, %v427
  %429 = vdwg.mxu0
  %430 = vmatprep.subr.mxu0 %v138
  %431 = vmatpush1.msra.mxu0 %v135
  %432 = vmatprep.subr.mxu0 0.0
  %433 = vmatpush1.msra.mxu0 0.0
  %434 = vmatprep.subr.mxu0 0.0
  %435 = vmatpush1.msra.mxu0 0.0
  %436 = vmatprep.subr.mxu0 0.0
  %437 = vmatpush1.msra.mxu0 0.0
  %438 = vmatprep.subr.mxu0 0.0
  %439 = vmatpush1.msra.mxu0 0.0
  %440 = vmatprep.subr.mxu0 0.0
  %441 = vmatpush1.msra.mxu0 0.0
  %442 = vmatprep.subr.mxu0 0.0
  %443 = vmatpush1.msra.mxu0 0.0
  %444 = vmatprep.subr.mxu0 0.0
  %445 = vmatpush1.msra.mxu0 0.0
  %446 = vmatprep.subr.mxu0 0.0
  %447 = vmatpush1.msra.mxu0 0.0
  %448 = vmatprep.subr.mxu0 0.0
  %449 = vmatpush1.msra.mxu0 0.0
  %450 = vmatprep.subr.mxu0 0.0
  %451 = vmatpush1.msra.mxu0 0.0
  %452 = vmatprep.subr.mxu0 0.0
  %453 = vmatpush1.msra.mxu0 0.0
  %454 = vmatprep.subr.mxu0 0.0
  %455 = vmatpush1.msra.mxu0 0.0
  %456 = vmatprep.subr.mxu0 0.0
  %457 = vmatpush1.msra.mxu0 0.0
  %458 = vmatprep.subr.mxu0 0.0
  %459 = vmatpush1.msra.mxu0 0.0
  %460 = vmatprep.subr.mxu0 0.0
  %461 = vmatpush1.msra.mxu0 0.0
  %462 = vmatprep.subr.mxu0 0.0
  %463 = vmatpush1.msra.mxu0 0.0
  %464 = vmatprep.subr.mxu0 0.0
  %465 = vmatpush1.msra.mxu0 0.0
  %466 = vmatprep.subr.mxu0 0.0
  %467 = vmatpush1.msra.mxu0 0.0
  %468 = vmatprep.subr.mxu0 0.0
  %469 = vmatpush1.msra.mxu0 0.0
  %470 = vmatprep.subr.mxu0 0.0
  %471 = vmatpush1.msra.mxu0 0.0
  %472 = vmatprep.subr.mxu0 0.0
  %473 = vmatpush1.msra.mxu0 0.0
  %474 = vmatprep.subr.mxu0 0.0
  %475 = vmatpush1.msra.mxu0 0.0
  %476 = vmatprep.subr.mxu0 0.0
  %477 = vmatpush1.msra.mxu0 0.0
  %478 = vmatprep.subr.mxu0 0.0
  %479 = vmatpush1.msra.mxu0 0.0
  %480 = vmatprep.subr.mxu0 0.0
  %481 = vmatpush1.msra.mxu0 0.0
  %482 = vmatprep.subr.mxu0 0.0
  %483 = vmatpush1.msra.mxu0 0.0
  %484 = vmatprep.subr.mxu0 0.0
  %485 = vmatpush1.msra.mxu0 0.0
  %486 = vmatprep.subr.mxu0 0.0
  %487 = vmatpush1.msra.mxu0 0.0
  %488 = vmatprep.subr.mxu0 0.0
  %489 = vmatpush1.msra.mxu0 0.0
  %490 = vmatprep.subr.mxu0 0.0
  %491 = vmatpush1.msra.mxu0 0.0
  %492 = vmatprep.subr.mxu0 0.0
  %493 = vmatpush1.msra.mxu0 0.0
  %494 = vmatprep.mubr.f32.mxu0 0.0
  %495 = vmatmul.mubr.f32.gmra.mrb[0].mxu0 %v107
  %v496 = vpop.f32.mrb[0].mxu0
  %v497 = vadd.f32 %v80, %v496
  %v498 = vpop.f32.mrb[0].mxu0
  %v499 = vadd.f32 %v84, %v498
  %500 = vdwg.mxu0
  %501 = vmatprep.subr.mxu0 %v144
  %502 = vmatpush1.msra.mxu0 %v141
  %503 = vmatprep.subr.mxu0 0.0
  %504 = vmatpush1.msra.mxu0 0.0
  %505 = vmatprep.subr.mxu0 0.0
  %506 = vmatpush1.msra.mxu0 0.0
  %507 = vmatprep.subr.mxu0 0.0
  %508 = vmatpush1.msra.mxu0 0.0
  %509 = vmatprep.subr.mxu0 0.0
  %510 = vmatpush1.msra.mxu0 0.0
  %511 = vmatprep.subr.mxu0 0.0
  %512 = vmatpush1.msra.mxu0 0.0
  %513 = vmatprep.subr.mxu0 0.0
  %514 = vmatpush1.msra.mxu0 0.0
  %515 = vmatprep.subr.mxu0 0.0
  %516 = vmatpush1.msra.mxu0 0.0
  %517 = vmatprep.subr.mxu0 0.0
  %518 = vmatpush1.msra.mxu0 0.0
  %519 = vmatprep.subr.mxu0 0.0
  %520 = vmatpush1.msra.mxu0 0.0
  %521 = vmatprep.subr.mxu0 0.0
  %522 = vmatpush1.msra.mxu0 0.0
  %523 = vmatprep.subr.mxu0 0.0
  %524 = vmatpush1.msra.mxu0 0.0
  %525 = vmatprep.subr.mxu0 0.0
  %526 = vmatpush1.msra.mxu0 0.0
  %527 = vmatprep.subr.mxu0 0.0
  %528 = vmatpush1.msra.mxu0 0.0
  %529 = vmatprep.subr.mxu0 0.0
  %530 = vmatpush1.msra.mxu0 0.0
  %531 = vmatprep.subr.mxu0 0.0
  %532 = vmatpush1.msra.mxu0 0.0
  %533 = vmatprep.subr.mxu0 0.0
  %534 = vmatpush1.msra.mxu0 0.0
  %535 = vmatprep.subr.mxu0 0.0
  %536 = vmatpush1.msra.mxu0 0.0
  %537 = vmatprep.subr.mxu0 0.0
  %538 = vmatpush1.msra.mxu0 0.0
  %539 = vmatprep.subr.mxu0 0.0
  %540 = vmatpush1.msra.mxu0 0.0
  %541 = vmatprep.subr.mxu0 0.0
  %542 = vmatpush1.msra.mxu0 0.0
  %543 = vmatprep.subr.mxu0 0.0
  %544 = vmatpush1.msra.mxu0 0.0
  %545 = vmatprep.subr.mxu0 0.0
  %546 = vmatpush1.msra.mxu0 0.0
  %547 = vmatprep.subr.mxu0 0.0
  %548 = vmatpush1.msra.mxu0 0.0
  %549 = vmatprep.subr.mxu0 0.0
  %550 = vmatpush1.msra.mxu0 0.0
  %551 = vmatprep.subr.mxu0 0.0
  %552 = vmatpush1.msra.mxu0 0.0
  %553 = vmatprep.subr.mxu0 0.0
  %554 = vmatpush1.msra.mxu0 0.0
  %555 = vmatprep.subr.mxu0 0.0
  %556 = vmatpush1.msra.mxu0 0.0
  %557 = vmatprep.subr.mxu0 0.0
  %558 = vmatpush1.msra.mxu0 0.0
  %559 = vmatprep.subr.mxu0 0.0
  %560 = vmatpush1.msra.mxu0 0.0
  %561 = vmatprep.subr.mxu0 0.0
  %562 = vmatpush1.msra.mxu0 0.0
  %563 = vmatprep.subr.mxu0 0.0
  %564 = vmatpush1.msra.mxu0 0.0
  %565 = vmatprep.mubr.f32.mxu0 0.0
  %566 = vmatmul.mubr.f32.gmra.mrb[0].mxu0 %v107
  %v567 = vpop.f32.mrb[0].mxu0
  %v568 = vadd.f32 %v88, %v567
  %v569 = vpop.f32.mrb[0].mxu0
  %v570 = vadd.f32 %v92, %v569
  %571 = vdwg.mxu0
  %v572 = vmax.f32 %v213, 0.0
  %v573 = vmax.f32 %v215, 0.0
  %v574 = vmax.f32 %v284, 0.0
  %v575 = vmax.f32 %v286, 0.0
  %v576 = vmax.f32 %v355, 0.0
  %v577 = vmax.f32 %v357, 0.0
  %v578 = vmax.f32 %v426, 0.0
  %v579 = vmax.f32 %v428, 0.0
  %v580 = vmax.f32 %v497, 0.0
  %v581 = vmax.f32 %v499, 0.0
  %v582 = vmax.f32 %v568, 0.0
  %v583 = vmax.f32 %v570, 0.0
  %vm584 = vcmask 785408
  %585 = vst.msk [vmem:[#allocation2] sm:$0xff] %vm584, 0.0
  %586 = vst.msk [vmem:[#allocation2 + $0x8] sm:$0xff] %vm584, 0.0
  %587 = vst.msk [vmem:[#allocation2 + $0x10] sm:$0xff] %vm584, 0.0
  %588 = vst.msk [vmem:[#allocation2 + $0x18] sm:$0xff] %vm584, 0.0
  %589 = vst.msk [vmem:[#allocation2 + $0x20] sm:$0xff] %vm584, 0.0
  %590 = vst.msk [vmem:[#allocation2 + $0x28] sm:$0xff] %vm584, 0.0
  %591 = vst.msk [vmem:[#allocation2 + $0xb0] sm:$0xff] %vm584, 0.0
  %592 = vst.msk [vmem:[#allocation2 + $0xb8] sm:$0xff] %vm584, 0.0
  %593 = vst.msk [vmem:[#allocation2 + $0xc0] sm:$0xff] %vm584, 0.0
  %594 = vst.msk [vmem:[#allocation2 + $0xc8] sm:$0xff] %vm584, 0.0
  %595 = vst.msk [vmem:[#allocation2 + $0xd0] sm:$0xff] %vm584, 0.0
  %596 = vst.msk [vmem:[#allocation2 + $0xd8] sm:$0xff] %vm584, 0.0
  %597 = vst.msk [vmem:[#allocation2 + $0x30] sm:$0xff] %vm584, %v572
  %600 = vrot.lane.b32.xlu0 %v572, 32
  %v601 = vpop.permute.xlu0 %600
  %602 = vrot.lane.b32.xlu0 %v573, 32
  %v603 = vpop.permute.xlu0 %602
  %vm604 = vcmask 261120
  %v605 = vsel %vm604, %v601, %v603
  %607 = vst.msk [vmem:[#allocation2 + $0x38] sm:$0xff] %vm584, %v605
  %609 = vrot.lane.b32.xlu0 %v573, 64
  %v610 = vpop.permute.xlu0 %609
  %611 = vrot.lane.b32.xlu0 %v574, 64
  %v612 = vpop.permute.xlu0 %611
  %vm613 = vcmask 523264
  %v614 = vsel %vm613, %v610, %v612
  %616 = vst.msk [vmem:[#allocation2 + $0x40] sm:$0xff] %vm584, %v614
  %617 = vrot.lane.b32.xlu0 %v574, 96
  %v618 = vpop.permute.xlu0 %617
  %620 = vst.msk [vmem:[#allocation2 + $0x48] sm:$0xff] %vm584, %v618
  %621 = vst.msk [vmem:[#allocation2 + $0x50] sm:$0xff] %vm584, %v575
  %624 = vrot.lane.b32.xlu0 %v575, 32
  %v625 = vpop.permute.xlu0 %624
  %626 = vrot.lane.b32.xlu0 %v576, 32
  %v627 = vpop.permute.xlu0 %626
  %v628 = vsel %vm604, %v625, %v627
  %630 = vst.msk [vmem:[#allocation2 + $0x58] sm:$0xff] %vm584, %v628
  %632 = vrot.lane.b32.xlu0 %v576, 64
  %v633 = vpop.permute.xlu0 %632
  %634 = vrot.lane.b32.xlu0 %v577, 64
  %v635 = vpop.permute.xlu0 %634
  %v636 = vsel %vm613, %v633, %v635
  %638 = vst.msk [vmem:[#allocation2 + $0x60] sm:$0xff] %vm584, %v636
  %639 = vrot.lane.b32.xlu0 %v577, 96
  %v640 = vpop.permute.xlu0 %639
  %642 = vst.msk [vmem:[#allocation2 + $0x68] sm:$0xff] %vm584, %v640
  %643 = vst.msk [vmem:[#allocation2 + $0x70] sm:$0xff] %vm584, %v578
  %646 = vrot.lane.b32.xlu0 %v578, 32
  %v647 = vpop.permute.xlu0 %646
  %648 = vrot.lane.b32.xlu0 %v579, 32
  %v649 = vpop.permute.xlu0 %648
  %v650 = vsel %vm604, %v647, %v649
  %652 = vst.msk [vmem:[#allocation2 + $0x78] sm:$0xff] %vm584, %v650
  %654 = vrot.lane.b32.xlu0 %v579, 64
  %v655 = vpop.permute.xlu0 %654
  %656 = vrot.lane.b32.xlu0 %v580, 64
  %v657 = vpop.permute.xlu0 %656
  %v658 = vsel %vm613, %v655, %v657
  %660 = vst.msk [vmem:[#allocation2 + $0x80] sm:$0xff] %vm584, %v658
  %661 = vrot.lane.b32.xlu0 %v580, 96
  %v662 = vpop.permute.xlu0 %661
  %664 = vst.msk [vmem:[#allocation2 + $0x88] sm:$0xff] %vm584, %v662
  %665 = vst.msk [vmem:[#allocation2 + $0x90] sm:$0xff] %vm584, %v581
  %668 = vrot.lane.b32.xlu0 %v581, 32
  %v669 = vpop.permute.xlu0 %668
  %670 = vrot.lane.b32.xlu0 %v582, 32
  %v671 = vpop.permute.xlu0 %670
  %v672 = vsel %vm604, %v669, %v671
  %674 = vst.msk [vmem:[#allocation2 + $0x98] sm:$0xff] %vm584, %v672
  %676 = vrot.lane.b32.xlu0 %v582, 64
  %v677 = vpop.permute.xlu0 %676
  %678 = vrot.lane.b32.xlu0 %v583, 64
  %v679 = vpop.permute.xlu0 %678
  %v680 = vsel %vm613, %v677, %v679
  %682 = vst.msk [vmem:[#allocation2 + $0xa0] sm:$0xff] %vm584, %v680
  %683 = vrot.lane.b32.xlu0 %v583, 96
  %v684 = vpop.permute.xlu0 %683
  %686 = vst.msk [vmem:[#allocation2 + $0xa8] sm:$0xff] %vm584, %v684
  %v687 = vld [vmem:[#allocation2] sm:$0xff]
  %v688 = vld [vmem:[#allocation2 + $0x8] sm:$0xff]
  %v689 = vld [vmem:[#allocation2 + $0x10] sm:$0xff]
  %v690 = vld [vmem:[#allocation2 + $0x18] sm:$0xff]
  %v691 = vld [vmem:[#allocation2 + $0x20] sm:$0xff]
  %v692 = vld [vmem:[#allocation2 + $0x28] sm:$0xff]
  %v693 = vld [vmem:[#allocation2 + $0x30] sm:$0xff]
  %v694 = vld [vmem:[#allocation2 + $0x38] sm:$0xff]
  %v695 = vld [vmem:[#allocation2 + $0x40] sm:$0xff]
  %v696 = vld [vmem:[#allocation2 + $0x48] sm:$0xff]
  %v697 = vld [vmem:[#allocation2 + $0x50] sm:$0xff]
  %v698 = vld [vmem:[#allocation2 + $0x58] sm:$0xff]
  %v699 = vld [vmem:[#allocation2 + $0x60] sm:$0xff]
  %v700 = vld [vmem:[#allocation2 + $0x68] sm:$0xff]
  %v701 = vld [vmem:[#allocation2 + $0x70] sm:$0xff]
  %v702 = vld [vmem:[#allocation2 + $0x78] sm:$0xff]
  %v703 = vld [vmem:[#allocation2 + $0x80] sm:$0xff]
  %v704 = vld [vmem:[#allocation2 + $0x88] sm:$0xff]
  %v705 = vld [vmem:[#allocation2 + $0x90] sm:$0xff]
  %v706 = vld [vmem:[#allocation2 + $0x98] sm:$0xff]
  %v707 = vld [vmem:[#allocation2 + $0xa0] sm:$0xff]
  %v708 = vld [vmem:[#allocation2 + $0xa8] sm:$0xff]
  %v709 = vld [vmem:[%s3] sm:$0xff]
  %v710 = vld [vmem:[%s3 + $0x8] sm:$0xff]
  %v711 = vld [vmem:[%s3 + $0x10] sm:$0xff]
  %v712 = vld [vmem:[%s3 + $0x18] sm:$0xff]
  %v713 = vld [vmem:[%s3 + $0x20] sm:$0xff]
  %v714 = vld [vmem:[%s3 + $0x28] sm:$0xff]
  %v715 = vld [vmem:[%s3 + $0x30] sm:$0xff]
  %v716 = vld [vmem:[%s3 + $0x38] sm:$0xff]
  %v717 = vld [vmem:[%s3 + $0x40] sm:$0xff]
  %v718 = vld [vmem:[%s3 + $0x48] sm:$0xff]
  %v719 = vld [vmem:[%s3 + $0x50] sm:$0xff]
  %v720 = vld [vmem:[%s3 + $0x58] sm:$0xff]
  %v721 = vld [vmem:[%s3 + $0x60] sm:$0xff]
  %v722 = vld [vmem:[%s3 + $0x68] sm:$0xff]
  %v723 = vld [vmem:[%s3 + $0x70] sm:$0xff]
  %v724 = vld [vmem:[%s3 + $0x78] sm:$0xff]
  %v725 = vld [vmem:[%s3 + $0x80] sm:$0xff]
  %v726 = vld [vmem:[%s3 + $0x88] sm:$0xff]
  %v727 = vld [vmem:[%s3 + $0x90] sm:$0xff]
  %v728 = vld [vmem:[%s3 + $0x98] sm:$0xff]
  %v729 = vld [vmem:[%s3 + $0xa0] sm:$0xff]
  %v730 = vld [vmem:[%s3 + $0xa8] sm:$0xff]
  %v731 = vld [vmem:[%s3 + $0xb0] sm:$0xff]
  %v732 = vld [vmem:[%s3 + $0xb8] sm:$0xff]
  %v733 = vld [vmem:[%s3 + $0xc0] sm:$0xff]
  %v734 = vld [vmem:[%s3 + $0xc8] sm:$0xff]
  %v735 = vld [vmem:[%s3 + $0xd0] sm:$0xff]
  %v736 = vld [vmem:[%s3 + $0xd8] sm:$0xff]
  %v737 = vld [vmem:[%s3 + $0xe0] sm:$0xff]
  %v738 = vld [vmem:[%s3 + $0xe8] sm:$0xff]
  %v739 = vld [vmem:[%s3 + $0xf0] sm:$0xff]
  %v740 = vld [vmem:[%s3 + $0xf8] sm:$0xff]
  %v741 = vld [vmem:[%s3 + $0x100] sm:$0xff]
  %v742 = vld [vmem:[%s3 + $0x108] sm:$0xff]
  %v743 = vld [vmem:[%s3 + $0x110] sm:$0xff]
  %v744 = vld [vmem:[%s3 + $0x118] sm:$0xff]
  %v745 = vld [vmem:[#allocation2 + $0xb0] sm:$0xff]
  %s746 = scalar_lea.vmem %s3, 288
  %v747 = vld [vmem:[%s746] sm:$0xff]
  %v748 = vld [vmem:[%s746 + $0x8] sm:$0xff]
  %v749 = vld [vmem:[%s746 + $0x10] sm:$0xff]
  %v750 = vld [vmem:[%s746 + $0x18] sm:$0xff]
  %v751 = vld [vmem:[%s746 + $0x20] sm:$0xff]
  %v752 = vld [vmem:[%s746 + $0x28] sm:$0xff]
  %v753 = vld [vmem:[%s746 + $0x30] sm:$0xff]
  %v754 = vld [vmem:[%s746 + $0x38] sm:$0xff]
  %v755 = vld [vmem:[%s746 + $0x40] sm:$0xff]
  %v756 = vld [vmem:[%s746 + $0x48] sm:$0xff]
  %v757 = vld [vmem:[%s746 + $0x50] sm:$0xff]
  %v758 = vld [vmem:[%s746 + $0x58] sm:$0xff]
  %v759 = vld [vmem:[%s746 + $0x60] sm:$0xff]
  %v760 = vld [vmem:[%s746 + $0x68] sm:$0xff]
  %v761 = vld [vmem:[%s746 + $0x70] sm:$0xff]
  %v762 = vld [vmem:[%s746 + $0x78] sm:$0xff]
  %v763 = vld [vmem:[%s746 + $0x80] sm:$0xff]
  %v764 = vld [vmem:[%s746 + $0x88] sm:$0xff]
  %v765 = vld [vmem:[%s746 + $0x90] sm:$0xff]
  %v766 = vld [vmem:[%s746 + $0x98] sm:$0xff]
  %v767 = vld [vmem:[%s746 + $0xa0] sm:$0xff]
  %v768 = vld [vmem:[%s746 + $0xa8] sm:$0xff]
  %v769 = vld [vmem:[%s746 + $0xb0] sm:$0xff]
  %v770 = vld [vmem:[%s746 + $0xb8] sm:$0xff]
  %v771 = vld [vmem:[%s746 + $0xc0] sm:$0xff]
  %v772 = vld [vmem:[%s746 + $0xc8] sm:$0xff]
  %v773 = vld [vmem:[%s746 + $0xd0] sm:$0xff]
  %v774 = vld [vmem:[%s746 + $0xd8] sm:$0xff]
  %v775 = vld [vmem:[%s746 + $0xe0] sm:$0xff]
  %v776 = vld [vmem:[%s746 + $0xe8] sm:$0xff]
  %v777 = vld [vmem:[%s746 + $0xf0] sm:$0xff]
  %v778 = vld [vmem:[%s746 + $0xf8] sm:$0xff]
  %v779 = vld [vmem:[%s746 + $0x100] sm:$0xff]
  %v780 = vld [vmem:[%s746 + $0x108] sm:$0xff]
  %v781 = vld [vmem:[%s746 + $0x110] sm:$0xff]
  %v782 = vld [vmem:[%s746 + $0x118] sm:$0xff]
  %v784 = vsel %vm584, %v688, 0
  %v787 = vsel %vm584, %v689, 0
  %v790 = vsel %vm584, %v690, 0
  %v793 = vsel %vm584, %v691, 0
  %v796 = vsel %vm584, %v692, 0
  %v799 = vsel %vm584, %v693, 0
  %v802 = vsel %vm584, %v694, 0
  %v805 = vsel %vm584, %v695, 0
  %v808 = vsel %vm584, %v696, 0
  %v811 = vsel %vm584, %v697, 0
  %v814 = vsel %vm584, %v698, 0
  %v817 = vsel %vm584, %v699, 0
  %v820 = vsel %vm584, %v700, 0
  %v823 = vsel %vm584, %v701, 0
  %v826 = vsel %vm584, %v702, 0
  %v829 = vsel %vm584, %v703, 0
  %v832 = vsel %vm584, %v704, 0
  %v835 = vsel %vm584, %v705, 0
  %v838 = vsel %vm584, %v706, 0
  %v841 = vsel %vm584, %v707, 0
  %v844 = vsel %vm584, %v708, 0
  %v847 = vsel %vm584, %v745, 0
  %849 = vmatprep.subr.mxu0 %v748
  %850 = vmatpush1.msra.mxu0 %v747
  %851 = vmatprep.subr.mxu0 %v751
  %852 = vmatpush1.msra.mxu0 %v750
  %853 = vmatprep.subr.mxu0 %v754
  %854 = vmatpush1.msra.mxu0 %v753
  %855 = vmatprep.subr.mxu0 %v757
  %856 = vmatpush1.msra.mxu0 %v756
  %857 = vmatprep.subr.mxu0 %v760
  %858 = vmatpush1.msra.mxu0 %v759
  %859 = vmatprep.subr.mxu0 %v763
  %860 = vmatpush1.msra.mxu0 %v762
  %861 = vmatprep.subr.mxu0 %v766
  %862 = vmatpush1.msra.mxu0 %v765
  %863 = vmatprep.subr.mxu0 %v769
  %864 = vmatpush1.msra.mxu0 %v768
  %865 = vmatprep.subr.mxu0 %v772
  %866 = vmatpush1.msra.mxu0 %v771
  %867 = vmatprep.subr.mxu0 %v775
  %868 = vmatpush1.msra.mxu0 %v774
  %869 = vmatprep.subr.mxu0 %v778
  %870 = vmatpush1.msra.mxu0 %v777
  %871 = vmatprep.subr.mxu0 %v781
  %872 = vmatpush1.msra.mxu0 %v780
  %873 = vmatprep.subr.mxu0 0.0
  %874 = vmatpush1.msra.mxu0 0.0
  %875 = vmatprep.subr.mxu0 0.0
  %876 = vmatpush1.msra.mxu0 0.0
  %877 = vmatprep.subr.mxu0 0.0
  %878 = vmatpush1.msra.mxu0 0.0
  %879 = vmatprep.subr.mxu0 0.0
  %880 = vmatpush1.msra.mxu0 0.0
  %881 = vmatprep.subr.mxu0 0.0
  %882 = vmatpush1.msra.mxu0 0.0
  %883 = vmatprep.subr.mxu0 0.0
  %884 = vmatpush1.msra.mxu0 0.0
  %885 = vmatprep.subr.mxu0 0.0
  %886 = vmatpush1.msra.mxu0 0.0
  %887 = vmatprep.subr.mxu0 0.0
  %888 = vmatpush1.msra.mxu0 0.0
  %889 = vmatprep.subr.mxu0 0.0
  %890 = vmatpush1.msra.mxu0 0.0
  %891 = vmatprep.subr.mxu0 0.0
  %892 = vmatpush1.msra.mxu0 0.0
  %893 = vmatprep.subr.mxu0 0.0
  %894 = vmatpush1.msra.mxu0 0.0
  %895 = vmatprep.subr.mxu0 0.0
  %896 = vmatpush1.msra.mxu0 0.0
  %897 = vmatprep.subr.mxu0 0.0
  %898 = vmatpush1.msra.mxu0 0.0
  %899 = vmatprep.subr.mxu0 0.0
  %900 = vmatpush1.msra.mxu0 0.0
  %901 = vmatprep.subr.mxu0 0.0
  %902 = vmatpush1.msra.mxu0 0.0
  %903 = vmatprep.subr.mxu0 0.0
  %904 = vmatpush1.msra.mxu0 0.0
  %905 = vmatprep.subr.mxu0 0.0
  %906 = vmatpush1.msra.mxu0 0.0
  %907 = vmatprep.subr.mxu0 0.0
  %908 = vmatpush1.msra.mxu0 0.0
  %909 = vmatprep.subr.mxu0 0.0
  %910 = vmatpush1.msra.mxu0 0.0
  %911 = vmatprep.subr.mxu0 0.0
  %912 = vmatpush1.msra.mxu0 0.0
  %913 = vmatprep.mubr.f32.mxu0 0.0
  %914 = vmatmul.mubr.f32.gmra.mrb[0].mxu0 %v784
  %v915 = vpop.f32.mrb[0].mxu0
  %v916 = vadd.f32 0.0, %v915
  %v917 = vpop.f32.mrb[0].mxu0
  %v918 = vadd.f32 0.0, %v917
  %919 = vmatprep.mubr.f32.mxu0 0.0
  %920 = vmatmul.mubr.f32.gmra.mrb[0].mxu0 %v787
  %v921 = vpop.f32.mrb[0].mxu0
  %v922 = vadd.f32 0.0, %v921
  %v923 = vpop.f32.mrb[0].mxu0
  %v924 = vadd.f32 0.0, %v923
  %925 = vmatprep.mubr.f32.mxu0 0.0
  %926 = vmatmul.mubr.f32.gmra.mrb[0].mxu0 %v790
  %v927 = vpop.f32.mrb[0].mxu0
  %v928 = vadd.f32 0.0, %v927
  %v929 = vpop.f32.mrb[0].mxu0
  %v930 = vadd.f32 0.0, %v929
  %931 = vmatprep.mubr.f32.mxu0 0.0
  %932 = vmatmul.mubr.f32.gmra.mrb[0].mxu0 %v793
  %v933 = vpop.f32.mrb[0].mxu0
  %v934 = vadd.f32 0.0, %v933
  %v935 = vpop.f32.mrb[0].mxu0
  %v936 = vadd.f32 0.0, %v935
  %937 = vmatprep.mubr.f32.mxu0 0.0
  %938 = vmatmul.mubr.f32.gmra.mrb[0].mxu0 %v796
  %v939 = vpop.f32.mrb[0].mxu0
  %v940 = vadd.f32 0.0, %v939
  %v941 = vpop.f32.mrb[0].mxu0
  %v942 = vadd.f32 0.0, %v941
  %943 = vmatprep.mubr.f32.mxu0 0.0
  %944 = vmatmul.mubr.f32.gmra.mrb[0].mxu0 %v799
  %v945 = vpop.f32.mrb[0].mxu0
  %v946 = vadd.f32 0.0, %v945
  %v947 = vpop.f32.mrb[0].mxu0
  %v948 = vadd.f32 0.0, %v947
  %949 = vmatprep.mubr.f32.mxu0 0.0
  %950 = vmatmul.mubr.f32.gmra.mrb[0].mxu0 %v802
  %v951 = vpop.f32.mrb[0].mxu0
  %v952 = vadd.f32 0.0, %v951
  %v953 = vpop.f32.mrb[0].mxu0
  %v954 = vadd.f32 0.0, %v953
  %955 = vmatprep.mubr.f32.mxu0 0.0
  %956 = vmatmul.mubr.f32.gmra.mrb[0].mxu0 %v805
  %v957 = vpop.f32.mrb[0].mxu0
  %v958 = vadd.f32 0.0, %v957
  %v959 = vpop.f32.mrb[0].mxu0
  %v960 = vadd.f32 0.0, %v959
  %961 = vmatprep.mubr.f32.mxu0 0.0
  %962 = vmatmul.mubr.f32.gmra.mrb[0].mxu0 %v808
  %v963 = vpop.f32.mrb[0].mxu0
  %v964 = vadd.f32 0.0, %v963
  %v965 = vpop.f32.mrb[0].mxu0
  %v966 = vadd.f32 0.0, %v965
  %967 = vmatprep.mubr.f32.mxu0 0.0
  %968 = vmatmul.mubr.f32.gmra.mrb[0].mxu0 %v811
  %v969 = vpop.f32.mrb[0].mxu0
  %v970 = vadd.f32 0.0, %v969
  %v971 = vpop.f32.mrb[0].mxu0
  %v972 = vadd.f32 0.0, %v971
  %973 = vmatprep.mubr.f32.mxu0 0.0
  %974 = vmatmul.mubr.f32.gmra.mrb[0].mxu0 %v814
  %v975 = vpop.f32.mrb[0].mxu0
  %v976 = vadd.f32 0.0, %v975
  %v977 = vpop.f32.mrb[0].mxu0
  %v978 = vadd.f32 0.0, %v977
  %979 = vmatprep.mubr.f32.mxu0 0.0
  %980 = vmatmul.mubr.f32.gmra.mrb[0].mxu0 %v817
  %v981 = vpop.f32.mrb[0].mxu0
  %v982 = vadd.f32 0.0, %v981
  %v983 = vpop.f32.mrb[0].mxu0
  %v984 = vadd.f32 0.0, %v983
  %985 = vmatprep.mubr.f32.mxu0 0.0
  %986 = vmatmul.mubr.f32.gmra.mrb[0].mxu0 %v820
  %v987 = vpop.f32.mrb[0].mxu0
  %v988 = vadd.f32 0.0, %v987
  %v989 = vpop.f32.mrb[0].mxu0
  %v990 = vadd.f32 0.0, %v989
  %991 = vmatprep.mubr.f32.mxu0 0.0
  %992 = vmatmul.mubr.f32.gmra.mrb[0].mxu0 %v823
  %v993 = vpop.f32.mrb[0].mxu0
  %v994 = vadd.f32 0.0, %v993
  %v995 = vpop.f32.mrb[0].mxu0
  %v996 = vadd.f32 0.0, %v995
  %997 = vmatprep.mubr.f32.mxu0 0.0
  %998 = vmatmul.mubr.f32.gmra.mrb[0].mxu0 %v826
  %v999 = vpop.f32.mrb[0].mxu0
  %v1000 = vadd.f32 0.0, %v999
  %v1001 = vpop.f32.mrb[0].mxu0
  %v1002 = vadd.f32 0.0, %v1001
  %1003 = vmatprep.mubr.f32.mxu0 0.0
  %1004 = vmatmul.mubr.f32.gmra.mrb[0].mxu0 %v829
  %v1005 = vpop.f32.mrb[0].mxu0
  %v1006 = vadd.f32 0.0, %v1005
  %v1007 = vpop.f32.mrb[0].mxu0
  %v1008 = vadd.f32 0.0, %v1007
  %1009 = vmatprep.mubr.f32.mxu0 0.0
  %1010 = vmatmul.mubr.f32.gmra.mrb[0].mxu0 %v832
  %v1011 = vpop.f32.mrb[0].mxu0
  %v1012 = vadd.f32 0.0, %v1011
  %v1013 = vpop.f32.mrb[0].mxu0
  %v1014 = vadd.f32 0.0, %v1013
  %1015 = vmatprep.mubr.f32.mxu0 0.0
  %1016 = vmatmul.mubr.f32.gmra.mrb[0].mxu0 %v835
  %v1017 = vpop.f32.mrb[0].mxu0
  %v1018 = vadd.f32 0.0, %v1017
  %v1019 = vpop.f32.mrb[0].mxu0
  %v1020 = vadd.f32 0.0, %v1019
  %1021 = vmatprep.mubr.f32.mxu0 0.0
  %1022 = vmatmul.mubr.f32.gmra.mrb[0].mxu0 %v838
  %v1023 = vpop.f32.mrb[0].mxu0
  %v1024 = vadd.f32 0.0, %v1023
  %v1025 = vpop.f32.mrb[0].mxu0
  %v1026 = vadd.f32 0.0, %v1025
  %1027 = vmatprep.mubr.f32.mxu0 0.0
  %1028 = vmatmul.mubr.f32.gmra.mrb[0].mxu0 %v841
  %v1029 = vpop.f32.mrb[0].mxu0
  %v1030 = vadd.f32 0.0, %v1029
  %v1031 = vpop.f32.mrb[0].mxu0
  %v1032 = vadd.f32 0.0, %v1031
  %1033 = vmatprep.mubr.f32.mxu0 0.0
  %1034 = vmatmul.mubr.f32.gmra.mrb[0].mxu0 %v844
  %v1035 = vpop.f32.mrb[0].mxu0
  %v1036 = vadd.f32 0.0, %v1035
  %v1037 = vpop.f32.mrb[0].mxu0
  %v1038 = vadd.f32 0.0, %v1037
  %1039 = vmatprep.mubr.f32.mxu0 0.0
  %1040 = vmatmul.mubr.f32.gmra.mrb[0].mxu0 %v847
  %v1041 = vpop.f32.mrb[0].mxu0
  %v1042 = vadd.f32 0.0, %v1041
  %v1043 = vpop.f32.mrb[0].mxu0
  %v1044 = vadd.f32 0.0, %v1043
  %1045 = vdwg.mxu0
  %1046 = vmatprep.subr.mxu0 0.0
  %1047 = vmatpush1.msra.mxu0 %v749
  %1048 = vmatprep.subr.mxu0 0.0
  %1049 = vmatpush1.msra.mxu0 %v752
  %1050 = vmatprep.subr.mxu0 0.0
  %1051 = vmatpush1.msra.mxu0 %v755
  %1052 = vmatprep.subr.mxu0 0.0
  %1053 = vmatpush1.msra.mxu0 %v758
  %1054 = vmatprep.subr.mxu0 0.0
  %1055 = vmatpush1.msra.mxu0 %v761
  %1056 = vmatprep.subr.mxu0 0.0
  %1057 = vmatpush1.msra.mxu0 %v764
  %1058 = vmatprep.subr.mxu0 0.0
  %1059 = vmatpush1.msra.mxu0 %v767
  %1060 = vmatprep.subr.mxu0 0.0
  %1061 = vmatpush1.msra.mxu0 %v770
  %1062 = vmatprep.subr.mxu0 0.0
  %1063 = vmatpush1.msra.mxu0 %v773
  %1064 = vmatprep.subr.mxu0 0.0
  %1065 = vmatpush1.msra.mxu0 %v776
  %1066 = vmatprep.subr.mxu0 0.0
  %1067 = vmatpush1.msra.mxu0 %v779
  %1068 = vmatprep.subr.mxu0 0.0
  %1069 = vmatpush1.msra.mxu0 %v782
  %1070 = vmatprep.subr.mxu0 0.0
  %1071 = vmatpush1.msra.mxu0 0.0
  %1072 = vmatprep.subr.mxu0 0.0
  %1073 = vmatpush1.msra.mxu0 0.0
  %1074 = vmatprep.subr.mxu0 0.0
  %1075 = vmatpush1.msra.mxu0 0.0
  %1076 = vmatprep.subr.mxu0 0.0
  %1077 = vmatpush1.msra.mxu0 0.0
  %1078 = vmatprep.subr.mxu0 0.0
  %1079 = vmatpush1.msra.mxu0 0.0
  %1080 = vmatprep.subr.mxu0 0.0
  %1081 = vmatpush1.msra.mxu0 0.0
  %1082 = vmatprep.subr.mxu0 0.0
  %1083 = vmatpush1.msra.mxu0 0.0
  %1084 = vmatprep.subr.mxu0 0.0
  %1085 = vmatpush1.msra.mxu0 0.0
  %1086 = vmatprep.subr.mxu0 0.0
  %1087 = vmatpush1.msra.mxu0 0.0
  %1088 = vmatprep.subr.mxu0 0.0
  %1089 = vmatpush1.msra.mxu0 0.0
  %1090 = vmatprep.subr.mxu0 0.0
  %1091 = vmatpush1.msra.mxu0 0.0
  %1092 = vmatprep.subr.mxu0 0.0
  %1093 = vmatpush1.msra.mxu0 0.0
  %1094 = vmatprep.subr.mxu0 0.0
  %1095 = vmatpush1.msra.mxu0 0.0
  %1096 = vmatprep.subr.mxu0 0.0
  %1097 = vmatpush1.msra.mxu0 0.0
  %1098 = vmatprep.subr.mxu0 0.0
  %1099 = vmatpush1.msra.mxu0 0.0
  %1100 = vmatprep.subr.mxu0 0.0
  %1101 = vmatpush1.msra.mxu0 0.0
  %1102 = vmatprep.subr.mxu0 0.0
  %1103 = vmatpush1.msra.mxu0 0.0
  %1104 = vmatprep.subr.mxu0 0.0
  %1105 = vmatpush1.msra.mxu0 0.0
  %1106 = vmatprep.subr.mxu0 0.0
  %1107 = vmatpush1.msra.mxu0 0.0
  %1108 = vmatprep.subr.mxu0 0.0
  %1109 = vmatpush1.msra.mxu0 0.0
  %1110 = vmatprep.mubr.f32.mxu0 0.0
  %1111 = vmatmul.mubr.f32.gmra.mrb[0].mxu0 %v784
  %v1112 = vpop.f32.mrb[0].mxu0
  %v1113 = vadd.f32 0.0, %v1112
  %v1114 = vpop.f32.mrb[0].mxu0
  %1115 = vmatprep.mubr.f32.mxu0 0.0
  %1116 = vmatmul.mubr.f32.gmra.mrb[0].mxu0 %v787
  %v1117 = vpop.f32.mrb[0].mxu0
  %v1118 = vadd.f32 0.0, %v1117
  %v1119 = vpop.f32.mrb[0].mxu0
  %1120 = vmatprep.mubr.f32.mxu0 0.0
  %1121 = vmatmul.mubr.f32.gmra.mrb[0].mxu0 %v790
  %v1122 = vpop.f32.mrb[0].mxu0
  %v1123 = vadd.f32 0.0, %v1122
  %v1124 = vpop.f32.mrb[0].mxu0
  %1125 = vmatprep.mubr.f32.mxu0 0.0
  %1126 = vmatmul.mubr.f32.gmra.mrb[0].mxu0 %v793
  %v1127 = vpop.f32.mrb[0].mxu0
  %v1128 = vadd.f32 0.0, %v1127
  %v1129 = vpop.f32.mrb[0].mxu0
  %1130 = vmatprep.mubr.f32.mxu0 0.0
  %1131 = vmatmul.mubr.f32.gmra.mrb[0].mxu0 %v796
  %v1132 = vpop.f32.mrb[0].mxu0
  %v1133 = vadd.f32 0.0, %v1132
  %v1134 = vpop.f32.mrb[0].mxu0
  %1135 = vmatprep.mubr.f32.mxu0 0.0
  %1136 = vmatmul.mubr.f32.gmra.mrb[0].mxu0 %v799
  %v1137 = vpop.f32.mrb[0].mxu0
  %v1138 = vadd.f32 0.0, %v1137
  %v1139 = vpop.f32.mrb[0].mxu0
  %1140 = vmatprep.mubr.f32.mxu0 0.0
  %1141 = vmatmul.mubr.f32.gmra.mrb[0].mxu0 %v802
  %v1142 = vpop.f32.mrb[0].mxu0
  %v1143 = vadd.f32 0.0, %v1142
  %v1144 = vpop.f32.mrb[0].mxu0
  %1145 = vmatprep.mubr.f32.mxu0 0.0
  %1146 = vmatmul.mubr.f32.gmra.mrb[0].mxu0 %v805
  %v1147 = vpop.f32.mrb[0].mxu0
  %v1148 = vadd.f32 0.0, %v1147
  %v1149 = vpop.f32.mrb[0].mxu0
  %1150 = vmatprep.mubr.f32.mxu0 0.0
  %1151 = vmatmul.mubr.f32.gmra.mrb[0].mxu0 %v808
  %v1152 = vpop.f32.mrb[0].mxu0
  %v1153 = vadd.f32 0.0, %v1152
  %v1154 = vpop.f32.mrb[0].mxu0
  %1155 = vmatprep.mubr.f32.mxu0 0.0
  %1156 = vmatmul.mubr.f32.gmra.mrb[0].mxu0 %v811
  %v1157 = vpop.f32.mrb[0].mxu0
  %v1158 = vadd.f32 0.0, %v1157
  %v1159 = vpop.f32.mrb[0].mxu0
  %1160 = vmatprep.mubr.f32.mxu0 0.0
  %1161 = vmatmul.mubr.f32.gmra.mrb[0].mxu0 %v814
  %v1162 = vpop.f32.mrb[0].mxu0
  %v1163 = vadd.f32 0.0, %v1162
  %v1164 = vpop.f32.mrb[0].mxu0
  %1165 = vmatprep.mubr.f32.mxu0 0.0
  %1166 = vmatmul.mubr.f32.gmra.mrb[0].mxu0 %v817
  %v1167 = vpop.f32.mrb[0].mxu0
  %v1168 = vadd.f32 0.0, %v1167
  %v1169 = vpop.f32.mrb[0].mxu0
  %1170 = vmatprep.mubr.f32.mxu0 0.0
  %1171 = vmatmul.mubr.f32.gmra.mrb[0].mxu0 %v820
  %v1172 = vpop.f32.mrb[0].mxu0
  %v1173 = vadd.f32 0.0, %v1172
  %v1174 = vpop.f32.mrb[0].mxu0
  %1175 = vmatprep.mubr.f32.mxu0 0.0
  %1176 = vmatmul.mubr.f32.gmra.mrb[0].mxu0 %v823
  %v1177 = vpop.f32.mrb[0].mxu0
  %v1178 = vadd.f32 0.0, %v1177
  %v1179 = vpop.f32.mrb[0].mxu0
  %1180 = vmatprep.mubr.f32.mxu0 0.0
  %1181 = vmatmul.mubr.f32.gmra.mrb[0].mxu0 %v826
  %v1182 = vpop.f32.mrb[0].mxu0
  %v1183 = vadd.f32 0.0, %v1182
  %v1184 = vpop.f32.mrb[0].mxu0
  %1185 = vmatprep.mubr.f32.mxu0 0.0
  %1186 = vmatmul.mubr.f32.gmra.mrb[0].mxu0 %v829
  %v1187 = vpop.f32.mrb[0].mxu0
  %v1188 = vadd.f32 0.0, %v1187
  %v1189 = vpop.f32.mrb[0].mxu0
  %1190 = vmatprep.mubr.f32.mxu0 0.0
  %1191 = vmatmul.mubr.f32.gmra.mrb[0].mxu0 %v832
  %v1192 = vpop.f32.mrb[0].mxu0
  %v1193 = vadd.f32 0.0, %v1192
  %v1194 = vpop.f32.mrb[0].mxu0
  %1195 = vmatprep.mubr.f32.mxu0 0.0
  %1196 = vmatmul.mubr.f32.gmra.mrb[0].mxu0 %v835
  %v1197 = vpop.f32.mrb[0].mxu0
  %v1198 = vadd.f32 0.0, %v1197
  %v1199 = vpop.f32.mrb[0].mxu0
  %1200 = vmatprep.mubr.f32.mxu0 0.0
  %1201 = vmatmul.mubr.f32.gmra.mrb[0].mxu0 %v838
  %v1202 = vpop.f32.mrb[0].mxu0
  %v1203 = vadd.f32 0.0, %v1202
  %v1204 = vpop.f32.mrb[0].mxu0
  %1205 = vmatprep.mubr.f32.mxu0 0.0
  %1206 = vmatmul.mubr.f32.gmra.mrb[0].mxu0 %v841
  %v1207 = vpop.f32.mrb[0].mxu0
  %v1208 = vadd.f32 0.0, %v1207
  %v1209 = vpop.f32.mrb[0].mxu0
  %1210 = vmatprep.mubr.f32.mxu0 0.0
  %1211 = vmatmul.mubr.f32.gmra.mrb[0].mxu0 %v844
  %v1212 = vpop.f32.mrb[0].mxu0
  %v1213 = vadd.f32 0.0, %v1212
  %v1214 = vpop.f32.mrb[0].mxu0
  %1215 = vmatprep.mubr.f32.mxu0 0.0
  %1216 = vmatmul.mubr.f32.gmra.mrb[0].mxu0 %v847
  %v1217 = vpop.f32.mrb[0].mxu0
  %v1218 = vadd.f32 0.0, %v1217
  %v1219 = vpop.f32.mrb[0].mxu0
  %1220 = vdwg.mxu0
  %v1222 = vsel %vm584, %v687, 0
  %1224 = vmatprep.subr.mxu0 %v710
  %1225 = vmatpush1.msra.mxu0 %v709
  %1226 = vmatprep.subr.mxu0 %v713
  %1227 = vmatpush1.msra.mxu0 %v712
  %1228 = vmatprep.subr.mxu0 %v716
  %1229 = vmatpush1.msra.mxu0 %v715
  %1230 = vmatprep.subr.mxu0 %v719
  %1231 = vmatpush1.msra.mxu0 %v718
  %1232 = vmatprep.subr.mxu0 %v722
  %1233 = vmatpush1.msra.mxu0 %v721
  %1234 = vmatprep.subr.mxu0 %v725
  %1235 = vmatpush1.msra.mxu0 %v724
  %1236 = vmatprep.subr.mxu0 %v728
  %1237 = vmatpush1.msra.mxu0 %v727
  %1238 = vmatprep.subr.mxu0 %v731
  %1239 = vmatpush1.msra.mxu0 %v730
  %1240 = vmatprep.subr.mxu0 %v734
  %1241 = vmatpush1.msra.mxu0 %v733
  %1242 = vmatprep.subr.mxu0 %v737
  %1243 = vmatpush1.msra.mxu0 %v736
  %1244 = vmatprep.subr.mxu0 %v740
  %1245 = vmatpush1.msra.mxu0 %v739
  %1246 = vmatprep.subr.mxu0 %v743
  %1247 = vmatpush1.msra.mxu0 %v742
  %1248 = vmatprep.subr.mxu0 0.0
  %1249 = vmatpush1.msra.mxu0 0.0
  %1250 = vmatprep.subr.mxu0 0.0
  %1251 = vmatpush1.msra.mxu0 0.0
  %1252 = vmatprep.subr.mxu0 0.0
  %1253 = vmatpush1.msra.mxu0 0.0
  %1254 = vmatprep.subr.mxu0 0.0
  %1255 = vmatpush1.msra.mxu0 0.0
  %1256 = vmatprep.subr.mxu0 0.0
  %1257 = vmatpush1.msra.mxu0 0.0
  %1258 = vmatprep.subr.mxu0 0.0
  %1259 = vmatpush1.msra.mxu0 0.0
  %1260 = vmatprep.subr.mxu0 0.0
  %1261 = vmatpush1.msra.mxu0 0.0
  %1262 = vmatprep.subr.mxu0 0.0
  %1263 = vmatpush1.msra.mxu0 0.0
  %1264 = vmatprep.subr.mxu0 0.0
  %1265 = vmatpush1.msra.mxu0 0.0
  %1266 = vmatprep.subr.mxu0 0.0
  %1267 = vmatpush1.msra.mxu0 0.0
  %1268 = vmatprep.subr.mxu0 0.0
  %1269 = vmatpush1.msra.mxu0 0.0
  %1270 = vmatprep.subr.mxu0 0.0
  %1271 = vmatpush1.msra.mxu0 0.0
  %1272 = vmatprep.subr.mxu0 0.0
  %1273 = vmatpush1.msra.mxu0 0.0
  %1274 = vmatprep.subr.mxu0 0.0
  %1275 = vmatpush1.msra.mxu0 0.0
  %1276 = vmatprep.subr.mxu0 0.0
  %1277 = vmatpush1.msra.mxu0 0.0
  %1278 = vmatprep.subr.mxu0 0.0
  %1279 = vmatpush1.msra.mxu0 0.0
  %1280 = vmatprep.subr.mxu0 0.0
  %1281 = vmatpush1.msra.mxu0 0.0
  %1282 = vmatprep.subr.mxu0 0.0
  %1283 = vmatpush1.msra.mxu0 0.0
  %1284 = vmatprep.subr.mxu0 0.0
  %1285 = vmatpush1.msra.mxu0 0.0
  %1286 = vmatprep.subr.mxu0 0.0
  %1287 = vmatpush1.msra.mxu0 0.0
  %1288 = vmatprep.mubr.f32.mxu0 0.0
  %1289 = vmatmul.mubr.f32.gmra.mrb[0].mxu0 %v1222
  %v1290 = vpop.f32.mrb[0].mxu0
  %v1291 = vadd.f32 %v916, %v1290
  %v1292 = vpop.f32.mrb[0].mxu0
  %v1293 = vadd.f32 %v918, %v1292
  %1294 = vmatprep.mubr.f32.mxu0 0.0
  %1295 = vmatmul.mubr.f32.gmra.mrb[0].mxu0 %v784
  %v1296 = vpop.f32.mrb[0].mxu0
  %v1297 = vadd.f32 %v922, %v1296
  %v1298 = vpop.f32.mrb[0].mxu0
  %v1299 = vadd.f32 %v924, %v1298
  %1300 = vmatprep.mubr.f32.mxu0 0.0
  %1301 = vmatmul.mubr.f32.gmra.mrb[0].mxu0 %v787
  %v1302 = vpop.f32.mrb[0].mxu0
  %v1303 = vadd.f32 %v928, %v1302
  %v1304 = vpop.f32.mrb[0].mxu0
  %v1305 = vadd.f32 %v930, %v1304
  %1306 = vmatprep.mubr.f32.mxu0 0.0
  %1307 = vmatmul.mubr.f32.gmra.mrb[0].mxu0 %v790
  %v1308 = vpop.f32.mrb[0].mxu0
  %v1309 = vadd.f32 %v934, %v1308
  %v1310 = vpop.f32.mrb[0].mxu0
  %v1311 = vadd.f32 %v936, %v1310
  %1312 = vmatprep.mubr.f32.mxu0 0.0
  %1313 = vmatmul.mubr.f32.gmra.mrb[0].mxu0 %v793
  %v1314 = vpop.f32.mrb[0].mxu0
  %v1315 = vadd.f32 %v940, %v1314
  %v1316 = vpop.f32.mrb[0].mxu0
  %v1317 = vadd.f32 %v942, %v1316
  %1318 = vmatprep.mubr.f32.mxu0 0.0
  %1319 = vmatmul.mubr.f32.gmra.mrb[0].mxu0 %v796
  %v1320 = vpop.f32.mrb[0].mxu0
  %v1321 = vadd.f32 %v946, %v1320
  %v1322 = vpop.f32.mrb[0].mxu0
  %v1323 = vadd.f32 %v948, %v1322
  %1324 = vmatprep.mubr.f32.mxu0 0.0
  %1325 = vmatmul.mubr.f32.gmra.mrb[0].mxu0 %v799
  %v1326 = vpop.f32.mrb[0].mxu0
  %v1327 = vadd.f32 %v952, %v1326
  %v1328 = vpop.f32.mrb[0].mxu0
  %v1329 = vadd.f32 %v954, %v1328
  %1330 = vmatprep.mubr.f32.mxu0 0.0
  %1331 = vmatmul.mubr.f32.gmra.mrb[0].mxu0 %v802
  %v1332 = vpop.f32.mrb[0].mxu0
  %v1333 = vadd.f32 %v958, %v1332
  %v1334 = vpop.f32.mrb[0].mxu0
  %v1335 = vadd.f32 %v960, %v1334
  %1336 = vmatprep.mubr.f32.mxu0 0.0
  %1337 = vmatmul.mubr.f32.gmra.mrb[0].mxu0 %v805
  %v1338 = vpop.f32.mrb[0].mxu0
  %v1339 = vadd.f32 %v964, %v1338
  %v1340 = vpop.f32.mrb[0].mxu0
  %v1341 = vadd.f32 %v966, %v1340
  %1342 = vmatprep.mubr.f32.mxu0 0.0
  %1343 = vmatmul.mubr.f32.gmra.mrb[0].mxu0 %v808
  %v1344 = vpop.f32.mrb[0].mxu0
  %v1345 = vadd.f32 %v970, %v1344
  %v1346 = vpop.f32.mrb[0].mxu0
  %v1347 = vadd.f32 %v972, %v1346
  %1348 = vmatprep.mubr.f32.mxu0 0.0
  %1349 = vmatmul.mubr.f32.gmra.mrb[0].mxu0 %v811
  %v1350 = vpop.f32.mrb[0].mxu0
  %v1351 = vadd.f32 %v976, %v1350
  %v1352 = vpop.f32.mrb[0].mxu0
  %v1353 = vadd.f32 %v978, %v1352
  %1354 = vmatprep.mubr.f32.mxu0 0.0
  %1355 = vmatmul.mubr.f32.gmra.mrb[0].mxu0 %v814
  %v1356 = vpop.f32.mrb[0].mxu0
  %v1357 = vadd.f32 %v982, %v1356
  %v1358 = vpop.f32.mrb[0].mxu0
  %v1359 = vadd.f32 %v984, %v1358
  %1360 = vmatprep.mubr.f32.mxu0 0.0
  %1361 = vmatmul.mubr.f32.gmra.mrb[0].mxu0 %v817
  %v1362 = vpop.f32.mrb[0].mxu0
  %v1363 = vadd.f32 %v988, %v1362
  %v1364 = vpop.f32.mrb[0].mxu0
  %v1365 = vadd.f32 %v990, %v1364
  %1366 = vmatprep.mubr.f32.mxu0 0.0
  %1367 = vmatmul.mubr.f32.gmra.mrb[0].mxu0 %v820
  %v1368 = vpop.f32.mrb[0].mxu0
  %v1369 = vadd.f32 %v994, %v1368
  %v1370 = vpop.f32.mrb[0].mxu0
  %v1371 = vadd.f32 %v996, %v1370
  %1372 = vmatprep.mubr.f32.mxu0 0.0
  %1373 = vmatmul.mubr.f32.gmra.mrb[0].mxu0 %v823
  %v1374 = vpop.f32.mrb[0].mxu0
  %v1375 = vadd.f32 %v1000, %v1374
  %v1376 = vpop.f32.mrb[0].mxu0
  %v1377 = vadd.f32 %v1002, %v1376
  %1378 = vmatprep.mubr.f32.mxu0 0.0
  %1379 = vmatmul.mubr.f32.gmra.mrb[0].mxu0 %v826
  %v1380 = vpop.f32.mrb[0].mxu0
  %v1381 = vadd.f32 %v1006, %v1380
  %v1382 = vpop.f32.mrb[0].mxu0
  %v1383 = vadd.f32 %v1008, %v1382
  %1384 = vmatprep.mubr.f32.mxu0 0.0
  %1385 = vmatmul.mubr.f32.gmra.mrb[0].mxu0 %v829
  %v1386 = vpop.f32.mrb[0].mxu0
  %v1387 = vadd.f32 %v1012, %v1386
  %v1388 = vpop.f32.mrb[0].mxu0
  %v1389 = vadd.f32 %v1014, %v1388
  %1390 = vmatprep.mubr.f32.mxu0 0.0
  %1391 = vmatmul.mubr.f32.gmra.mrb[0].mxu0 %v832
  %v1392 = vpop.f32.mrb[0].mxu0
  %v1393 = vadd.f32 %v1018, %v1392
  %v1394 = vpop.f32.mrb[0].mxu0
  %v1395 = vadd.f32 %v1020, %v1394
  %1396 = vmatprep.mubr.f32.mxu0 0.0
  %1397 = vmatmul.mubr.f32.gmra.mrb[0].mxu0 %v835
  %v1398 = vpop.f32.mrb[0].mxu0
  %v1399 = vadd.f32 %v1024, %v1398
  %v1400 = vpop.f32.mrb[0].mxu0
  %v1401 = vadd.f32 %v1026, %v1400
  %1402 = vmatprep.mubr.f32.mxu0 0.0
  %1403 = vmatmul.mubr.f32.gmra.mrb[0].mxu0 %v838
  %v1404 = vpop.f32.mrb[0].mxu0
  %v1405 = vadd.f32 %v1030, %v1404
  %v1406 = vpop.f32.mrb[0].mxu0
  %v1407 = vadd.f32 %v1032, %v1406
  %1408 = vmatprep.mubr.f32.mxu0 0.0
  %1409 = vmatmul.mubr.f32.gmra.mrb[0].mxu0 %v841
  %v1410 = vpop.f32.mrb[0].mxu0
  %v1411 = vadd.f32 %v1036, %v1410
  %v1412 = vpop.f32.mrb[0].mxu0
  %v1413 = vadd.f32 %v1038, %v1412
  %1414 = vmatprep.mubr.f32.mxu0 0.0
  %1415 = vmatmul.mubr.f32.gmra.mrb[0].mxu0 %v844
  %v1416 = vpop.f32.mrb[0].mxu0
  %v1417 = vadd.f32 %v1042, %v1416
  %v1418 = vpop.f32.mrb[0].mxu0
  %v1419 = vadd.f32 %v1044, %v1418
  %1420 = vdwg.mxu0
  %1421 = vmatprep.subr.mxu0 0.0
  %1422 = vmatpush1.msra.mxu0 %v711
  %1423 = vmatprep.subr.mxu0 0.0
  %1424 = vmatpush1.msra.mxu0 %v714
  %1425 = vmatprep.subr.mxu0 0.0
  %1426 = vmatpush1.msra.mxu0 %v717
  %1427 = vmatprep.subr.mxu0 0.0
  %1428 = vmatpush1.msra.mxu0 %v720
  %1429 = vmatprep.subr.mxu0 0.0
  %1430 = vmatpush1.msra.mxu0 %v723
  %1431 = vmatprep.subr.mxu0 0.0
  %1432 = vmatpush1.msra.mxu0 %v726
  %1433 = vmatprep.subr.mxu0 0.0
  %1434 = vmatpush1.msra.mxu0 %v729
  %1435 = vmatprep.subr.mxu0 0.0
  %1436 = vmatpush1.msra.mxu0 %v732
  %1437 = vmatprep.subr.mxu0 0.0
  %1438 = vmatpush1.msra.mxu0 %v735
  %1439 = vmatprep.subr.mxu0 0.0
  %1440 = vmatpush1.msra.mxu0 %v738
  %1441 = vmatprep.subr.mxu0 0.0
  %1442 = vmatpush1.msra.mxu0 %v741
  %1443 = vmatprep.subr.mxu0 0.0
  %1444 = vmatpush1.msra.mxu0 %v744
  %1445 = vmatprep.subr.mxu0 0.0
  %1446 = vmatpush1.msra.mxu0 0.0
  %1447 = vmatprep.subr.mxu0 0.0
  %1448 = vmatpush1.msra.mxu0 0.0
  %1449 = vmatprep.subr.mxu0 0.0
  %1450 = vmatpush1.msra.mxu0 0.0
  %1451 = vmatprep.subr.mxu0 0.0
  %1452 = vmatpush1.msra.mxu0 0.0
  %1453 = vmatprep.subr.mxu0 0.0
  %1454 = vmatpush1.msra.mxu0 0.0
  %1455 = vmatprep.subr.mxu0 0.0
  %1456 = vmatpush1.msra.mxu0 0.0
  %1457 = vmatprep.subr.mxu0 0.0
  %1458 = vmatpush1.msra.mxu0 0.0
  %1459 = vmatprep.subr.mxu0 0.0
  %1460 = vmatpush1.msra.mxu0 0.0
  %1461 = vmatprep.subr.mxu0 0.0
  %1462 = vmatpush1.msra.mxu0 0.0
  %1463 = vmatprep.subr.mxu0 0.0
  %1464 = vmatpush1.msra.mxu0 0.0
  %1465 = vmatprep.subr.mxu0 0.0
  %1466 = vmatpush1.msra.mxu0 0.0
  %1467 = vmatprep.subr.mxu0 0.0
  %1468 = vmatpush1.msra.mxu0 0.0
  %1469 = vmatprep.subr.mxu0 0.0
  %1470 = vmatpush1.msra.mxu0 0.0
  %1471 = vmatprep.subr.mxu0 0.0
  %1472 = vmatpush1.msra.mxu0 0.0
  %1473 = vmatprep.subr.mxu0 0.0
  %1474 = vmatpush1.msra.mxu0 0.0
  %1475 = vmatprep.subr.mxu0 0.0
  %1476 = vmatpush1.msra.mxu0 0.0
  %1477 = vmatprep.subr.mxu0 0.0
  %1478 = vmatpush1.msra.mxu0 0.0
  %1479 = vmatprep.subr.mxu0 0.0
  %1480 = vmatpush1.msra.mxu0 0.0
  %1481 = vmatprep.subr.mxu0 0.0
  %1482 = vmatpush1.msra.mxu0 0.0
  %1483 = vmatprep.subr.mxu0 0.0
  %1484 = vmatpush1.msra.mxu0 0.0
  %1485 = vmatprep.mubr.f32.mxu0 0.0
  %1486 = vmatmul.mubr.f32.gmra.mrb[0].mxu0 %v1222
  %v1487 = vpop.f32.mrb[0].mxu0
  %v1488 = vadd.f32 %v1113, %v1487
  %v1489 = vpop.f32.mrb[0].mxu0
  %1490 = vmatprep.mubr.f32.mxu0 0.0
  %1491 = vmatmul.mubr.f32.gmra.mrb[0].mxu0 %v784
  %v1492 = vpop.f32.mrb[0].mxu0
  %v1493 = vadd.f32 %v1118, %v1492
  %v1494 = vpop.f32.mrb[0].mxu0
  %1495 = vmatprep.mubr.f32.mxu0 0.0
  %1496 = vmatmul.mubr.f32.gmra.mrb[0].mxu0 %v787
  %v1497 = vpop.f32.mrb[0].mxu0
  %v1498 = vadd.f32 %v1123, %v1497
  %v1499 = vpop.f32.mrb[0].mxu0
  %1500 = vmatprep.mubr.f32.mxu0 0.0
  %1501 = vmatmul.mubr.f32.gmra.mrb[0].mxu0 %v790
  %v1502 = vpop.f32.mrb[0].mxu0
  %v1503 = vadd.f32 %v1128, %v1502
  %v1504 = vpop.f32.mrb[0].mxu0
  %1505 = vmatprep.mubr.f32.mxu0 0.0
  %1506 = vmatmul.mubr.f32.gmra.mrb[0].mxu0 %v793
  %v1507 = vpop.f32.mrb[0].mxu0
  %v1508 = vadd.f32 %v1133, %v1507
  %v1509 = vpop.f32.mrb[0].mxu0
  %1510 = vmatprep.mubr.f32.mxu0 0.0
  %1511 = vmatmul.mubr.f32.gmra.mrb[0].mxu0 %v796
  %v1512 = vpop.f32.mrb[0].mxu0
  %v1513 = vadd.f32 %v1138, %v1512
  %v1514 = vpop.f32.mrb[0].mxu0
  %1515 = vmatprep.mubr.f32.mxu0 0.0
  %1516 = vmatmul.mubr.f32.gmra.mrb[0].mxu0 %v799
  %v1517 = vpop.f32.mrb[0].mxu0
  %v1518 = vadd.f32 %v1143, %v1517
  %v1519 = vpop.f32.mrb[0].mxu0
  %1520 = vmatprep.mubr.f32.mxu0 0.0
  %1521 = vmatmul.mubr.f32.gmra.mrb[0].mxu0 %v802
  %v1522 = vpop.f32.mrb[0].mxu0
  %v1523 = vadd.f32 %v1148, %v1522
  %v1524 = vpop.f32.mrb[0].mxu0
  %1525 = vmatprep.mubr.f32.mxu0 0.0
  %1526 = vmatmul.mubr.f32.gmra.mrb[0].mxu0 %v805
  %v1527 = vpop.f32.mrb[0].mxu0
  %v1528 = vadd.f32 %v1153, %v1527
  %v1529 = vpop.f32.mrb[0].mxu0
  %1530 = vmatprep.mubr.f32.mxu0 0.0
  %1531 = vmatmul.mubr.f32.gmra.mrb[0].mxu0 %v808
  %v1532 = vpop.f32.mrb[0].mxu0
  %v1533 = vadd.f32 %v1158, %v1532
  %v1534 = vpop.f32.mrb[0].mxu0
  %1535 = vmatprep.mubr.f32.mxu0 0.0
  %1536 = vmatmul.mubr.f32.gmra.mrb[0].mxu0 %v811
  %v1537 = vpop.f32.mrb[0].mxu0
  %v1538 = vadd.f32 %v1163, %v1537
  %v1539 = vpop.f32.mrb[0].mxu0
  %1540 = vmatprep.mubr.f32.mxu0 0.0
  %1541 = vmatmul.mubr.f32.gmra.mrb[0].mxu0 %v814
  %v1542 = vpop.f32.mrb[0].mxu0
  %v1543 = vadd.f32 %v1168, %v1542
  %v1544 = vpop.f32.mrb[0].mxu0
  %1545 = vmatprep.mubr.f32.mxu0 0.0
  %1546 = vmatmul.mubr.f32.gmra.mrb[0].mxu0 %v817
  %v1547 = vpop.f32.mrb[0].mxu0
  %v1548 = vadd.f32 %v1173, %v1547
  %v1549 = vpop.f32.mrb[0].mxu0
  %1550 = vmatprep.mubr.f32.mxu0 0.0
  %1551 = vmatmul.mubr.f32.gmra.mrb[0].mxu0 %v820
  %v1552 = vpop.f32.mrb[0].mxu0
  %v1553 = vadd.f32 %v1178, %v1552
  %v1554 = vpop.f32.mrb[0].mxu0
  %1555 = vmatprep.mubr.f32.mxu0 0.0
  %1556 = vmatmul.mubr.f32.gmra.mrb[0].mxu0 %v823
  %v1557 = vpop.f32.mrb[0].mxu0
  %v1558 = vadd.f32 %v1183, %v1557
  %v1559 = vpop.f32.mrb[0].mxu0
  %1560 = vmatprep.mubr.f32.mxu0 0.0
  %1561 = vmatmul.mubr.f32.gmra.mrb[0].mxu0 %v826
  %v1562 = vpop.f32.mrb[0].mxu0
  %v1563 = vadd.f32 %v1188, %v1562
  %v1564 = vpop.f32.mrb[0].mxu0
  %1565 = vmatprep.mubr.f32.mxu0 0.0
  %1566 = vmatmul.mubr.f32.gmra.mrb[0].mxu0 %v829
  %v1567 = vpop.f32.mrb[0].mxu0
  %v1568 = vadd.f32 %v1193, %v1567
  %v1569 = vpop.f32.mrb[0].mxu0
  %1570 = vmatprep.mubr.f32.mxu0 0.0
  %1571 = vmatmul.mubr.f32.gmra.mrb[0].mxu0 %v832
  %v1572 = vpop.f32.mrb[0].mxu0
  %v1573 = vadd.f32 %v1198, %v1572
  %v1574 = vpop.f32.mrb[0].mxu0
  %1575 = vmatprep.mubr.f32.mxu0 0.0
  %1576 = vmatmul.mubr.f32.gmra.mrb[0].mxu0 %v835
  %v1577 = vpop.f32.mrb[0].mxu0
  %v1578 = vadd.f32 %v1203, %v1577
  %v1579 = vpop.f32.mrb[0].mxu0
  %1580 = vmatprep.mubr.f32.mxu0 0.0
  %1581 = vmatmul.mubr.f32.gmra.mrb[0].mxu0 %v838
  %v1582 = vpop.f32.mrb[0].mxu0
  %v1583 = vadd.f32 %v1208, %v1582
  %v1584 = vpop.f32.mrb[0].mxu0
  %1585 = vmatprep.mubr.f32.mxu0 0.0
  %1586 = vmatmul.mubr.f32.gmra.mrb[0].mxu0 %v841
  %v1587 = vpop.f32.mrb[0].mxu0
  %v1588 = vadd.f32 %v1213, %v1587
  %v1589 = vpop.f32.mrb[0].mxu0
  %1590 = vmatprep.mubr.f32.mxu0 0.0
  %1591 = vmatmul.mubr.f32.gmra.mrb[0].mxu0 %v844
  %v1592 = vpop.f32.mrb[0].mxu0
  %v1593 = vadd.f32 %v1218, %v1592
  %v1594 = vpop.f32.mrb[0].mxu0
  %1595 = vdwg.mxu0
  %v1596 = vld [vmem:[#allocation2 + $0x10] sm:$0xff]
  %v1597 = vld [vmem:[#allocation2 + $0x18] sm:$0xff]
  %v1598 = vld [vmem:[#allocation2 + $0x20] sm:$0xff]
  %v1599 = vld [vmem:[#allocation2 + $0x28] sm:$0xff]
  %v1600 = vld [vmem:[#allocation2 + $0x30] sm:$0xff]
  %v1601 = vld [vmem:[#allocation2 + $0x38] sm:$0xff]
  %v1602 = vld [vmem:[#allocation2 + $0x40] sm:$0xff]
  %v1603 = vld [vmem:[#allocation2 + $0x48] sm:$0xff]
  %v1604 = vld [vmem:[#allocation2 + $0x50] sm:$0xff]
  %v1605 = vld [vmem:[#allocation2 + $0x58] sm:$0xff]
  %v1606 = vld [vmem:[#allocation2 + $0x60] sm:$0xff]
  %v1607 = vld [vmem:[#allocation2 + $0x68] sm:$0xff]
  %v1608 = vld [vmem:[#allocation2 + $0x70] sm:$0xff]
  %v1609 = vld [vmem:[#allocation2 + $0x78] sm:$0xff]
  %v1610 = vld [vmem:[#allocation2 + $0x80] sm:$0xff]
  %v1611 = vld [vmem:[#allocation2 + $0x88] sm:$0xff]
  %v1612 = vld [vmem:[#allocation2 + $0x90] sm:$0xff]
  %v1613 = vld [vmem:[#allocation2 + $0x98] sm:$0xff]
  %v1614 = vld [vmem:[#allocation2 + $0xa0] sm:$0xff]
  %v1615 = vld [vmem:[#allocation2 + $0xa8] sm:$0xff]
  %v1616 = vld [vmem:[#allocation2 + $0xb0] sm:$0xff]
  %v1617 = vld [vmem:[#allocation2 + $0xb8] sm:$0xff]
  %s1618 = scalar_lea.vmem %s3, 576
  %v1619 = vld [vmem:[%s1618] sm:$0xff]
  %v1620 = vld [vmem:[%s1618 + $0x8] sm:$0xff]
  %v1621 = vld [vmem:[%s1618 + $0x10] sm:$0xff]
  %v1622 = vld [vmem:[%s1618 + $0x18] sm:$0xff]
  %v1623 = vld [vmem:[%s1618 + $0x20] sm:$0xff]
  %v1624 = vld [vmem:[%s1618 + $0x28] sm:$0xff]
  %v1625 = vld [vmem:[%s1618 + $0x30] sm:$0xff]
  %v1626 = vld [vmem:[%s1618 + $0x38] sm:$0xff]
  %v1627 = vld [vmem:[%s1618 + $0x40] sm:$0xff]
  %v1628 = vld [vmem:[%s1618 + $0x48] sm:$0xff]
  %v1629 = vld [vmem:[%s1618 + $0x50] sm:$0xff]
  %v1630 = vld [vmem:[%s1618 + $0x58] sm:$0xff]
  %v1631 = vld [vmem:[%s1618 + $0x60] sm:$0xff]
  %v1632 = vld [vmem:[%s1618 + $0x68] sm:$0xff]
  %v1633 = vld [vmem:[%s1618 + $0x70] sm:$0xff]
  %v1634 = vld [vmem:[%s1618 + $0x78] sm:$0xff]
  %v1635 = vld [vmem:[%s1618 + $0x80] sm:$0xff]
  %v1636 = vld [vmem:[%s1618 + $0x88] sm:$0xff]
  %v1637 = vld [vmem:[%s1618 + $0x90] sm:$0xff]
  %v1638 = vld [vmem:[%s1618 + $0x98] sm:$0xff]
  %v1639 = vld [vmem:[%s1618 + $0xa0] sm:$0xff]
  %v1640 = vld [vmem:[%s1618 + $0xa8] sm:$0xff]
  %v1641 = vld [vmem:[%s1618 + $0xb0] sm:$0xff]
  %v1642 = vld [vmem:[%s1618 + $0xb8] sm:$0xff]
  %v1643 = vld [vmem:[%s1618 + $0xc0] sm:$0xff]
  %v1644 = vld [vmem:[%s1618 + $0xc8] sm:$0xff]
  %v1645 = vld [vmem:[%s1618 + $0xd0] sm:$0xff]
  %v1646 = vld [vmem:[%s1618 + $0xd8] sm:$0xff]
  %v1647 = vld [vmem:[%s1618 + $0xe0] sm:$0xff]
  %v1648 = vld [vmem:[%s1618 + $0xe8] sm:$0xff]
  %v1649 = vld [vmem:[%s1618 + $0xf0] sm:$0xff]
  %v1650 = vld [vmem:[%s1618 + $0xf8] sm:$0xff]
  %v1651 = vld [vmem:[%s1618 + $0x100] sm:$0xff]
  %v1652 = vld [vmem:[%s1618 + $0x108] sm:$0xff]
  %v1653 = vld [vmem:[%s1618 + $0x110] sm:$0xff]
  %v1654 = vld [vmem:[%s1618 + $0x118] sm:$0xff]
  %v1656 = vsel %vm584, %v1596, 0
  %v1659 = vsel %vm584, %v1597, 0
  %v1662 = vsel %vm584, %v1598, 0
  %v1665 = vsel %vm584, %v1599, 0
  %v1668 = vsel %vm584, %v1600, 0
  %v1671 = vsel %vm584, %v1601, 0
  %v1674 = vsel %vm584, %v1602, 0
  %v1677 = vsel %vm584, %v1603, 0
  %v1680 = vsel %vm584, %v1604, 0
  %v1683 = vsel %vm584, %v1605, 0
  %v1686 = vsel %vm584, %v1606, 0
  %v1689 = vsel %vm584, %v1607, 0
  %v1692 = vsel %vm584, %v1608, 0
  %v1695 = vsel %vm584, %v1609, 0
  %v1698 = vsel %vm584, %v1610, 0
  %v1701 = vsel %vm584, %v1611, 0
  %v1704 = vsel %vm584, %v1612, 0
  %v1707 = vsel %vm584, %v1613, 0
  %v1710 = vsel %vm584, %v1614, 0
  %v1713 = vsel %vm584, %v1615, 0
  %v1716 = vsel %vm584, %v1616, 0
  %v1719 = vsel %vm584, %v1617, 0
  %1721 = vmatprep.subr.mxu0 %v1620
  %1722 = vmatpush1.msra.mxu0 %v1619
  %1723 = vmatprep.subr.mxu0 %v1623
  %1724 = vmatpush1.msra.mxu0 %v1622
  %1725 = vmatprep.subr.mxu0 %v1626
  %1726 = vmatpush1.msra.mxu0 %v1625
  %1727 = vmatprep.subr.mxu0 %v1629
  %1728 = vmatpush1.msra.mxu0 %v1628
  %1729 = vmatprep.subr.mxu0 %v1632
  %1730 = vmatpush1.msra.mxu0 %v1631
  %1731 = vmatprep.subr.mxu0 %v1635
  %1732 = vmatpush1.msra.mxu0 %v1634
  %1733 = vmatprep.subr.mxu0 %v1638
  %1734 = vmatpush1.msra.mxu0 %v1637
  %1735 = vmatprep.subr.mxu0 %v1641
  %1736 = vmatpush1.msra.mxu0 %v1640
  %1737 = vmatprep.subr.mxu0 %v1644
  %1738 = vmatpush1.msra.mxu0 %v1643
  %1739 = vmatprep.subr.mxu0 %v1647
  %1740 = vmatpush1.msra.mxu0 %v1646
  %1741 = vmatprep.subr.mxu0 %v1650
  %1742 = vmatpush1.msra.mxu0 %v1649
  %1743 = vmatprep.subr.mxu0 %v1653
  %1744 = vmatpush1.msra.mxu0 %v1652
  %1745 = vmatprep.subr.mxu0 0.0
  %1746 = vmatpush1.msra.mxu0 0.0
  %1747 = vmatprep.subr.mxu0 0.0
  %1748 = vmatpush1.msra.mxu0 0.0
  %1749 = vmatprep.subr.mxu0 0.0
  %1750 = vmatpush1.msra.mxu0 0.0
  %1751 = vmatprep.subr.mxu0 0.0
  %1752 = vmatpush1.msra.mxu0 0.0
  %1753 = vmatprep.subr.mxu0 0.0
  %1754 = vmatpush1.msra.mxu0 0.0
  %1755 = vmatprep.subr.mxu0 0.0
  %1756 = vmatpush1.msra.mxu0 0.0
  %1757 = vmatprep.subr.mxu0 0.0
  %1758 = vmatpush1.msra.mxu0 0.0
  %1759 = vmatprep.subr.mxu0 0.0
  %1760 = vmatpush1.msra.mxu0 0.0
  %1761 = vmatprep.subr.mxu0 0.0
  %1762 = vmatpush1.msra.mxu0 0.0
  %1763 = vmatprep.subr.mxu0 0.0
  %1764 = vmatpush1.msra.mxu0 0.0
  %1765 = vmatprep.subr.mxu0 0.0
  %1766 = vmatpush1.msra.mxu0 0.0
  %1767 = vmatprep.subr.mxu0 0.0
  %1768 = vmatpush1.msra.mxu0 0.0
  %1769 = vmatprep.subr.mxu0 0.0
  %1770 = vmatpush1.msra.mxu0 0.0
  %1771 = vmatprep.subr.mxu0 0.0
  %1772 = vmatpush1.msra.mxu0 0.0
  %1773 = vmatprep.subr.mxu0 0.0
  %1774 = vmatpush1.msra.mxu0 0.0
  %1775 = vmatprep.subr.mxu0 0.0
  %1776 = vmatpush1.msra.mxu0 0.0
  %1777 = vmatprep.subr.mxu0 0.0
  %1778 = vmatpush1.msra.mxu0 0.0
  %1779 = vmatprep.subr.mxu0 0.0
  %1780 = vmatpush1.msra.mxu0 0.0
  %1781 = vmatprep.subr.mxu0 0.0
  %1782 = vmatpush1.msra.mxu0 0.0
  %1783 = vmatprep.subr.mxu0 0.0
  %1784 = vmatpush1.msra.mxu0 0.0
  %1785 = vmatprep.mubr.f32.mxu0 0.0
  %1786 = vmatmul.mubr.f32.gmra.mrb[0].mxu0 %v1656
  %v1787 = vpop.f32.mrb[0].mxu0
  %v1788 = vadd.f32 0.0, %v1787
  %v1789 = vpop.f32.mrb[0].mxu0
  %v1790 = vadd.f32 0.0, %v1789
  %1791 = vmatprep.mubr.f32.mxu0 0.0
  %1792 = vmatmul.mubr.f32.gmra.mrb[0].mxu0 %v1659
  %v1793 = vpop.f32.mrb[0].mxu0
  %v1794 = vadd.f32 0.0, %v1793
  %v1795 = vpop.f32.mrb[0].mxu0
  %v1796 = vadd.f32 0.0, %v1795
  %1797 = vmatprep.mubr.f32.mxu0 0.0
  %1798 = vmatmul.mubr.f32.gmra.mrb[0].mxu0 %v1662
  %v1799 = vpop.f32.mrb[0].mxu0
  %v1800 = vadd.f32 0.0, %v1799
  %v1801 = vpop.f32.mrb[0].mxu0
  %v1802 = vadd.f32 0.0, %v1801
  %1803 = vmatprep.mubr.f32.mxu0 0.0
  %1804 = vmatmul.mubr.f32.gmra.mrb[0].mxu0 %v1665
  %v1805 = vpop.f32.mrb[0].mxu0
  %v1806 = vadd.f32 0.0, %v1805
  %v1807 = vpop.f32.mrb[0].mxu0
  %v1808 = vadd.f32 0.0, %v1807
  %1809 = vmatprep.mubr.f32.mxu0 0.0
  %1810 = vmatmul.mubr.f32.gmra.mrb[0].mxu0 %v1668
  %v1811 = vpop.f32.mrb[0].mxu0
  %v1812 = vadd.f32 0.0, %v1811
  %v1813 = vpop.f32.mrb[0].mxu0
  %v1814 = vadd.f32 0.0, %v1813
  %1815 = vmatprep.mubr.f32.mxu0 0.0
  %1816 = vmatmul.mubr.f32.gmra.mrb[0].mxu0 %v1671
  %v1817 = vpop.f32.mrb[0].mxu0
  %v1818 = vadd.f32 0.0, %v1817
  %v1819 = vpop.f32.mrb[0].mxu0
  %v1820 = vadd.f32 0.0, %v1819
  %1821 = vmatprep.mubr.f32.mxu0 0.0
  %1822 = vmatmul.mubr.f32.gmra.mrb[0].mxu0 %v1674
  %v1823 = vpop.f32.mrb[0].mxu0
  %v1824 = vadd.f32 0.0, %v1823
  %v1825 = vpop.f32.mrb[0].mxu0
  %v1826 = vadd.f32 0.0, %v1825
  %1827 = vmatprep.mubr.f32.mxu0 0.0
  %1828 = vmatmul.mubr.f32.gmra.mrb[0].mxu0 %v1677
  %v1829 = vpop.f32.mrb[0].mxu0
  %v1830 = vadd.f32 0.0, %v1829
  %v1831 = vpop.f32.mrb[0].mxu0
  %v1832 = vadd.f32 0.0, %v1831
  %1833 = vmatprep.mubr.f32.mxu0 0.0
  %1834 = vmatmul.mubr.f32.gmra.mrb[0].mxu0 %v1680
  %v1835 = vpop.f32.mrb[0].mxu0
  %v1836 = vadd.f32 0.0, %v1835
  %v1837 = vpop.f32.mrb[0].mxu0
  %v1838 = vadd.f32 0.0, %v1837
  %1839 = vmatprep.mubr.f32.mxu0 0.0
  %1840 = vmatmul.mubr.f32.gmra.mrb[0].mxu0 %v1683
  %v1841 = vpop.f32.mrb[0].mxu0
  %v1842 = vadd.f32 0.0, %v1841
  %v1843 = vpop.f32.mrb[0].mxu0
  %v1844 = vadd.f32 0.0, %v1843
  %1845 = vmatprep.mubr.f32.mxu0 0.0
  %1846 = vmatmul.mubr.f32.gmra.mrb[0].mxu0 %v1686
  %v1847 = vpop.f32.mrb[0].mxu0
  %v1848 = vadd.f32 0.0, %v1847
  %v1849 = vpop.f32.mrb[0].mxu0
  %v1850 = vadd.f32 0.0, %v1849
  %1851 = vmatprep.mubr.f32.mxu0 0.0
  %1852 = vmatmul.mubr.f32.gmra.mrb[0].mxu0 %v1689
  %v1853 = vpop.f32.mrb[0].mxu0
  %v1854 = vadd.f32 0.0, %v1853
  %v1855 = vpop.f32.mrb[0].mxu0
  %v1856 = vadd.f32 0.0, %v1855
  %1857 = vmatprep.mubr.f32.mxu0 0.0
  %1858 = vmatmul.mubr.f32.gmra.mrb[0].mxu0 %v1692
  %v1859 = vpop.f32.mrb[0].mxu0
  %v1860 = vadd.f32 0.0, %v1859
  %v1861 = vpop.f32.mrb[0].mxu0
  %v1862 = vadd.f32 0.0, %v1861
  %1863 = vmatprep.mubr.f32.mxu0 0.0
  %1864 = vmatmul.mubr.f32.gmra.mrb[0].mxu0 %v1695
  %v1865 = vpop.f32.mrb[0].mxu0
  %v1866 = vadd.f32 0.0, %v1865
  %v1867 = vpop.f32.mrb[0].mxu0
  %v1868 = vadd.f32 0.0, %v1867
  %1869 = vmatprep.mubr.f32.mxu0 0.0
  %1870 = vmatmul.mubr.f32.gmra.mrb[0].mxu0 %v1698
  %v1871 = vpop.f32.mrb[0].mxu0
  %v1872 = vadd.f32 0.0, %v1871
  %v1873 = vpop.f32.mrb[0].mxu0
  %v1874 = vadd.f32 0.0, %v1873
  %1875 = vmatprep.mubr.f32.mxu0 0.0
  %1876 = vmatmul.mubr.f32.gmra.mrb[0].mxu0 %v1701
  %v1877 = vpop.f32.mrb[0].mxu0
  %v1878 = vadd.f32 0.0, %v1877
  %v1879 = vpop.f32.mrb[0].mxu0
  %v1880 = vadd.f32 0.0, %v1879
  %1881 = vmatprep.mubr.f32.mxu0 0.0
  %1882 = vmatmul.mubr.f32.gmra.mrb[0].mxu0 %v1704
  %v1883 = vpop.f32.mrb[0].mxu0
  %v1884 = vadd.f32 0.0, %v1883
  %v1885 = vpop.f32.mrb[0].mxu0
  %v1886 = vadd.f32 0.0, %v1885
  %1887 = vmatprep.mubr.f32.mxu0 0.0
  %1888 = vmatmul.mubr.f32.gmra.mrb[0].mxu0 %v1707
  %v1889 = vpop.f32.mrb[0].mxu0
  %v1890 = vadd.f32 0.0, %v1889
  %v1891 = vpop.f32.mrb[0].mxu0
  %v1892 = vadd.f32 0.0, %v1891
  %1893 = vmatprep.mubr.f32.mxu0 0.0
  %1894 = vmatmul.mubr.f32.gmra.mrb[0].mxu0 %v1710
  %v1895 = vpop.f32.mrb[0].mxu0
  %v1896 = vadd.f32 0.0, %v1895
  %v1897 = vpop.f32.mrb[0].mxu0
  %v1898 = vadd.f32 0.0, %v1897
  %1899 = vmatprep.mubr.f32.mxu0 0.0
  %1900 = vmatmul.mubr.f32.gmra.mrb[0].mxu0 %v1713
  %v1901 = vpop.f32.mrb[0].mxu0
  %v1902 = vadd.f32 0.0, %v1901
  %v1903 = vpop.f32.mrb[0].mxu0
  %v1904 = vadd.f32 0.0, %v1903
  %1905 = vmatprep.mubr.f32.mxu0 0.0
  %1906 = vmatmul.mubr.f32.gmra.mrb[0].mxu0 %v1716
  %v1907 = vpop.f32.mrb[0].mxu0
  %v1908 = vadd.f32 0.0, %v1907
  %v1909 = vpop.f32.mrb[0].mxu0
  %v1910 = vadd.f32 0.0, %v1909
  %1911 = vmatprep.mubr.f32.mxu0 0.0
  %1912 = vmatmul.mubr.f32.gmra.mrb[0].mxu0 %v1719
  %v1913 = vpop.f32.mrb[0].mxu0
  %v1914 = vadd.f32 0.0, %v1913
  %v1915 = vpop.f32.mrb[0].mxu0
  %v1916 = vadd.f32 0.0, %v1915
  %1917 = vdwg.mxu0
  %1918 = vmatprep.subr.mxu0 0.0
  %1919 = vmatpush1.msra.mxu0 %v1621
  %1920 = vmatprep.subr.mxu0 0.0
  %1921 = vmatpush1.msra.mxu0 %v1624
  %1922 = vmatprep.subr.mxu0 0.0
  %1923 = vmatpush1.msra.mxu0 %v1627
  %1924 = vmatprep.subr.mxu0 0.0
  %1925 = vmatpush1.msra.mxu0 %v1630
  %1926 = vmatprep.subr.mxu0 0.0
  %1927 = vmatpush1.msra.mxu0 %v1633
  %1928 = vmatprep.subr.mxu0 0.0
  %1929 = vmatpush1.msra.mxu0 %v1636
  %1930 = vmatprep.subr.mxu0 0.0
  %1931 = vmatpush1.msra.mxu0 %v1639
  %1932 = vmatprep.subr.mxu0 0.0
  %1933 = vmatpush1.msra.mxu0 %v1642
  %1934 = vmatprep.subr.mxu0 0.0
  %1935 = vmatpush1.msra.mxu0 %v1645
  %1936 = vmatprep.subr.mxu0 0.0
  %1937 = vmatpush1.msra.mxu0 %v1648
  %1938 = vmatprep.subr.mxu0 0.0
  %1939 = vmatpush1.msra.mxu0 %v1651
  %1940 = vmatprep.subr.mxu0 0.0
  %1941 = vmatpush1.msra.mxu0 %v1654
  %1942 = vmatprep.subr.mxu0 0.0
  %1943 = vmatpush1.msra.mxu0 0.0
  %1944 = vmatprep.subr.mxu0 0.0
  %1945 = vmatpush1.msra.mxu0 0.0
  %1946 = vmatprep.subr.mxu0 0.0
  %1947 = vmatpush1.msra.mxu0 0.0
  %1948 = vmatprep.subr.mxu0 0.0
  %1949 = vmatpush1.msra.mxu0 0.0
  %1950 = vmatprep.subr.mxu0 0.0
  %1951 = vmatpush1.msra.mxu0 0.0
  %1952 = vmatprep.subr.mxu0 0.0
  %1953 = vmatpush1.msra.mxu0 0.0
  %1954 = vmatprep.subr.mxu0 0.0
  %1955 = vmatpush1.msra.mxu0 0.0
  %1956 = vmatprep.subr.mxu0 0.0
  %1957 = vmatpush1.msra.mxu0 0.0
  %1958 = vmatprep.subr.mxu0 0.0
  %1959 = vmatpush1.msra.mxu0 0.0
  %1960 = vmatprep.subr.mxu0 0.0
  %1961 = vmatpush1.msra.mxu0 0.0
  %1962 = vmatprep.subr.mxu0 0.0
  %1963 = vmatpush1.msra.mxu0 0.0
  %1964 = vmatprep.subr.mxu0 0.0
  %1965 = vmatpush1.msra.mxu0 0.0
  %1966 = vmatprep.subr.mxu0 0.0
  %1967 = vmatpush1.msra.mxu0 0.0
  %1968 = vmatprep.subr.mxu0 0.0
  %1969 = vmatpush1.msra.mxu0 0.0
  %1970 = vmatprep.subr.mxu0 0.0
  %1971 = vmatpush1.msra.mxu0 0.0
  %1972 = vmatprep.subr.mxu0 0.0
  %1973 = vmatpush1.msra.mxu0 0.0
  %1974 = vmatprep.subr.mxu0 0.0
  %1975 = vmatpush1.msra.mxu0 0.0
  %1976 = vmatprep.subr.mxu0 0.0
  %1977 = vmatpush1.msra.mxu0 0.0
  %1978 = vmatprep.subr.mxu0 0.0
  %1979 = vmatpush1.msra.mxu0 0.0
  %1980 = vmatprep.subr.mxu0 0.0
  %1981 = vmatpush1.msra.mxu0 0.0
  %1982 = vmatprep.mubr.f32.mxu0 0.0
  %1983 = vmatmul.mubr.f32.gmra.mrb[0].mxu0 %v1656
  %v1984 = vpop.f32.mrb[0].mxu0
  %v1985 = vadd.f32 0.0, %v1984
  %v1986 = vpop.f32.mrb[0].mxu0
  %1987 = vmatprep.mubr.f32.mxu0 0.0
  %1988 = vmatmul.mubr.f32.gmra.mrb[0].mxu0 %v1659
  %v1989 = vpop.f32.mrb[0].mxu0
  %v1990 = vadd.f32 0.0, %v1989
  %v1991 = vpop.f32.mrb[0].mxu0
  %1992 = vmatprep.mubr.f32.mxu0 0.0
  %1993 = vmatmul.mubr.f32.gmra.mrb[0].mxu0 %v1662
  %v1994 = vpop.f32.mrb[0].mxu0
  %v1995 = vadd.f32 0.0, %v1994
  %v1996 = vpop.f32.mrb[0].mxu0
  %1997 = vmatprep.mubr.f32.mxu0 0.0
  %1998 = vmatmul.mubr.f32.gmra.mrb[0].mxu0 %v1665
  %v1999 = vpop.f32.mrb[0].mxu0
  %v2000 = vadd.f32 0.0, %v1999
  %v2001 = vpop.f32.mrb[0].mxu0
  %2002 = vmatprep.mubr.f32.mxu0 0.0
  %2003 = vmatmul.mubr.f32.gmra.mrb[0].mxu0 %v1668
  %v2004 = vpop.f32.mrb[0].mxu0
  %v2005 = vadd.f32 0.0, %v2004
  %v2006 = vpop.f32.mrb[0].mxu0
  %2007 = vmatprep.mubr.f32.mxu0 0.0
  %2008 = vmatmul.mubr.f32.gmra.mrb[0].mxu0 %v1671
  %v2009 = vpop.f32.mrb[0].mxu0
  %v2010 = vadd.f32 0.0, %v2009
  %v2011 = vpop.f32.mrb[0].mxu0
  %2012 = vmatprep.mubr.f32.mxu0 0.0
  %2013 = vmatmul.mubr.f32.gmra.mrb[0].mxu0 %v1674
  %v2014 = vpop.f32.mrb[0].mxu0
  %v2015 = vadd.f32 0.0, %v2014
  %v2016 = vpop.f32.mrb[0].mxu0
  %2017 = vmatprep.mubr.f32.mxu0 0.0
  %2018 = vmatmul.mubr.f32.gmra.mrb[0].mxu0 %v1677
  %v2019 = vpop.f32.mrb[0].mxu0
  %v2020 = vadd.f32 0.0, %v2019
  %v2021 = vpop.f32.mrb[0].mxu0
  %2022 = vmatprep.mubr.f32.mxu0 0.0
  %2023 = vmatmul.mubr.f32.gmra.mrb[0].mxu0 %v1680
  %v2024 = vpop.f32.mrb[0].mxu0
  %v2025 = vadd.f32 0.0, %v2024
  %v2026 = vpop.f32.mrb[0].mxu0
  %2027 = vmatprep.mubr.f32.mxu0 0.0
  %2028 = vmatmul.mubr.f32.gmra.mrb[0].mxu0 %v1683
  %v2029 = vpop.f32.mrb[0].mxu0
  %v2030 = vadd.f32 0.0, %v2029
  %v2031 = vpop.f32.mrb[0].mxu0
  %2032 = vmatprep.mubr.f32.mxu0 0.0
  %2033 = vmatmul.mubr.f32.gmra.mrb[0].mxu0 %v1686
  %v2034 = vpop.f32.mrb[0].mxu0
  %v2035 = vadd.f32 0.0, %v2034
  %v2036 = vpop.f32.mrb[0].mxu0
  %2037 = vmatprep.mubr.f32.mxu0 0.0
  %2038 = vmatmul.mubr.f32.gmra.mrb[0].mxu0 %v1689
  %v2039 = vpop.f32.mrb[0].mxu0
  %v2040 = vadd.f32 0.0, %v2039
  %v2041 = vpop.f32.mrb[0].mxu0
  %2042 = vmatprep.mubr.f32.mxu0 0.0
  %2043 = vmatmul.mubr.f32.gmra.mrb[0].mxu0 %v1692
  %v2044 = vpop.f32.mrb[0].mxu0
  %v2045 = vadd.f32 0.0, %v2044
  %v2046 = vpop.f32.mrb[0].mxu0
  %2047 = vmatprep.mubr.f32.mxu0 0.0
  %2048 = vmatmul.mubr.f32.gmra.mrb[0].mxu0 %v1695
  %v2049 = vpop.f32.mrb[0].mxu0
  %v2050 = vadd.f32 0.0, %v2049
  %v2051 = vpop.f32.mrb[0].mxu0
  %2052 = vmatprep.mubr.f32.mxu0 0.0
  %2053 = vmatmul.mubr.f32.gmra.mrb[0].mxu0 %v1698
  %v2054 = vpop.f32.mrb[0].mxu0
  %v2055 = vadd.f32 0.0, %v2054
  %v2056 = vpop.f32.mrb[0].mxu0
  %2057 = vmatprep.mubr.f32.mxu0 0.0
  %2058 = vmatmul.mubr.f32.gmra.mrb[0].mxu0 %v1701
  %v2059 = vpop.f32.mrb[0].mxu0
  %v2060 = vadd.f32 0.0, %v2059
  %v2061 = vpop.f32.mrb[0].mxu0
  %2062 = vmatprep.mubr.f32.mxu0 0.0
  %2063 = vmatmul.mubr.f32.gmra.mrb[0].mxu0 %v1704
  %v2064 = vpop.f32.mrb[0].mxu0
  %v2065 = vadd.f32 0.0, %v2064
  %v2066 = vpop.f32.mrb[0].mxu0
  %2067 = vmatprep.mubr.f32.mxu0 0.0
  %2068 = vmatmul.mubr.f32.gmra.mrb[0].mxu0 %v1707
  %v2069 = vpop.f32.mrb[0].mxu0
  %v2070 = vadd.f32 0.0, %v2069
  %v2071 = vpop.f32.mrb[0].mxu0
  %2072 = vmatprep.mubr.f32.mxu0 0.0
  %2073 = vmatmul.mubr.f32.gmra.mrb[0].mxu0 %v1710
  %v2074 = vpop.f32.mrb[0].mxu0
  %v2075 = vadd.f32 0.0, %v2074
  %v2076 = vpop.f32.mrb[0].mxu0
  %2077 = vmatprep.mubr.f32.mxu0 0.0
  %2078 = vmatmul.mubr.f32.gmra.mrb[0].mxu0 %v1713
  %v2079 = vpop.f32.mrb[0].mxu0
  %v2080 = vadd.f32 0.0, %v2079
  %v2081 = vpop.f32.mrb[0].mxu0
  %2082 = vmatprep.mubr.f32.mxu0 0.0
  %2083 = vmatmul.mubr.f32.gmra.mrb[0].mxu0 %v1716
  %v2084 = vpop.f32.mrb[0].mxu0
  %v2085 = vadd.f32 0.0, %v2084
  %v2086 = vpop.f32.mrb[0].mxu0
  %2087 = vmatprep.mubr.f32.mxu0 0.0
  %2088 = vmatmul.mubr.f32.gmra.mrb[0].mxu0 %v1719
  %v2089 = vpop.f32.mrb[0].mxu0
  %v2090 = vadd.f32 0.0, %v2089
  %v2091 = vpop.f32.mrb[0].mxu0
  %2092 = vdwg.mxu0
  %v2093 = vadd.f32 %v1291, %v1788
  %v2094 = vadd.f32 %v1293, %v1790
  %v2095 = vadd.f32 %v1488, %v1985
  %v2096 = vadd.f32 %v1297, %v1794
  %v2097 = vadd.f32 %v1299, %v1796
  %v2098 = vadd.f32 %v1493, %v1990
  %v2099 = vadd.f32 %v1303, %v1800
  %v2100 = vadd.f32 %v1305, %v1802
  %v2101 = vadd.f32 %v1498, %v1995
  %v2102 = vadd.f32 %v1309, %v1806
  %v2103 = vadd.f32 %v1311, %v1808
  %v2104 = vadd.f32 %v1503, %v2000
  %v2105 = vadd.f32 %v1315, %v1812
  %v2106 = vadd.f32 %v1317, %v1814
  %v2107 = vadd.f32 %v1508, %v2005
  %v2108 = vadd.f32 %v1321, %v1818
  %v2109 = vadd.f32 %v1323, %v1820
  %v2110 = vadd.f32 %v1513, %v2010
  %v2111 = vadd.f32 %v1327, %v1824
  %v2112 = vadd.f32 %v1329, %v1826
  %v2113 = vadd.f32 %v1518, %v2015
  %v2114 = vadd.f32 %v1333, %v1830
  %v2115 = vadd.f32 %v1335, %v1832
  %v2116 = vadd.f32 %v1523, %v2020
  %v2117 = vadd.f32 %v1339, %v1836
  %v2118 = vadd.f32 %v1341, %v1838
  %v2119 = vadd.f32 %v1528, %v2025
  %v2120 = vadd.f32 %v1345, %v1842
  %v2121 = vadd.f32 %v1347, %v1844
  %v2122 = vadd.f32 %v1533, %v2030
  %v2123 = vadd.f32 %v1351, %v1848
  %v2124 = vadd.f32 %v1353, %v1850
  %v2125 = vadd.f32 %v1538, %v2035
  %v2126 = vadd.f32 %v1357, %v1854
  %v2127 = vadd.f32 %v1359, %v1856
  %v2128 = vadd.f32 %v1543, %v2040
  %v2129 = vadd.f32 %v1363, %v1860
  %v2130 = vadd.f32 %v1365, %v1862
  %v2131 = vadd.f32 %v1548, %v2045
  %v2132 = vadd.f32 %v1369, %v1866
  %v2133 = vadd.f32 %v1371, %v1868
  %v2134 = vadd.f32 %v1553, %v2050
  %v2135 = vadd.f32 %v1375, %v1872
  %v2136 = vadd.f32 %v1377, %v1874
  %v2137 = vadd.f32 %v1558, %v2055
  %v2138 = vadd.f32 %v1381, %v1878
  %v2139 = vadd.f32 %v1383, %v1880
  %v2140 = vadd.f32 %v1563, %v2060
  %v2141 = vadd.f32 %v1387, %v1884
  %v2142 = vadd.f32 %v1389, %v1886
  %v2143 = vadd.f32 %v1568, %v2065
  %v2144 = vadd.f32 %v1393, %v1890
  %v2145 = vadd.f32 %v1395, %v1892
  %v2146 = vadd.f32 %v1573, %v2070
  %v2147 = vadd.f32 %v1399, %v1896
  %v2148 = vadd.f32 %v1401, %v1898
  %v2149 = vadd.f32 %v1578, %v2075
  %v2150 = vadd.f32 %v1405, %v1902
  %v2151 = vadd.f32 %v1407, %v1904
  %v2152 = vadd.f32 %v1583, %v2080
  %v2153 = vadd.f32 %v1411, %v1908
  %v2154 = vadd.f32 %v1413, %v1910
  %v2155 = vadd.f32 %v1588, %v2085
  %v2156 = vadd.f32 %v1417, %v1914
  %v2157 = vadd.f32 %v1419, %v1916
  %v2158 = vadd.f32 %v1593, %v2090
  %v2159 = vld [vmem:[#allocation2 + $0x18] sm:$0xff]
  %v2160 = vld [vmem:[#allocation2 + $0x20] sm:$0xff]
  %v2161 = vld [vmem:[#allocation2 + $0x28] sm:$0xff]
  %v2162 = vld [vmem:[#allocation2 + $0x30] sm:$0xff]
  %v2163 = vld [vmem:[#allocation2 + $0x38] sm:$0xff]
  %v2164 = vld [vmem:[#allocation2 + $0x40] sm:$0xff]
  %v2165 = vld [vmem:[#allocation2 + $0x48] sm:$0xff]
  %v2166 = vld [vmem:[#allocation2 + $0x50] sm:$0xff]
  %v2167 = vld [vmem:[#allocation2 + $0x58] sm:$0xff]
  %v2168 = vld [vmem:[#allocation2 + $0x60] sm:$0xff]
  %v2169 = vld [vmem:[#allocation2 + $0x68] sm:$0xff]
  %v2170 = vld [vmem:[#allocation2 + $0x70] sm:$0xff]
  %v2171 = vld [vmem:[#allocation2 + $0x78] sm:$0xff]
  %v2172 = vld [vmem:[#allocation2 + $0x80] sm:$0xff]
  %v2173 = vld [vmem:[#allocation2 + $0x88] sm:$0xff]
  %v2174 = vld [vmem:[#allocation2 + $0x90] sm:$0xff]
  %v2175 = vld [vmem:[#allocation2 + $0x98] sm:$0xff]
  %v2176 = vld [vmem:[#allocation2 + $0xa0] sm:$0xff]
  %v2177 = vld [vmem:[#allocation2 + $0xa8] sm:$0xff]
  %v2178 = vld [vmem:[#allocation2 + $0xb0] sm:$0xff]
  %v2179 = vld [vmem:[#allocation2 + $0xb8] sm:$0xff]
  %v2180 = vld [vmem:[#allocation2 + $0xc0] sm:$0xff]
  %s2181 = scalar_lea.vmem %s3, 864
  %v2182 = vld [vmem:[%s2181] sm:$0xff]
  %v2183 = vld [vmem:[%s2181 + $0x8] sm:$0xff]
  %v2184 = vld [vmem:[%s2181 + $0x10] sm:$0xff]
  %v2185 = vld [vmem:[%s2181 + $0x18] sm:$0xff]
  %v2186 = vld [vmem:[%s2181 + $0x20] sm:$0xff]
  %v2187 = vld [vmem:[%s2181 + $0x28] sm:$0xff]
  %v2188 = vld [vmem:[%s2181 + $0x30] sm:$0xff]
  %v2189 = vld [vmem:[%s2181 + $0x38] sm:$0xff]
  %v2190 = vld [vmem:[%s2181 + $0x40] sm:$0xff]
  %v2191 = vld [vmem:[%s2181 + $0x48] sm:$0xff]
  %v2192 = vld [vmem:[%s2181 + $0x50] sm:$0xff]
  %v2193 = vld [vmem:[%s2181 + $0x58] sm:$0xff]
  %v2194 = vld [vmem:[%s2181 + $0x60] sm:$0xff]
  %v2195 = vld [vmem:[%s2181 + $0x68] sm:$0xff]
  %v2196 = vld [vmem:[%s2181 + $0x70] sm:$0xff]
  %v2197 = vld [vmem:[%s2181 + $0x78] sm:$0xff]
  %v2198 = vld [vmem:[%s2181 + $0x80] sm:$0xff]
  %v2199 = vld [vmem:[%s2181 + $0x88] sm:$0xff]
  %v2200 = vld [vmem:[%s2181 + $0x90] sm:$0xff]
  %v2201 = vld [vmem:[%s2181 + $0x98] sm:$0xff]
  %v2202 = vld [vmem:[%s2181 + $0xa0] sm:$0xff]
  %v2203 = vld [vmem:[%s2181 + $0xa8] sm:$0xff]
  %v2204 = vld [vmem:[%s2181 + $0xb0] sm:$0xff]
  %v2205 = vld [vmem:[%s2181 + $0xb8] sm:$0xff]
  %v2206 = vld [vmem:[%s2181 + $0xc0] sm:$0xff]
  %v2207 = vld [vmem:[%s2181 + $0xc8] sm:$0xff]
  %v2208 = vld [vmem:[%s2181 + $0xd0] sm:$0xff]
  %v2209 = vld [vmem:[%s2181 + $0xd8] sm:$0xff]
  %v2210 = vld [vmem:[%s2181 + $0xe0] sm:$0xff]
  %v2211 = vld [vmem:[%s2181 + $0xe8] sm:$0xff]
  %v2212 = vld [vmem:[%s2181 + $0xf0] sm:$0xff]
  %v2213 = vld [vmem:[%s2181 + $0xf8] sm:$0xff]
  %v2214 = vld [vmem:[%s2181 + $0x100] sm:$0xff]
  %v2215 = vld [vmem:[%s2181 + $0x108] sm:$0xff]
  %v2216 = vld [vmem:[%s2181 + $0x110] sm:$0xff]
  %v2217 = vld [vmem:[%s2181 + $0x118] sm:$0xff]
  %v2219 = vsel %vm584, %v2159, 0
  %v2222 = vsel %vm584, %v2160, 0
  %v2225 = vsel %vm584, %v2161, 0
  %v2228 = vsel %vm584, %v2162, 0
  %v2231 = vsel %vm584, %v2163, 0
  %v2234 = vsel %vm584, %v2164, 0
  %v2237 = vsel %vm584, %v2165, 0
  %v2240 = vsel %vm584, %v2166, 0
  %v2243 = vsel %vm584, %v2167, 0
  %v2246 = vsel %vm584, %v2168, 0
  %v2249 = vsel %vm584, %v2169, 0
  %v2252 = vsel %vm584, %v2170, 0
  %v2255 = vsel %vm584, %v2171, 0
  %v2258 = vsel %vm584, %v2172, 0
  %v2261 = vsel %vm584, %v2173, 0
  %v2264 = vsel %vm584, %v2174, 0
  %v2267 = vsel %vm584, %v2175, 0
  %v2270 = vsel %vm584, %v2176, 0
  %v2273 = vsel %vm584, %v2177, 0
  %v2276 = vsel %vm584, %v2178, 0
  %v2279 = vsel %vm584, %v2179, 0
  %v2282 = vsel %vm584, %v2180, 0
  %2284 = vmatprep.subr.mxu0 %v2183
  %2285 = vmatpush1.msra.mxu0 %v2182
  %2286 = vmatprep.subr.mxu0 %v2186
  %2287 = vmatpush1.msra.mxu0 %v2185
  %2288 = vmatprep.subr.mxu0 %v2189
  %2289 = vmatpush1.msra.mxu0 %v2188
  %2290 = vmatprep.subr.mxu0 %v2192
  %2291 = vmatpush1.msra.mxu0 %v2191
  %2292 = vmatprep.subr.mxu0 %v2195
  %2293 = vmatpush1.msra.mxu0 %v2194
  %2294 = vmatprep.subr.mxu0 %v2198
  %2295 = vmatpush1.msra.mxu0 %v2197
  %2296 = vmatprep.subr.mxu0 %v2201
  %2297 = vmatpush1.msra.mxu0 %v2200
  %2298 = vmatprep.subr.mxu0 %v2204
  %2299 = vmatpush1.msra.mxu0 %v2203
  %2300 = vmatprep.subr.mxu0 %v2207
  %2301 = vmatpush1.msra.mxu0 %v2206
  %2302 = vmatprep.subr.mxu0 %v2210
  %2303 = vmatpush1.msra.mxu0 %v2209
  %2304 = vmatprep.subr.mxu0 %v2213
  %2305 = vmatpush1.msra.mxu0 %v2212
  %2306 = vmatprep.subr.mxu0 %v2216
  %2307 = vmatpush1.msra.mxu0 %v2215
  %2308 = vmatprep.subr.mxu0 0.0
  %2309 = vmatpush1.msra.mxu0 0.0
  %2310 = vmatprep.subr.mxu0 0.0
  %2311 = vmatpush1.msra.mxu0 0.0
  %2312 = vmatprep.subr.mxu0 0.0
  %2313 = vmatpush1.msra.mxu0 0.0
  %2314 = vmatprep.subr.mxu0 0.0
  %2315 = vmatpush1.msra.mxu0 0.0
  %2316 = vmatprep.subr.mxu0 0.0
  %2317 = vmatpush1.msra.mxu0 0.0
  %2318 = vmatprep.subr.mxu0 0.0
  %2319 = vmatpush1.msra.mxu0 0.0
  %2320 = vmatprep.subr.mxu0 0.0
  %2321 = vmatpush1.msra.mxu0 0.0
  %2322 = vmatprep.subr.mxu0 0.0
  %2323 = vmatpush1.msra.mxu0 0.0
  %2324 = vmatprep.subr.mxu0 0.0
  %2325 = vmatpush1.msra.mxu0 0.0
  %2326 = vmatprep.subr.mxu0 0.0
  %2327 = vmatpush1.msra.mxu0 0.0
  %2328 = vmatprep.subr.mxu0 0.0
  %2329 = vmatpush1.msra.mxu0 0.0
  %2330 = vmatprep.subr.mxu0 0.0
  %2331 = vmatpush1.msra.mxu0 0.0
  %2332 = vmatprep.subr.mxu0 0.0
  %2333 = vmatpush1.msra.mxu0 0.0
  %2334 = vmatprep.subr.mxu0 0.0
  %2335 = vmatpush1.msra.mxu0 0.0
  %2336 = vmatprep.subr.mxu0 0.0
  %2337 = vmatpush1.msra.mxu0 0.0
  %2338 = vmatprep.subr.mxu0 0.0
  %2339 = vmatpush1.msra.mxu0 0.0
  %2340 = vmatprep.subr.mxu0 0.0
  %2341 = vmatpush1.msra.mxu0 0.0
  %2342 = vmatprep.subr.mxu0 0.0
  %2343 = vmatpush1.msra.mxu0 0.0
  %2344 = vmatprep.subr.mxu0 0.0
  %2345 = vmatpush1.msra.mxu0 0.0
  %2346 = vmatprep.subr.mxu0 0.0
  %2347 = vmatpush1.msra.mxu0 0.0
  %2348 = vmatprep.mubr.f32.mxu0 0.0
  %2349 = vmatmul.mubr.f32.gmra.mrb[0].mxu0 %v2219
  %v2350 = vpop.f32.mrb[0].mxu0
  %v2351 = vadd.f32 0.0, %v2350
  %v2352 = vpop.f32.mrb[0].mxu0
  %v2353 = vadd.f32 0.0, %v2352
  %2354 = vmatprep.mubr.f32.mxu0 0.0
  %2355 = vmatmul.mubr.f32.gmra.mrb[0].mxu0 %v2222
  %v2356 = vpop.f32.mrb[0].mxu0
  %v2357 = vadd.f32 0.0, %v2356
  %v2358 = vpop.f32.mrb[0].mxu0
  %v2359 = vadd.f32 0.0, %v2358
  %2360 = vmatprep.mubr.f32.mxu0 0.0
  %2361 = vmatmul.mubr.f32.gmra.mrb[0].mxu0 %v2225
  %v2362 = vpop.f32.mrb[0].mxu0
  %v2363 = vadd.f32 0.0, %v2362
  %v2364 = vpop.f32.mrb[0].mxu0
  %v2365 = vadd.f32 0.0, %v2364
  %2366 = vmatprep.mubr.f32.mxu0 0.0
  %2367 = vmatmul.mubr.f32.gmra.mrb[0].mxu0 %v2228
  %v2368 = vpop.f32.mrb[0].mxu0
  %v2369 = vadd.f32 0.0, %v2368
  %v2370 = vpop.f32.mrb[0].mxu0
  %v2371 = vadd.f32 0.0, %v2370
  %2372 = vmatprep.mubr.f32.mxu0 0.0
  %2373 = vmatmul.mubr.f32.gmra.mrb[0].mxu0 %v2231
  %v2374 = vpop.f32.mrb[0].mxu0
  %v2375 = vadd.f32 0.0, %v2374
  %v2376 = vpop.f32.mrb[0].mxu0
  %v2377 = vadd.f32 0.0, %v2376
  %2378 = vmatprep.mubr.f32.mxu0 0.0
  %2379 = vmatmul.mubr.f32.gmra.mrb[0].mxu0 %v2234
  %v2380 = vpop.f32.mrb[0].mxu0
  %v2381 = vadd.f32 0.0, %v2380
  %v2382 = vpop.f32.mrb[0].mxu0
  %v2383 = vadd.f32 0.0, %v2382
  %2384 = vmatprep.mubr.f32.mxu0 0.0
  %2385 = vmatmul.mubr.f32.gmra.mrb[0].mxu0 %v2237
  %v2386 = vpop.f32.mrb[0].mxu0
  %v2387 = vadd.f32 0.0, %v2386
  %v2388 = vpop.f32.mrb[0].mxu0
  %v2389 = vadd.f32 0.0, %v2388
  %2390 = vmatprep.mubr.f32.mxu0 0.0
  %2391 = vmatmul.mubr.f32.gmra.mrb[0].mxu0 %v2240
  %v2392 = vpop.f32.mrb[0].mxu0
  %v2393 = vadd.f32 0.0, %v2392
  %v2394 = vpop.f32.mrb[0].mxu0
  %v2395 = vadd.f32 0.0, %v2394
  %2396 = vmatprep.mubr.f32.mxu0 0.0
  %2397 = vmatmul.mubr.f32.gmra.mrb[0].mxu0 %v2243
  %v2398 = vpop.f32.mrb[0].mxu0
  %v2399 = vadd.f32 0.0, %v2398
  %v2400 = vpop.f32.mrb[0].mxu0
  %v2401 = vadd.f32 0.0, %v2400
  %2402 = vmatprep.mubr.f32.mxu0 0.0
  %2403 = vmatmul.mubr.f32.gmra.mrb[0].mxu0 %v2246
  %v2404 = vpop.f32.mrb[0].mxu0
  %v2405 = vadd.f32 0.0, %v2404
  %v2406 = vpop.f32.mrb[0].mxu0
  %v2407 = vadd.f32 0.0, %v2406
  %2408 = vmatprep.mubr.f32.mxu0 0.0
  %2409 = vmatmul.mubr.f32.gmra.mrb[0].mxu0 %v2249
  %v2410 = vpop.f32.mrb[0].mxu0
  %v2411 = vadd.f32 0.0, %v2410
  %v2412 = vpop.f32.mrb[0].mxu0
  %v2413 = vadd.f32 0.0, %v2412
  %2414 = vmatprep.mubr.f32.mxu0 0.0
  %2415 = vmatmul.mubr.f32.gmra.mrb[0].mxu0 %v2252
  %v2416 = vpop.f32.mrb[0].mxu0
  %v2417 = vadd.f32 0.0, %v2416
  %v2418 = vpop.f32.mrb[0].mxu0
  %v2419 = vadd.f32 0.0, %v2418
  %2420 = vmatprep.mubr.f32.mxu0 0.0
  %2421 = vmatmul.mubr.f32.gmra.mrb[0].mxu0 %v2255
  %v2422 = vpop.f32.mrb[0].mxu0
  %v2423 = vadd.f32 0.0, %v2422
  %v2424 = vpop.f32.mrb[0].mxu0
  %v2425 = vadd.f32 0.0, %v2424
  %2426 = vmatprep.mubr.f32.mxu0 0.0
  %2427 = vmatmul.mubr.f32.gmra.mrb[0].mxu0 %v2258
  %v2428 = vpop.f32.mrb[0].mxu0
  %v2429 = vadd.f32 0.0, %v2428
  %v2430 = vpop.f32.mrb[0].mxu0
  %v2431 = vadd.f32 0.0, %v2430
  %2432 = vmatprep.mubr.f32.mxu0 0.0
  %2433 = vmatmul.mubr.f32.gmra.mrb[0].mxu0 %v2261
  %v2434 = vpop.f32.mrb[0].mxu0
  %v2435 = vadd.f32 0.0, %v2434
  %v2436 = vpop.f32.mrb[0].mxu0
  %v2437 = vadd.f32 0.0, %v2436
  %2438 = vmatprep.mubr.f32.mxu0 0.0
  %2439 = vmatmul.mubr.f32.gmra.mrb[0].mxu0 %v2264
  %v2440 = vpop.f32.mrb[0].mxu0
  %v2441 = vadd.f32 0.0, %v2440
  %v2442 = vpop.f32.mrb[0].mxu0
  %v2443 = vadd.f32 0.0, %v2442
  %2444 = vmatprep.mubr.f32.mxu0 0.0
  %2445 = vmatmul.mubr.f32.gmra.mrb[0].mxu0 %v2267
  %v2446 = vpop.f32.mrb[0].mxu0
  %v2447 = vadd.f32 0.0, %v2446
  %v2448 = vpop.f32.mrb[0].mxu0
  %v2449 = vadd.f32 0.0, %v2448
  %2450 = vmatprep.mubr.f32.mxu0 0.0
  %2451 = vmatmul.mubr.f32.gmra.mrb[0].mxu0 %v2270
  %v2452 = vpop.f32.mrb[0].mxu0
  %v2453 = vadd.f32 0.0, %v2452
  %v2454 = vpop.f32.mrb[0].mxu0
  %v2455 = vadd.f32 0.0, %v2454
  %2456 = vmatprep.mubr.f32.mxu0 0.0
  %2457 = vmatmul.mubr.f32.gmra.mrb[0].mxu0 %v2273
  %v2458 = vpop.f32.mrb[0].mxu0
  %v2459 = vadd.f32 0.0, %v2458
  %v2460 = vpop.f32.mrb[0].mxu0
  %v2461 = vadd.f32 0.0, %v2460
  %2462 = vmatprep.mubr.f32.mxu0 0.0
  %2463 = vmatmul.mubr.f32.gmra.mrb[0].mxu0 %v2276
  %v2464 = vpop.f32.mrb[0].mxu0
  %v2465 = vadd.f32 0.0, %v2464
  %v2466 = vpop.f32.mrb[0].mxu0
  %v2467 = vadd.f32 0.0, %v2466
  %2468 = vmatprep.mubr.f32.mxu0 0.0
  %2469 = vmatmul.mubr.f32.gmra.mrb[0].mxu0 %v2279
  %v2470 = vpop.f32.mrb[0].mxu0
  %v2471 = vadd.f32 0.0, %v2470
  %v2472 = vpop.f32.mrb[0].mxu0
  %v2473 = vadd.f32 0.0, %v2472
  %2474 = vmatprep.mubr.f32.mxu0 0.0
  %2475 = vmatmul.mubr.f32.gmra.mrb[0].mxu0 %v2282
  %v2476 = vpop.f32.mrb[0].mxu0
  %v2477 = vadd.f32 0.0, %v2476
  %v2478 = vpop.f32.mrb[0].mxu0
  %v2479 = vadd.f32 0.0, %v2478
  %2480 = vdwg.mxu0
  %2481 = vmatprep.subr.mxu0 0.0
  %2482 = vmatpush1.msra.mxu0 %v2184
  %2483 = vmatprep.subr.mxu0 0.0
  %2484 = vmatpush1.msra.mxu0 %v2187
  %2485 = vmatprep.subr.mxu0 0.0
  %2486 = vmatpush1.msra.mxu0 %v2190
  %2487 = vmatprep.subr.mxu0 0.0
  %2488 = vmatpush1.msra.mxu0 %v2193
  %2489 = vmatprep.subr.mxu0 0.0
  %2490 = vmatpush1.msra.mxu0 %v2196
  %2491 = vmatprep.subr.mxu0 0.0
  %2492 = vmatpush1.msra.mxu0 %v2199
  %2493 = vmatprep.subr.mxu0 0.0
  %2494 = vmatpush1.msra.mxu0 %v2202
  %2495 = vmatprep.subr.mxu0 0.0
  %2496 = vmatpush1.msra.mxu0 %v2205
  %2497 = vmatprep.subr.mxu0 0.0
  %2498 = vmatpush1.msra.mxu0 %v2208
  %2499 = vmatprep.subr.mxu0 0.0
  %2500 = vmatpush1.msra.mxu0 %v2211
  %2501 = vmatprep.subr.mxu0 0.0
  %2502 = vmatpush1.msra.mxu0 %v2214
  %2503 = vmatprep.subr.mxu0 0.0
  %2504 = vmatpush1.msra.mxu0 %v2217
  %2505 = vmatprep.subr.mxu0 0.0
  %2506 = vmatpush1.msra.mxu0 0.0
  %2507 = vmatprep.subr.mxu0 0.0
  %2508 = vmatpush1.msra.mxu0 0.0
  %2509 = vmatprep.subr.mxu0 0.0
  %2510 = vmatpush1.msra.mxu0 0.0
  %2511 = vmatprep.subr.mxu0 0.0
  %2512 = vmatpush1.msra.mxu0 0.0
  %2513 = vmatprep.subr.mxu0 0.0
  %2514 = vmatpush1.msra.mxu0 0.0
  %2515 = vmatprep.subr.mxu0 0.0
  %2516 = vmatpush1.msra.mxu0 0.0
  %2517 = vmatprep.subr.mxu0 0.0
  %2518 = vmatpush1.msra.mxu0 0.0
  %2519 = vmatprep.subr.mxu0 0.0
  %2520 = vmatpush1.msra.mxu0 0.0
  %2521 = vmatprep.subr.mxu0 0.0
  %2522 = vmatpush1.msra.mxu0 0.0
  %2523 = vmatprep.subr.mxu0 0.0
  %2524 = vmatpush1.msra.mxu0 0.0
  %2525 = vmatprep.subr.mxu0 0.0
  %2526 = vmatpush1.msra.mxu0 0.0
  %2527 = vmatprep.subr.mxu0 0.0
  %2528 = vmatpush1.msra.mxu0 0.0
  %2529 = vmatprep.subr.mxu0 0.0
  %2530 = vmatpush1.msra.mxu0 0.0
  %2531 = vmatprep.subr.mxu0 0.0
  %2532 = vmatpush1.msra.mxu0 0.0
  %2533 = vmatprep.subr.mxu0 0.0
  %2534 = vmatpush1.msra.mxu0 0.0
  %2535 = vmatprep.subr.mxu0 0.0
  %2536 = vmatpush1.msra.mxu0 0.0
  %2537 = vmatprep.subr.mxu0 0.0
  %2538 = vmatpush1.msra.mxu0 0.0
  %2539 = vmatprep.subr.mxu0 0.0
  %2540 = vmatpush1.msra.mxu0 0.0
  %2541 = vmatprep.subr.mxu0 0.0
  %2542 = vmatpush1.msra.mxu0 0.0
  %2543 = vmatprep.subr.mxu0 0.0
  %2544 = vmatpush1.msra.mxu0 0.0
  %2545 = vmatprep.mubr.f32.mxu0 0.0
  %2546 = vmatmul.mubr.f32.gmra.mrb[0].mxu0 %v2219
  %v2547 = vpop.f32.mrb[0].mxu0
  %v2548 = vadd.f32 0.0, %v2547
  %v2549 = vpop.f32.mrb[0].mxu0
  %2550 = vmatprep.mubr.f32.mxu0 0.0
  %2551 = vmatmul.mubr.f32.gmra.mrb[0].mxu0 %v2222
  %v2552 = vpop.f32.mrb[0].mxu0
  %v2553 = vadd.f32 0.0, %v2552
  %v2554 = vpop.f32.mrb[0].mxu0
  %2555 = vmatprep.mubr.f32.mxu0 0.0
  %2556 = vmatmul.mubr.f32.gmra.mrb[0].mxu0 %v2225
  %v2557 = vpop.f32.mrb[0].mxu0
  %v2558 = vadd.f32 0.0, %v2557
  %v2559 = vpop.f32.mrb[0].mxu0
  %2560 = vmatprep.mubr.f32.mxu0 0.0
  %2561 = vmatmul.mubr.f32.gmra.mrb[0].mxu0 %v2228
  %v2562 = vpop.f32.mrb[0].mxu0
  %v2563 = vadd.f32 0.0, %v2562
  %v2564 = vpop.f32.mrb[0].mxu0
  %2565 = vmatprep.mubr.f32.mxu0 0.0
  %2566 = vmatmul.mubr.f32.gmra.mrb[0].mxu0 %v2231
  %v2567 = vpop.f32.mrb[0].mxu0
  %v2568 = vadd.f32 0.0, %v2567
  %v2569 = vpop.f32.mrb[0].mxu0
  %2570 = vmatprep.mubr.f32.mxu0 0.0
  %2571 = vmatmul.mubr.f32.gmra.mrb[0].mxu0 %v2234
  %v2572 = vpop.f32.mrb[0].mxu0
  %v2573 = vadd.f32 0.0, %v2572
  %v2574 = vpop.f32.mrb[0].mxu0
  %2575 = vmatprep.mubr.f32.mxu0 0.0
  %2576 = vmatmul.mubr.f32.gmra.mrb[0].mxu0 %v2237
  %v2577 = vpop.f32.mrb[0].mxu0
  %v2578 = vadd.f32 0.0, %v2577
  %v2579 = vpop.f32.mrb[0].mxu0
  %2580 = vmatprep.mubr.f32.mxu0 0.0
  %2581 = vmatmul.mubr.f32.gmra.mrb[0].mxu0 %v2240
  %v2582 = vpop.f32.mrb[0].mxu0
  %v2583 = vadd.f32 0.0, %v2582
  %v2584 = vpop.f32.mrb[0].mxu0
  %2585 = vmatprep.mubr.f32.mxu0 0.0
  %2586 = vmatmul.mubr.f32.gmra.mrb[0].mxu0 %v2243
  %v2587 = vpop.f32.mrb[0].mxu0
  %v2588 = vadd.f32 0.0, %v2587
  %v2589 = vpop.f32.mrb[0].mxu0
  %2590 = vmatprep.mubr.f32.mxu0 0.0
  %2591 = vmatmul.mubr.f32.gmra.mrb[0].mxu0 %v2246
  %v2592 = vpop.f32.mrb[0].mxu0
  %v2593 = vadd.f32 0.0, %v2592
  %v2594 = vpop.f32.mrb[0].mxu0
  %2595 = vmatprep.mubr.f32.mxu0 0.0
  %2596 = vmatmul.mubr.f32.gmra.mrb[0].mxu0 %v2249
  %v2597 = vpop.f32.mrb[0].mxu0
  %v2598 = vadd.f32 0.0, %v2597
  %v2599 = vpop.f32.mrb[0].mxu0
  %2600 = vmatprep.mubr.f32.mxu0 0.0
  %2601 = vmatmul.mubr.f32.gmra.mrb[0].mxu0 %v2252
  %v2602 = vpop.f32.mrb[0].mxu0
  %v2603 = vadd.f32 0.0, %v2602
  %v2604 = vpop.f32.mrb[0].mxu0
  %2605 = vmatprep.mubr.f32.mxu0 0.0
  %2606 = vmatmul.mubr.f32.gmra.mrb[0].mxu0 %v2255
  %v2607 = vpop.f32.mrb[0].mxu0
  %v2608 = vadd.f32 0.0, %v2607
  %v2609 = vpop.f32.mrb[0].mxu0
  %2610 = vmatprep.mubr.f32.mxu0 0.0
  %2611 = vmatmul.mubr.f32.gmra.mrb[0].mxu0 %v2258
  %v2612 = vpop.f32.mrb[0].mxu0
  %v2613 = vadd.f32 0.0, %v2612
  %v2614 = vpop.f32.mrb[0].mxu0
  %2615 = vmatprep.mubr.f32.mxu0 0.0
  %2616 = vmatmul.mubr.f32.gmra.mrb[0].mxu0 %v2261
  %v2617 = vpop.f32.mrb[0].mxu0
  %v2618 = vadd.f32 0.0, %v2617
  %v2619 = vpop.f32.mrb[0].mxu0
  %2620 = vmatprep.mubr.f32.mxu0 0.0
  %2621 = vmatmul.mubr.f32.gmra.mrb[0].mxu0 %v2264
  %v2622 = vpop.f32.mrb[0].mxu0
  %v2623 = vadd.f32 0.0, %v2622
  %v2624 = vpop.f32.mrb[0].mxu0
  %2625 = vmatprep.mubr.f32.mxu0 0.0
  %2626 = vmatmul.mubr.f32.gmra.mrb[0].mxu0 %v2267
  %v2627 = vpop.f32.mrb[0].mxu0
  %v2628 = vadd.f32 0.0, %v2627
  %v2629 = vpop.f32.mrb[0].mxu0
  %2630 = vmatprep.mubr.f32.mxu0 0.0
  %2631 = vmatmul.mubr.f32.gmra.mrb[0].mxu0 %v2270
  %v2632 = vpop.f32.mrb[0].mxu0
  %v2633 = vadd.f32 0.0, %v2632
  %v2634 = vpop.f32.mrb[0].mxu0
  %2635 = vmatprep.mubr.f32.mxu0 0.0
  %2636 = vmatmul.mubr.f32.gmra.mrb[0].mxu0 %v2273
  %v2637 = vpop.f32.mrb[0].mxu0
  %v2638 = vadd.f32 0.0, %v2637
  %v2639 = vpop.f32.mrb[0].mxu0
  %2640 = vmatprep.mubr.f32.mxu0 0.0
  %2641 = vmatmul.mubr.f32.gmra.mrb[0].mxu0 %v2276
  %v2642 = vpop.f32.mrb[0].mxu0
  %v2643 = vadd.f32 0.0, %v2642
  %v2644 = vpop.f32.mrb[0].mxu0
  %2645 = vmatprep.mubr.f32.mxu0 0.0
  %2646 = vmatmul.mubr.f32.gmra.mrb[0].mxu0 %v2279
  %v2647 = vpop.f32.mrb[0].mxu0
  %v2648 = vadd.f32 0.0, %v2647
  %v2649 = vpop.f32.mrb[0].mxu0
  %2650 = vmatprep.mubr.f32.mxu0 0.0
  %2651 = vmatmul.mubr.f32.gmra.mrb[0].mxu0 %v2282
  %v2652 = vpop.f32.mrb[0].mxu0
  %v2653 = vadd.f32 0.0, %v2652
  %v2654 = vpop.f32.mrb[0].mxu0
  %2655 = vdwg.mxu0
  %v2656 = vadd.f32 %v2093, %v2351
  %v2657 = vadd.f32 %v2094, %v2353
  %v2658 = vadd.f32 %v2095, %v2548
  %v2659 = vadd.f32 %v2096, %v2357
  %v2660 = vadd.f32 %v2097, %v2359
  %v2661 = vadd.f32 %v2098, %v2553
  %v2662 = vadd.f32 %v2099, %v2363
  %v2663 = vadd.f32 %v2100, %v2365
  %v2664 = vadd.f32 %v2101, %v2558
  %v2665 = vadd.f32 %v2102, %v2369
  %v2666 = vadd.f32 %v2103, %v2371
  %v2667 = vadd.f32 %v2104, %v2563
  %v2668 = vadd.f32 %v2105, %v2375
  %v2669 = vadd.f32 %v2106, %v2377
  %v2670 = vadd.f32 %v2107, %v2568
  %v2671 = vadd.f32 %v2108, %v2381
  %v2672 = vadd.f32 %v2109, %v2383
  %v2673 = vadd.f32 %v2110, %v2573
  %v2674 = vadd.f32 %v2111, %v2387
  %v2675 = vadd.f32 %v2112, %v2389
  %v2676 = vadd.f32 %v2113, %v2578
  %v2677 = vadd.f32 %v2114, %v2393
  %v2678 = vadd.f32 %v2115, %v2395
  %v2679 = vadd.f32 %v2116, %v2583
  %v2680 = vadd.f32 %v2117, %v2399
  %v2681 = vadd.f32 %v2118, %v2401
  %v2682 = vadd.f32 %v2119, %v2588
  %v2683 = vadd.f32 %v2120, %v2405
  %v2684 = vadd.f32 %v2121, %v2407
  %v2685 = vadd.f32 %v2122, %v2593
  %v2686 = vadd.f32 %v2123, %v2411
  %v2687 = vadd.f32 %v2124, %v2413
  %v2688 = vadd.f32 %v2125, %v2598
  %v2689 = vadd.f32 %v2126, %v2417
  %v2690 = vadd.f32 %v2127, %v2419
  %v2691 = vadd.f32 %v2128, %v2603
  %v2692 = vadd.f32 %v2129, %v2423
  %v2693 = vadd.f32 %v2130, %v2425
  %v2694 = vadd.f32 %v2131, %v2608
  %v2695 = vadd.f32 %v2132, %v2429
  %v2696 = vadd.f32 %v2133, %v2431
  %v2697 = vadd.f32 %v2134, %v2613
  %v2698 = vadd.f32 %v2135, %v2435
  %v2699 = vadd.f32 %v2136, %v2437
  %v2700 = vadd.f32 %v2137, %v2618
  %v2701 = vadd.f32 %v2138, %v2441
  %v2702 = vadd.f32 %v2139, %v2443
  %v2703 = vadd.f32 %v2140, %v2623
  %v2704 = vadd.f32 %v2141, %v2447
  %v2705 = vadd.f32 %v2142, %v2449
  %v2706 = vadd.f32 %v2143, %v2628
  %v2707 = vadd.f32 %v2144, %v2453
  %v2708 = vadd.f32 %v2145, %v2455
  %v2709 = vadd.f32 %v2146, %v2633
  %v2710 = vadd.f32 %v2147, %v2459
  %v2711 = vadd.f32 %v2148, %v2461
  %v2712 = vadd.f32 %v2149, %v2638
  %v2713 = vadd.f32 %v2150, %v2465
  %v2714 = vadd.f32 %v2151, %v2467
  %v2715 = vadd.f32 %v2152, %v2643
  %v2716 = vadd.f32 %v2153, %v2471
  %v2717 = vadd.f32 %v2154, %v2473
  %v2718 = vadd.f32 %v2155, %v2648
  %v2719 = vadd.f32 %v2156, %v2477
  %v2720 = vadd.f32 %v2157, %v2479
  %v2721 = vadd.f32 %v2158, %v2653
  %v2722 = vld [vmem:[#allocation2 + $0x20] sm:$0xff]
  %v2723 = vld [vmem:[#allocation2 + $0x28] sm:$0xff]
  %v2724 = vld [vmem:[#allocation2 + $0x30] sm:$0xff]
  %v2725 = vld [vmem:[#allocation2 + $0x38] sm:$0xff]
  %v2726 = vld [vmem:[#allocation2 + $0x40] sm:$0xff]
  %v2727 = vld [vmem:[#allocation2 + $0x48] sm:$0xff]
  %v2728 = vld [vmem:[#allocation2 + $0x50] sm:$0xff]
  %v2729 = vld [vmem:[#allocation2 + $0x58] sm:$0xff]
  %v2730 = vld [vmem:[#allocation2 + $0x60] sm:$0xff]
  %v2731 = vld [vmem:[#allocation2 + $0x68] sm:$0xff]
  %v2732 = vld [vmem:[#allocation2 + $0x70] sm:$0xff]
  %v2733 = vld [vmem:[#allocation2 + $0x78] sm:$0xff]
  %v2734 = vld [vmem:[#allocation2 + $0x80] sm:$0xff]
  %v2735 = vld [vmem:[#allocation2 + $0x88] sm:$0xff]
  %v2736 = vld [vmem:[#allocation2 + $0x90] sm:$0xff]
  %v2737 = vld [vmem:[#allocation2 + $0x98] sm:$0xff]
  %v2738 = vld [vmem:[#allocation2 + $0xa0] sm:$0xff]
  %v2739 = vld [vmem:[#allocation2 + $0xa8] sm:$0xff]
  %v2740 = vld [vmem:[#allocation2 + $0xb0] sm:$0xff]
  %v2741 = vld [vmem:[#allocation2 + $0xb8] sm:$0xff]
  %v2742 = vld [vmem:[#allocation2 + $0xc0] sm:$0xff]
  %v2743 = vld [vmem:[#allocation2 + $0xc8] sm:$0xff]
  %s2744 = scalar_lea.vmem %s3, 1152
  %v2745 = vld [vmem:[%s2744] sm:$0xff]
  %v2746 = vld [vmem:[%s2744 + $0x8] sm:$0xff]
  %v2747 = vld [vmem:[%s2744 + $0x10] sm:$0xff]
  %v2748 = vld [vmem:[%s2744 + $0x18] sm:$0xff]
  %v2749 = vld [vmem:[%s2744 + $0x20] sm:$0xff]
  %v2750 = vld [vmem:[%s2744 + $0x28] sm:$0xff]
  %v2751 = vld [vmem:[%s2744 + $0x30] sm:$0xff]
  %v2752 = vld [vmem:[%s2744 + $0x38] sm:$0xff]
  %v2753 = vld [vmem:[%s2744 + $0x40] sm:$0xff]
  %v2754 = vld [vmem:[%s2744 + $0x48] sm:$0xff]
  %v2755 = vld [vmem:[%s2744 + $0x50] sm:$0xff]
  %v2756 = vld [vmem:[%s2744 + $0x58] sm:$0xff]
  %v2757 = vld [vmem:[%s2744 + $0x60] sm:$0xff]
  %v2758 = vld [vmem:[%s2744 + $0x68] sm:$0xff]
  %v2759 = vld [vmem:[%s2744 + $0x70] sm:$0xff]
  %v2760 = vld [vmem:[%s2744 + $0x78] sm:$0xff]
  %v2761 = vld [vmem:[%s2744 + $0x80] sm:$0xff]
  %v2762 = vld [vmem:[%s2744 + $0x88] sm:$0xff]
  %v2763 = vld [vmem:[%s2744 + $0x90] sm:$0xff]
  %v2764 = vld [vmem:[%s2744 + $0x98] sm:$0xff]
  %v2765 = vld [vmem:[%s2744 + $0xa0] sm:$0xff]
  %v2766 = vld [vmem:[%s2744 + $0xa8] sm:$0xff]
  %v2767 = vld [vmem:[%s2744 + $0xb0] sm:$0xff]
  %v2768 = vld [vmem:[%s2744 + $0xb8] sm:$0xff]
  %v2769 = vld [vmem:[%s2744 + $0xc0] sm:$0xff]
  %v2770 = vld [vmem:[%s2744 + $0xc8] sm:$0xff]
  %v2771 = vld [vmem:[%s2744 + $0xd0] sm:$0xff]
  %v2772 = vld [vmem:[%s2744 + $0xd8] sm:$0xff]
  %v2773 = vld [vmem:[%s2744 + $0xe0] sm:$0xff]
  %v2774 = vld [vmem:[%s2744 + $0xe8] sm:$0xff]
  %v2775 = vld [vmem:[%s2744 + $0xf0] sm:$0xff]
  %v2776 = vld [vmem:[%s2744 + $0xf8] sm:$0xff]
  %v2777 = vld [vmem:[%s2744 + $0x100] sm:$0xff]
  %v2778 = vld [vmem:[%s2744 + $0x108] sm:$0xff]
  %v2779 = vld [vmem:[%s2744 + $0x110] sm:$0xff]
  %v2780 = vld [vmem:[%s2744 + $0x118] sm:$0xff]
  %v2782 = vsel %vm584, %v2722, 0
  %v2785 = vsel %vm584, %v2723, 0
  %v2788 = vsel %vm584, %v2724, 0
  %v2791 = vsel %vm584, %v2725, 0
  %v2794 = vsel %vm584, %v2726, 0
  %v2797 = vsel %vm584, %v2727, 0
  %v2800 = vsel %vm584, %v2728, 0
  %v2803 = vsel %vm584, %v2729, 0
  %v2806 = vsel %vm584, %v2730, 0
  %v2809 = vsel %vm584, %v2731, 0
  %v2812 = vsel %vm584, %v2732, 0
  %v2815 = vsel %vm584, %v2733, 0
  %v2818 = vsel %vm584, %v2734, 0
  %v2821 = vsel %vm584, %v2735, 0
  %v2824 = vsel %vm584, %v2736, 0
  %v2827 = vsel %vm584, %v2737, 0
  %v2830 = vsel %vm584, %v2738, 0
  %v2833 = vsel %vm584, %v2739, 0
  %v2836 = vsel %vm584, %v2740, 0
  %v2839 = vsel %vm584, %v2741, 0
  %v2842 = vsel %vm584, %v2742, 0
  %v2845 = vsel %vm584, %v2743, 0
  %2847 = vmatprep.subr.mxu0 %v2746
  %2848 = vmatpush1.msra.mxu0 %v2745
  %2849 = vmatprep.subr.mxu0 %v2749
  %2850 = vmatpush1.msra.mxu0 %v2748
  %2851 = vmatprep.subr.mxu0 %v2752
  %2852 = vmatpush1.msra.mxu0 %v2751
  %2853 = vmatprep.subr.mxu0 %v2755
  %2854 = vmatpush1.msra.mxu0 %v2754
  %2855 = vmatprep.subr.mxu0 %v2758
  %2856 = vmatpush1.msra.mxu0 %v2757
  %2857 = vmatprep.subr.mxu0 %v2761
  %2858 = vmatpush1.msra.mxu0 %v2760
  %2859 = vmatprep.subr.mxu0 %v2764
  %2860 = vmatpush1.msra.mxu0 %v2763
  %2861 = vmatprep.subr.mxu0 %v2767
  %2862 = vmatpush1.msra.mxu0 %v2766
  %2863 = vmatprep.subr.mxu0 %v2770
  %2864 = vmatpush1.msra.mxu0 %v2769
  %2865 = vmatprep.subr.mxu0 %v2773
  %2866 = vmatpush1.msra.mxu0 %v2772
  %2867 = vmatprep.subr.mxu0 %v2776
  %2868 = vmatpush1.msra.mxu0 %v2775
  %2869 = vmatprep.subr.mxu0 %v2779
  %2870 = vmatpush1.msra.mxu0 %v2778
  %2871 = vmatprep.subr.mxu0 0.0
  %2872 = vmatpush1.msra.mxu0 0.0
  %2873 = vmatprep.subr.mxu0 0.0
  %2874 = vmatpush1.msra.mxu0 0.0
  %2875 = vmatprep.subr.mxu0 0.0
  %2876 = vmatpush1.msra.mxu0 0.0
  %2877 = vmatprep.subr.mxu0 0.0
  %2878 = vmatpush1.msra.mxu0 0.0
  %2879 = vmatprep.subr.mxu0 0.0
  %2880 = vmatpush1.msra.mxu0 0.0
  %2881 = vmatprep.subr.mxu0 0.0
  %2882 = vmatpush1.msra.mxu0 0.0
  %2883 = vmatprep.subr.mxu0 0.0
  %2884 = vmatpush1.msra.mxu0 0.0
  %2885 = vmatprep.subr.mxu0 0.0
  %2886 = vmatpush1.msra.mxu0 0.0
  %2887 = vmatprep.subr.mxu0 0.0
  %2888 = vmatpush1.msra.mxu0 0.0
  %2889 = vmatprep.subr.mxu0 0.0
  %2890 = vmatpush1.msra.mxu0 0.0
  %2891 = vmatprep.subr.mxu0 0.0
  %2892 = vmatpush1.msra.mxu0 0.0
  %2893 = vmatprep.subr.mxu0 0.0
  %2894 = vmatpush1.msra.mxu0 0.0
  %2895 = vmatprep.subr.mxu0 0.0
  %2896 = vmatpush1.msra.mxu0 0.0
  %2897 = vmatprep.subr.mxu0 0.0
  %2898 = vmatpush1.msra.mxu0 0.0
  %2899 = vmatprep.subr.mxu0 0.0
  %2900 = vmatpush1.msra.mxu0 0.0
  %2901 = vmatprep.subr.mxu0 0.0
  %2902 = vmatpush1.msra.mxu0 0.0
  %2903 = vmatprep.subr.mxu0 0.0
  %2904 = vmatpush1.msra.mxu0 0.0
  %2905 = vmatprep.subr.mxu0 0.0
  %2906 = vmatpush1.msra.mxu0 0.0
  %2907 = vmatprep.subr.mxu0 0.0
  %2908 = vmatpush1.msra.mxu0 0.0
  %2909 = vmatprep.subr.mxu0 0.0
  %2910 = vmatpush1.msra.mxu0 0.0
  %2911 = vmatprep.mubr.f32.mxu0 0.0
  %2912 = vmatmul.mubr.f32.gmra.mrb[0].mxu0 %v2782
  %v2913 = vpop.f32.mrb[0].mxu0
  %v2914 = vadd.f32 0.0, %v2913
  %v2915 = vpop.f32.mrb[0].mxu0
  %v2916 = vadd.f32 0.0, %v2915
  %2917 = vmatprep.mubr.f32.mxu0 0.0
  %2918 = vmatmul.mubr.f32.gmra.mrb[0].mxu0 %v2785
  %v2919 = vpop.f32.mrb[0].mxu0
  %v2920 = vadd.f32 0.0, %v2919
  %v2921 = vpop.f32.mrb[0].mxu0
  %v2922 = vadd.f32 0.0, %v2921
  %2923 = vmatprep.mubr.f32.mxu0 0.0
  %2924 = vmatmul.mubr.f32.gmra.mrb[0].mxu0 %v2788
  %v2925 = vpop.f32.mrb[0].mxu0
  %v2926 = vadd.f32 0.0, %v2925
  %v2927 = vpop.f32.mrb[0].mxu0
  %v2928 = vadd.f32 0.0, %v2927
  %2929 = vmatprep.mubr.f32.mxu0 0.0
  %2930 = vmatmul.mubr.f32.gmra.mrb[0].mxu0 %v2791
  %v2931 = vpop.f32.mrb[0].mxu0
  %v2932 = vadd.f32 0.0, %v2931
  %v2933 = vpop.f32.mrb[0].mxu0
  %v2934 = vadd.f32 0.0, %v2933
  %2935 = vmatprep.mubr.f32.mxu0 0.0
  %2936 = vmatmul.mubr.f32.gmra.mrb[0].mxu0 %v2794
  %v2937 = vpop.f32.mrb[0].mxu0
  %v2938 = vadd.f32 0.0, %v2937
  %v2939 = vpop.f32.mrb[0].mxu0
  %v2940 = vadd.f32 0.0, %v2939
  %2941 = vmatprep.mubr.f32.mxu0 0.0
  %2942 = vmatmul.mubr.f32.gmra.mrb[0].mxu0 %v2797
  %v2943 = vpop.f32.mrb[0].mxu0
  %v2944 = vadd.f32 0.0, %v2943
  %v2945 = vpop.f32.mrb[0].mxu0
  %v2946 = vadd.f32 0.0, %v2945
  %2947 = vmatprep.mubr.f32.mxu0 0.0
  %2948 = vmatmul.mubr.f32.gmra.mrb[0].mxu0 %v2800
  %v2949 = vpop.f32.mrb[0].mxu0
  %v2950 = vadd.f32 0.0, %v2949
  %v2951 = vpop.f32.mrb[0].mxu0
  %v2952 = vadd.f32 0.0, %v2951
  %2953 = vmatprep.mubr.f32.mxu0 0.0
  %2954 = vmatmul.mubr.f32.gmra.mrb[0].mxu0 %v2803
  %v2955 = vpop.f32.mrb[0].mxu0
  %v2956 = vadd.f32 0.0, %v2955
  %v2957 = vpop.f32.mrb[0].mxu0
  %v2958 = vadd.f32 0.0, %v2957
  %2959 = vmatprep.mubr.f32.mxu0 0.0
  %2960 = vmatmul.mubr.f32.gmra.mrb[0].mxu0 %v2806
  %v2961 = vpop.f32.mrb[0].mxu0
  %v2962 = vadd.f32 0.0, %v2961
  %v2963 = vpop.f32.mrb[0].mxu0
  %v2964 = vadd.f32 0.0, %v2963
  %2965 = vmatprep.mubr.f32.mxu0 0.0
  %2966 = vmatmul.mubr.f32.gmra.mrb[0].mxu0 %v2809
  %v2967 = vpop.f32.mrb[0].mxu0
  %v2968 = vadd.f32 0.0, %v2967
  %v2969 = vpop.f32.mrb[0].mxu0
  %v2970 = vadd.f32 0.0, %v2969
  %2971 = vmatprep.mubr.f32.mxu0 0.0
  %2972 = vmatmul.mubr.f32.gmra.mrb[0].mxu0 %v2812
  %v2973 = vpop.f32.mrb[0].mxu0
  %v2974 = vadd.f32 0.0, %v2973
  %v2975 = vpop.f32.mrb[0].mxu0
  %v2976 = vadd.f32 0.0, %v2975
  %2977 = vmatprep.mubr.f32.mxu0 0.0
  %2978 = vmatmul.mubr.f32.gmra.mrb[0].mxu0 %v2815
  %v2979 = vpop.f32.mrb[0].mxu0
  %v2980 = vadd.f32 0.0, %v2979
  %v2981 = vpop.f32.mrb[0].mxu0
  %v2982 = vadd.f32 0.0, %v2981
  %2983 = vmatprep.mubr.f32.mxu0 0.0
  %2984 = vmatmul.mubr.f32.gmra.mrb[0].mxu0 %v2818
  %v2985 = vpop.f32.mrb[0].mxu0
  %v2986 = vadd.f32 0.0, %v2985
  %v2987 = vpop.f32.mrb[0].mxu0
  %v2988 = vadd.f32 0.0, %v2987
  %2989 = vmatprep.mubr.f32.mxu0 0.0
  %2990 = vmatmul.mubr.f32.gmra.mrb[0].mxu0 %v2821
  %v2991 = vpop.f32.mrb[0].mxu0
  %v2992 = vadd.f32 0.0, %v2991
  %v2993 = vpop.f32.mrb[0].mxu0
  %v2994 = vadd.f32 0.0, %v2993
  %2995 = vmatprep.mubr.f32.mxu0 0.0
  %2996 = vmatmul.mubr.f32.gmra.mrb[0].mxu0 %v2824
  %v2997 = vpop.f32.mrb[0].mxu0
  %v2998 = vadd.f32 0.0, %v2997
  %v2999 = vpop.f32.mrb[0].mxu0
  %v3000 = vadd.f32 0.0, %v2999
  %3001 = vmatprep.mubr.f32.mxu0 0.0
  %3002 = vmatmul.mubr.f32.gmra.mrb[0].mxu0 %v2827
  %v3003 = vpop.f32.mrb[0].mxu0
  %v3004 = vadd.f32 0.0, %v3003
  %v3005 = vpop.f32.mrb[0].mxu0
  %v3006 = vadd.f32 0.0, %v3005
  %3007 = vmatprep.mubr.f32.mxu0 0.0
  %3008 = vmatmul.mubr.f32.gmra.mrb[0].mxu0 %v2830
  %v3009 = vpop.f32.mrb[0].mxu0
  %v3010 = vadd.f32 0.0, %v3009
  %v3011 = vpop.f32.mrb[0].mxu0
  %v3012 = vadd.f32 0.0, %v3011
  %3013 = vmatprep.mubr.f32.mxu0 0.0
  %3014 = vmatmul.mubr.f32.gmra.mrb[0].mxu0 %v2833
  %v3015 = vpop.f32.mrb[0].mxu0
  %v3016 = vadd.f32 0.0, %v3015
  %v3017 = vpop.f32.mrb[0].mxu0
  %v3018 = vadd.f32 0.0, %v3017
  %3019 = vmatprep.mubr.f32.mxu0 0.0
  %3020 = vmatmul.mubr.f32.gmra.mrb[0].mxu0 %v2836
  %v3021 = vpop.f32.mrb[0].mxu0
  %v3022 = vadd.f32 0.0, %v3021
  %v3023 = vpop.f32.mrb[0].mxu0
  %v3024 = vadd.f32 0.0, %v3023
  %3025 = vmatprep.mubr.f32.mxu0 0.0
  %3026 = vmatmul.mubr.f32.gmra.mrb[0].mxu0 %v2839
  %v3027 = vpop.f32.mrb[0].mxu0
  %v3028 = vadd.f32 0.0, %v3027
  %v3029 = vpop.f32.mrb[0].mxu0
  %v3030 = vadd.f32 0.0, %v3029
  %3031 = vmatprep.mubr.f32.mxu0 0.0
  %3032 = vmatmul.mubr.f32.gmra.mrb[0].mxu0 %v2842
  %v3033 = vpop.f32.mrb[0].mxu0
  %v3034 = vadd.f32 0.0, %v3033
  %v3035 = vpop.f32.mrb[0].mxu0
  %v3036 = vadd.f32 0.0, %v3035
  %3037 = vmatprep.mubr.f32.mxu0 0.0
  %3038 = vmatmul.mubr.f32.gmra.mrb[0].mxu0 %v2845
  %v3039 = vpop.f32.mrb[0].mxu0
  %v3040 = vadd.f32 0.0, %v3039
  %v3041 = vpop.f32.mrb[0].mxu0
  %v3042 = vadd.f32 0.0, %v3041
  %3043 = vdwg.mxu0
  %3044 = vmatprep.subr.mxu0 0.0
  %3045 = vmatpush1.msra.mxu0 %v2747
  %3046 = vmatprep.subr.mxu0 0.0
  %3047 = vmatpush1.msra.mxu0 %v2750
  %3048 = vmatprep.subr.mxu0 0.0
  %3049 = vmatpush1.msra.mxu0 %v2753
  %3050 = vmatprep.subr.mxu0 0.0
  %3051 = vmatpush1.msra.mxu0 %v2756
  %3052 = vmatprep.subr.mxu0 0.0
  %3053 = vmatpush1.msra.mxu0 %v2759
  %3054 = vmatprep.subr.mxu0 0.0
  %3055 = vmatpush1.msra.mxu0 %v2762
  %3056 = vmatprep.subr.mxu0 0.0
  %3057 = vmatpush1.msra.mxu0 %v2765
  %3058 = vmatprep.subr.mxu0 0.0
  %3059 = vmatpush1.msra.mxu0 %v2768
  %3060 = vmatprep.subr.mxu0 0.0
  %3061 = vmatpush1.msra.mxu0 %v2771
  %3062 = vmatprep.subr.mxu0 0.0
  %3063 = vmatpush1.msra.mxu0 %v2774
  %3064 = vmatprep.subr.mxu0 0.0
  %3065 = vmatpush1.msra.mxu0 %v2777
  %3066 = vmatprep.subr.mxu0 0.0
  %3067 = vmatpush1.msra.mxu0 %v2780
  %3068 = vmatprep.subr.mxu0 0.0
  %3069 = vmatpush1.msra.mxu0 0.0
  %3070 = vmatprep.subr.mxu0 0.0
  %3071 = vmatpush1.msra.mxu0 0.0
  %3072 = vmatprep.subr.mxu0 0.0
  %3073 = vmatpush1.msra.mxu0 0.0
  %3074 = vmatprep.subr.mxu0 0.0
  %3075 = vmatpush1.msra.mxu0 0.0
  %3076 = vmatprep.subr.mxu0 0.0
  %3077 = vmatpush1.msra.mxu0 0.0
  %3078 = vmatprep.subr.mxu0 0.0
  %3079 = vmatpush1.msra.mxu0 0.0
  %3080 = vmatprep.subr.mxu0 0.0
  %3081 = vmatpush1.msra.mxu0 0.0
  %3082 = vmatprep.subr.mxu0 0.0
  %3083 = vmatpush1.msra.mxu0 0.0
  %3084 = vmatprep.subr.mxu0 0.0
  %3085 = vmatpush1.msra.mxu0 0.0
  %3086 = vmatprep.subr.mxu0 0.0
  %3087 = vmatpush1.msra.mxu0 0.0
  %3088 = vmatprep.subr.mxu0 0.0
  %3089 = vmatpush1.msra.mxu0 0.0
  %3090 = vmatprep.subr.mxu0 0.0
  %3091 = vmatpush1.msra.mxu0 0.0
  %3092 = vmatprep.subr.mxu0 0.0
  %3093 = vmatpush1.msra.mxu0 0.0
  %3094 = vmatprep.subr.mxu0 0.0
  %3095 = vmatpush1.msra.mxu0 0.0
  %3096 = vmatprep.subr.mxu0 0.0
  %3097 = vmatpush1.msra.mxu0 0.0
  %3098 = vmatprep.subr.mxu0 0.0
  %3099 = vmatpush1.msra.mxu0 0.0
  %3100 = vmatprep.subr.mxu0 0.0
  %3101 = vmatpush1.msra.mxu0 0.0
  %3102 = vmatprep.subr.mxu0 0.0
  %3103 = vmatpush1.msra.mxu0 0.0
  %3104 = vmatprep.subr.mxu0 0.0
  %3105 = vmatpush1.msra.mxu0 0.0
  %3106 = vmatprep.subr.mxu0 0.0
  %3107 = vmatpush1.msra.mxu0 0.0
  %3108 = vmatprep.mubr.f32.mxu0 0.0
  %3109 = vmatmul.mubr.f32.gmra.mrb[0].mxu0 %v2782
  %v3110 = vpop.f32.mrb[0].mxu0
  %v3111 = vadd.f32 0.0, %v3110
  %v3112 = vpop.f32.mrb[0].mxu0
  %3113 = vmatprep.mubr.f32.mxu0 0.0
  %3114 = vmatmul.mubr.f32.gmra.mrb[0].mxu0 %v2785
  %v3115 = vpop.f32.mrb[0].mxu0
  %v3116 = vadd.f32 0.0, %v3115
  %v3117 = vpop.f32.mrb[0].mxu0
  %3118 = vmatprep.mubr.f32.mxu0 0.0
  %3119 = vmatmul.mubr.f32.gmra.mrb[0].mxu0 %v2788
  %v3120 = vpop.f32.mrb[0].mxu0
  %v3121 = vadd.f32 0.0, %v3120
  %v3122 = vpop.f32.mrb[0].mxu0
  %3123 = vmatprep.mubr.f32.mxu0 0.0
  %3124 = vmatmul.mubr.f32.gmra.mrb[0].mxu0 %v2791
  %v3125 = vpop.f32.mrb[0].mxu0
  %v3126 = vadd.f32 0.0, %v3125
  %v3127 = vpop.f32.mrb[0].mxu0
  %3128 = vmatprep.mubr.f32.mxu0 0.0
  %3129 = vmatmul.mubr.f32.gmra.mrb[0].mxu0 %v2794
  %v3130 = vpop.f32.mrb[0].mxu0
  %v3131 = vadd.f32 0.0, %v3130
  %v3132 = vpop.f32.mrb[0].mxu0
  %3133 = vmatprep.mubr.f32.mxu0 0.0
  %3134 = vmatmul.mubr.f32.gmra.mrb[0].mxu0 %v2797
  %v3135 = vpop.f32.mrb[0].mxu0
  %v3136 = vadd.f32 0.0, %v3135
  %v3137 = vpop.f32.mrb[0].mxu0
  %3138 = vmatprep.mubr.f32.mxu0 0.0
  %3139 = vmatmul.mubr.f32.gmra.mrb[0].mxu0 %v2800
  %v3140 = vpop.f32.mrb[0].mxu0
  %v3141 = vadd.f32 0.0, %v3140
  %v3142 = vpop.f32.mrb[0].mxu0
  %3143 = vmatprep.mubr.f32.mxu0 0.0
  %3144 = vmatmul.mubr.f32.gmra.mrb[0].mxu0 %v2803
  %v3145 = vpop.f32.mrb[0].mxu0
  %v3146 = vadd.f32 0.0, %v3145
  %v3147 = vpop.f32.mrb[0].mxu0
  %3148 = vmatprep.mubr.f32.mxu0 0.0
  %3149 = vmatmul.mubr.f32.gmra.mrb[0].mxu0 %v2806
  %v3150 = vpop.f32.mrb[0].mxu0
  %v3151 = vadd.f32 0.0, %v3150
  %v3152 = vpop.f32.mrb[0].mxu0
  %3153 = vmatprep.mubr.f32.mxu0 0.0
  %3154 = vmatmul.mubr.f32.gmra.mrb[0].mxu0 %v2809
  %v3155 = vpop.f32.mrb[0].mxu0
  %v3156 = vadd.f32 0.0, %v3155
  %v3157 = vpop.f32.mrb[0].mxu0
  %3158 = vmatprep.mubr.f32.mxu0 0.0
  %3159 = vmatmul.mubr.f32.gmra.mrb[0].mxu0 %v2812
  %v3160 = vpop.f32.mrb[0].mxu0
  %v3161 = vadd.f32 0.0, %v3160
  %v3162 = vpop.f32.mrb[0].mxu0
  %3163 = vmatprep.mubr.f32.mxu0 0.0
  %3164 = vmatmul.mubr.f32.gmra.mrb[0].mxu0 %v2815
  %v3165 = vpop.f32.mrb[0].mxu0
  %v3166 = vadd.f32 0.0, %v3165
  %v3167 = vpop.f32.mrb[0].mxu0
  %3168 = vmatprep.mubr.f32.mxu0 0.0
  %3169 = vmatmul.mubr.f32.gmra.mrb[0].mxu0 %v2818
  %v3170 = vpop.f32.mrb[0].mxu0
  %v3171 = vadd.f32 0.0, %v3170
  %v3172 = vpop.f32.mrb[0].mxu0
  %3173 = vmatprep.mubr.f32.mxu0 0.0
  %3174 = vmatmul.mubr.f32.gmra.mrb[0].mxu0 %v2821
  %v3175 = vpop.f32.mrb[0].mxu0
  %v3176 = vadd.f32 0.0, %v3175
  %v3177 = vpop.f32.mrb[0].mxu0
  %3178 = vmatprep.mubr.f32.mxu0 0.0
  %3179 = vmatmul.mubr.f32.gmra.mrb[0].mxu0 %v2824
  %v3180 = vpop.f32.mrb[0].mxu0
  %v3181 = vadd.f32 0.0, %v3180
  %v3182 = vpop.f32.mrb[0].mxu0
  %3183 = vmatprep.mubr.f32.mxu0 0.0
  %3184 = vmatmul.mubr.f32.gmra.mrb[0].mxu0 %v2827
  %v3185 = vpop.f32.mrb[0].mxu0
  %v3186 = vadd.f32 0.0, %v3185
  %v3187 = vpop.f32.mrb[0].mxu0
  %3188 = vmatprep.mubr.f32.mxu0 0.0
  %3189 = vmatmul.mubr.f32.gmra.mrb[0].mxu0 %v2830
  %v3190 = vpop.f32.mrb[0].mxu0
  %v3191 = vadd.f32 0.0, %v3190
  %v3192 = vpop.f32.mrb[0].mxu0
  %3193 = vmatprep.mubr.f32.mxu0 0.0
  %3194 = vmatmul.mubr.f32.gmra.mrb[0].mxu0 %v2833
  %v3195 = vpop.f32.mrb[0].mxu0
  %v3196 = vadd.f32 0.0, %v3195
  %v3197 = vpop.f32.mrb[0].mxu0
  %3198 = vmatprep.mubr.f32.mxu0 0.0
  %3199 = vmatmul.mubr.f32.gmra.mrb[0].mxu0 %v2836
  %v3200 = vpop.f32.mrb[0].mxu0
  %v3201 = vadd.f32 0.0, %v3200
  %v3202 = vpop.f32.mrb[0].mxu0
  %3203 = vmatprep.mubr.f32.mxu0 0.0
  %3204 = vmatmul.mubr.f32.gmra.mrb[0].mxu0 %v2839
  %v3205 = vpop.f32.mrb[0].mxu0
  %v3206 = vadd.f32 0.0, %v3205
  %v3207 = vpop.f32.mrb[0].mxu0
  %3208 = vmatprep.mubr.f32.mxu0 0.0
  %3209 = vmatmul.mubr.f32.gmra.mrb[0].mxu0 %v2842
  %v3210 = vpop.f32.mrb[0].mxu0
  %v3211 = vadd.f32 0.0, %v3210
  %v3212 = vpop.f32.mrb[0].mxu0
  %3213 = vmatprep.mubr.f32.mxu0 0.0
  %3214 = vmatmul.mubr.f32.gmra.mrb[0].mxu0 %v2845
  %v3215 = vpop.f32.mrb[0].mxu0
  %v3216 = vadd.f32 0.0, %v3215
  %v3217 = vpop.f32.mrb[0].mxu0
  %3218 = vdwg.mxu0
  %v3219 = vadd.f32 %v2656, %v2914
  %v3220 = vadd.f32 %v2657, %v2916
  %v3221 = vadd.f32 %v2658, %v3111
  %v3222 = vadd.f32 %v2659, %v2920
  %v3223 = vadd.f32 %v2660, %v2922
  %v3224 = vadd.f32 %v2661, %v3116
  %v3225 = vadd.f32 %v2662, %v2926
  %v3226 = vadd.f32 %v2663, %v2928
  %v3227 = vadd.f32 %v2664, %v3121
  %v3228 = vadd.f32 %v2665, %v2932
  %v3229 = vadd.f32 %v2666, %v2934
  %v3230 = vadd.f32 %v2667, %v3126
  %v3231 = vadd.f32 %v2668, %v2938
  %v3232 = vadd.f32 %v2669, %v2940
  %v3233 = vadd.f32 %v2670, %v3131
  %v3234 = vadd.f32 %v2671, %v2944
  %v3235 = vadd.f32 %v2672, %v2946
  %v3236 = vadd.f32 %v2673, %v3136
  %v3237 = vadd.f32 %v2674, %v2950
  %v3238 = vadd.f32 %v2675, %v2952
  %v3239 = vadd.f32 %v2676, %v3141
  %v3240 = vadd.f32 %v2677, %v2956
  %v3241 = vadd.f32 %v2678, %v2958
  %v3242 = vadd.f32 %v2679, %v3146
  %v3243 = vadd.f32 %v2680, %v2962
  %v3244 = vadd.f32 %v2681, %v2964
  %v3245 = vadd.f32 %v2682, %v3151
  %v3246 = vadd.f32 %v2683, %v2968
  %v3247 = vadd.f32 %v2684, %v2970
  %v3248 = vadd.f32 %v2685, %v3156
  %v3249 = vadd.f32 %v2686, %v2974
  %v3250 = vadd.f32 %v2687, %v2976
  %v3251 = vadd.f32 %v2688, %v3161
  %v3252 = vadd.f32 %v2689, %v2980
  %v3253 = vadd.f32 %v2690, %v2982
  %v3254 = vadd.f32 %v2691, %v3166
  %v3255 = vadd.f32 %v2692, %v2986
  %v3256 = vadd.f32 %v2693, %v2988
  %v3257 = vadd.f32 %v2694, %v3171
  %v3258 = vadd.f32 %v2695, %v2992
  %v3259 = vadd.f32 %v2696, %v2994
  %v3260 = vadd.f32 %v2697, %v3176
  %v3261 = vadd.f32 %v2698, %v2998
  %v3262 = vadd.f32 %v2699, %v3000
  %v3263 = vadd.f32 %v2700, %v3181
  %v3264 = vadd.f32 %v2701, %v3004
  %v3265 = vadd.f32 %v2702, %v3006
  %v3266 = vadd.f32 %v2703, %v3186
  %v3267 = vadd.f32 %v2704, %v3010
  %v3268 = vadd.f32 %v2705, %v3012
  %v3269 = vadd.f32 %v2706, %v3191
  %v3270 = vadd.f32 %v2707, %v3016
  %v3271 = vadd.f32 %v2708, %v3018
  %v3272 = vadd.f32 %v2709, %v3196
  %v3273 = vadd.f32 %v2710, %v3022
  %v3274 = vadd.f32 %v2711, %v3024
  %v3275 = vadd.f32 %v2712, %v3201
  %v3276 = vadd.f32 %v2713, %v3028
  %v3277 = vadd.f32 %v2714, %v3030
  %v3278 = vadd.f32 %v2715, %v3206
  %v3279 = vadd.f32 %v2716, %v3034
  %v3280 = vadd.f32 %v2717, %v3036
  %v3281 = vadd.f32 %v2718, %v3211
  %v3282 = vadd.f32 %v2719, %v3040
  %v3283 = vadd.f32 %v2720, %v3042
  %v3284 = vadd.f32 %v2721, %v3216
  %v3285 = vld [vmem:[#allocation2 + $0x28] sm:$0xff]
  %v3286 = vld [vmem:[#allocation2 + $0x30] sm:$0xff]
  %v3287 = vld [vmem:[#allocation2 + $0x38] sm:$0xff]
  %v3288 = vld [vmem:[#allocation2 + $0x40] sm:$0xff]
  %v3289 = vld [vmem:[#allocation2 + $0x48] sm:$0xff]
  %v3290 = vld [vmem:[#allocation2 + $0x50] sm:$0xff]
  %v3291 = vld [vmem:[#allocation2 + $0x58] sm:$0xff]
  %v3292 = vld [vmem:[#allocation2 + $0x60] sm:$0xff]
  %v3293 = vld [vmem:[#allocation2 + $0x68] sm:$0xff]
  %v3294 = vld [vmem:[#allocation2 + $0x70] sm:$0xff]
  %v3295 = vld [vmem:[#allocation2 + $0x78] sm:$0xff]
  %v3296 = vld [vmem:[#allocation2 + $0x80] sm:$0xff]
  %v3297 = vld [vmem:[#allocation2 + $0x88] sm:$0xff]
  %v3298 = vld [vmem:[#allocation2 + $0x90] sm:$0xff]
  %v3299 = vld [vmem:[#allocation2 + $0x98] sm:$0xff]
  %v3300 = vld [vmem:[#allocation2 + $0xa0] sm:$0xff]
  %v3301 = vld [vmem:[#allocation2 + $0xa8] sm:$0xff]
  %v3302 = vld [vmem:[#allocation2 + $0xb0] sm:$0xff]
  %v3303 = vld [vmem:[#allocation2 + $0xb8] sm:$0xff]
  %v3304 = vld [vmem:[#allocation2 + $0xc0] sm:$0xff]
  %v3305 = vld [vmem:[#allocation2 + $0xc8] sm:$0xff]
  %v3306 = vld [vmem:[#allocation2 + $0xd0] sm:$0xff]
  %s3307 = scalar_lea.vmem %s3, 1440
  %v3308 = vld [vmem:[%s3307] sm:$0xff]
  %v3309 = vld [vmem:[%s3307 + $0x8] sm:$0xff]
  %v3310 = vld [vmem:[%s3307 + $0x10] sm:$0xff]
  %v3311 = vld [vmem:[%s3307 + $0x18] sm:$0xff]
  %v3312 = vld [vmem:[%s3307 + $0x20] sm:$0xff]
  %v3313 = vld [vmem:[%s3307 + $0x28] sm:$0xff]
  %v3314 = vld [vmem:[%s3307 + $0x30] sm:$0xff]
  %v3315 = vld [vmem:[%s3307 + $0x38] sm:$0xff]
  %v3316 = vld [vmem:[%s3307 + $0x40] sm:$0xff]
  %v3317 = vld [vmem:[%s3307 + $0x48] sm:$0xff]
  %v3318 = vld [vmem:[%s3307 + $0x50] sm:$0xff]
  %v3319 = vld [vmem:[%s3307 + $0x58] sm:$0xff]
  %v3320 = vld [vmem:[%s3307 + $0x60] sm:$0xff]
  %v3321 = vld [vmem:[%s3307 + $0x68] sm:$0xff]
  %v3322 = vld [vmem:[%s3307 + $0x70] sm:$0xff]
  %v3323 = vld [vmem:[%s3307 + $0x78] sm:$0xff]
  %v3324 = vld [vmem:[%s3307 + $0x80] sm:$0xff]
  %v3325 = vld [vmem:[%s3307 + $0x88] sm:$0xff]
  %v3326 = vld [vmem:[%s3307 + $0x90] sm:$0xff]
  %v3327 = vld [vmem:[%s3307 + $0x98] sm:$0xff]
  %v3328 = vld [vmem:[%s3307 + $0xa0] sm:$0xff]
  %v3329 = vld [vmem:[%s3307 + $0xa8] sm:$0xff]
  %v3330 = vld [vmem:[%s3307 + $0xb0] sm:$0xff]
  %v3331 = vld [vmem:[%s3307 + $0xb8] sm:$0xff]
  %v3332 = vld [vmem:[%s3307 + $0xc0] sm:$0xff]
  %v3333 = vld [vmem:[%s3307 + $0xc8] sm:$0xff]
  %v3334 = vld [vmem:[%s3307 + $0xd0] sm:$0xff]
  %v3335 = vld [vmem:[%s3307 + $0xd8] sm:$0xff]
  %v3336 = vld [vmem:[%s3307 + $0xe0] sm:$0xff]
  %v3337 = vld [vmem:[%s3307 + $0xe8] sm:$0xff]
  %v3338 = vld [vmem:[%s3307 + $0xf0] sm:$0xff]
  %v3339 = vld [vmem:[%s3307 + $0xf8] sm:$0xff]
  %v3340 = vld [vmem:[%s3307 + $0x100] sm:$0xff]
  %v3341 = vld [vmem:[%s3307 + $0x108] sm:$0xff]
  %v3342 = vld [vmem:[%s3307 + $0x110] sm:$0xff]
  %v3343 = vld [vmem:[%s3307 + $0x118] sm:$0xff]
  %v3345 = vsel %vm584, %v3285, 0
  %v3348 = vsel %vm584, %v3286, 0
  %v3351 = vsel %vm584, %v3287, 0
  %v3354 = vsel %vm584, %v3288, 0
  %v3357 = vsel %vm584, %v3289, 0
  %v3360 = vsel %vm584, %v3290, 0
  %v3363 = vsel %vm584, %v3291, 0
  %v3366 = vsel %vm584, %v3292, 0
  %v3369 = vsel %vm584, %v3293, 0
  %v3372 = vsel %vm584, %v3294, 0
  %v3375 = vsel %vm584, %v3295, 0
  %v3378 = vsel %vm584, %v3296, 0
  %v3381 = vsel %vm584, %v3297, 0
  %v3384 = vsel %vm584, %v3298, 0
  %v3387 = vsel %vm584, %v3299, 0
  %v3390 = vsel %vm584, %v3300, 0
  %v3393 = vsel %vm584, %v3301, 0
  %v3396 = vsel %vm584, %v3302, 0
  %v3399 = vsel %vm584, %v3303, 0
  %v3402 = vsel %vm584, %v3304, 0
  %v3405 = vsel %vm584, %v3305, 0
  %v3408 = vsel %vm584, %v3306, 0
  %3410 = vmatprep.subr.mxu0 %v3309
  %3411 = vmatpush1.msra.mxu0 %v3308
  %3412 = vmatprep.subr.mxu0 %v3312
  %3413 = vmatpush1.msra.mxu0 %v3311
  %3414 = vmatprep.subr.mxu0 %v3315
  %3415 = vmatpush1.msra.mxu0 %v3314
  %3416 = vmatprep.subr.mxu0 %v3318
  %3417 = vmatpush1.msra.mxu0 %v3317
  %3418 = vmatprep.subr.mxu0 %v3321
  %3419 = vmatpush1.msra.mxu0 %v3320
  %3420 = vmatprep.subr.mxu0 %v3324
  %3421 = vmatpush1.msra.mxu0 %v3323
  %3422 = vmatprep.subr.mxu0 %v3327
  %3423 = vmatpush1.msra.mxu0 %v3326
  %3424 = vmatprep.subr.mxu0 %v3330
  %3425 = vmatpush1.msra.mxu0 %v3329
  %3426 = vmatprep.subr.mxu0 %v3333
  %3427 = vmatpush1.msra.mxu0 %v3332
  %3428 = vmatprep.subr.mxu0 %v3336
  %3429 = vmatpush1.msra.mxu0 %v3335
  %3430 = vmatprep.subr.mxu0 %v3339
  %3431 = vmatpush1.msra.mxu0 %v3338
  %3432 = vmatprep.subr.mxu0 %v3342
  %3433 = vmatpush1.msra.mxu0 %v3341
  %3434 = vmatprep.subr.mxu0 0.0
  %3435 = vmatpush1.msra.mxu0 0.0
  %3436 = vmatprep.subr.mxu0 0.0
  %3437 = vmatpush1.msra.mxu0 0.0
  %3438 = vmatprep.subr.mxu0 0.0
  %3439 = vmatpush1.msra.mxu0 0.0
  %3440 = vmatprep.subr.mxu0 0.0
  %3441 = vmatpush1.msra.mxu0 0.0
  %3442 = vmatprep.subr.mxu0 0.0
  %3443 = vmatpush1.msra.mxu0 0.0
  %3444 = vmatprep.subr.mxu0 0.0
  %3445 = vmatpush1.msra.mxu0 0.0
  %3446 = vmatprep.subr.mxu0 0.0
  %3447 = vmatpush1.msra.mxu0 0.0
  %3448 = vmatprep.subr.mxu0 0.0
  %3449 = vmatpush1.msra.mxu0 0.0
  %3450 = vmatprep.subr.mxu0 0.0
  %3451 = vmatpush1.msra.mxu0 0.0
  %3452 = vmatprep.subr.mxu0 0.0
  %3453 = vmatpush1.msra.mxu0 0.0
  %3454 = vmatprep.subr.mxu0 0.0
  %3455 = vmatpush1.msra.mxu0 0.0
  %3456 = vmatprep.subr.mxu0 0.0
  %3457 = vmatpush1.msra.mxu0 0.0
  %3458 = vmatprep.subr.mxu0 0.0
  %3459 = vmatpush1.msra.mxu0 0.0
  %3460 = vmatprep.subr.mxu0 0.0
  %3461 = vmatpush1.msra.mxu0 0.0
  %3462 = vmatprep.subr.mxu0 0.0
  %3463 = vmatpush1.msra.mxu0 0.0
  %3464 = vmatprep.subr.mxu0 0.0
  %3465 = vmatpush1.msra.mxu0 0.0
  %3466 = vmatprep.subr.mxu0 0.0
  %3467 = vmatpush1.msra.mxu0 0.0
  %3468 = vmatprep.subr.mxu0 0.0
  %3469 = vmatpush1.msra.mxu0 0.0
  %3470 = vmatprep.subr.mxu0 0.0
  %3471 = vmatpush1.msra.mxu0 0.0
  %3472 = vmatprep.subr.mxu0 0.0
  %3473 = vmatpush1.msra.mxu0 0.0
  %3474 = vmatprep.mubr.f32.mxu0 0.0
  %3475 = vmatmul.mubr.f32.gmra.mrb[0].mxu0 %v3345
  %v3476 = vpop.f32.mrb[0].mxu0
  %v3477 = vadd.f32 0.0, %v3476
  %v3478 = vpop.f32.mrb[0].mxu0
  %v3479 = vadd.f32 0.0, %v3478
  %3480 = vmatprep.mubr.f32.mxu0 0.0
  %3481 = vmatmul.mubr.f32.gmra.mrb[0].mxu0 %v3348
  %v3482 = vpop.f32.mrb[0].mxu0
  %v3483 = vadd.f32 0.0, %v3482
  %v3484 = vpop.f32.mrb[0].mxu0
  %v3485 = vadd.f32 0.0, %v3484
  %3486 = vmatprep.mubr.f32.mxu0 0.0
  %3487 = vmatmul.mubr.f32.gmra.mrb[0].mxu0 %v3351
  %v3488 = vpop.f32.mrb[0].mxu0
  %v3489 = vadd.f32 0.0, %v3488
  %v3490 = vpop.f32.mrb[0].mxu0
  %v3491 = vadd.f32 0.0, %v3490
  %3492 = vmatprep.mubr.f32.mxu0 0.0
  %3493 = vmatmul.mubr.f32.gmra.mrb[0].mxu0 %v3354
  %v3494 = vpop.f32.mrb[0].mxu0
  %v3495 = vadd.f32 0.0, %v3494
  %v3496 = vpop.f32.mrb[0].mxu0
  %v3497 = vadd.f32 0.0, %v3496
  %3498 = vmatprep.mubr.f32.mxu0 0.0
  %3499 = vmatmul.mubr.f32.gmra.mrb[0].mxu0 %v3357
  %v3500 = vpop.f32.mrb[0].mxu0
  %v3501 = vadd.f32 0.0, %v3500
  %v3502 = vpop.f32.mrb[0].mxu0
  %v3503 = vadd.f32 0.0, %v3502
  %3504 = vmatprep.mubr.f32.mxu0 0.0
  %3505 = vmatmul.mubr.f32.gmra.mrb[0].mxu0 %v3360
  %v3506 = vpop.f32.mrb[0].mxu0
  %v3507 = vadd.f32 0.0, %v3506
  %v3508 = vpop.f32.mrb[0].mxu0
  %v3509 = vadd.f32 0.0, %v3508
  %3510 = vmatprep.mubr.f32.mxu0 0.0
  %3511 = vmatmul.mubr.f32.gmra.mrb[0].mxu0 %v3363
  %v3512 = vpop.f32.mrb[0].mxu0
  %v3513 = vadd.f32 0.0, %v3512
  %v3514 = vpop.f32.mrb[0].mxu0
  %v3515 = vadd.f32 0.0, %v3514
  %3516 = vmatprep.mubr.f32.mxu0 0.0
  %3517 = vmatmul.mubr.f32.gmra.mrb[0].mxu0 %v3366
  %v3518 = vpop.f32.mrb[0].mxu0
  %v3519 = vadd.f32 0.0, %v3518
  %v3520 = vpop.f32.mrb[0].mxu0
  %v3521 = vadd.f32 0.0, %v3520
  %3522 = vmatprep.mubr.f32.mxu0 0.0
  %3523 = vmatmul.mubr.f32.gmra.mrb[0].mxu0 %v3369
  %v3524 = vpop.f32.mrb[0].mxu0
  %v3525 = vadd.f32 0.0, %v3524
  %v3526 = vpop.f32.mrb[0].mxu0
  %v3527 = vadd.f32 0.0, %v3526
  %3528 = vmatprep.mubr.f32.mxu0 0.0
  %3529 = vmatmul.mubr.f32.gmra.mrb[0].mxu0 %v3372
  %v3530 = vpop.f32.mrb[0].mxu0
  %v3531 = vadd.f32 0.0, %v3530
  %v3532 = vpop.f32.mrb[0].mxu0
  %v3533 = vadd.f32 0.0, %v3532
  %3534 = vmatprep.mubr.f32.mxu0 0.0
  %3535 = vmatmul.mubr.f32.gmra.mrb[0].mxu0 %v3375
  %v3536 = vpop.f32.mrb[0].mxu0
  %v3537 = vadd.f32 0.0, %v3536
  %v3538 = vpop.f32.mrb[0].mxu0
  %v3539 = vadd.f32 0.0, %v3538
  %3540 = vmatprep.mubr.f32.mxu0 0.0
  %3541 = vmatmul.mubr.f32.gmra.mrb[0].mxu0 %v3378
  %v3542 = vpop.f32.mrb[0].mxu0
  %v3543 = vadd.f32 0.0, %v3542
  %v3544 = vpop.f32.mrb[0].mxu0
  %v3545 = vadd.f32 0.0, %v3544
  %3546 = vmatprep.mubr.f32.mxu0 0.0
  %3547 = vmatmul.mubr.f32.gmra.mrb[0].mxu0 %v3381
  %v3548 = vpop.f32.mrb[0].mxu0
  %v3549 = vadd.f32 0.0, %v3548
  %v3550 = vpop.f32.mrb[0].mxu0
  %v3551 = vadd.f32 0.0, %v3550
  %3552 = vmatprep.mubr.f32.mxu0 0.0
  %3553 = vmatmul.mubr.f32.gmra.mrb[0].mxu0 %v3384
  %v3554 = vpop.f32.mrb[0].mxu0
  %v3555 = vadd.f32 0.0, %v3554
  %v3556 = vpop.f32.mrb[0].mxu0
  %v3557 = vadd.f32 0.0, %v3556
  %3558 = vmatprep.mubr.f32.mxu0 0.0
  %3559 = vmatmul.mubr.f32.gmra.mrb[0].mxu0 %v3387
  %v3560 = vpop.f32.mrb[0].mxu0
  %v3561 = vadd.f32 0.0, %v3560
  %v3562 = vpop.f32.mrb[0].mxu0
  %v3563 = vadd.f32 0.0, %v3562
  %3564 = vmatprep.mubr.f32.mxu0 0.0
  %3565 = vmatmul.mubr.f32.gmra.mrb[0].mxu0 %v3390
  %v3566 = vpop.f32.mrb[0].mxu0
  %v3567 = vadd.f32 0.0, %v3566
  %v3568 = vpop.f32.mrb[0].mxu0
  %v3569 = vadd.f32 0.0, %v3568
  %3570 = vmatprep.mubr.f32.mxu0 0.0
  %3571 = vmatmul.mubr.f32.gmra.mrb[0].mxu0 %v3393
  %v3572 = vpop.f32.mrb[0].mxu0
  %v3573 = vadd.f32 0.0, %v3572
  %v3574 = vpop.f32.mrb[0].mxu0
  %v3575 = vadd.f32 0.0, %v3574
  %3576 = vmatprep.mubr.f32.mxu0 0.0
  %3577 = vmatmul.mubr.f32.gmra.mrb[0].mxu0 %v3396
  %v3578 = vpop.f32.mrb[0].mxu0
  %v3579 = vadd.f32 0.0, %v3578
  %v3580 = vpop.f32.mrb[0].mxu0
  %v3581 = vadd.f32 0.0, %v3580
  %3582 = vmatprep.mubr.f32.mxu0 0.0
  %3583 = vmatmul.mubr.f32.gmra.mrb[0].mxu0 %v3399
  %v3584 = vpop.f32.mrb[0].mxu0
  %v3585 = vadd.f32 0.0, %v3584
  %v3586 = vpop.f32.mrb[0].mxu0
  %v3587 = vadd.f32 0.0, %v3586
  %3588 = vmatprep.mubr.f32.mxu0 0.0
  %3589 = vmatmul.mubr.f32.gmra.mrb[0].mxu0 %v3402
  %v3590 = vpop.f32.mrb[0].mxu0
  %v3591 = vadd.f32 0.0, %v3590
  %v3592 = vpop.f32.mrb[0].mxu0
  %v3593 = vadd.f32 0.0, %v3592
  %3594 = vmatprep.mubr.f32.mxu0 0.0
  %3595 = vmatmul.mubr.f32.gmra.mrb[0].mxu0 %v3405
  %v3596 = vpop.f32.mrb[0].mxu0
  %v3597 = vadd.f32 0.0, %v3596
  %v3598 = vpop.f32.mrb[0].mxu0
  %v3599 = vadd.f32 0.0, %v3598
  %3600 = vmatprep.mubr.f32.mxu0 0.0
  %3601 = vmatmul.mubr.f32.gmra.mrb[0].mxu0 %v3408
  %v3602 = vpop.f32.mrb[0].mxu0
  %v3603 = vadd.f32 0.0, %v3602
  %v3604 = vpop.f32.mrb[0].mxu0
  %v3605 = vadd.f32 0.0, %v3604
  %3606 = vdwg.mxu0
  %3607 = vmatprep.subr.mxu0 0.0
  %3608 = vmatpush1.msra.mxu0 %v3310
  %3609 = vmatprep.subr.mxu0 0.0
  %3610 = vmatpush1.msra.mxu0 %v3313
  %3611 = vmatprep.subr.mxu0 0.0
  %3612 = vmatpush1.msra.mxu0 %v3316
  %3613 = vmatprep.subr.mxu0 0.0
  %3614 = vmatpush1.msra.mxu0 %v3319
  %3615 = vmatprep.subr.mxu0 0.0
  %3616 = vmatpush1.msra.mxu0 %v3322
  %3617 = vmatprep.subr.mxu0 0.0
  %3618 = vmatpush1.msra.mxu0 %v3325
  %3619 = vmatprep.subr.mxu0 0.0
  %3620 = vmatpush1.msra.mxu0 %v3328
  %3621 = vmatprep.subr.mxu0 0.0
  %3622 = vmatpush1.msra.mxu0 %v3331
  %3623 = vmatprep.subr.mxu0 0.0
  %3624 = vmatpush1.msra.mxu0 %v3334
  %3625 = vmatprep.subr.mxu0 0.0
  %3626 = vmatpush1.msra.mxu0 %v3337
  %3627 = vmatprep.subr.mxu0 0.0
  %3628 = vmatpush1.msra.mxu0 %v3340
  %3629 = vmatprep.subr.mxu0 0.0
  %3630 = vmatpush1.msra.mxu0 %v3343
  %3631 = vmatprep.subr.mxu0 0.0
  %3632 = vmatpush1.msra.mxu0 0.0
  %3633 = vmatprep.subr.mxu0 0.0
  %3634 = vmatpush1.msra.mxu0 0.0
  %3635 = vmatprep.subr.mxu0 0.0
  %3636 = vmatpush1.msra.mxu0 0.0
  %3637 = vmatprep.subr.mxu0 0.0
  %3638 = vmatpush1.msra.mxu0 0.0
  %3639 = vmatprep.subr.mxu0 0.0
  %3640 = vmatpush1.msra.mxu0 0.0
  %3641 = vmatprep.subr.mxu0 0.0
  %3642 = vmatpush1.msra.mxu0 0.0
  %3643 = vmatprep.subr.mxu0 0.0
  %3644 = vmatpush1.msra.mxu0 0.0
  %3645 = vmatprep.subr.mxu0 0.0
  %3646 = vmatpush1.msra.mxu0 0.0
  %3647 = vmatprep.subr.mxu0 0.0
  %3648 = vmatpush1.msra.mxu0 0.0
  %3649 = vmatprep.subr.mxu0 0.0
  %3650 = vmatpush1.msra.mxu0 0.0
  %3651 = vmatprep.subr.mxu0 0.0
  %3652 = vmatpush1.msra.mxu0 0.0
  %3653 = vmatprep.subr.mxu0 0.0
  %3654 = vmatpush1.msra.mxu0 0.0
  %3655 = vmatprep.subr.mxu0 0.0
  %3656 = vmatpush1.msra.mxu0 0.0
  %3657 = vmatprep.subr.mxu0 0.0
  %3658 = vmatpush1.msra.mxu0 0.0
  %3659 = vmatprep.subr.mxu0 0.0
  %3660 = vmatpush1.msra.mxu0 0.0
  %3661 = vmatprep.subr.mxu0 0.0
  %3662 = vmatpush1.msra.mxu0 0.0
  %3663 = vmatprep.subr.mxu0 0.0
  %3664 = vmatpush1.msra.mxu0 0.0
  %3665 = vmatprep.subr.mxu0 0.0
  %3666 = vmatpush1.msra.mxu0 0.0
  %3667 = vmatprep.subr.mxu0 0.0
  %3668 = vmatpush1.msra.mxu0 0.0
  %3669 = vmatprep.subr.mxu0 0.0
  %3670 = vmatpush1.msra.mxu0 0.0
  %3671 = vmatprep.mubr.f32.mxu0 0.0
  %3672 = vmatmul.mubr.f32.gmra.mrb[0].mxu0 %v3345
  %v3673 = vpop.f32.mrb[0].mxu0
  %v3674 = vadd.f32 0.0, %v3673
  %v3675 = vpop.f32.mrb[0].mxu0
  %3676 = vmatprep.mubr.f32.mxu0 0.0
  %3677 = vmatmul.mubr.f32.gmra.mrb[0].mxu0 %v3348
  %v3678 = vpop.f32.mrb[0].mxu0
  %v3679 = vadd.f32 0.0, %v3678
  %v3680 = vpop.f32.mrb[0].mxu0
  %3681 = vmatprep.mubr.f32.mxu0 0.0
  %3682 = vmatmul.mubr.f32.gmra.mrb[0].mxu0 %v3351
  %v3683 = vpop.f32.mrb[0].mxu0
  %v3684 = vadd.f32 0.0, %v3683
  %v3685 = vpop.f32.mrb[0].mxu0
  %3686 = vmatprep.mubr.f32.mxu0 0.0
  %3687 = vmatmul.mubr.f32.gmra.mrb[0].mxu0 %v3354
  %v3688 = vpop.f32.mrb[0].mxu0
  %v3689 = vadd.f32 0.0, %v3688
  %v3690 = vpop.f32.mrb[0].mxu0
  %3691 = vmatprep.mubr.f32.mxu0 0.0
  %3692 = vmatmul.mubr.f32.gmra.mrb[0].mxu0 %v3357
  %v3693 = vpop.f32.mrb[0].mxu0
  %v3694 = vadd.f32 0.0, %v3693
  %v3695 = vpop.f32.mrb[0].mxu0
  %3696 = vmatprep.mubr.f32.mxu0 0.0
  %3697 = vmatmul.mubr.f32.gmra.mrb[0].mxu0 %v3360
  %v3698 = vpop.f32.mrb[0].mxu0
  %v3699 = vadd.f32 0.0, %v3698
  %v3700 = vpop.f32.mrb[0].mxu0
  %3701 = vmatprep.mubr.f32.mxu0 0.0
  %3702 = vmatmul.mubr.f32.gmra.mrb[0].mxu0 %v3363
  %v3703 = vpop.f32.mrb[0].mxu0
  %v3704 = vadd.f32 0.0, %v3703
  %v3705 = vpop.f32.mrb[0].mxu0
  %3706 = vmatprep.mubr.f32.mxu0 0.0
  %3707 = vmatmul.mubr.f32.gmra.mrb[0].mxu0 %v3366
  %v3708 = vpop.f32.mrb[0].mxu0
  %v3709 = vadd.f32 0.0, %v3708
  %v3710 = vpop.f32.mrb[0].mxu0
  %3711 = vmatprep.mubr.f32.mxu0 0.0
  %3712 = vmatmul.mubr.f32.gmra.mrb[0].mxu0 %v3369
  %v3713 = vpop.f32.mrb[0].mxu0
  %v3714 = vadd.f32 0.0, %v3713
  %v3715 = vpop.f32.mrb[0].mxu0
  %3716 = vmatprep.mubr.f32.mxu0 0.0
  %3717 = vmatmul.mubr.f32.gmra.mrb[0].mxu0 %v3372
  %v3718 = vpop.f32.mrb[0].mxu0
  %v3719 = vadd.f32 0.0, %v3718
  %v3720 = vpop.f32.mrb[0].mxu0
  %3721 = vmatprep.mubr.f32.mxu0 0.0
  %3722 = vmatmul.mubr.f32.gmra.mrb[0].mxu0 %v3375
  %v3723 = vpop.f32.mrb[0].mxu0
  %v3724 = vadd.f32 0.0, %v3723
  %v3725 = vpop.f32.mrb[0].mxu0
  %3726 = vmatprep.mubr.f32.mxu0 0.0
  %3727 = vmatmul.mubr.f32.gmra.mrb[0].mxu0 %v3378
  %v3728 = vpop.f32.mrb[0].mxu0
  %v3729 = vadd.f32 0.0, %v3728
  %v3730 = vpop.f32.mrb[0].mxu0
  %3731 = vmatprep.mubr.f32.mxu0 0.0
  %3732 = vmatmul.mubr.f32.gmra.mrb[0].mxu0 %v3381
  %v3733 = vpop.f32.mrb[0].mxu0
  %v3734 = vadd.f32 0.0, %v3733
  %v3735 = vpop.f32.mrb[0].mxu0
  %3736 = vmatprep.mubr.f32.mxu0 0.0
  %3737 = vmatmul.mubr.f32.gmra.mrb[0].mxu0 %v3384
  %v3738 = vpop.f32.mrb[0].mxu0
  %v3739 = vadd.f32 0.0, %v3738
  %v3740 = vpop.f32.mrb[0].mxu0
  %3741 = vmatprep.mubr.f32.mxu0 0.0
  %3742 = vmatmul.mubr.f32.gmra.mrb[0].mxu0 %v3387
  %v3743 = vpop.f32.mrb[0].mxu0
  %v3744 = vadd.f32 0.0, %v3743
  %v3745 = vpop.f32.mrb[0].mxu0
  %3746 = vmatprep.mubr.f32.mxu0 0.0
  %3747 = vmatmul.mubr.f32.gmra.mrb[0].mxu0 %v3390
  %v3748 = vpop.f32.mrb[0].mxu0
  %v3749 = vadd.f32 0.0, %v3748
  %v3750 = vpop.f32.mrb[0].mxu0
  %3751 = vmatprep.mubr.f32.mxu0 0.0
  %3752 = vmatmul.mubr.f32.gmra.mrb[0].mxu0 %v3393
  %v3753 = vpop.f32.mrb[0].mxu0
  %v3754 = vadd.f32 0.0, %v3753
  %v3755 = vpop.f32.mrb[0].mxu0
  %3756 = vmatprep.mubr.f32.mxu0 0.0
  %3757 = vmatmul.mubr.f32.gmra.mrb[0].mxu0 %v3396
  %v3758 = vpop.f32.mrb[0].mxu0
  %v3759 = vadd.f32 0.0, %v3758
  %v3760 = vpop.f32.mrb[0].mxu0
  %3761 = vmatprep.mubr.f32.mxu0 0.0
  %3762 = vmatmul.mubr.f32.gmra.mrb[0].mxu0 %v3399
  %v3763 = vpop.f32.mrb[0].mxu0
  %v3764 = vadd.f32 0.0, %v3763
  %v3765 = vpop.f32.mrb[0].mxu0
  %3766 = vmatprep.mubr.f32.mxu0 0.0
  %3767 = vmatmul.mubr.f32.gmra.mrb[0].mxu0 %v3402
  %v3768 = vpop.f32.mrb[0].mxu0
  %v3769 = vadd.f32 0.0, %v3768
  %v3770 = vpop.f32.mrb[0].mxu0
  %3771 = vmatprep.mubr.f32.mxu0 0.0
  %3772 = vmatmul.mubr.f32.gmra.mrb[0].mxu0 %v3405
  %v3773 = vpop.f32.mrb[0].mxu0
  %v3774 = vadd.f32 0.0, %v3773
  %v3775 = vpop.f32.mrb[0].mxu0
  %3776 = vmatprep.mubr.f32.mxu0 0.0
  %3777 = vmatmul.mubr.f32.gmra.mrb[0].mxu0 %v3408
  %v3778 = vpop.f32.mrb[0].mxu0
  %v3779 = vadd.f32 0.0, %v3778
  %v3780 = vpop.f32.mrb[0].mxu0
  %3781 = vdwg.mxu0
  %v3782 = vadd.f32 %v3219, %v3477
  %v3783 = vadd.f32 %v3220, %v3479
  %v3784 = vadd.f32 %v3221, %v3674
  %v3785 = vadd.f32 %v3222, %v3483
  %v3786 = vadd.f32 %v3223, %v3485
  %v3787 = vadd.f32 %v3224, %v3679
  %v3788 = vadd.f32 %v3225, %v3489
  %v3789 = vadd.f32 %v3226, %v3491
  %v3790 = vadd.f32 %v3227, %v3684
  %v3791 = vadd.f32 %v3228, %v3495
  %v3792 = vadd.f32 %v3229, %v3497
  %v3793 = vadd.f32 %v3230, %v3689
  %v3794 = vadd.f32 %v3231, %v3501
  %v3795 = vadd.f32 %v3232, %v3503
  %v3796 = vadd.f32 %v3233, %v3694
  %v3797 = vadd.f32 %v3234, %v3507
  %v3798 = vadd.f32 %v3235, %v3509
  %v3799 = vadd.f32 %v3236, %v3699
  %v3800 = vadd.f32 %v3237, %v3513
  %v3801 = vadd.f32 %v3238, %v3515
  %v3802 = vadd.f32 %v3239, %v3704
  %v3803 = vadd.f32 %v3240, %v3519
  %v3804 = vadd.f32 %v3241, %v3521
  %v3805 = vadd.f32 %v3242, %v3709
  %v3806 = vadd.f32 %v3243, %v3525
  %v3807 = vadd.f32 %v3244, %v3527
  %v3808 = vadd.f32 %v3245, %v3714
  %v3809 = vadd.f32 %v3246, %v3531
  %v3810 = vadd.f32 %v3247, %v3533
  %v3811 = vadd.f32 %v3248, %v3719
  %v3812 = vadd.f32 %v3249, %v3537
  %v3813 = vadd.f32 %v3250, %v3539
  %v3814 = vadd.f32 %v3251, %v3724
  %v3815 = vadd.f32 %v3252, %v3543
  %v3816 = vadd.f32 %v3253, %v3545
  %v3817 = vadd.f32 %v3254, %v3729
  %v3818 = vadd.f32 %v3255, %v3549
  %v3819 = vadd.f32 %v3256, %v3551
  %v3820 = vadd.f32 %v3257, %v3734
  %v3821 = vadd.f32 %v3258, %v3555
  %v3822 = vadd.f32 %v3259, %v3557
  %v3823 = vadd.f32 %v3260, %v3739
  %v3824 = vadd.f32 %v3261, %v3561
  %v3825 = vadd.f32 %v3262, %v3563
  %v3826 = vadd.f32 %v3263, %v3744
  %v3827 = vadd.f32 %v3264, %v3567
  %v3828 = vadd.f32 %v3265, %v3569
  %v3829 = vadd.f32 %v3266, %v3749
  %v3830 = vadd.f32 %v3267, %v3573
  %v3831 = vadd.f32 %v3268, %v3575
  %v3832 = vadd.f32 %v3269, %v3754
  %v3833 = vadd.f32 %v3270, %v3579
  %v3834 = vadd.f32 %v3271, %v3581
  %v3835 = vadd.f32 %v3272, %v3759
  %v3836 = vadd.f32 %v3273, %v3585
  %v3837 = vadd.f32 %v3274, %v3587
  %v3838 = vadd.f32 %v3275, %v3764
  %v3839 = vadd.f32 %v3276, %v3591
  %v3840 = vadd.f32 %v3277, %v3593
  %v3841 = vadd.f32 %v3278, %v3769
  %v3842 = vadd.f32 %v3279, %v3597
  %v3843 = vadd.f32 %v3280, %v3599
  %v3844 = vadd.f32 %v3281, %v3774
  %v3845 = vadd.f32 %v3282, %v3603
  %v3846 = vadd.f32 %v3283, %v3605
  %v3847 = vadd.f32 %v3284, %v3779
  %v3848 = vld [vmem:[#allocation2 + $0x30] sm:$0xff]
  %v3849 = vld [vmem:[#allocation2 + $0x38] sm:$0xff]
  %v3850 = vld [vmem:[#allocation2 + $0x40] sm:$0xff]
  %v3851 = vld [vmem:[#allocation2 + $0x48] sm:$0xff]
  %v3852 = vld [vmem:[#allocation2 + $0x50] sm:$0xff]
  %v3853 = vld [vmem:[#allocation2 + $0x58] sm:$0xff]
  %v3854 = vld [vmem:[#allocation2 + $0x60] sm:$0xff]
  %v3855 = vld [vmem:[#allocation2 + $0x68] sm:$0xff]
  %v3856 = vld [vmem:[#allocation2 + $0x70] sm:$0xff]
  %v3857 = vld [vmem:[#allocation2 + $0x78] sm:$0xff]
  %v3858 = vld [vmem:[#allocation2 + $0x80] sm:$0xff]
  %v3859 = vld [vmem:[#allocation2 + $0x88] sm:$0xff]
  %v3860 = vld [vmem:[#allocation2 + $0x90] sm:$0xff]
  %v3861 = vld [vmem:[#allocation2 + $0x98] sm:$0xff]
  %v3862 = vld [vmem:[#allocation2 + $0xa0] sm:$0xff]
  %v3863 = vld [vmem:[#allocation2 + $0xa8] sm:$0xff]
  %v3864 = vld [vmem:[#allocation2 + $0xb0] sm:$0xff]
  %v3865 = vld [vmem:[#allocation2 + $0xb8] sm:$0xff]
  %v3866 = vld [vmem:[#allocation2 + $0xc0] sm:$0xff]
  %v3867 = vld [vmem:[#allocation2 + $0xc8] sm:$0xff]
  %v3868 = vld [vmem:[#allocation2 + $0xd0] sm:$0xff]
  %v3869 = vld [vmem:[#allocation2 + $0xd8] sm:$0xff]
  %s3870 = scalar_lea.vmem %s3, 1728
  %v3871 = vld [vmem:[%s3870] sm:$0xff]
  %v3872 = vld [vmem:[%s3870 + $0x8] sm:$0xff]
  %v3873 = vld [vmem:[%s3870 + $0x10] sm:$0xff]
  %v3874 = vld [vmem:[%s3870 + $0x18] sm:$0xff]
  %v3875 = vld [vmem:[%s3870 + $0x20] sm:$0xff]
  %v3876 = vld [vmem:[%s3870 + $0x28] sm:$0xff]
  %v3877 = vld [vmem:[%s3870 + $0x30] sm:$0xff]
  %v3878 = vld [vmem:[%s3870 + $0x38] sm:$0xff]
  %v3879 = vld [vmem:[%s3870 + $0x40] sm:$0xff]
  %v3880 = vld [vmem:[%s3870 + $0x48] sm:$0xff]
  %v3881 = vld [vmem:[%s3870 + $0x50] sm:$0xff]
  %v3882 = vld [vmem:[%s3870 + $0x58] sm:$0xff]
  %v3883 = vld [vmem:[%s3870 + $0x60] sm:$0xff]
  %v3884 = vld [vmem:[%s3870 + $0x68] sm:$0xff]
  %v3885 = vld [vmem:[%s3870 + $0x70] sm:$0xff]
  %v3886 = vld [vmem:[%s3870 + $0x78] sm:$0xff]
  %v3887 = vld [vmem:[%s3870 + $0x80] sm:$0xff]
  %v3888 = vld [vmem:[%s3870 + $0x88] sm:$0xff]
  %v3889 = vld [vmem:[%s3870 + $0x90] sm:$0xff]
  %v3890 = vld [vmem:[%s3870 + $0x98] sm:$0xff]
  %v3891 = vld [vmem:[%s3870 + $0xa0] sm:$0xff]
  %v3892 = vld [vmem:[%s3870 + $0xa8] sm:$0xff]
  %v3893 = vld [vmem:[%s3870 + $0xb0] sm:$0xff]
  %v3894 = vld [vmem:[%s3870 + $0xb8] sm:$0xff]
  %v3895 = vld [vmem:[%s3870 + $0xc0] sm:$0xff]
  %v3896 = vld [vmem:[%s3870 + $0xc8] sm:$0xff]
  %v3897 = vld [vmem:[%s3870 + $0xd0] sm:$0xff]
  %v3898 = vld [vmem:[%s3870 + $0xd8] sm:$0xff]
  %v3899 = vld [vmem:[%s3870 + $0xe0] sm:$0xff]
  %v3900 = vld [vmem:[%s3870 + $0xe8] sm:$0xff]
  %v3901 = vld [vmem:[%s3870 + $0xf0] sm:$0xff]
  %v3902 = vld [vmem:[%s3870 + $0xf8] sm:$0xff]
  %v3903 = vld [vmem:[%s3870 + $0x100] sm:$0xff]
  %v3904 = vld [vmem:[%s3870 + $0x108] sm:$0xff]
  %v3905 = vld [vmem:[%s3870 + $0x110] sm:$0xff]
  %v3906 = vld [vmem:[%s3870 + $0x118] sm:$0xff]
  %v3908 = vsel %vm584, %v3848, 0
  %v3911 = vsel %vm584, %v3849, 0
  %v3914 = vsel %vm584, %v3850, 0
  %v3917 = vsel %vm584, %v3851, 0
  %v3920 = vsel %vm584, %v3852, 0
  %v3923 = vsel %vm584, %v3853, 0
  %v3926 = vsel %vm584, %v3854, 0
  %v3929 = vsel %vm584, %v3855, 0
  %v3932 = vsel %vm584, %v3856, 0
  %v3935 = vsel %vm584, %v3857, 0
  %v3938 = vsel %vm584, %v3858, 0
  %v3941 = vsel %vm584, %v3859, 0
  %v3944 = vsel %vm584, %v3860, 0
  %v3947 = vsel %vm584, %v3861, 0
  %v3950 = vsel %vm584, %v3862, 0
  %v3953 = vsel %vm584, %v3863, 0
  %v3956 = vsel %vm584, %v3864, 0
  %v3959 = vsel %vm584, %v3865, 0
  %v3962 = vsel %vm584, %v3866, 0
  %v3965 = vsel %vm584, %v3867, 0
  %v3968 = vsel %vm584, %v3868, 0
  %v3971 = vsel %vm584, %v3869, 0
  %3973 = vmatprep.subr.mxu0 %v3872
  %3974 = vmatpush1.msra.mxu0 %v3871
  %3975 = vmatprep.subr.mxu0 %v3875
  %3976 = vmatpush1.msra.mxu0 %v3874
  %3977 = vmatprep.subr.mxu0 %v3878
  %3978 = vmatpush1.msra.mxu0 %v3877
  %3979 = vmatprep.subr.mxu0 %v3881
  %3980 = vmatpush1.msra.mxu0 %v3880
  %3981 = vmatprep.subr.mxu0 %v3884
  %3982 = vmatpush1.msra.mxu0 %v3883
  %3983 = vmatprep.subr.mxu0 %v3887
  %3984 = vmatpush1.msra.mxu0 %v3886
  %3985 = vmatprep.subr.mxu0 %v3890
  %3986 = vmatpush1.msra.mxu0 %v3889
  %3987 = vmatprep.subr.mxu0 %v3893
  %3988 = vmatpush1.msra.mxu0 %v3892
  %3989 = vmatprep.subr.mxu0 %v3896
  %3990 = vmatpush1.msra.mxu0 %v3895
  %3991 = vmatprep.subr.mxu0 %v3899
  %3992 = vmatpush1.msra.mxu0 %v3898
  %3993 = vmatprep.subr.mxu0 %v3902
  %3994 = vmatpush1.msra.mxu0 %v3901
  %3995 = vmatprep.subr.mxu0 %v3905
  %3996 = vmatpush1.msra.mxu0 %v3904
  %3997 = vmatprep.subr.mxu0 0.0
  %3998 = vmatpush1.msra.mxu0 0.0
  %3999 = vmatprep.subr.mxu0 0.0
  %4000 = vmatpush1.msra.mxu0 0.0
  %4001 = vmatprep.subr.mxu0 0.0
  %4002 = vmatpush1.msra.mxu0 0.0
  %4003 = vmatprep.subr.mxu0 0.0
  %4004 = vmatpush1.msra.mxu0 0.0
  %4005 = vmatprep.subr.mxu0 0.0
  %4006 = vmatpush1.msra.mxu0 0.0
  %4007 = vmatprep.subr.mxu0 0.0
  %4008 = vmatpush1.msra.mxu0 0.0
  %4009 = vmatprep.subr.mxu0 0.0
  %4010 = vmatpush1.msra.mxu0 0.0
  %4011 = vmatprep.subr.mxu0 0.0
  %4012 = vmatpush1.msra.mxu0 0.0
  %4013 = vmatprep.subr.mxu0 0.0
  %4014 = vmatpush1.msra.mxu0 0.0
  %4015 = vmatprep.subr.mxu0 0.0
  %4016 = vmatpush1.msra.mxu0 0.0
  %4017 = vmatprep.subr.mxu0 0.0
  %4018 = vmatpush1.msra.mxu0 0.0
  %4019 = vmatprep.subr.mxu0 0.0
  %4020 = vmatpush1.msra.mxu0 0.0
  %4021 = vmatprep.subr.mxu0 0.0
  %4022 = vmatpush1.msra.mxu0 0.0
  %4023 = vmatprep.subr.mxu0 0.0
  %4024 = vmatpush1.msra.mxu0 0.0
  %4025 = vmatprep.subr.mxu0 0.0
  %4026 = vmatpush1.msra.mxu0 0.0
  %4027 = vmatprep.subr.mxu0 0.0
  %4028 = vmatpush1.msra.mxu0 0.0
  %4029 = vmatprep.subr.mxu0 0.0
  %4030 = vmatpush1.msra.mxu0 0.0
  %4031 = vmatprep.subr.mxu0 0.0
  %4032 = vmatpush1.msra.mxu0 0.0
  %4033 = vmatprep.subr.mxu0 0.0
  %4034 = vmatpush1.msra.mxu0 0.0
  %4035 = vmatprep.subr.mxu0 0.0
  %4036 = vmatpush1.msra.mxu0 0.0
  %4037 = vmatprep.mubr.f32.mxu0 0.0
  %4038 = vmatmul.mubr.f32.gmra.mrb[0].mxu0 %v3908
  %v4039 = vpop.f32.mrb[0].mxu0
  %v4040 = vadd.f32 0.0, %v4039
  %v4041 = vpop.f32.mrb[0].mxu0
  %v4042 = vadd.f32 0.0, %v4041
  %4043 = vmatprep.mubr.f32.mxu0 0.0
  %4044 = vmatmul.mubr.f32.gmra.mrb[0].mxu0 %v3911
  %v4045 = vpop.f32.mrb[0].mxu0
  %v4046 = vadd.f32 0.0, %v4045
  %v4047 = vpop.f32.mrb[0].mxu0
  %v4048 = vadd.f32 0.0, %v4047
  %4049 = vmatprep.mubr.f32.mxu0 0.0
  %4050 = vmatmul.mubr.f32.gmra.mrb[0].mxu0 %v3914
  %v4051 = vpop.f32.mrb[0].mxu0
  %v4052 = vadd.f32 0.0, %v4051
  %v4053 = vpop.f32.mrb[0].mxu0
  %v4054 = vadd.f32 0.0, %v4053
  %4055 = vmatprep.mubr.f32.mxu0 0.0
  %4056 = vmatmul.mubr.f32.gmra.mrb[0].mxu0 %v3917
  %v4057 = vpop.f32.mrb[0].mxu0
  %v4058 = vadd.f32 0.0, %v4057
  %v4059 = vpop.f32.mrb[0].mxu0
  %v4060 = vadd.f32 0.0, %v4059
  %4061 = vmatprep.mubr.f32.mxu0 0.0
  %4062 = vmatmul.mubr.f32.gmra.mrb[0].mxu0 %v3920
  %v4063 = vpop.f32.mrb[0].mxu0
  %v4064 = vadd.f32 0.0, %v4063
  %v4065 = vpop.f32.mrb[0].mxu0
  %v4066 = vadd.f32 0.0, %v4065
  %4067 = vmatprep.mubr.f32.mxu0 0.0
  %4068 = vmatmul.mubr.f32.gmra.mrb[0].mxu0 %v3923
  %v4069 = vpop.f32.mrb[0].mxu0
  %v4070 = vadd.f32 0.0, %v4069
  %v4071 = vpop.f32.mrb[0].mxu0
  %v4072 = vadd.f32 0.0, %v4071
  %4073 = vmatprep.mubr.f32.mxu0 0.0
  %4074 = vmatmul.mubr.f32.gmra.mrb[0].mxu0 %v3926
  %v4075 = vpop.f32.mrb[0].mxu0
  %v4076 = vadd.f32 0.0, %v4075
  %v4077 = vpop.f32.mrb[0].mxu0
  %v4078 = vadd.f32 0.0, %v4077
  %4079 = vmatprep.mubr.f32.mxu0 0.0
  %4080 = vmatmul.mubr.f32.gmra.mrb[0].mxu0 %v3929
  %v4081 = vpop.f32.mrb[0].mxu0
  %v4082 = vadd.f32 0.0, %v4081
  %v4083 = vpop.f32.mrb[0].mxu0
  %v4084 = vadd.f32 0.0, %v4083
  %4085 = vmatprep.mubr.f32.mxu0 0.0
  %4086 = vmatmul.mubr.f32.gmra.mrb[0].mxu0 %v3932
  %v4087 = vpop.f32.mrb[0].mxu0
  %v4088 = vadd.f32 0.0, %v4087
  %v4089 = vpop.f32.mrb[0].mxu0
  %v4090 = vadd.f32 0.0, %v4089
  %4091 = vmatprep.mubr.f32.mxu0 0.0
  %4092 = vmatmul.mubr.f32.gmra.mrb[0].mxu0 %v3935
  %v4093 = vpop.f32.mrb[0].mxu0
  %v4094 = vadd.f32 0.0, %v4093
  %v4095 = vpop.f32.mrb[0].mxu0
  %v4096 = vadd.f32 0.0, %v4095
  %4097 = vmatprep.mubr.f32.mxu0 0.0
  %4098 = vmatmul.mubr.f32.gmra.mrb[0].mxu0 %v3938
  %v4099 = vpop.f32.mrb[0].mxu0
  %v4100 = vadd.f32 0.0, %v4099
  %v4101 = vpop.f32.mrb[0].mxu0
  %v4102 = vadd.f32 0.0, %v4101
  %4103 = vmatprep.mubr.f32.mxu0 0.0
  %4104 = vmatmul.mubr.f32.gmra.mrb[0].mxu0 %v3941
  %v4105 = vpop.f32.mrb[0].mxu0
  %v4106 = vadd.f32 0.0, %v4105
  %v4107 = vpop.f32.mrb[0].mxu0
  %v4108 = vadd.f32 0.0, %v4107
  %4109 = vmatprep.mubr.f32.mxu0 0.0
  %4110 = vmatmul.mubr.f32.gmra.mrb[0].mxu0 %v3944
  %v4111 = vpop.f32.mrb[0].mxu0
  %v4112 = vadd.f32 0.0, %v4111
  %v4113 = vpop.f32.mrb[0].mxu0
  %v4114 = vadd.f32 0.0, %v4113
  %4115 = vmatprep.mubr.f32.mxu0 0.0
  %4116 = vmatmul.mubr.f32.gmra.mrb[0].mxu0 %v3947
  %v4117 = vpop.f32.mrb[0].mxu0
  %v4118 = vadd.f32 0.0, %v4117
  %v4119 = vpop.f32.mrb[0].mxu0
  %v4120 = vadd.f32 0.0, %v4119
  %4121 = vmatprep.mubr.f32.mxu0 0.0
  %4122 = vmatmul.mubr.f32.gmra.mrb[0].mxu0 %v3950
  %v4123 = vpop.f32.mrb[0].mxu0
  %v4124 = vadd.f32 0.0, %v4123
  %v4125 = vpop.f32.mrb[0].mxu0
  %v4126 = vadd.f32 0.0, %v4125
  %4127 = vmatprep.mubr.f32.mxu0 0.0
  %4128 = vmatmul.mubr.f32.gmra.mrb[0].mxu0 %v3953
  %v4129 = vpop.f32.mrb[0].mxu0
  %v4130 = vadd.f32 0.0, %v4129
  %v4131 = vpop.f32.mrb[0].mxu0
  %v4132 = vadd.f32 0.0, %v4131
  %4133 = vmatprep.mubr.f32.mxu0 0.0
  %4134 = vmatmul.mubr.f32.gmra.mrb[0].mxu0 %v3956
  %v4135 = vpop.f32.mrb[0].mxu0
  %v4136 = vadd.f32 0.0, %v4135
  %v4137 = vpop.f32.mrb[0].mxu0
  %v4138 = vadd.f32 0.0, %v4137
  %4139 = vmatprep.mubr.f32.mxu0 0.0
  %4140 = vmatmul.mubr.f32.gmra.mrb[0].mxu0 %v3959
  %v4141 = vpop.f32.mrb[0].mxu0
  %v4142 = vadd.f32 0.0, %v4141
  %v4143 = vpop.f32.mrb[0].mxu0
  %v4144 = vadd.f32 0.0, %v4143
  %4145 = vmatprep.mubr.f32.mxu0 0.0
  %4146 = vmatmul.mubr.f32.gmra.mrb[0].mxu0 %v3962
  %v4147 = vpop.f32.mrb[0].mxu0
  %v4148 = vadd.f32 0.0, %v4147
  %v4149 = vpop.f32.mrb[0].mxu0
  %v4150 = vadd.f32 0.0, %v4149
  %4151 = vmatprep.mubr.f32.mxu0 0.0
  %4152 = vmatmul.mubr.f32.gmra.mrb[0].mxu0 %v3965
  %v4153 = vpop.f32.mrb[0].mxu0
  %v4154 = vadd.f32 0.0, %v4153
  %v4155 = vpop.f32.mrb[0].mxu0
  %v4156 = vadd.f32 0.0, %v4155
  %4157 = vmatprep.mubr.f32.mxu0 0.0
  %4158 = vmatmul.mubr.f32.gmra.mrb[0].mxu0 %v3968
  %v4159 = vpop.f32.mrb[0].mxu0
  %v4160 = vadd.f32 0.0, %v4159
  %v4161 = vpop.f32.mrb[0].mxu0
  %v4162 = vadd.f32 0.0, %v4161
  %4163 = vmatprep.mubr.f32.mxu0 0.0
  %4164 = vmatmul.mubr.f32.gmra.mrb[0].mxu0 %v3971
  %v4165 = vpop.f32.mrb[0].mxu0
  %v4166 = vadd.f32 0.0, %v4165
  %v4167 = vpop.f32.mrb[0].mxu0
  %v4168 = vadd.f32 0.0, %v4167
  %4169 = vdwg.mxu0
  %4170 = vmatprep.subr.mxu0 0.0
  %4171 = vmatpush1.msra.mxu0 %v3873
  %4172 = vmatprep.subr.mxu0 0.0
  %4173 = vmatpush1.msra.mxu0 %v3876
  %4174 = vmatprep.subr.mxu0 0.0
  %4175 = vmatpush1.msra.mxu0 %v3879
  %4176 = vmatprep.subr.mxu0 0.0
  %4177 = vmatpush1.msra.mxu0 %v3882
  %4178 = vmatprep.subr.mxu0 0.0
  %4179 = vmatpush1.msra.mxu0 %v3885
  %4180 = vmatprep.subr.mxu0 0.0
  %4181 = vmatpush1.msra.mxu0 %v3888
  %4182 = vmatprep.subr.mxu0 0.0
  %4183 = vmatpush1.msra.mxu0 %v3891
  %4184 = vmatprep.subr.mxu0 0.0
  %4185 = vmatpush1.msra.mxu0 %v3894
  %4186 = vmatprep.subr.mxu0 0.0
  %4187 = vmatpush1.msra.mxu0 %v3897
  %4188 = vmatprep.subr.mxu0 0.0
  %4189 = vmatpush1.msra.mxu0 %v3900
  %4190 = vmatprep.subr.mxu0 0.0
  %4191 = vmatpush1.msra.mxu0 %v3903
  %4192 = vmatprep.subr.mxu0 0.0
  %4193 = vmatpush1.msra.mxu0 %v3906
  %4194 = vmatprep.subr.mxu0 0.0
  %4195 = vmatpush1.msra.mxu0 0.0
  %4196 = vmatprep.subr.mxu0 0.0
  %4197 = vmatpush1.msra.mxu0 0.0
  %4198 = vmatprep.subr.mxu0 0.0
  %4199 = vmatpush1.msra.mxu0 0.0
  %4200 = vmatprep.subr.mxu0 0.0
  %4201 = vmatpush1.msra.mxu0 0.0
  %4202 = vmatprep.subr.mxu0 0.0
  %4203 = vmatpush1.msra.mxu0 0.0
  %4204 = vmatprep.subr.mxu0 0.0
  %4205 = vmatpush1.msra.mxu0 0.0
  %4206 = vmatprep.subr.mxu0 0.0
  %4207 = vmatpush1.msra.mxu0 0.0
  %4208 = vmatprep.subr.mxu0 0.0
  %4209 = vmatpush1.msra.mxu0 0.0
  %4210 = vmatprep.subr.mxu0 0.0
  %4211 = vmatpush1.msra.mxu0 0.0
  %4212 = vmatprep.subr.mxu0 0.0
  %4213 = vmatpush1.msra.mxu0 0.0
  %4214 = vmatprep.subr.mxu0 0.0
  %4215 = vmatpush1.msra.mxu0 0.0
  %4216 = vmatprep.subr.mxu0 0.0
  %4217 = vmatpush1.msra.mxu0 0.0
  %4218 = vmatprep.subr.mxu0 0.0
  %4219 = vmatpush1.msra.mxu0 0.0
  %4220 = vmatprep.subr.mxu0 0.0
  %4221 = vmatpush1.msra.mxu0 0.0
  %4222 = vmatprep.subr.mxu0 0.0
  %4223 = vmatpush1.msra.mxu0 0.0
  %4224 = vmatprep.subr.mxu0 0.0
  %4225 = vmatpush1.msra.mxu0 0.0
  %4226 = vmatprep.subr.mxu0 0.0
  %4227 = vmatpush1.msra.mxu0 0.0
  %4228 = vmatprep.subr.mxu0 0.0
  %4229 = vmatpush1.msra.mxu0 0.0
  %4230 = vmatprep.subr.mxu0 0.0
  %4231 = vmatpush1.msra.mxu0 0.0
  %4232 = vmatprep.subr.mxu0 0.0
  %4233 = vmatpush1.msra.mxu0 0.0
  %4234 = vmatprep.mubr.f32.mxu0 0.0
  %4235 = vmatmul.mubr.f32.gmra.mrb[0].mxu0 %v3908
  %v4236 = vpop.f32.mrb[0].mxu0
  %v4237 = vadd.f32 0.0, %v4236
  %v4238 = vpop.f32.mrb[0].mxu0
  %4239 = vmatprep.mubr.f32.mxu0 0.0
  %4240 = vmatmul.mubr.f32.gmra.mrb[0].mxu0 %v3911
  %v4241 = vpop.f32.mrb[0].mxu0
  %v4242 = vadd.f32 0.0, %v4241
  %v4243 = vpop.f32.mrb[0].mxu0
  %4244 = vmatprep.mubr.f32.mxu0 0.0
  %4245 = vmatmul.mubr.f32.gmra.mrb[0].mxu0 %v3914
  %v4246 = vpop.f32.mrb[0].mxu0
  %v4247 = vadd.f32 0.0, %v4246
  %v4248 = vpop.f32.mrb[0].mxu0
  %4249 = vmatprep.mubr.f32.mxu0 0.0
  %4250 = vmatmul.mubr.f32.gmra.mrb[0].mxu0 %v3917
  %v4251 = vpop.f32.mrb[0].mxu0
  %v4252 = vadd.f32 0.0, %v4251
  %v4253 = vpop.f32.mrb[0].mxu0
  %4254 = vmatprep.mubr.f32.mxu0 0.0
  %4255 = vmatmul.mubr.f32.gmra.mrb[0].mxu0 %v3920
  %v4256 = vpop.f32.mrb[0].mxu0
  %v4257 = vadd.f32 0.0, %v4256
  %v4258 = vpop.f32.mrb[0].mxu0
  %4259 = vmatprep.mubr.f32.mxu0 0.0
  %4260 = vmatmul.mubr.f32.gmra.mrb[0].mxu0 %v3923
  %v4261 = vpop.f32.mrb[0].mxu0
  %v4262 = vadd.f32 0.0, %v4261
  %v4263 = vpop.f32.mrb[0].mxu0
  %4264 = vmatprep.mubr.f32.mxu0 0.0
  %4265 = vmatmul.mubr.f32.gmra.mrb[0].mxu0 %v3926
  %v4266 = vpop.f32.mrb[0].mxu0
  %v4267 = vadd.f32 0.0, %v4266
  %v4268 = vpop.f32.mrb[0].mxu0
  %4269 = vmatprep.mubr.f32.mxu0 0.0
  %4270 = vmatmul.mubr.f32.gmra.mrb[0].mxu0 %v3929
  %v4271 = vpop.f32.mrb[0].mxu0
  %v4272 = vadd.f32 0.0, %v4271
  %v4273 = vpop.f32.mrb[0].mxu0
  %4274 = vmatprep.mubr.f32.mxu0 0.0
  %4275 = vmatmul.mubr.f32.gmra.mrb[0].mxu0 %v3932
  %v4276 = vpop.f32.mrb[0].mxu0
  %v4277 = vadd.f32 0.0, %v4276
  %v4278 = vpop.f32.mrb[0].mxu0
  %4279 = vmatprep.mubr.f32.mxu0 0.0
  %4280 = vmatmul.mubr.f32.gmra.mrb[0].mxu0 %v3935
  %v4281 = vpop.f32.mrb[0].mxu0
  %v4282 = vadd.f32 0.0, %v4281
  %v4283 = vpop.f32.mrb[0].mxu0
  %4284 = vmatprep.mubr.f32.mxu0 0.0
  %4285 = vmatmul.mubr.f32.gmra.mrb[0].mxu0 %v3938
  %v4286 = vpop.f32.mrb[0].mxu0
  %v4287 = vadd.f32 0.0, %v4286
  %v4288 = vpop.f32.mrb[0].mxu0
  %4289 = vmatprep.mubr.f32.mxu0 0.0
  %4290 = vmatmul.mubr.f32.gmra.mrb[0].mxu0 %v3941
  %v4291 = vpop.f32.mrb[0].mxu0
  %v4292 = vadd.f32 0.0, %v4291
  %v4293 = vpop.f32.mrb[0].mxu0
  %4294 = vmatprep.mubr.f32.mxu0 0.0
  %4295 = vmatmul.mubr.f32.gmra.mrb[0].mxu0 %v3944
  %v4296 = vpop.f32.mrb[0].mxu0
  %v4297 = vadd.f32 0.0, %v4296
  %v4298 = vpop.f32.mrb[0].mxu0
  %4299 = vmatprep.mubr.f32.mxu0 0.0
  %4300 = vmatmul.mubr.f32.gmra.mrb[0].mxu0 %v3947
  %v4301 = vpop.f32.mrb[0].mxu0
  %v4302 = vadd.f32 0.0, %v4301
  %v4303 = vpop.f32.mrb[0].mxu0
  %4304 = vmatprep.mubr.f32.mxu0 0.0
  %4305 = vmatmul.mubr.f32.gmra.mrb[0].mxu0 %v3950
  %v4306 = vpop.f32.mrb[0].mxu0
  %v4307 = vadd.f32 0.0, %v4306
  %v4308 = vpop.f32.mrb[0].mxu0
  %4309 = vmatprep.mubr.f32.mxu0 0.0
  %4310 = vmatmul.mubr.f32.gmra.mrb[0].mxu0 %v3953
  %v4311 = vpop.f32.mrb[0].mxu0
  %v4312 = vadd.f32 0.0, %v4311
  %v4313 = vpop.f32.mrb[0].mxu0
  %4314 = vmatprep.mubr.f32.mxu0 0.0
  %4315 = vmatmul.mubr.f32.gmra.mrb[0].mxu0 %v3956
  %v4316 = vpop.f32.mrb[0].mxu0
  %v4317 = vadd.f32 0.0, %v4316
  %v4318 = vpop.f32.mrb[0].mxu0
  %4319 = vmatprep.mubr.f32.mxu0 0.0
  %4320 = vmatmul.mubr.f32.gmra.mrb[0].mxu0 %v3959
  %v4321 = vpop.f32.mrb[0].mxu0
  %v4322 = vadd.f32 0.0, %v4321
  %v4323 = vpop.f32.mrb[0].mxu0
  %4324 = vmatprep.mubr.f32.mxu0 0.0
  %4325 = vmatmul.mubr.f32.gmra.mrb[0].mxu0 %v3962
  %v4326 = vpop.f32.mrb[0].mxu0
  %v4327 = vadd.f32 0.0, %v4326
  %v4328 = vpop.f32.mrb[0].mxu0
  %4329 = vmatprep.mubr.f32.mxu0 0.0
  %4330 = vmatmul.mubr.f32.gmra.mrb[0].mxu0 %v3965
  %v4331 = vpop.f32.mrb[0].mxu0
  %v4332 = vadd.f32 0.0, %v4331
  %v4333 = vpop.f32.mrb[0].mxu0
  %4334 = vmatprep.mubr.f32.mxu0 0.0
  %4335 = vmatmul.mubr.f32.gmra.mrb[0].mxu0 %v3968
  %v4336 = vpop.f32.mrb[0].mxu0
  %v4337 = vadd.f32 0.0, %v4336
  %v4338 = vpop.f32.mrb[0].mxu0
  %4339 = vmatprep.mubr.f32.mxu0 0.0
  %4340 = vmatmul.mubr.f32.gmra.mrb[0].mxu0 %v3971
  %v4341 = vpop.f32.mrb[0].mxu0
  %v4342 = vadd.f32 0.0, %v4341
  %v4343 = vpop.f32.mrb[0].mxu0
  %4344 = vdwg.mxu0
  %v4345 = vadd.f32 %v3782, %v4040
  %v4346 = vadd.f32 %v3783, %v4042
  %v4347 = vadd.f32 %v3784, %v4237
  %v4348 = vadd.f32 %v3785, %v4046
  %v4349 = vadd.f32 %v3786, %v4048
  %v4350 = vadd.f32 %v3787, %v4242
  %v4351 = vadd.f32 %v3788, %v4052
  %v4352 = vadd.f32 %v3789, %v4054
  %v4353 = vadd.f32 %v3790, %v4247
  %v4354 = vadd.f32 %v3791, %v4058
  %v4355 = vadd.f32 %v3792, %v4060
  %v4356 = vadd.f32 %v3793, %v4252
  %v4357 = vadd.f32 %v3794, %v4064
  %v4358 = vadd.f32 %v3795, %v4066
  %v4359 = vadd.f32 %v3796, %v4257
  %v4360 = vadd.f32 %v3797, %v4070
  %v4361 = vadd.f32 %v3798, %v4072
  %v4362 = vadd.f32 %v3799, %v4262
  %v4363 = vadd.f32 %v3800, %v4076
  %v4364 = vadd.f32 %v3801, %v4078
  %v4365 = vadd.f32 %v3802, %v4267
  %v4366 = vadd.f32 %v3803, %v4082
  %v4367 = vadd.f32 %v3804, %v4084
  %v4368 = vadd.f32 %v3805, %v4272
  %v4369 = vadd.f32 %v3806, %v4088
  %v4370 = vadd.f32 %v3807, %v4090
  %v4371 = vadd.f32 %v3808, %v4277
  %v4372 = vadd.f32 %v3809, %v4094
  %v4373 = vadd.f32 %v3810, %v4096
  %v4374 = vadd.f32 %v3811, %v4282
  %v4375 = vadd.f32 %v3812, %v4100
  %v4376 = vadd.f32 %v3813, %v4102
  %v4377 = vadd.f32 %v3814, %v4287
  %v4378 = vadd.f32 %v3815, %v4106
  %v4379 = vadd.f32 %v3816, %v4108
  %v4380 = vadd.f32 %v3817, %v4292
  %v4381 = vadd.f32 %v3818, %v4112
  %v4382 = vadd.f32 %v3819, %v4114
  %v4383 = vadd.f32 %v3820, %v4297
  %v4384 = vadd.f32 %v3821, %v4118
  %v4385 = vadd.f32 %v3822, %v4120
  %v4386 = vadd.f32 %v3823, %v4302
  %v4387 = vadd.f32 %v3824, %v4124
  %v4388 = vadd.f32 %v3825, %v4126
  %v4389 = vadd.f32 %v3826, %v4307
  %v4390 = vadd.f32 %v3827, %v4130
  %v4391 = vadd.f32 %v3828, %v4132
  %v4392 = vadd.f32 %v3829, %v4312
  %v4393 = vadd.f32 %v3830, %v4136
  %v4394 = vadd.f32 %v3831, %v4138
  %v4395 = vadd.f32 %v3832, %v4317
  %v4396 = vadd.f32 %v3833, %v4142
  %v4397 = vadd.f32 %v3834, %v4144
  %v4398 = vadd.f32 %v3835, %v4322
  %v4399 = vadd.f32 %v3836, %v4148
  %v4400 = vadd.f32 %v3837, %v4150
  %v4401 = vadd.f32 %v3838, %v4327
  %v4402 = vadd.f32 %v3839, %v4154
  %v4403 = vadd.f32 %v3840, %v4156
  %v4404 = vadd.f32 %v3841, %v4332
  %v4405 = vadd.f32 %v3842, %v4160
  %v4406 = vadd.f32 %v3843, %v4162
  %v4407 = vadd.f32 %v3844, %v4337
  %v4408 = vadd.f32 %v3845, %v4166
  %v4409 = vadd.f32 %v3846, %v4168
  %v4410 = vadd.f32 %v3847, %v4342
  %v4411 = vld [vmem:[%s4] sm:$0x7]
  %v4413 = vlaneseq
  %v4414 = vshrl.u32 %v4413, 7
  %v4415 = vsub.s32 0, %v4414
  %v4416 = vrot.slane %v4411, %v4415
  %v4417 = vlaneseq
  %v4418 = vshrl.u32 %v4417, 7
  %v4419 = vsub.s32 1, %v4418
  %v4420 = vrot.slane %v4411, %v4419
  %v4421 = vlaneseq
  %v4422 = vshrl.u32 %v4421, 7
  %v4423 = vsub.s32 2, %v4422
  %v4424 = vrot.slane %v4411, %v4423
  %v4428 = vadd.f32 %v4345, %v4416
  %v4429 = vadd.f32 %v4346, %v4420
  %v4430 = vadd.f32 %v4347, %v4424
  %v4431 = vadd.f32 %v4348, %v4416
  %v4432 = vadd.f32 %v4349, %v4420
  %v4433 = vadd.f32 %v4350, %v4424
  %v4434 = vadd.f32 %v4351, %v4416
  %v4435 = vadd.f32 %v4352, %v4420
  %v4436 = vadd.f32 %v4353, %v4424
  %v4437 = vadd.f32 %v4354, %v4416
  %v4438 = vadd.f32 %v4355, %v4420
  %v4439 = vadd.f32 %v4356, %v4424
  %v4440 = vadd.f32 %v4357, %v4416
  %v4441 = vadd.f32 %v4358, %v4420
  %v4442 = vadd.f32 %v4359, %v4424
  %v4443 = vadd.f32 %v4360, %v4416
  %v4444 = vadd.f32 %v4361, %v4420
  %v4445 = vadd.f32 %v4362, %v4424
  %v4446 = vadd.f32 %v4363, %v4416
  %v4447 = vadd.f32 %v4364, %v4420
  %v4448 = vadd.f32 %v4365, %v4424
  %v4449 = vadd.f32 %v4366, %v4416
  %v4450 = vadd.f32 %v4367, %v4420
  %v4451 = vadd.f32 %v4368, %v4424
  %v4452 = vadd.f32 %v4369, %v4416
  %v4453 = vadd.f32 %v4370, %v4420
  %v4454 = vadd.f32 %v4371, %v4424
  %v4455 = vadd.f32 %v4372, %v4416
  %v4456 = vadd.f32 %v4373, %v4420
  %v4457 = vadd.f32 %v4374, %v4424
  %v4458 = vadd.f32 %v4375, %v4416
  %v4459 = vadd.f32 %v4376, %v4420
  %v4460 = vadd.f32 %v4377, %v4424
  %v4461 = vadd.f32 %v4378, %v4416
  %v4462 = vadd.f32 %v4379, %v4420
  %v4463 = vadd.f32 %v4380, %v4424
  %v4464 = vadd.f32 %v4381, %v4416
  %v4465 = vadd.f32 %v4382, %v4420
  %v4466 = vadd.f32 %v4383, %v4424
  %v4467 = vadd.f32 %v4384, %v4416
  %v4468 = vadd.f32 %v4385, %v4420
  %v4469 = vadd.f32 %v4386, %v4424
  %v4470 = vadd.f32 %v4387, %v4416
  %v4471 = vadd.f32 %v4388, %v4420
  %v4472 = vadd.f32 %v4389, %v4424
  %v4473 = vadd.f32 %v4390, %v4416
  %v4474 = vadd.f32 %v4391, %v4420
  %v4475 = vadd.f32 %v4392, %v4424
  %v4476 = vadd.f32 %v4393, %v4416
  %v4477 = vadd.f32 %v4394, %v4420
  %v4478 = vadd.f32 %v4395, %v4424
  %v4479 = vadd.f32 %v4396, %v4416
  %v4480 = vadd.f32 %v4397, %v4420
  %v4481 = vadd.f32 %v4398, %v4424
  %v4482 = vadd.f32 %v4399, %v4416
  %v4483 = vadd.f32 %v4400, %v4420
  %v4484 = vadd.f32 %v4401, %v4424
  %v4485 = vadd.f32 %v4402, %v4416
  %v4486 = vadd.f32 %v4403, %v4420
  %v4487 = vadd.f32 %v4404, %v4424
  %v4488 = vadd.f32 %v4405, %v4416
  %v4489 = vadd.f32 %v4406, %v4420
  %v4490 = vadd.f32 %v4407, %v4424
  %v4491 = vadd.f32 %v4408, %v4416
  %v4492 = vadd.f32 %v4409, %v4420
  %v4493 = vadd.f32 %v4410, %v4424
  %v4494 = vmax.f32 %v4428, 0.0
  %v4495 = vmax.f32 %v4429, 0.0
  %v4496 = vmax.f32 %v4430, 0.0
  %v4497 = vmax.f32 %v4431, 0.0
  %v4498 = vmax.f32 %v4432, 0.0
  %v4499 = vmax.f32 %v4433, 0.0
  %v4500 = vmax.f32 %v4434, 0.0
  %v4501 = vmax.f32 %v4435, 0.0
  %v4502 = vmax.f32 %v4436, 0.0
  %v4503 = vmax.f32 %v4437, 0.0
  %v4504 = vmax.f32 %v4438, 0.0
  %v4505 = vmax.f32 %v4439, 0.0
  %v4506 = vmax.f32 %v4440, 0.0
  %v4507 = vmax.f32 %v4441, 0.0
  %v4508 = vmax.f32 %v4442, 0.0
  %v4509 = vmax.f32 %v4443, 0.0
  %v4510 = vmax.f32 %v4444, 0.0
  %v4511 = vmax.f32 %v4445, 0.0
  %v4512 = vmax.f32 %v4446, 0.0
  %v4513 = vmax.f32 %v4447, 0.0
  %v4514 = vmax.f32 %v4448, 0.0
  %v4515 = vmax.f32 %v4449, 0.0
  %v4516 = vmax.f32 %v4450, 0.0
  %v4517 = vmax.f32 %v4451, 0.0
  %v4518 = vmax.f32 %v4452, 0.0
  %v4519 = vmax.f32 %v4453, 0.0
  %v4520 = vmax.f32 %v4454, 0.0
  %v4521 = vmax.f32 %v4455, 0.0
  %v4522 = vmax.f32 %v4456, 0.0
  %v4523 = vmax.f32 %v4457, 0.0
  %v4524 = vmax.f32 %v4458, 0.0
  %v4525 = vmax.f32 %v4459, 0.0
  %v4526 = vmax.f32 %v4460, 0.0
  %v4527 = vmax.f32 %v4461, 0.0
  %v4528 = vmax.f32 %v4462, 0.0
  %v4529 = vmax.f32 %v4463, 0.0
  %v4530 = vmax.f32 %v4464, 0.0
  %v4531 = vmax.f32 %v4465, 0.0
  %v4532 = vmax.f32 %v4466, 0.0
  %v4533 = vmax.f32 %v4467, 0.0
  %v4534 = vmax.f32 %v4468, 0.0
  %v4535 = vmax.f32 %v4469, 0.0
  %v4536 = vmax.f32 %v4470, 0.0
  %v4537 = vmax.f32 %v4471, 0.0
  %v4538 = vmax.f32 %v4472, 0.0
  %v4539 = vmax.f32 %v4473, 0.0
  %v4540 = vmax.f32 %v4474, 0.0
  %v4541 = vmax.f32 %v4475, 0.0
  %v4542 = vmax.f32 %v4476, 0.0
  %v4543 = vmax.f32 %v4477, 0.0
  %v4544 = vmax.f32 %v4478, 0.0
  %v4545 = vmax.f32 %v4479, 0.0
  %v4546 = vmax.f32 %v4480, 0.0
  %v4547 = vmax.f32 %v4481, 0.0
  %v4548 = vmax.f32 %v4482, 0.0
  %v4549 = vmax.f32 %v4483, 0.0
  %v4550 = vmax.f32 %v4484, 0.0
  %v4551 = vmax.f32 %v4485, 0.0
  %v4552 = vmax.f32 %v4486, 0.0
  %v4553 = vmax.f32 %v4487, 0.0
  %v4554 = vmax.f32 %v4488, 0.0
  %v4555 = vmax.f32 %v4489, 0.0
  %v4556 = vmax.f32 %v4490, 0.0
  %v4557 = vmax.f32 %v4491, 0.0
  %v4558 = vmax.f32 %v4492, 0.0
  %v4559 = vmax.f32 %v4493, 0.0
  %4560 = vst [vmem:[#allocation3] sm:$0xff] 0.0
  %vm4561 = vcmask 556032
  %4562 = vst.msk [vmem:[#allocation3 + $0x8] sm:$0xff] %vm4561, 0.0
  %4563 = vst [vmem:[#allocation3 + $0x10] sm:$0xff] 0.0
  %4564 = vst.msk [vmem:[#allocation3 + $0x18] sm:$0xff] %vm4561, 0.0
  %4565 = vst [vmem:[#allocation3 + $0x20] sm:$0xff] 0.0
  %4566 = vst.msk [vmem:[#allocation3 + $0x28] sm:$0xff] %vm4561, 0.0
  %4567 = vst [vmem:[#allocation3 + $0x30] sm:$0xff] 0.0
  %4568 = vst.msk [vmem:[#allocation3 + $0x38] sm:$0xff] %vm4561, 0.0
  %4569 = vst [vmem:[#allocation3 + $0x40] sm:$0xff] 0.0
  %4570 = vst.msk [vmem:[#allocation3 + $0x48] sm:$0xff] %vm4561, 0.0
  %4571 = vst [vmem:[#allocation3 + $0x50] sm:$0xff] 0.0
  %4572 = vst.msk [vmem:[#allocation3 + $0x58] sm:$0xff] %vm4561, 0.0
  %4573 = vst [vmem:[#allocation3 + $0x1c0] sm:$0xff] 0.0
  %4574 = vst.msk [vmem:[#allocation3 + $0x1c8] sm:$0xff] %vm4561, 0.0
  %4575 = vst [vmem:[#allocation3 + $0x1d0] sm:$0xff] 0.0
  %4576 = vst.msk [vmem:[#allocation3 + $0x1d8] sm:$0xff] %vm4561, 0.0
  %4577 = vst [vmem:[#allocation3 + $0x1e0] sm:$0xff] 0.0
  %4578 = vst.msk [vmem:[#allocation3 + $0x1e8] sm:$0xff] %vm4561, 0.0
  %4579 = vst [vmem:[#allocation3 + $0x1f0] sm:$0xff] 0.0
  %4580 = vst.msk [vmem:[#allocation3 + $0x1f8] sm:$0xff] %vm4561, 0.0
  %4581 = vst [vmem:[#allocation3 + $0x200] sm:$0xff] 0.0
  %4582 = vst.msk [vmem:[#allocation3 + $0x208] sm:$0xff] %vm4561, 0.0
  %4583 = vst [vmem:[#allocation3 + $0x210] sm:$0xff] 0.0
  %4584 = vst.msk [vmem:[#allocation3 + $0x218] sm:$0xff] %vm4561, 0.0
  %v4585 = vld [vmem:[%s5] sm:$0xff]
  %v4586 = vld [vmem:[%s5 + $0x8] sm:$0xff]
  %v4587 = vld [vmem:[%s5 + $0x10] sm:$0xff]
  %v4588 = vld [vmem:[%s5 + $0x18] sm:$0xff]
  %v4589 = vld [vmem:[%s5 + $0x20] sm:$0xff]
  %v4590 = vld [vmem:[%s5 + $0x28] sm:$0xff]
  %v4591 = vld [vmem:[%s5 + $0x30] sm:$0xff]
  %v4592 = vld [vmem:[%s5 + $0x38] sm:$0xff]
  %v4593 = vld [vmem:[%s5 + $0x40] sm:$0xff]
  %v4594 = vld [vmem:[%s5 + $0x48] sm:$0xff]
  %v4595 = vld [vmem:[%s5 + $0x50] sm:$0xff]
  %v4596 = vld [vmem:[%s5 + $0x58] sm:$0xff]
  %v4597 = vld [vmem:[%s5 + $0x60] sm:$0xff]
  %v4598 = vld [vmem:[%s5 + $0x68] sm:$0xff]
  %v4599 = vld [vmem:[%s5 + $0x70] sm:$0xff]
  %v4600 = vld [vmem:[%s5 + $0x78] sm:$0xff]
  %v4601 = vld [vmem:[%s5 + $0x80] sm:$0xff]
  %v4602 = vld [vmem:[%s5 + $0x88] sm:$0xff]
  %v4603 = vld [vmem:[%s5 + $0x90] sm:$0xff]
  %v4604 = vld [vmem:[%s5 + $0x98] sm:$0xff]
  %v4605 = vld [vmem:[%s5 + $0xa0] sm:$0xff]
  %v4606 = vld [vmem:[%s5 + $0xa8] sm:$0xff]
  %v4607 = vld [vmem:[%s5 + $0xb0] sm:$0xff]
  %v4608 = vld [vmem:[%s5 + $0xb8] sm:$0xff]
  %v4609 = vld [vmem:[%s5 + $0xc0] sm:$0xff]
  %v4610 = vld [vmem:[%s5 + $0xc8] sm:$0xff]
  %v4611 = vld [vmem:[%s5 + $0xd0] sm:$0xff]
  %v4612 = vld [vmem:[%s5 + $0xd8] sm:$0xff]
  %v4613 = vld [vmem:[%s5 + $0xe0] sm:$0xff]
  %v4614 = vld [vmem:[%s5 + $0xe8] sm:$0xff]
  %v4615 = vld [vmem:[%s5 + $0xf0] sm:$0xff]
  %v4616 = vld [vmem:[%s5 + $0xf8] sm:$0xff]
  %v4617 = vld [vmem:[%s5 + $0x100] sm:$0xff]
  %v4618 = vld [vmem:[%s5 + $0x108] sm:$0xff]
  %v4619 = vld [vmem:[%s5 + $0x110] sm:$0xff]
  %v4620 = vld [vmem:[%s5 + $0x118] sm:$0xff]
  %v4621 = vld [vmem:[%s5 + $0x120] sm:$0xff]
  %v4622 = vld [vmem:[%s5 + $0x128] sm:$0xff]
  %v4623 = vld [vmem:[%s5 + $0x130] sm:$0xff]
  %v4624 = vld [vmem:[%s5 + $0x138] sm:$0xff]
  %v4625 = vld [vmem:[%s5 + $0x140] sm:$0xff]
  %v4626 = vld [vmem:[%s5 + $0x148] sm:$0xff]
  %v4627 = vld [vmem:[%s5 + $0x150] sm:$0xff]
  %v4628 = vld [vmem:[%s5 + $0x158] sm:$0xff]
  %v4629 = vld [vmem:[%s5 + $0x160] sm:$0xff]
  %v4630 = vld [vmem:[%s5 + $0x168] sm:$0xff]
  %v4631 = vld [vmem:[%s5 + $0x170] sm:$0xff]
  %v4632 = vld [vmem:[%s5 + $0x178] sm:$0xff]
  %v4633 = vld [vmem:[%s5 + $0x180] sm:$0xff]
  %v4634 = vld [vmem:[%s5 + $0x188] sm:$0xff]
  %v4635 = vld [vmem:[%s5 + $0x190] sm:$0xff]
  %v4636 = vld [vmem:[%s5 + $0x198] sm:$0xff]
  %v4637 = vld [vmem:[%s5 + $0x1a0] sm:$0xff]
  %v4638 = vld [vmem:[%s5 + $0x1a8] sm:$0xff]
  %v4639 = vld [vmem:[%s5 + $0x1b0] sm:$0xff]
  %v4640 = vld [vmem:[%s5 + $0x1b8] sm:$0xff]
  %v4641 = vld [vmem:[%s5 + $0x1c0] sm:$0xff]
  %v4642 = vld [vmem:[%s5 + $0x1c8] sm:$0xff]
  %v4643 = vld [vmem:[%s5 + $0x1d0] sm:$0xff]
  %v4644 = vld [vmem:[%s5 + $0x1d8] sm:$0xff]
  %v4645 = vld [vmem:[%s5 + $0x1e0] sm:$0xff]
  %v4646 = vld [vmem:[%s5 + $0x1e8] sm:$0xff]
  %v4647 = vld [vmem:[%s5 + $0x1f0] sm:$0xff]
  %v4648 = vld [vmem:[%s5 + $0x1f8] sm:$0xff]
  %v4649 = vld [vmem:[%s5 + $0x200] sm:$0xff]
  %v4650 = vld [vmem:[%s5 + $0x208] sm:$0xff]
  %vm4651 = vcmask 64512
  %v4653 = vsel %vm4651, %v4496, 0
  %v4656 = vsel %vm4651, %v4499, 0
  %v4659 = vsel %vm4651, %v4502, 0
  %v4662 = vsel %vm4651, %v4505, 0
  %v4665 = vsel %vm4651, %v4508, 0
  %v4668 = vsel %vm4651, %v4511, 0
  %v4671 = vsel %vm4651, %v4514, 0
  %v4674 = vsel %vm4651, %v4517, 0
  %v4677 = vsel %vm4651, %v4520, 0
  %v4680 = vsel %vm4651, %v4523, 0
  %v4683 = vsel %vm4651, %v4526, 0
  %v4686 = vsel %vm4651, %v4529, 0
  %v4689 = vsel %vm4651, %v4532, 0
  %v4692 = vsel %vm4651, %v4535, 0
  %v4695 = vsel %vm4651, %v4538, 0
  %v4698 = vsel %vm4651, %v4541, 0
  %v4701 = vsel %vm4651, %v4544, 0
  %v4704 = vsel %vm4651, %v4547, 0
  %v4707 = vsel %vm4651, %v4550, 0
  %v4710 = vsel %vm4651, %v4553, 0
  %v4713 = vsel %vm4651, %v4556, 0
  %v4716 = vsel %vm4651, %v4559, 0
  %4718 = vmatprep.subr.mxu0 %v4586
  %4719 = vmatpush1.msra.mxu0 %v4585
  %4720 = vmatprep.subr.mxu0 %v4588
  %4721 = vmatpush1.msra.mxu0 %v4587
  %4722 = vmatprep.subr.mxu0 %v4590
  %4723 = vmatpush1.msra.mxu0 %v4589
  %4724 = vmatprep.subr.mxu0 %v4592
  %4725 = vmatpush1.msra.mxu0 %v4591
  %4726 = vmatprep.subr.mxu0 %v4594
  %4727 = vmatpush1.msra.mxu0 %v4593
  %4728 = vmatprep.subr.mxu0 %v4596
  %4729 = vmatpush1.msra.mxu0 %v4595
  %4730 = vmatprep.subr.mxu0 %v4598
  %4731 = vmatpush1.msra.mxu0 %v4597
  %4732 = vmatprep.subr.mxu0 %v4600
  %4733 = vmatpush1.msra.mxu0 %v4599
  %4734 = vmatprep.subr.mxu0 %v4602
  %4735 = vmatpush1.msra.mxu0 %v4601
  %4736 = vmatprep.subr.mxu0 %v4604
  %4737 = vmatpush1.msra.mxu0 %v4603
  %4738 = vmatprep.subr.mxu0 %v4606
  %4739 = vmatpush1.msra.mxu0 %v4605
  %4740 = vmatprep.subr.mxu0 %v4608
  %4741 = vmatpush1.msra.mxu0 %v4607
  %4742 = vmatprep.subr.mxu0 %v4610
  %4743 = vmatpush1.msra.mxu0 %v4609
  %4744 = vmatprep.subr.mxu0 %v4612
  %4745 = vmatpush1.msra.mxu0 %v4611
  %4746 = vmatprep.subr.mxu0 %v4614
  %4747 = vmatpush1.msra.mxu0 %v4613
  %4748 = vmatprep.subr.mxu0 %v4616
  %4749 = vmatpush1.msra.mxu0 %v4615
  %4750 = vmatprep.subr.mxu0 %v4618
  %4751 = vmatpush1.msra.mxu0 %v4617
  %4752 = vmatprep.subr.mxu0 %v4620
  %4753 = vmatpush1.msra.mxu0 %v4619
  %4754 = vmatprep.subr.mxu0 %v4622
  %4755 = vmatpush1.msra.mxu0 %v4621
  %4756 = vmatprep.subr.mxu0 %v4624
  %4757 = vmatpush1.msra.mxu0 %v4623
  %4758 = vmatprep.subr.mxu0 %v4626
  %4759 = vmatpush1.msra.mxu0 %v4625
  %4760 = vmatprep.subr.mxu0 %v4628
  %4761 = vmatpush1.msra.mxu0 %v4627
  %4762 = vmatprep.subr.mxu0 %v4630
  %4763 = vmatpush1.msra.mxu0 %v4629
  %4764 = vmatprep.subr.mxu0 %v4632
  %4765 = vmatpush1.msra.mxu0 %v4631
  %4766 = vmatprep.subr.mxu0 %v4634
  %4767 = vmatpush1.msra.mxu0 %v4633
  %4768 = vmatprep.subr.mxu0 %v4636
  %4769 = vmatpush1.msra.mxu0 %v4635
  %4770 = vmatprep.subr.mxu0 %v4638
  %4771 = vmatpush1.msra.mxu0 %v4637
  %4772 = vmatprep.subr.mxu0 %v4640
  %4773 = vmatpush1.msra.mxu0 %v4639
  %4774 = vmatprep.subr.mxu0 %v4642
  %4775 = vmatpush1.msra.mxu0 %v4641
  %4776 = vmatprep.subr.mxu0 %v4644
  %4777 = vmatpush1.msra.mxu0 %v4643
  %4778 = vmatprep.subr.mxu0 %v4646
  %4779 = vmatpush1.msra.mxu0 %v4645
  %4780 = vmatprep.subr.mxu0 %v4648
  %4781 = vmatpush1.msra.mxu0 %v4647
  %4782 = vmatprep.mubr.f32.mxu0 %v4495
  %4783 = vmatmul.mubr.f32.gmra.mrb[0].mxu0 %v4494
  %v4784 = vpop.f32.mrb[0].mxu0
  %v4785 = vadd.f32 0.0, %v4784
  %v4786 = vpop.f32.mrb[0].mxu0
  %v4787 = vadd.f32 0.0, %v4786
  %4788 = vmatprep.mubr.f32.mxu0 %v4498
  %4789 = vmatmul.mubr.f32.gmra.mrb[0].mxu0 %v4497
  %v4790 = vpop.f32.mrb[0].mxu0
  %v4791 = vadd.f32 0.0, %v4790
  %v4792 = vpop.f32.mrb[0].mxu0
  %v4793 = vadd.f32 0.0, %v4792
  %4794 = vmatprep.mubr.f32.mxu0 %v4501
  %4795 = vmatmul.mubr.f32.gmra.mrb[0].mxu0 %v4500
  %v4796 = vpop.f32.mrb[0].mxu0
  %v4797 = vadd.f32 0.0, %v4796
  %v4798 = vpop.f32.mrb[0].mxu0
  %v4799 = vadd.f32 0.0, %v4798
  %4800 = vmatprep.mubr.f32.mxu0 %v4504
  %4801 = vmatmul.mubr.f32.gmra.mrb[0].mxu0 %v4503
  %v4802 = vpop.f32.mrb[0].mxu0
  %v4803 = vadd.f32 0.0, %v4802
  %v4804 = vpop.f32.mrb[0].mxu0
  %v4805 = vadd.f32 0.0, %v4804
  %4806 = vmatprep.mubr.f32.mxu0 %v4507
  %4807 = vmatmul.mubr.f32.gmra.mrb[0].mxu0 %v4506
  %v4808 = vpop.f32.mrb[0].mxu0
  %v4809 = vadd.f32 0.0, %v4808
  %v4810 = vpop.f32.mrb[0].mxu0
  %v4811 = vadd.f32 0.0, %v4810
  %4812 = vmatprep.mubr.f32.mxu0 %v4510
  %4813 = vmatmul.mubr.f32.gmra.mrb[0].mxu0 %v4509
  %v4814 = vpop.f32.mrb[0].mxu0
  %v4815 = vadd.f32 0.0, %v4814
  %v4816 = vpop.f32.mrb[0].mxu0
  %v4817 = vadd.f32 0.0, %v4816
  %4818 = vmatprep.mubr.f32.mxu0 %v4513
  %4819 = vmatmul.mubr.f32.gmra.mrb[0].mxu0 %v4512
  %v4820 = vpop.f32.mrb[0].mxu0
  %v4821 = vadd.f32 0.0, %v4820
  %v4822 = vpop.f32.mrb[0].mxu0
  %v4823 = vadd.f32 0.0, %v4822
  %4824 = vmatprep.mubr.f32.mxu0 %v4516
  %4825 = vmatmul.mubr.f32.gmra.mrb[0].mxu0 %v4515
  %v4826 = vpop.f32.mrb[0].mxu0
  %v4827 = vadd.f32 0.0, %v4826
  %v4828 = vpop.f32.mrb[0].mxu0
  %v4829 = vadd.f32 0.0, %v4828
  %4830 = vmatprep.mubr.f32.mxu0 %v4519
  %4831 = vmatmul.mubr.f32.gmra.mrb[0].mxu0 %v4518
  %v4832 = vpop.f32.mrb[0].mxu0
  %v4833 = vadd.f32 0.0, %v4832
  %v4834 = vpop.f32.mrb[0].mxu0
  %v4835 = vadd.f32 0.0, %v4834
  %4836 = vmatprep.mubr.f32.mxu0 %v4522
  %4837 = vmatmul.mubr.f32.gmra.mrb[0].mxu0 %v4521
  %v4838 = vpop.f32.mrb[0].mxu0
  %v4839 = vadd.f32 0.0, %v4838
  %v4840 = vpop.f32.mrb[0].mxu0
  %v4841 = vadd.f32 0.0, %v4840
  %4842 = vmatprep.mubr.f32.mxu0 %v4525
  %4843 = vmatmul.mubr.f32.gmra.mrb[0].mxu0 %v4524
  %v4844 = vpop.f32.mrb[0].mxu0
  %v4845 = vadd.f32 0.0, %v4844
  %v4846 = vpop.f32.mrb[0].mxu0
  %v4847 = vadd.f32 0.0, %v4846
  %4848 = vmatprep.mubr.f32.mxu0 %v4528
  %4849 = vmatmul.mubr.f32.gmra.mrb[0].mxu0 %v4527
  %v4850 = vpop.f32.mrb[0].mxu0
  %v4851 = vadd.f32 0.0, %v4850
  %v4852 = vpop.f32.mrb[0].mxu0
  %v4853 = vadd.f32 0.0, %v4852
  %4854 = vmatprep.mubr.f32.mxu0 %v4531
  %4855 = vmatmul.mubr.f32.gmra.mrb[0].mxu0 %v4530
  %v4856 = vpop.f32.mrb[0].mxu0
  %v4857 = vadd.f32 0.0, %v4856
  %v4858 = vpop.f32.mrb[0].mxu0
  %v4859 = vadd.f32 0.0, %v4858
  %4860 = vmatprep.mubr.f32.mxu0 %v4534
  %4861 = vmatmul.mubr.f32.gmra.mrb[0].mxu0 %v4533
  %v4862 = vpop.f32.mrb[0].mxu0
  %v4863 = vadd.f32 0.0, %v4862
  %v4864 = vpop.f32.mrb[0].mxu0
  %v4865 = vadd.f32 0.0, %v4864
  %4866 = vmatprep.mubr.f32.mxu0 %v4537
  %4867 = vmatmul.mubr.f32.gmra.mrb[0].mxu0 %v4536
  %v4868 = vpop.f32.mrb[0].mxu0
  %v4869 = vadd.f32 0.0, %v4868
  %v4870 = vpop.f32.mrb[0].mxu0
  %v4871 = vadd.f32 0.0, %v4870
  %4872 = vmatprep.mubr.f32.mxu0 %v4540
  %4873 = vmatmul.mubr.f32.gmra.mrb[0].mxu0 %v4539
  %v4874 = vpop.f32.mrb[0].mxu0
  %v4875 = vadd.f32 0.0, %v4874
  %v4876 = vpop.f32.mrb[0].mxu0
  %v4877 = vadd.f32 0.0, %v4876
  %4878 = vmatprep.mubr.f32.mxu0 %v4543
  %4879 = vmatmul.mubr.f32.gmra.mrb[0].mxu0 %v4542
  %v4880 = vpop.f32.mrb[0].mxu0
  %v4881 = vadd.f32 0.0, %v4880
  %v4882 = vpop.f32.mrb[0].mxu0
  %v4883 = vadd.f32 0.0, %v4882
  %4884 = vmatprep.mubr.f32.mxu0 %v4546
  %4885 = vmatmul.mubr.f32.gmra.mrb[0].mxu0 %v4545
  %v4886 = vpop.f32.mrb[0].mxu0
  %v4887 = vadd.f32 0.0, %v4886
  %v4888 = vpop.f32.mrb[0].mxu0
  %v4889 = vadd.f32 0.0, %v4888
  %4890 = vmatprep.mubr.f32.mxu0 %v4549
  %4891 = vmatmul.mubr.f32.gmra.mrb[0].mxu0 %v4548
  %v4892 = vpop.f32.mrb[0].mxu0
  %v4893 = vadd.f32 0.0, %v4892
  %v4894 = vpop.f32.mrb[0].mxu0
  %v4895 = vadd.f32 0.0, %v4894
  %4896 = vmatprep.mubr.f32.mxu0 %v4552
  %4897 = vmatmul.mubr.f32.gmra.mrb[0].mxu0 %v4551
  %v4898 = vpop.f32.mrb[0].mxu0
  %v4899 = vadd.f32 0.0, %v4898
  %v4900 = vpop.f32.mrb[0].mxu0
  %v4901 = vadd.f32 0.0, %v4900
  %4902 = vmatprep.mubr.f32.mxu0 %v4555
  %4903 = vmatmul.mubr.f32.gmra.mrb[0].mxu0 %v4554
  %v4904 = vpop.f32.mrb[0].mxu0
  %v4905 = vadd.f32 0.0, %v4904
  %v4906 = vpop.f32.mrb[0].mxu0
  %v4907 = vadd.f32 0.0, %v4906
  %4908 = vmatprep.mubr.f32.mxu0 %v4558
  %4909 = vmatmul.mubr.f32.gmra.mrb[0].mxu0 %v4557
  %v4910 = vpop.f32.mrb[0].mxu0
  %v4911 = vadd.f32 0.0, %v4910
  %v4912 = vpop.f32.mrb[0].mxu0
  %v4913 = vadd.f32 0.0, %v4912
  %4914 = vdwg.mxu0
  %4915 = vmatprep.subr.mxu0 %v4650
  %4916 = vmatpush1.msra.mxu0 %v4649
  %4917 = vmatprep.subr.mxu0 0.0
  %4918 = vmatpush1.msra.mxu0 0.0
  %4919 = vmatprep.subr.mxu0 0.0
  %4920 = vmatpush1.msra.mxu0 0.0
  %4921 = vmatprep.subr.mxu0 0.0
  %4922 = vmatpush1.msra.mxu0 0.0
  %4923 = vmatprep.subr.mxu0 0.0
  %4924 = vmatpush1.msra.mxu0 0.0
  %4925 = vmatprep.subr.mxu0 0.0
  %4926 = vmatpush1.msra.mxu0 0.0
  %4927 = vmatprep.subr.mxu0 0.0
  %4928 = vmatpush1.msra.mxu0 0.0
  %4929 = vmatprep.subr.mxu0 0.0
  %4930 = vmatpush1.msra.mxu0 0.0
  %4931 = vmatprep.subr.mxu0 0.0
  %4932 = vmatpush1.msra.mxu0 0.0
  %4933 = vmatprep.subr.mxu0 0.0
  %4934 = vmatpush1.msra.mxu0 0.0
  %4935 = vmatprep.subr.mxu0 0.0
  %4936 = vmatpush1.msra.mxu0 0.0
  %4937 = vmatprep.subr.mxu0 0.0
  %4938 = vmatpush1.msra.mxu0 0.0
  %4939 = vmatprep.subr.mxu0 0.0
  %4940 = vmatpush1.msra.mxu0 0.0
  %4941 = vmatprep.subr.mxu0 0.0
  %4942 = vmatpush1.msra.mxu0 0.0
  %4943 = vmatprep.subr.mxu0 0.0
  %4944 = vmatpush1.msra.mxu0 0.0
  %4945 = vmatprep.subr.mxu0 0.0
  %4946 = vmatpush1.msra.mxu0 0.0
  %4947 = vmatprep.subr.mxu0 0.0
  %4948 = vmatpush1.msra.mxu0 0.0
  %4949 = vmatprep.subr.mxu0 0.0
  %4950 = vmatpush1.msra.mxu0 0.0
  %4951 = vmatprep.subr.mxu0 0.0
  %4952 = vmatpush1.msra.mxu0 0.0
  %4953 = vmatprep.subr.mxu0 0.0
  %4954 = vmatpush1.msra.mxu0 0.0
  %4955 = vmatprep.subr.mxu0 0.0
  %4956 = vmatpush1.msra.mxu0 0.0
  %4957 = vmatprep.subr.mxu0 0.0
  %4958 = vmatpush1.msra.mxu0 0.0
  %4959 = vmatprep.subr.mxu0 0.0
  %4960 = vmatpush1.msra.mxu0 0.0
  %4961 = vmatprep.subr.mxu0 0.0
  %4962 = vmatpush1.msra.mxu0 0.0
  %4963 = vmatprep.subr.mxu0 0.0
  %4964 = vmatpush1.msra.mxu0 0.0
  %4965 = vmatprep.subr.mxu0 0.0
  %4966 = vmatpush1.msra.mxu0 0.0
  %4967 = vmatprep.subr.mxu0 0.0
  %4968 = vmatpush1.msra.mxu0 0.0
  %4969 = vmatprep.subr.mxu0 0.0
  %4970 = vmatpush1.msra.mxu0 0.0
  %4971 = vmatprep.subr.mxu0 0.0
  %4972 = vmatpush1.msra.mxu0 0.0
  %4973 = vmatprep.subr.mxu0 0.0
  %4974 = vmatpush1.msra.mxu0 0.0
  %4975 = vmatprep.subr.mxu0 0.0
  %4976 = vmatpush1.msra.mxu0 0.0
  %4977 = vmatprep.subr.mxu0 0.0
  %4978 = vmatpush1.msra.mxu0 0.0
  %4979 = vmatprep.mubr.f32.mxu0 0.0
  %4980 = vmatmul.mubr.f32.gmra.mrb[0].mxu0 %v4653
  %v4981 = vpop.f32.mrb[0].mxu0
  %v4982 = vadd.f32 %v4785, %v4981
  %v4983 = vpop.f32.mrb[0].mxu0
  %v4984 = vadd.f32 %v4787, %v4983
  %4985 = vmatprep.mubr.f32.mxu0 0.0
  %4986 = vmatmul.mubr.f32.gmra.mrb[0].mxu0 %v4656
  %v4987 = vpop.f32.mrb[0].mxu0
  %v4988 = vadd.f32 %v4791, %v4987
  %v4989 = vpop.f32.mrb[0].mxu0
  %v4990 = vadd.f32 %v4793, %v4989
  %4991 = vmatprep.mubr.f32.mxu0 0.0
  %4992 = vmatmul.mubr.f32.gmra.mrb[0].mxu0 %v4659
  %v4993 = vpop.f32.mrb[0].mxu0
  %v4994 = vadd.f32 %v4797, %v4993
  %v4995 = vpop.f32.mrb[0].mxu0
  %v4996 = vadd.f32 %v4799, %v4995
  %4997 = vmatprep.mubr.f32.mxu0 0.0
  %4998 = vmatmul.mubr.f32.gmra.mrb[0].mxu0 %v4662
  %v4999 = vpop.f32.mrb[0].mxu0
  %v5000 = vadd.f32 %v4803, %v4999
  %v5001 = vpop.f32.mrb[0].mxu0
  %v5002 = vadd.f32 %v4805, %v5001
  %5003 = vmatprep.mubr.f32.mxu0 0.0
  %5004 = vmatmul.mubr.f32.gmra.mrb[0].mxu0 %v4665
  %v5005 = vpop.f32.mrb[0].mxu0
  %v5006 = vadd.f32 %v4809, %v5005
  %v5007 = vpop.f32.mrb[0].mxu0
  %v5008 = vadd.f32 %v4811, %v5007
  %5009 = vmatprep.mubr.f32.mxu0 0.0
  %5010 = vmatmul.mubr.f32.gmra.mrb[0].mxu0 %v4668
  %v5011 = vpop.f32.mrb[0].mxu0
  %v5012 = vadd.f32 %v4815, %v5011
  %v5013 = vpop.f32.mrb[0].mxu0
  %v5014 = vadd.f32 %v4817, %v5013
  %5015 = vmatprep.mubr.f32.mxu0 0.0
  %5016 = vmatmul.mubr.f32.gmra.mrb[0].mxu0 %v4671
  %v5017 = vpop.f32.mrb[0].mxu0
  %v5018 = vadd.f32 %v4821, %v5017
  %v5019 = vpop.f32.mrb[0].mxu0
  %v5020 = vadd.f32 %v4823, %v5019
  %5021 = vmatprep.mubr.f32.mxu0 0.0
  %5022 = vmatmul.mubr.f32.gmra.mrb[0].mxu0 %v4674
  %v5023 = vpop.f32.mrb[0].mxu0
  %v5024 = vadd.f32 %v4827, %v5023
  %v5025 = vpop.f32.mrb[0].mxu0
  %v5026 = vadd.f32 %v4829, %v5025
  %5027 = vmatprep.mubr.f32.mxu0 0.0
  %5028 = vmatmul.mubr.f32.gmra.mrb[0].mxu0 %v4677
  %v5029 = vpop.f32.mrb[0].mxu0
  %v5030 = vadd.f32 %v4833, %v5029
  %v5031 = vpop.f32.mrb[0].mxu0
  %v5032 = vadd.f32 %v4835, %v5031
  %5033 = vmatprep.mubr.f32.mxu0 0.0
  %5034 = vmatmul.mubr.f32.gmra.mrb[0].mxu0 %v4680
  %v5035 = vpop.f32.mrb[0].mxu0
  %v5036 = vadd.f32 %v4839, %v5035
  %v5037 = vpop.f32.mrb[0].mxu0
  %v5038 = vadd.f32 %v4841, %v5037
  %5039 = vmatprep.mubr.f32.mxu0 0.0
  %5040 = vmatmul.mubr.f32.gmra.mrb[0].mxu0 %v4683
  %v5041 = vpop.f32.mrb[0].mxu0
  %v5042 = vadd.f32 %v4845, %v5041
  %v5043 = vpop.f32.mrb[0].mxu0
  %v5044 = vadd.f32 %v4847, %v5043
  %5045 = vmatprep.mubr.f32.mxu0 0.0
  %5046 = vmatmul.mubr.f32.gmra.mrb[0].mxu0 %v4686
  %v5047 = vpop.f32.mrb[0].mxu0
  %v5048 = vadd.f32 %v4851, %v5047
  %v5049 = vpop.f32.mrb[0].mxu0
  %v5050 = vadd.f32 %v4853, %v5049
  %5051 = vmatprep.mubr.f32.mxu0 0.0
  %5052 = vmatmul.mubr.f32.gmra.mrb[0].mxu0 %v4689
  %v5053 = vpop.f32.mrb[0].mxu0
  %v5054 = vadd.f32 %v4857, %v5053
  %v5055 = vpop.f32.mrb[0].mxu0
  %v5056 = vadd.f32 %v4859, %v5055
  %5057 = vmatprep.mubr.f32.mxu0 0.0
  %5058 = vmatmul.mubr.f32.gmra.mrb[0].mxu0 %v4692
  %v5059 = vpop.f32.mrb[0].mxu0
  %v5060 = vadd.f32 %v4863, %v5059
  %v5061 = vpop.f32.mrb[0].mxu0
  %v5062 = vadd.f32 %v4865, %v5061
  %5063 = vmatprep.mubr.f32.mxu0 0.0
  %5064 = vmatmul.mubr.f32.gmra.mrb[0].mxu0 %v4695
  %v5065 = vpop.f32.mrb[0].mxu0
  %v5066 = vadd.f32 %v4869, %v5065
  %v5067 = vpop.f32.mrb[0].mxu0
  %v5068 = vadd.f32 %v4871, %v5067
  %5069 = vmatprep.mubr.f32.mxu0 0.0
  %5070 = vmatmul.mubr.f32.gmra.mrb[0].mxu0 %v4698
  %v5071 = vpop.f32.mrb[0].mxu0
  %v5072 = vadd.f32 %v4875, %v5071
  %v5073 = vpop.f32.mrb[0].mxu0
  %v5074 = vadd.f32 %v4877, %v5073
  %5075 = vmatprep.mubr.f32.mxu0 0.0
  %5076 = vmatmul.mubr.f32.gmra.mrb[0].mxu0 %v4701
  %v5077 = vpop.f32.mrb[0].mxu0
  %v5078 = vadd.f32 %v4881, %v5077
  %v5079 = vpop.f32.mrb[0].mxu0
  %v5080 = vadd.f32 %v4883, %v5079
  %5081 = vmatprep.mubr.f32.mxu0 0.0
  %5082 = vmatmul.mubr.f32.gmra.mrb[0].mxu0 %v4704
  %v5083 = vpop.f32.mrb[0].mxu0
  %v5084 = vadd.f32 %v4887, %v5083
  %v5085 = vpop.f32.mrb[0].mxu0
  %v5086 = vadd.f32 %v4889, %v5085
  %5087 = vmatprep.mubr.f32.mxu0 0.0
  %5088 = vmatmul.mubr.f32.gmra.mrb[0].mxu0 %v4707
  %v5089 = vpop.f32.mrb[0].mxu0
  %v5090 = vadd.f32 %v4893, %v5089
  %v5091 = vpop.f32.mrb[0].mxu0
  %v5092 = vadd.f32 %v4895, %v5091
  %5093 = vmatprep.mubr.f32.mxu0 0.0
  %5094 = vmatmul.mubr.f32.gmra.mrb[0].mxu0 %v4710
  %v5095 = vpop.f32.mrb[0].mxu0
  %v5096 = vadd.f32 %v4899, %v5095
  %v5097 = vpop.f32.mrb[0].mxu0
  %v5098 = vadd.f32 %v4901, %v5097
  %5099 = vmatprep.mubr.f32.mxu0 0.0
  %5100 = vmatmul.mubr.f32.gmra.mrb[0].mxu0 %v4713
  %v5101 = vpop.f32.mrb[0].mxu0
  %v5102 = vadd.f32 %v4905, %v5101
  %v5103 = vpop.f32.mrb[0].mxu0
  %v5104 = vadd.f32 %v4907, %v5103
  %5105 = vmatprep.mubr.f32.mxu0 0.0
  %5106 = vmatmul.mubr.f32.gmra.mrb[0].mxu0 %v4716
  %v5107 = vpop.f32.mrb[0].mxu0
  %v5108 = vadd.f32 %v4911, %v5107
  %v5109 = vpop.f32.mrb[0].mxu0
  %v5110 = vadd.f32 %v4913, %v5109
  %5111 = vdwg.mxu0
  %5112 = vst [vmem:[#allocation3 + $0x60] sm:$0xff] %v4982
  %5113 = vst.msk [vmem:[#allocation3 + $0x68] sm:$0xff] %vm4561, %v4984
  %5114 = vst [vmem:[#allocation3 + $0x70] sm:$0xff] %v4988
  %5115 = vst.msk [vmem:[#allocation3 + $0x78] sm:$0xff] %vm4561, %v4990
  %5116 = vst [vmem:[#allocation3 + $0x80] sm:$0xff] %v4994
  %5117 = vst.msk [vmem:[#allocation3 + $0x88] sm:$0xff] %vm4561, %v4996
  %5118 = vst [vmem:[#allocation3 + $0x90] sm:$0xff] %v5000
  %5119 = vst.msk [vmem:[#allocation3 + $0x98] sm:$0xff] %vm4561, %v5002
  %5120 = vst [vmem:[#allocation3 + $0xa0] sm:$0xff] %v5006
  %5121 = vst.msk [vmem:[#allocation3 + $0xa8] sm:$0xff] %vm4561, %v5008
  %5122 = vst [vmem:[#allocation3 + $0xb0] sm:$0xff] %v5012
  %5123 = vst.msk [vmem:[#allocation3 + $0xb8] sm:$0xff] %vm4561, %v5014
  %5124 = vst [vmem:[#allocation3 + $0xc0] sm:$0xff] %v5018
  %5125 = vst.msk [vmem:[#allocation3 + $0xc8] sm:$0xff] %vm4561, %v5020
  %5126 = vst [vmem:[#allocation3 + $0xd0] sm:$0xff] %v5024
  %5127 = vst.msk [vmem:[#allocation3 + $0xd8] sm:$0xff] %vm4561, %v5026
  %5128 = vst [vmem:[#allocation3 + $0xe0] sm:$0xff] %v5030
  %5129 = vst.msk [vmem:[#allocation3 + $0xe8] sm:$0xff] %vm4561, %v5032
  %5130 = vst [vmem:[#allocation3 + $0xf0] sm:$0xff] %v5036
  %5131 = vst.msk [vmem:[#allocation3 + $0xf8] sm:$0xff] %vm4561, %v5038
  %5132 = vst [vmem:[#allocation3 + $0x100] sm:$0xff] %v5042
  %5133 = vst.msk [vmem:[#allocation3 + $0x108] sm:$0xff] %vm4561, %v5044
  %5134 = vst [vmem:[#allocation3 + $0x110] sm:$0xff] %v5048
  %5135 = vst.msk [vmem:[#allocation3 + $0x118] sm:$0xff] %vm4561, %v5050
  %5136 = vst [vmem:[#allocation3 + $0x120] sm:$0xff] %v5054
  %5137 = vst.msk [vmem:[#allocation3 + $0x128] sm:$0xff] %vm4561, %v5056
  %5138 = vst [vmem:[#allocation3 + $0x130] sm:$0xff] %v5060
  %5139 = vst.msk [vmem:[#allocation3 + $0x138] sm:$0xff] %vm4561, %v5062
  %5140 = vst [vmem:[#allocation3 + $0x140] sm:$0xff] %v5066
  %5141 = vst.msk [vmem:[#allocation3 + $0x148] sm:$0xff] %vm4561, %v5068
  %5142 = vst [vmem:[#allocation3 + $0x150] sm:$0xff] %v5072
  %5143 = vst.msk [vmem:[#allocation3 + $0x158] sm:$0xff] %vm4561, %v5074
  %5144 = vst [vmem:[#allocation3 + $0x160] sm:$0xff] %v5078
  %5145 = vst.msk [vmem:[#allocation3 + $0x168] sm:$0xff] %vm4561, %v5080
  %5146 = vst [vmem:[#allocation3 + $0x170] sm:$0xff] %v5084
  %5147 = vst.msk [vmem:[#allocation3 + $0x178] sm:$0xff] %vm4561, %v5086
  %5148 = vst [vmem:[#allocation3 + $0x180] sm:$0xff] %v5090
  %5149 = vst.msk [vmem:[#allocation3 + $0x188] sm:$0xff] %vm4561, %v5092
  %5150 = vst [vmem:[#allocation3 + $0x190] sm:$0xff] %v5096
  %5151 = vst.msk [vmem:[#allocation3 + $0x198] sm:$0xff] %vm4561, %v5098
  %5152 = vst [vmem:[#allocation3 + $0x1a0] sm:$0xff] %v5102
  %5153 = vst.msk [vmem:[#allocation3 + $0x1a8] sm:$0xff] %vm4561, %v5104
  %5154 = vst [vmem:[#allocation3 + $0x1b0] sm:$0xff] %v5108
  %5155 = vst.msk [vmem:[#allocation3 + $0x1b8] sm:$0xff] %vm4561, %v5110
  %v5156 = vld [vmem:[#allocation4] sm:$0x1]
  %v5157 = vld [vmem:[#allocation3 + $0x60] sm:$0xff]
  %v5158 = vld [vmem:[#allocation3 + $0x50] sm:$0xff]
  %5160 = vrot.lane.b32.xlu0 %v5158, 100
  %v5161 = vpop.permute.xlu0 %5160
  %v5163 = vadd.f32 %v5157, %v5161
  %v5164 = vld [vmem:[#allocation3 + $0x40] sm:$0xff]
  %5166 = vrot.lane.b32.xlu0 %v5164, 72
  %v5167 = vpop.permute.xlu0 %5166
  %v5169 = vadd.f32 %v5163, %v5167
  %v5170 = vld [vmem:[#allocation3 + $0x30] sm:$0xff]
  %5172 = vrot.lane.b32.xlu0 %v5170, 44
  %v5173 = vpop.permute.xlu0 %5172
  %v5175 = vadd.f32 %v5169, %v5173
  %v5176 = vld [vmem:[#allocation3 + $0x20] sm:$0xff]
  %v5177 = vld [vmem:[#allocation3 + $0x28] sm:$0xff]
  %5180 = vrot.lane.b32.xlu0 %v5176, 16
  %v5181 = vpop.permute.xlu0 %5180
  %5182 = vrot.lane.b32.xlu0 %v5177, 16
  %v5183 = vpop.permute.xlu0 %5182
  %vm5184 = vcmask 130048
  %v5185 = vsel %vm5184, %v5181, %v5183
  %v5187 = vadd.f32 %v5175, %v5185
  %v5188 = vld [vmem:[#allocation3 + $0x18] sm:$0xff]
  %5190 = vrot.lane.b32.xlu0 %v5188, 116
  %v5191 = vpop.permute.xlu0 %5190
  %v5193 = vadd.f32 %v5187, %v5191
  %v5194 = vld [vmem:[#allocation3 + $0x8] sm:$0xff]
  %5196 = vrot.lane.b32.xlu0 %v5194, 88
  %v5197 = vpop.permute.xlu0 %5196
  %v5199 = vadd.f32 %v5193, %v5197
  %v5201 = vlaneseq
  %v5202 = vshrl.u32 %v5201, 7
  %v5203 = vsub.s32 0, %v5202
  %v5204 = vrot.slane %v5156, %v5203
  %5205 = vset.pattern.permute.xlu0 0
  %5206 = vperm.xlu0 %5205, %v5204
  %v5207 = vpop.permute.xlu0 %5206
  %v5209 = vadd.f32 %v5199, %v5207
  %v5210 = vxor.u32 %v5209, 2147483648
  %v5211 = vmul.f32 %v5210, 1.442695
  %v5212 = vpow.pop %v5211
  %v5213 = vadd.f32 %v5212, 1.0
  %v5214 = vrcp.pop %v5213
  %v5215 = vmul.f32 1.0, %v5214
  %vm5216 = vcmask 228352
  %5217 = vst.msk [vmem:[%s7] sm:$0xff] %vm5216, %v5215
  %v5218 = vld [vmem:[#allocation3 + $0x70] sm:$0xff]
  %v5219 = vld [vmem:[#allocation3 + $0x60] sm:$0xff]
  %5221 = vrot.lane.b32.xlu0 %v5219, 100
  %v5222 = vpop.permute.xlu0 %5221
  %v5224 = vadd.f32 %v5218, %v5222
  %v5225 = vld [vmem:[#allocation3 + $0x50] sm:$0xff]
  %5227 = vrot.lane.b32.xlu0 %v5225, 72
  %v5228 = vpop.permute.xlu0 %5227
  %v5230 = vadd.f32 %v5224, %v5228
  %v5231 = vld [vmem:[#allocation3 + $0x40] sm:$0xff]
  %5233 = vrot.lane.b32.xlu0 %v5231, 44
  %v5234 = vpop.permute.xlu0 %5233
  %v5236 = vadd.f32 %v5230, %v5234
  %v5237 = vld [vmem:[#allocation3 + $0x30] sm:$0xff]
  %v5238 = vld [vmem:[#allocation3 + $0x38] sm:$0xff]
  %5241 = vrot.lane.b32.xlu0 %v5237, 16
  %v5242 = vpop.permute.xlu0 %5241
  %5243 = vrot.lane.b32.xlu0 %v5238, 16
  %v5244 = vpop.permute.xlu0 %5243
  %v5245 = vsel %vm5184, %v5242, %v5244
  %v5247 = vadd.f32 %v5236, %v5245
  %v5248 = vld [vmem:[#allocation3 + $0x28] sm:$0xff]
  %5250 = vrot.lane.b32.xlu0 %v5248, 116
  %v5251 = vpop.permute.xlu0 %5250
  %v5253 = vadd.f32 %v5247, %v5251
  %v5254 = vld [vmem:[#allocation3 + $0x18] sm:$0xff]
  %5256 = vrot.lane.b32.xlu0 %v5254, 88
  %v5257 = vpop.permute.xlu0 %5256
  %v5259 = vadd.f32 %v5253, %v5257
  %v5260 = vadd.f32 %v5259, %v5207
  %v5261 = vxor.u32 %v5260, 2147483648
  %v5262 = vmul.f32 %v5261, 1.442695
  %v5263 = vpow.pop %v5262
  %v5264 = vadd.f32 %v5263, 1.0
  %v5265 = vrcp.pop %v5264
  %v5266 = vmul.f32 1.0, %v5265
  %5268 = vrot.lane.b32.xlu0 %v5266, 28
  %v5269 = vpop.permute.xlu0 %5268
  %vm5271 = vcmask 457952
  %5272 = vst.msk [vmem:[%s7] sm:$0xff] %vm5271, %v5269
  %v5273 = vld [vmem:[#allocation3 + $0x80] sm:$0xff]
  %v5274 = vld [vmem:[#allocation3 + $0x70] sm:$0xff]
  %5276 = vrot.lane.b32.xlu0 %v5274, 100
  %v5277 = vpop.permute.xlu0 %5276
  %v5279 = vadd.f32 %v5273, %v5277
  %v5280 = vld [vmem:[#allocation3 + $0x60] sm:$0xff]
  %5282 = vrot.lane.b32.xlu0 %v5280, 72
  %v5283 = vpop.permute.xlu0 %5282
  %v5285 = vadd.f32 %v5279, %v5283
  %v5286 = vld [vmem:[#allocation3 + $0x50] sm:$0xff]
  %5288 = vrot.lane.b32.xlu0 %v5286, 44
  %v5289 = vpop.permute.xlu0 %5288
  %v5291 = vadd.f32 %v5285, %v5289
  %v5292 = vld [vmem:[#allocation3 + $0x40] sm:$0xff]
  %v5293 = vld [vmem:[#allocation3 + $0x48] sm:$0xff]
  %5296 = vrot.lane.b32.xlu0 %v5292, 16
  %v5297 = vpop.permute.xlu0 %5296
  %5298 = vrot.lane.b32.xlu0 %v5293, 16
  %v5299 = vpop.permute.xlu0 %5298
  %v5300 = vsel %vm5184, %v5297, %v5299
  %v5302 = vadd.f32 %v5291, %v5300
  %v5303 = vld [vmem:[#allocation3 + $0x38] sm:$0xff]
  %5305 = vrot.lane.b32.xlu0 %v5303, 116
  %v5306 = vpop.permute.xlu0 %5305
  %v5308 = vadd.f32 %v5302, %v5306
  %v5309 = vld [vmem:[#allocation3 + $0x28] sm:$0xff]
  %5311 = vrot.lane.b32.xlu0 %v5309, 88
  %v5312 = vpop.permute.xlu0 %5311
  %v5314 = vadd.f32 %v5308, %v5312
  %v5315 = vadd.f32 %v5314, %v5207
  %v5316 = vxor.u32 %v5315, 2147483648
  %v5317 = vmul.f32 %v5316, 1.442695
  %v5318 = vpow.pop %v5317
  %v5319 = vadd.f32 %v5318, 1.0
  %v5320 = vrcp.pop %v5319
  %v5321 = vmul.f32 1.0, %v5320
  %5323 = vrot.lane.b32.xlu0 %v5321, 56
  %v5324 = vpop.permute.xlu0 %5323
  %vm5326 = vcmask 687552
  %5327 = vst.msk [vmem:[%s7] sm:$0xff] %vm5326, %v5324
  %v5328 = vld [vmem:[#allocation3 + $0x90] sm:$0xff]
  %v5329 = vld [vmem:[#allocation3 + $0x80] sm:$0xff]
  %5331 = vrot.lane.b32.xlu0 %v5329, 100
  %v5332 = vpop.permute.xlu0 %5331
  %v5334 = vadd.f32 %v5328, %v5332
  %v5335 = vld [vmem:[#allocation3 + $0x70] sm:$0xff]
  %5337 = vrot.lane.b32.xlu0 %v5335, 72
  %v5338 = vpop.permute.xlu0 %5337
  %v5340 = vadd.f32 %v5334, %v5338
  %v5341 = vld [vmem:[#allocation3 + $0x60] sm:$0xff]
  %5343 = vrot.lane.b32.xlu0 %v5341, 44
  %v5344 = vpop.permute.xlu0 %5343
  %v5346 = vadd.f32 %v5340, %v5344
  %v5347 = vld [vmem:[#allocation3 + $0x50] sm:$0xff]
  %v5348 = vld [vmem:[#allocation3 + $0x58] sm:$0xff]
  %5351 = vrot.lane.b32.xlu0 %v5347, 16
  %v5352 = vpop.permute.xlu0 %5351
  %5353 = vrot.lane.b32.xlu0 %v5348, 16
  %v5354 = vpop.permute.xlu0 %5353
  %v5355 = vsel %vm5184, %v5352, %v5354
  %v5357 = vadd.f32 %v5346, %v5355
  %v5358 = vld [vmem:[#allocation3 + $0x48] sm:$0xff]
  %5360 = vrot.lane.b32.xlu0 %v5358, 116
  %v5361 = vpop.permute.xlu0 %5360
  %v5363 = vadd.f32 %v5357, %v5361
  %v5364 = vld [vmem:[#allocation3 + $0x38] sm:$0xff]
  %5366 = vrot.lane.b32.xlu0 %v5364, 88
  %v5367 = vpop.permute.xlu0 %5366
  %v5369 = vadd.f32 %v5363, %v5367
  %v5370 = vadd.f32 %v5369, %v5207
  %v5371 = vxor.u32 %v5370, 2147483648
  %v5372 = vmul.f32 %v5371, 1.442695
  %v5373 = vpow.pop %v5372
  %v5374 = vadd.f32 %v5373, 1.0
  %v5375 = vrcp.pop %v5374
  %v5376 = vmul.f32 1.0, %v5375
  %5378 = vrot.lane.b32.xlu0 %v5376, 84
  %v5379 = vpop.permute.xlu0 %5378
  %vm5381 = vcmask 917152
  %5382 = vst.msk [vmem:[%s7] sm:$0xff] %vm5381, %v5379
  %v5383 = vld [vmem:[#allocation3 + $0xa0] sm:$0xff]
  %v5384 = vld [vmem:[#allocation3 + $0x90] sm:$0xff]
  %5386 = vrot.lane.b32.xlu0 %v5384, 100
  %v5387 = vpop.permute.xlu0 %5386
  %v5389 = vadd.f32 %v5383, %v5387
  %v5390 = vld [vmem:[#allocation3 + $0x80] sm:$0xff]
  %5392 = vrot.lane.b32.xlu0 %v5390, 72
  %v5393 = vpop.permute.xlu0 %5392
  %v5395 = vadd.f32 %v5389, %v5393
  %v5396 = vld [vmem:[#allocation3 + $0x70] sm:$0xff]
  %5398 = vrot.lane.b32.xlu0 %v5396, 44
  %v5399 = vpop.permute.xlu0 %5398
  %v5401 = vadd.f32 %v5395, %v5399
  %v5402 = vld [vmem:[#allocation3 + $0x60] sm:$0xff]
  %v5403 = vld [vmem:[#allocation3 + $0x68] sm:$0xff]
  %5406 = vrot.lane.b32.xlu0 %v5402, 16
  %v5407 = vpop.permute.xlu0 %5406
  %5408 = vrot.lane.b32.xlu0 %v5403, 16
  %v5409 = vpop.permute.xlu0 %5408
  %v5410 = vsel %vm5184, %v5407, %v5409
  %v5412 = vadd.f32 %v5401, %v5410
  %v5413 = vld [vmem:[#allocation3 + $0x58] sm:$0xff]
  %5415 = vrot.lane.b32.xlu0 %v5413, 116
  %v5416 = vpop.permute.xlu0 %5415
  %v5418 = vadd.f32 %v5412, %v5416
  %v5419 = vld [vmem:[#allocation3 + $0x48] sm:$0xff]
  %5421 = vrot.lane.b32.xlu0 %v5419, 88
  %v5422 = vpop.permute.xlu0 %5421
  %v5424 = vadd.f32 %v5418, %v5422
  %v5425 = vadd.f32 %v5424, %v5207
  %v5426 = vxor.u32 %v5425, 2147483648
  %v5427 = vmul.f32 %v5426, 1.442695
  %v5428 = vpow.pop %v5427
  %v5429 = vadd.f32 %v5428, 1.0
  %v5430 = vrcp.pop %v5429
  %v5431 = vmul.f32 1.0, %v5430
  %5433 = vrot.lane.b32.xlu0 %v5431, 112
  %v5434 = vpop.permute.xlu0 %5433
  %vm5436 = vcmask 1048448
  %5437 = vst.msk [vmem:[%s7] sm:$0xff] %vm5436, %v5434
  %vm5438 = vcmask 97280
  %5439 = vst.msk [vmem:[%s7 + $0x8] sm:$0xff] %vm5438, %v5434
  %v5440 = vld [vmem:[#allocation3 + $0xb0] sm:$0xff]
  %v5441 = vld [vmem:[#allocation3 + $0xa0] sm:$0xff]
  %5443 = vrot.lane.b32.xlu0 %v5441, 100
  %v5444 = vpop.permute.xlu0 %5443
  %v5446 = vadd.f32 %v5440, %v5444
  %v5447 = vld [vmem:[#allocation3 + $0x90] sm:$0xff]
  %5449 = vrot.lane.b32.xlu0 %v5447, 72
  %v5450 = vpop.permute.xlu0 %5449
  %v5452 = vadd.f32 %v5446, %v5450
  %v5453 = vld [vmem:[#allocation3 + $0x80] sm:$0xff]
  %5455 = vrot.lane.b32.xlu0 %v5453, 44
  %v5456 = vpop.permute.xlu0 %5455
  %v5458 = vadd.f32 %v5452, %v5456
  %v5459 = vld [vmem:[#allocation3 + $0x70] sm:$0xff]
  %v5460 = vld [vmem:[#allocation3 + $0x78] sm:$0xff]
  %5463 = vrot.lane.b32.xlu0 %v5459, 16
  %v5464 = vpop.permute.xlu0 %5463
  %5465 = vrot.lane.b32.xlu0 %v5460, 16
  %v5466 = vpop.permute.xlu0 %5465
  %v5467 = vsel %vm5184, %v5464, %v5466
  %v5469 = vadd.f32 %v5458, %v5467
  %v5470 = vld [vmem:[#allocation3 + $0x68] sm:$0xff]
  %5472 = vrot.lane.b32.xlu0 %v5470, 116
  %v5473 = vpop.permute.xlu0 %5472
  %v5475 = vadd.f32 %v5469, %v5473
  %v5476 = vld [vmem:[#allocation3 + $0x58] sm:$0xff]
  %5478 = vrot.lane.b32.xlu0 %v5476, 88
  %v5479 = vpop.permute.xlu0 %5478
  %v5481 = vadd.f32 %v5475, %v5479
  %v5482 = vadd.f32 %v5481, %v5207
  %v5483 = vxor.u32 %v5482, 2147483648
  %v5484 = vmul.f32 %v5483, 1.442695
  %v5485 = vpow.pop %v5484
  %v5486 = vadd.f32 %v5485, 1.0
  %v5487 = vrcp.pop %v5486
  %v5488 = vmul.f32 1.0, %v5487
  %5490 = vrot.lane.b32.xlu0 %v5488, 12
  %v5491 = vpop.permute.xlu0 %5490
  %vm5493 = vcmask 326752
  %5494 = vst.msk [vmem:[%s7 + $0x8] sm:$0xff] %vm5493, %v5491
  %v5495 = vld [vmem:[#allocation3 + $0xc0] sm:$0xff]
  %v5496 = vld [vmem:[#allocation3 + $0xb0] sm:$0xff]
  %5498 = vrot.lane.b32.xlu0 %v5496, 100
  %v5499 = vpop.permute.xlu0 %5498
  %v5501 = vadd.f32 %v5495, %v5499
  %v5502 = vld [vmem:[#allocation3 + $0xa0] sm:$0xff]
  %5504 = vrot.lane.b32.xlu0 %v5502, 72
  %v5505 = vpop.permute.xlu0 %5504
  %v5507 = vadd.f32 %v5501, %v5505
  %v5508 = vld [vmem:[#allocation3 + $0x90] sm:$0xff]
  %5510 = vrot.lane.b32.xlu0 %v5508, 44
  %v5511 = vpop.permute.xlu0 %5510
  %v5513 = vadd.f32 %v5507, %v5511
  %v5514 = vld [vmem:[#allocation3 + $0x80] sm:$0xff]
  %v5515 = vld [vmem:[#allocation3 + $0x88] sm:$0xff]
  %5518 = vrot.lane.b32.xlu0 %v5514, 16
  %v5519 = vpop.permute.xlu0 %5518
  %5520 = vrot.lane.b32.xlu0 %v5515, 16
  %v5521 = vpop.permute.xlu0 %5520
  %v5522 = vsel %vm5184, %v5519, %v5521
  %v5524 = vadd.f32 %v5513, %v5522
  %v5525 = vld [vmem:[#allocation3 + $0x78] sm:$0xff]
  %5527 = vrot.lane.b32.xlu0 %v5525, 116
  %v5528 = vpop.permute.xlu0 %5527
  %v5530 = vadd.f32 %v5524, %v5528
  %v5531 = vld [vmem:[#allocation3 + $0x68] sm:$0xff]
  %5533 = vrot.lane.b32.xlu0 %v5531, 88
  %v5534 = vpop.permute.xlu0 %5533
  %v5536 = vadd.f32 %v5530, %v5534
  %v5537 = vadd.f32 %v5536, %v5207
  %v5538 = vxor.u32 %v5537, 2147483648
  %v5539 = vmul.f32 %v5538, 1.442695
  %v5540 = vpow.pop %v5539
  %v5541 = vadd.f32 %v5540, 1.0
  %v5542 = vrcp.pop %v5541
  %v5543 = vmul.f32 1.0, %v5542
  %5545 = vrot.lane.b32.xlu0 %v5543, 40
  %v5546 = vpop.permute.xlu0 %5545
  %vm5548 = vcmask 556352
  %5549 = vst.msk [vmem:[%s7 + $0x8] sm:$0xff] %vm5548, %v5546
  %v5550 = vld [vmem:[#allocation3 + $0xd0] sm:$0xff]
  %v5551 = vld [vmem:[#allocation3 + $0xc0] sm:$0xff]
  %5553 = vrot.lane.b32.xlu0 %v5551, 100
  %v5554 = vpop.permute.xlu0 %5553
  %v5556 = vadd.f32 %v5550, %v5554
  %v5557 = vld [vmem:[#allocation3 + $0xb0] sm:$0xff]
  %5559 = vrot.lane.b32.xlu0 %v5557, 72
  %v5560 = vpop.permute.xlu0 %5559
  %v5562 = vadd.f32 %v5556, %v5560
  %v5563 = vld [vmem:[#allocation3 + $0xa0] sm:$0xff]
  %5565 = vrot.lane.b32.xlu0 %v5563, 44
  %v5566 = vpop.permute.xlu0 %5565
  %v5568 = vadd.f32 %v5562, %v5566
  %v5569 = vld [vmem:[#allocation3 + $0x90] sm:$0xff]
  %v5570 = vld [vmem:[#allocation3 + $0x98] sm:$0xff]
  %5573 = vrot.lane.b32.xlu0 %v5569, 16
  %v5574 = vpop.permute.xlu0 %5573
  %5575 = vrot.lane.b32.xlu0 %v5570, 16
  %v5576 = vpop.permute.xlu0 %5575
  %v5577 = vsel %vm5184, %v5574, %v5576
  %v5579 = vadd.f32 %v5568, %v5577
  %v5580 = vld [vmem:[#allocation3 + $0x88] sm:$0xff]
  %5582 = vrot.lane.b32.xlu0 %v5580, 116
  %v5583 = vpop.permute.xlu0 %5582
  %v5585 = vadd.f32 %v5579, %v5583
  %v5586 = vld [vmem:[#allocation3 + $0x78] sm:$0xff]
  %5588 = vrot.lane.b32.xlu0 %v5586, 88
  %v5589 = vpop.permute.xlu0 %5588
  %v5591 = vadd.f32 %v5585, %v5589
  %v5592 = vadd.f32 %v5591, %v5207
  %v5593 = vxor.u32 %v5592, 2147483648
  %v5594 = vmul.f32 %v5593, 1.442695
  %v5595 = vpow.pop %v5594
  %v5596 = vadd.f32 %v5595, 1.0
  %v5597 = vrcp.pop %v5596
  %v5598 = vmul.f32 1.0, %v5597
  %5600 = vrot.lane.b32.xlu0 %v5598, 68
  %v5601 = vpop.permute.xlu0 %5600
  %vm5603 = vcmask 785952
  %5604 = vst.msk [vmem:[%s7 + $0x8] sm:$0xff] %vm5603, %v5601
  %v5605 = vld [vmem:[#allocation3 + $0xe0] sm:$0xff]
  %v5606 = vld [vmem:[#allocation3 + $0xd0] sm:$0xff]
  %5608 = vrot.lane.b32.xlu0 %v5606, 100
  %v5609 = vpop.permute.xlu0 %5608
  %v5611 = vadd.f32 %v5605, %v5609
  %v5612 = vld [vmem:[#allocation3 + $0xc0] sm:$0xff]
  %5614 = vrot.lane.b32.xlu0 %v5612, 72
  %v5615 = vpop.permute.xlu0 %5614
  %v5617 = vadd.f32 %v5611, %v5615
  %v5618 = vld [vmem:[#allocation3 + $0xb0] sm:$0xff]
  %5620 = vrot.lane.b32.xlu0 %v5618, 44
  %v5621 = vpop.permute.xlu0 %5620
  %v5623 = vadd.f32 %v5617, %v5621
  %v5624 = vld [vmem:[#allocation3 + $0xa0] sm:$0xff]
  %v5625 = vld [vmem:[#allocation3 + $0xa8] sm:$0xff]
  %5628 = vrot.lane.b32.xlu0 %v5624, 16
  %v5629 = vpop.permute.xlu0 %5628
  %5630 = vrot.lane.b32.xlu0 %v5625, 16
  %v5631 = vpop.permute.xlu0 %5630
  %v5632 = vsel %vm5184, %v5629, %v5631
  %v5634 = vadd.f32 %v5623, %v5632
  %v5635 = vld [vmem:[#allocation3 + $0x98] sm:$0xff]
  %5637 = vrot.lane.b32.xlu0 %v5635, 116
  %v5638 = vpop.permute.xlu0 %5637
  %v5640 = vadd.f32 %v5634, %v5638
  %v5641 = vld [vmem:[#allocation3 + $0x88] sm:$0xff]
  %5643 = vrot.lane.b32.xlu0 %v5641, 88
  %v5644 = vpop.permute.xlu0 %5643
  %v5646 = vadd.f32 %v5640, %v5644
  %v5647 = vadd.f32 %v5646, %v5207
  %v5648 = vxor.u32 %v5647, 2147483648
  %v5649 = vmul.f32 %v5648, 1.442695
  %v5650 = vpow.pop %v5649
  %v5651 = vadd.f32 %v5650, 1.0
  %v5652 = vrcp.pop %v5651
  %v5653 = vmul.f32 1.0, %v5652
  %5655 = vrot.lane.b32.xlu0 %v5653, 96
  %v5656 = vpop.permute.xlu0 %5655
  %vm5658 = vcmask 1015552
  %5659 = vst.msk [vmem:[%s7 + $0x8] sm:$0xff] %vm5658, %v5656
  %v5660 = vld [vmem:[#allocation3 + $0xf0] sm:$0xff]
  %v5661 = vld [vmem:[#allocation3 + $0xe0] sm:$0xff]
  %5663 = vrot.lane.b32.xlu0 %v5661, 100
  %v5664 = vpop.permute.xlu0 %5663
  %v5666 = vadd.f32 %v5660, %v5664
  %v5667 = vld [vmem:[#allocation3 + $0xd0] sm:$0xff]
  %5669 = vrot.lane.b32.xlu0 %v5667, 72
  %v5670 = vpop.permute.xlu0 %5669
  %v5672 = vadd.f32 %v5666, %v5670
  %v5673 = vld [vmem:[#allocation3 + $0xc0] sm:$0xff]
  %5675 = vrot.lane.b32.xlu0 %v5673, 44
  %v5676 = vpop.permute.xlu0 %5675
  %v5678 = vadd.f32 %v5672, %v5676
  %v5679 = vld [vmem:[#allocation3 + $0xb0] sm:$0xff]
  %v5680 = vld [vmem:[#allocation3 + $0xb8] sm:$0xff]
  %5683 = vrot.lane.b32.xlu0 %v5679, 16
  %v5684 = vpop.permute.xlu0 %5683
  %5685 = vrot.lane.b32.xlu0 %v5680, 16
  %v5686 = vpop.permute.xlu0 %5685
  %v5687 = vsel %vm5184, %v5684, %v5686
  %v5689 = vadd.f32 %v5678, %v5687
  %v5690 = vld [vmem:[#allocation3 + $0xa8] sm:$0xff]
  %5692 = vrot.lane.b32.xlu0 %v5690, 116
  %v5693 = vpop.permute.xlu0 %5692
  %v5695 = vadd.f32 %v5689, %v5693
  %v5696 = vld [vmem:[#allocation3 + $0x98] sm:$0xff]
  %5698 = vrot.lane.b32.xlu0 %v5696, 88
  %v5699 = vpop.permute.xlu0 %5698
  %v5701 = vadd.f32 %v5695, %v5699
  %v5702 = vadd.f32 %v5701, %v5207
  %v5703 = vxor.u32 %v5702, 2147483648
  %v5704 = vmul.f32 %v5703, 1.442695
  %v5705 = vpow.pop %v5704
  %v5706 = vadd.f32 %v5705, 1.0
  %v5707 = vrcp.pop %v5706
  %v5708 = vmul.f32 1.0, %v5707
  %5710 = vrot.lane.b32.xlu0 %v5708, 124
  %v5711 = vpop.permute.xlu0 %5710
  %vm5713 = vcmask 1048544
  %5714 = vst.msk [vmem:[%s7 + $0x8] sm:$0xff] %vm5713, %v5711
  %vm5715 = vcmask 195584
  %5716 = vst.msk [vmem:[%s7 + $0x10] sm:$0xff] %vm5715, %v5711
  %v5717 = vld [vmem:[#allocation3 + $0x100] sm:$0xff]
  %v5718 = vld [vmem:[#allocation3 + $0xf0] sm:$0xff]
  %5720 = vrot.lane.b32.xlu0 %v5718, 100
  %v5721 = vpop.permute.xlu0 %5720
  %v5723 = vadd.f32 %v5717, %v5721
  %v5724 = vld [vmem:[#allocation3 + $0xe0] sm:$0xff]
  %5726 = vrot.lane.b32.xlu0 %v5724, 72
  %v5727 = vpop.permute.xlu0 %5726
  %v5729 = vadd.f32 %v5723, %v5727
  %v5730 = vld [vmem:[#allocation3 + $0xd0] sm:$0xff]
  %5732 = vrot.lane.b32.xlu0 %v5730, 44
  %v5733 = vpop.permute.xlu0 %5732
  %v5735 = vadd.f32 %v5729, %v5733
  %v5736 = vld [vmem:[#allocation3 + $0xc0] sm:$0xff]
  %v5737 = vld [vmem:[#allocation3 + $0xc8] sm:$0xff]
  %5740 = vrot.lane.b32.xlu0 %v5736, 16
  %v5741 = vpop.permute.xlu0 %5740
  %5742 = vrot.lane.b32.xlu0 %v5737, 16
  %v5743 = vpop.permute.xlu0 %5742
  %v5744 = vsel %vm5184, %v5741, %v5743
  %v5746 = vadd.f32 %v5735, %v5744
  %v5747 = vld [vmem:[#allocation3 + $0xb8] sm:$0xff]
  %5749 = vrot.lane.b32.xlu0 %v5747, 116
  %v5750 = vpop.permute.xlu0 %5749
  %v5752 = vadd.f32 %v5746, %v5750
  %v5753 = vld [vmem:[#allocation3 + $0xa8] sm:$0xff]
  %5755 = vrot.lane.b32.xlu0 %v5753, 88
  %v5756 = vpop.permute.xlu0 %5755
  %v5758 = vadd.f32 %v5752, %v5756
  %v5759 = vadd.f32 %v5758, %v5207
  %v5760 = vxor.u32 %v5759, 2147483648
  %v5761 = vmul.f32 %v5760, 1.442695
  %v5762 = vpow.pop %v5761
  %v5763 = vadd.f32 %v5762, 1.0
  %v5764 = vrcp.pop %v5763
  %v5765 = vmul.f32 1.0, %v5764
  %5767 = vrot.lane.b32.xlu0 %v5765, 24
  %v5768 = vpop.permute.xlu0 %5767
  %vm5770 = vcmask 425152
  %5771 = vst.msk [vmem:[%s7 + $0x10] sm:$0xff] %vm5770, %v5768
  %v5772 = vld [vmem:[#allocation3 + $0x110] sm:$0xff]
  %v5773 = vld [vmem:[#allocation3 + $0x100] sm:$0xff]
  %5775 = vrot.lane.b32.xlu0 %v5773, 100
  %v5776 = vpop.permute.xlu0 %5775
  %v5778 = vadd.f32 %v5772, %v5776
  %v5779 = vld [vmem:[#allocation3 + $0xf0] sm:$0xff]
  %5781 = vrot.lane.b32.xlu0 %v5779, 72
  %v5782 = vpop.permute.xlu0 %5781
  %v5784 = vadd.f32 %v5778, %v5782
  %v5785 = vld [vmem:[#allocation3 + $0xe0] sm:$0xff]
  %5787 = vrot.lane.b32.xlu0 %v5785, 44
  %v5788 = vpop.permute.xlu0 %5787
  %v5790 = vadd.f32 %v5784, %v5788
  %v5791 = vld [vmem:[#allocation3 + $0xd0] sm:$0xff]
  %v5792 = vld [vmem:[#allocation3 + $0xd8] sm:$0xff]
  %5795 = vrot.lane.b32.xlu0 %v5791, 16
  %v5796 = vpop.permute.xlu0 %5795
  %5797 = vrot.lane.b32.xlu0 %v5792, 16
  %v5798 = vpop.permute.xlu0 %5797
  %v5799 = vsel %vm5184, %v5796, %v5798
  %v5801 = vadd.f32 %v5790, %v5799
  %v5802 = vld [vmem:[#allocation3 + $0xc8] sm:$0xff]
  %5804 = vrot.lane.b32.xlu0 %v5802, 116
  %v5805 = vpop.permute.xlu0 %5804
  %v5807 = vadd.f32 %v5801, %v5805
  %v5808 = vld [vmem:[#allocation3 + $0xb8] sm:$0xff]
  %5810 = vrot.lane.b32.xlu0 %v5808, 88
  %v5811 = vpop.permute.xlu0 %5810
  %v5813 = vadd.f32 %v5807, %v5811
  %v5814 = vadd.f32 %v5813, %v5207
  %v5815 = vxor.u32 %v5814, 2147483648
  %v5816 = vmul.f32 %v5815, 1.442695
  %v5817 = vpow.pop %v5816
  %v5818 = vadd.f32 %v5817, 1.0
  %v5819 = vrcp.pop %v5818
  %v5820 = vmul.f32 1.0, %v5819
  %5822 = vrot.lane.b32.xlu0 %v5820, 52
  %v5823 = vpop.permute.xlu0 %5822
  %vm5825 = vcmask 654752
  %5826 = vst.msk [vmem:[%s7 + $0x10] sm:$0xff] %vm5825, %v5823
  %v5827 = vld [vmem:[#allocation3 + $0x120] sm:$0xff]
  %v5828 = vld [vmem:[#allocation3 + $0x110] sm:$0xff]
  %5830 = vrot.lane.b32.xlu0 %v5828, 100
  %v5831 = vpop.permute.xlu0 %5830
  %v5833 = vadd.f32 %v5827, %v5831
  %v5834 = vld [vmem:[#allocation3 + $0x100] sm:$0xff]
  %5836 = vrot.lane.b32.xlu0 %v5834, 72
  %v5837 = vpop.permute.xlu0 %5836
  %v5839 = vadd.f32 %v5833, %v5837
  %v5840 = vld [vmem:[#allocation3 + $0xf0] sm:$0xff]
  %5842 = vrot.lane.b32.xlu0 %v5840, 44
  %v5843 = vpop.permute.xlu0 %5842
  %v5845 = vadd.f32 %v5839, %v5843
  %v5846 = vld [vmem:[#allocation3 + $0xe0] sm:$0xff]
  %v5847 = vld [vmem:[#allocation3 + $0xe8] sm:$0xff]
  %5850 = vrot.lane.b32.xlu0 %v5846, 16
  %v5851 = vpop.permute.xlu0 %5850
  %5852 = vrot.lane.b32.xlu0 %v5847, 16
  %v5853 = vpop.permute.xlu0 %5852
  %v5854 = vsel %vm5184, %v5851, %v5853
  %v5856 = vadd.f32 %v5845, %v5854
  %v5857 = vld [vmem:[#allocation3 + $0xd8] sm:$0xff]
  %5859 = vrot.lane.b32.xlu0 %v5857, 116
  %v5860 = vpop.permute.xlu0 %5859
  %v5862 = vadd.f32 %v5856, %v5860
  %v5863 = vld [vmem:[#allocation3 + $0xc8] sm:$0xff]
  %5865 = vrot.lane.b32.xlu0 %v5863, 88
  %v5866 = vpop.permute.xlu0 %5865
  %v5868 = vadd.f32 %v5862, %v5866
  %v5869 = vadd.f32 %v5868, %v5207
  %v5870 = vxor.u32 %v5869, 2147483648
  %v5871 = vmul.f32 %v5870, 1.442695
  %v5872 = vpow.pop %v5871
  %v5873 = vadd.f32 %v5872, 1.0
  %v5874 = vrcp.pop %v5873
  %v5875 = vmul.f32 1.0, %v5874
  %5877 = vrot.lane.b32.xlu0 %v5875, 80
  %v5878 = vpop.permute.xlu0 %5877
  %vm5880 = vcmask 884352
  %5881 = vst.msk [vmem:[%s7 + $0x10] sm:$0xff] %vm5880, %v5878
  %v5882 = vld [vmem:[#allocation3 + $0x130] sm:$0xff]
  %v5883 = vld [vmem:[#allocation3 + $0x120] sm:$0xff]
  %5885 = vrot.lane.b32.xlu0 %v5883, 100
  %v5886 = vpop.permute.xlu0 %5885
  %v5888 = vadd.f32 %v5882, %v5886
  %v5889 = vld [vmem:[#allocation3 + $0x110] sm:$0xff]
  %5891 = vrot.lane.b32.xlu0 %v5889, 72
  %v5892 = vpop.permute.xlu0 %5891
  %v5894 = vadd.f32 %v5888, %v5892
  %v5895 = vld [vmem:[#allocation3 + $0x100] sm:$0xff]
  %5897 = vrot.lane.b32.xlu0 %v5895, 44
  %v5898 = vpop.permute.xlu0 %5897
  %v5900 = vadd.f32 %v5894, %v5898
  %v5901 = vld [vmem:[#allocation3 + $0xf0] sm:$0xff]
  %v5902 = vld [vmem:[#allocation3 + $0xf8] sm:$0xff]
  %5905 = vrot.lane.b32.xlu0 %v5901, 16
  %v5906 = vpop.permute.xlu0 %5905
  %5907 = vrot.lane.b32.xlu0 %v5902, 16
  %v5908 = vpop.permute.xlu0 %5907
  %v5909 = vsel %vm5184, %v5906, %v5908
  %v5911 = vadd.f32 %v5900, %v5909
  %v5912 = vld [vmem:[#allocation3 + $0xe8] sm:$0xff]
  %5914 = vrot.lane.b32.xlu0 %v5912, 116
  %v5915 = vpop.permute.xlu0 %5914
  %v5917 = vadd.f32 %v5911, %v5915
  %v5918 = vld [vmem:[#allocation3 + $0xd8] sm:$0xff]
  %5920 = vrot.lane.b32.xlu0 %v5918, 88
  %v5921 = vpop.permute.xlu0 %5920
  %v5923 = vadd.f32 %v5917, %v5921
  %v5924 = vadd.f32 %v5923, %v5207
  %v5925 = vxor.u32 %v5924, 2147483648
  %v5926 = vmul.f32 %v5925, 1.442695
  %v5927 = vpow.pop %v5926
  %v5928 = vadd.f32 %v5927, 1.0
  %v5929 = vrcp.pop %v5928
  %v5930 = vmul.f32 1.0, %v5929
  %5932 = vrot.lane.b32.xlu0 %v5930, 108
  %v5933 = vpop.permute.xlu0 %5932
  %vm5935 = vcmask 1048416
  %5936 = vst.msk [vmem:[%s7 + $0x10] sm:$0xff] %vm5935, %v5933
  %5937 = vst.msk [vmem:[%s7 + $0x18] sm:$0xff] %vm4651, %v5933
  %v5938 = vld [vmem:[#allocation3 + $0x140] sm:$0xff]
  %v5939 = vld [vmem:[#allocation3 + $0x130] sm:$0xff]
  %5941 = vrot.lane.b32.xlu0 %v5939, 100
  %v5942 = vpop.permute.xlu0 %5941
  %v5944 = vadd.f32 %v5938, %v5942
  %v5945 = vld [vmem:[#allocation3 + $0x120] sm:$0xff]
  %5947 = vrot.lane.b32.xlu0 %v5945, 72
  %v5948 = vpop.permute.xlu0 %5947
  %v5950 = vadd.f32 %v5944, %v5948
  %v5951 = vld [vmem:[#allocation3 + $0x110] sm:$0xff]
  %5953 = vrot.lane.b32.xlu0 %v5951, 44
  %v5954 = vpop.permute.xlu0 %5953
  %v5956 = vadd.f32 %v5950, %v5954
  %v5957 = vld [vmem:[#allocation3 + $0x100] sm:$0xff]
  %v5958 = vld [vmem:[#allocation3 + $0x108] sm:$0xff]
  %5961 = vrot.lane.b32.xlu0 %v5957, 16
  %v5962 = vpop.permute.xlu0 %5961
  %5963 = vrot.lane.b32.xlu0 %v5958, 16
  %v5964 = vpop.permute.xlu0 %5963
  %v5965 = vsel %vm5184, %v5962, %v5964
  %v5967 = vadd.f32 %v5956, %v5965
  %v5968 = vld [vmem:[#allocation3 + $0xf8] sm:$0xff]
  %5970 = vrot.lane.b32.xlu0 %v5968, 116
  %v5971 = vpop.permute.xlu0 %5970
  %v5973 = vadd.f32 %v5967, %v5971
  %v5974 = vld [vmem:[#allocation3 + $0xe8] sm:$0xff]
  %5976 = vrot.lane.b32.xlu0 %v5974, 88
  %v5977 = vpop.permute.xlu0 %5976
  %v5979 = vadd.f32 %v5973, %v5977
  %v5980 = vadd.f32 %v5979, %v5207
  %v5981 = vxor.u32 %v5980, 2147483648
  %v5982 = vmul.f32 %v5981, 1.442695
  %v5983 = vpow.pop %v5982
  %v5984 = vadd.f32 %v5983, 1.0
  %v5985 = vrcp.pop %v5984
  %v5986 = vmul.f32 1.0, %v5985
  %5988 = vrot.lane.b32.xlu0 %v5986, 8
  %v5989 = vpop.permute.xlu0 %5988
  %vm5991 = vcmask 293952
  %5992 = vst.msk [vmem:[%s7 + $0x18] sm:$0xff] %vm5991, %v5989
  %v5993 = vld [vmem:[#allocation3 + $0x150] sm:$0xff]
  %v5994 = vld [vmem:[#allocation3 + $0x140] sm:$0xff]
  %5996 = vrot.lane.b32.xlu0 %v5994, 100
  %v5997 = vpop.permute.xlu0 %5996
  %v5999 = vadd.f32 %v5993, %v5997
  %v6000 = vld [vmem:[#allocation3 + $0x130] sm:$0xff]
  %6002 = vrot.lane.b32.xlu0 %v6000, 72
  %v6003 = vpop.permute.xlu0 %6002
  %v6005 = vadd.f32 %v5999, %v6003
  %v6006 = vld [vmem:[#allocation3 + $0x120] sm:$0xff]
  %6008 = vrot.lane.b32.xlu0 %v6006, 44
  %v6009 = vpop.permute.xlu0 %6008
  %v6011 = vadd.f32 %v6005, %v6009
  %v6012 = vld [vmem:[#allocation3 + $0x110] sm:$0xff]
  %v6013 = vld [vmem:[#allocation3 + $0x118] sm:$0xff]
  %6016 = vrot.lane.b32.xlu0 %v6012, 16
  %v6017 = vpop.permute.xlu0 %6016
  %6018 = vrot.lane.b32.xlu0 %v6013, 16
  %v6019 = vpop.permute.xlu0 %6018
  %v6020 = vsel %vm5184, %v6017, %v6019
  %v6022 = vadd.f32 %v6011, %v6020
  %v6023 = vld [vmem:[#allocation3 + $0x108] sm:$0xff]
  %6025 = vrot.lane.b32.xlu0 %v6023, 116
  %v6026 = vpop.permute.xlu0 %6025
  %v6028 = vadd.f32 %v6022, %v6026
  %v6029 = vld [vmem:[#allocation3 + $0xf8] sm:$0xff]
  %6031 = vrot.lane.b32.xlu0 %v6029, 88
  %v6032 = vpop.permute.xlu0 %6031
  %v6034 = vadd.f32 %v6028, %v6032
  %v6035 = vadd.f32 %v6034, %v5207
  %v6036 = vxor.u32 %v6035, 2147483648
  %v6037 = vmul.f32 %v6036, 1.442695
  %v6038 = vpow.pop %v6037
  %v6039 = vadd.f32 %v6038, 1.0
  %v6040 = vrcp.pop %v6039
  %v6041 = vmul.f32 1.0, %v6040
  %6043 = vrot.lane.b32.xlu0 %v6041, 36
  %v6044 = vpop.permute.xlu0 %6043
  %vm6046 = vcmask 523552
  %6047 = vst.msk [vmem:[%s7 + $0x18] sm:$0xff] %vm6046, %v6044
  %v6048 = vld [vmem:[#allocation3 + $0x160] sm:$0xff]
  %v6049 = vld [vmem:[#allocation3 + $0x150] sm:$0xff]
  %6051 = vrot.lane.b32.xlu0 %v6049, 100
  %v6052 = vpop.permute.xlu0 %6051
  %v6054 = vadd.f32 %v6048, %v6052
  %v6055 = vld [vmem:[#allocation3 + $0x140] sm:$0xff]
  %6057 = vrot.lane.b32.xlu0 %v6055, 72
  %v6058 = vpop.permute.xlu0 %6057
  %v6060 = vadd.f32 %v6054, %v6058
  %v6061 = vld [vmem:[#allocation3 + $0x130] sm:$0xff]
  %6063 = vrot.lane.b32.xlu0 %v6061, 44
  %v6064 = vpop.permute.xlu0 %6063
  %v6066 = vadd.f32 %v6060, %v6064
  %v6067 = vld [vmem:[#allocation3 + $0x120] sm:$0xff]
  %v6068 = vld [vmem:[#allocation3 + $0x128] sm:$0xff]
  %6071 = vrot.lane.b32.xlu0 %v6067, 16
  %v6072 = vpop.permute.xlu0 %6071
  %6073 = vrot.lane.b32.xlu0 %v6068, 16
  %v6074 = vpop.permute.xlu0 %6073
  %v6075 = vsel %vm5184, %v6072, %v6074
  %v6077 = vadd.f32 %v6066, %v6075
  %v6078 = vld [vmem:[#allocation3 + $0x118] sm:$0xff]
  %6080 = vrot.lane.b32.xlu0 %v6078, 116
  %v6081 = vpop.permute.xlu0 %6080
  %v6083 = vadd.f32 %v6077, %v6081
  %v6084 = vld [vmem:[#allocation3 + $0x108] sm:$0xff]
  %6086 = vrot.lane.b32.xlu0 %v6084, 88
  %v6087 = vpop.permute.xlu0 %6086
  %v6089 = vadd.f32 %v6083, %v6087
  %v6090 = vadd.f32 %v6089, %v5207
  %v6091 = vxor.u32 %v6090, 2147483648
  %v6092 = vmul.f32 %v6091, 1.442695
  %v6093 = vpow.pop %v6092
  %v6094 = vadd.f32 %v6093, 1.0
  %v6095 = vrcp.pop %v6094
  %v6096 = vmul.f32 1.0, %v6095
  %6098 = vrot.lane.b32.xlu0 %v6096, 64
  %v6099 = vpop.permute.xlu0 %6098
  %vm6101 = vcmask 753152
  %6102 = vst.msk [vmem:[%s7 + $0x18] sm:$0xff] %vm6101, %v6099
  %v6103 = vld [vmem:[#allocation3 + $0x170] sm:$0xff]
  %v6104 = vld [vmem:[#allocation3 + $0x160] sm:$0xff]
  %6106 = vrot.lane.b32.xlu0 %v6104, 100
  %v6107 = vpop.permute.xlu0 %6106
  %v6109 = vadd.f32 %v6103, %v6107
  %v6110 = vld [vmem:[#allocation3 + $0x150] sm:$0xff]
  %6112 = vrot.lane.b32.xlu0 %v6110, 72
  %v6113 = vpop.permute.xlu0 %6112
  %v6115 = vadd.f32 %v6109, %v6113
  %v6116 = vld [vmem:[#allocation3 + $0x140] sm:$0xff]
  %6118 = vrot.lane.b32.xlu0 %v6116, 44
  %v6119 = vpop.permute.xlu0 %6118
  %v6121 = vadd.f32 %v6115, %v6119
  %v6122 = vld [vmem:[#allocation3 + $0x130] sm:$0xff]
  %v6123 = vld [vmem:[#allocation3 + $0x138] sm:$0xff]
  %6126 = vrot.lane.b32.xlu0 %v6122, 16
  %v6127 = vpop.permute.xlu0 %6126
  %6128 = vrot.lane.b32.xlu0 %v6123, 16
  %v6129 = vpop.permute.xlu0 %6128
  %v6130 = vsel %vm5184, %v6127, %v6129
  %v6132 = vadd.f32 %v6121, %v6130
  %v6133 = vld [vmem:[#allocation3 + $0x128] sm:$0xff]
  %6135 = vrot.lane.b32.xlu0 %v6133, 116
  %v6136 = vpop.permute.xlu0 %6135
  %v6138 = vadd.f32 %v6132, %v6136
  %v6139 = vld [vmem:[#allocation3 + $0x118] sm:$0xff]
  %6141 = vrot.lane.b32.xlu0 %v6139, 88
  %v6142 = vpop.permute.xlu0 %6141
  %v6144 = vadd.f32 %v6138, %v6142
  %v6145 = vadd.f32 %v6144, %v5207
  %v6146 = vxor.u32 %v6145, 2147483648
  %v6147 = vmul.f32 %v6146, 1.442695
  %v6148 = vpow.pop %v6147
  %v6149 = vadd.f32 %v6148, 1.0
  %v6150 = vrcp.pop %v6149
  %v6151 = vmul.f32 1.0, %v6150
  %6153 = vrot.lane.b32.xlu0 %v6151, 92
  %v6154 = vpop.permute.xlu0 %6153
  %vm6156 = vcmask 982752
  %6157 = vst.msk [vmem:[%s7 + $0x18] sm:$0xff] %vm6156, %v6154
  %v6158 = vld [vmem:[#allocation3 + $0x180] sm:$0xff]
  %v6159 = vld [vmem:[#allocation3 + $0x170] sm:$0xff]
  %6161 = vrot.lane.b32.xlu0 %v6159, 100
  %v6162 = vpop.permute.xlu0 %6161
  %v6164 = vadd.f32 %v6158, %v6162
  %v6165 = vld [vmem:[#allocation3 + $0x160] sm:$0xff]
  %6167 = vrot.lane.b32.xlu0 %v6165, 72
  %v6168 = vpop.permute.xlu0 %6167
  %v6170 = vadd.f32 %v6164, %v6168
  %v6171 = vld [vmem:[#allocation3 + $0x150] sm:$0xff]
  %6173 = vrot.lane.b32.xlu0 %v6171, 44
  %v6174 = vpop.permute.xlu0 %6173
  %v6176 = vadd.f32 %v6170, %v6174
  %v6177 = vld [vmem:[#allocation3 + $0x140] sm:$0xff]
  %v6178 = vld [vmem:[#allocation3 + $0x148] sm:$0xff]
  %6181 = vrot.lane.b32.xlu0 %v6177, 16
  %v6182 = vpop.permute.xlu0 %6181
  %6183 = vrot.lane.b32.xlu0 %v6178, 16
  %v6184 = vpop.permute.xlu0 %6183
  %v6185 = vsel %vm5184, %v6182, %v6184
  %v6187 = vadd.f32 %v6176, %v6185
  %v6188 = vld [vmem:[#allocation3 + $0x138] sm:$0xff]
  %6190 = vrot.lane.b32.xlu0 %v6188, 116
  %v6191 = vpop.permute.xlu0 %6190
  %v6193 = vadd.f32 %v6187, %v6191
  %v6194 = vld [vmem:[#allocation3 + $0x128] sm:$0xff]
  %6196 = vrot.lane.b32.xlu0 %v6194, 88
  %v6197 = vpop.permute.xlu0 %6196
  %v6199 = vadd.f32 %v6193, %v6197
  %v6200 = vadd.f32 %v6199, %v5207
  %v6201 = vxor.u32 %v6200, 2147483648
  %v6202 = vmul.f32 %v6201, 1.442695
  %v6203 = vpow.pop %v6202
  %v6204 = vadd.f32 %v6203, 1.0
  %v6205 = vrcp.pop %v6204
  %v6206 = vmul.f32 1.0, %v6205
  %6208 = vrot.lane.b32.xlu0 %v6206, 120
  %v6209 = vpop.permute.xlu0 %6208
  %vm6211 = vcmask 1048512
  %6212 = vst.msk [vmem:[%s7 + $0x18] sm:$0xff] %vm6211, %v6209
  %vm6213 = vcmask 162816
  %6214 = vst.msk [vmem:[%s7 + $0x20] sm:$0xff] %vm6213, %v6209
  %v6215 = vld [vmem:[#allocation3 + $0x190] sm:$0xff]
  %v6216 = vld [vmem:[#allocation3 + $0x180] sm:$0xff]
  %6218 = vrot.lane.b32.xlu0 %v6216, 100
  %v6219 = vpop.permute.xlu0 %6218
  %v6221 = vadd.f32 %v6215, %v6219
  %v6222 = vld [vmem:[#allocation3 + $0x170] sm:$0xff]
  %6224 = vrot.lane.b32.xlu0 %v6222, 72
  %v6225 = vpop.permute.xlu0 %6224
  %v6227 = vadd.f32 %v6221, %v6225
  %v6228 = vld [vmem:[#allocation3 + $0x160] sm:$0xff]
  %6230 = vrot.lane.b32.xlu0 %v6228, 44
  %v6231 = vpop.permute.xlu0 %6230
  %v6233 = vadd.f32 %v6227, %v6231
  %v6234 = vld [vmem:[#allocation3 + $0x150] sm:$0xff]
  %v6235 = vld [vmem:[#allocation3 + $0x158] sm:$0xff]
  %6238 = vrot.lane.b32.xlu0 %v6234, 16
  %v6239 = vpop.permute.xlu0 %6238
  %6240 = vrot.lane.b32.xlu0 %v6235, 16
  %v6241 = vpop.permute.xlu0 %6240
  %v6242 = vsel %vm5184, %v6239, %v6241
  %v6244 = vadd.f32 %v6233, %v6242
  %v6245 = vld [vmem:[#allocation3 + $0x148] sm:$0xff]
  %6247 = vrot.lane.b32.xlu0 %v6245, 116
  %v6248 = vpop.permute.xlu0 %6247
  %v6250 = vadd.f32 %v6244, %v6248
  %v6251 = vld [vmem:[#allocation3 + $0x138] sm:$0xff]
  %6253 = vrot.lane.b32.xlu0 %v6251, 88
  %v6254 = vpop.permute.xlu0 %6253
  %v6256 = vadd.f32 %v6250, %v6254
  %v6257 = vadd.f32 %v6256, %v5207
  %v6258 = vxor.u32 %v6257, 2147483648
  %v6259 = vmul.f32 %v6258, 1.442695
  %v6260 = vpow.pop %v6259
  %v6261 = vadd.f32 %v6260, 1.0
  %v6262 = vrcp.pop %v6261
  %v6263 = vmul.f32 1.0, %v6262
  %6265 = vrot.lane.b32.xlu0 %v6263, 20
  %v6266 = vpop.permute.xlu0 %6265
  %vm6268 = vcmask 392352
  %6269 = vst.msk [vmem:[%s7 + $0x20] sm:$0xff] %vm6268, %v6266
  %v6270 = vld [vmem:[#allocation3 + $0x1a0] sm:$0xff]
  %v6271 = vld [vmem:[#allocation3 + $0x190] sm:$0xff]
  %6273 = vrot.lane.b32.xlu0 %v6271, 100
  %v6274 = vpop.permute.xlu0 %6273
  %v6276 = vadd.f32 %v6270, %v6274
  %v6277 = vld [vmem:[#allocation3 + $0x180] sm:$0xff]
  %6279 = vrot.lane.b32.xlu0 %v6277, 72
  %v6280 = vpop.permute.xlu0 %6279
  %v6282 = vadd.f32 %v6276, %v6280
  %v6283 = vld [vmem:[#allocation3 + $0x170] sm:$0xff]
  %6285 = vrot.lane.b32.xlu0 %v6283, 44
  %v6286 = vpop.permute.xlu0 %6285
  %v6288 = vadd.f32 %v6282, %v6286
  %v6289 = vld [vmem:[#allocation3 + $0x160] sm:$0xff]
  %v6290 = vld [vmem:[#allocation3 + $0x168] sm:$0xff]
  %6293 = vrot.lane.b32.xlu0 %v6289, 16
  %v6294 = vpop.permute.xlu0 %6293
  %6295 = vrot.lane.b32.xlu0 %v6290, 16
  %v6296 = vpop.permute.xlu0 %6295
  %v6297 = vsel %vm5184, %v6294, %v6296
  %v6299 = vadd.f32 %v6288, %v6297
  %v6300 = vld [vmem:[#allocation3 + $0x158] sm:$0xff]
  %6302 = vrot.lane.b32.xlu0 %v6300, 116
  %v6303 = vpop.permute.xlu0 %6302
  %v6305 = vadd.f32 %v6299, %v6303
  %v6306 = vld [vmem:[#allocation3 + $0x148] sm:$0xff]
  %6308 = vrot.lane.b32.xlu0 %v6306, 88
  %v6309 = vpop.permute.xlu0 %6308
  %v6311 = vadd.f32 %v6305, %v6309
  %v6312 = vadd.f32 %v6311, %v5207
  %v6313 = vxor.u32 %v6312, 2147483648
  %v6314 = vmul.f32 %v6313, 1.442695
  %v6315 = vpow.pop %v6314
  %v6316 = vadd.f32 %v6315, 1.0
  %v6317 = vrcp.pop %v6316
  %v6318 = vmul.f32 1.0, %v6317
  %6320 = vrot.lane.b32.xlu0 %v6318, 48
  %v6321 = vpop.permute.xlu0 %6320
  %vm6323 = vcmask 621952
  %6324 = vst.msk [vmem:[%s7 + $0x20] sm:$0xff] %vm6323, %v6321
  %v6325 = vld [vmem:[#allocation3 + $0x1b0] sm:$0xff]
  %v6326 = vld [vmem:[#allocation3 + $0x1a0] sm:$0xff]
  %6328 = vrot.lane.b32.xlu0 %v6326, 100
  %v6329 = vpop.permute.xlu0 %6328
  %v6331 = vadd.f32 %v6325, %v6329
  %v6332 = vld [vmem:[#allocation3 + $0x190] sm:$0xff]
  %6334 = vrot.lane.b32.xlu0 %v6332, 72
  %v6335 = vpop.permute.xlu0 %6334
  %v6337 = vadd.f32 %v6331, %v6335
  %v6338 = vld [vmem:[#allocation3 + $0x180] sm:$0xff]
  %6340 = vrot.lane.b32.xlu0 %v6338, 44
  %v6341 = vpop.permute.xlu0 %6340
  %v6343 = vadd.f32 %v6337, %v6341
  %v6344 = vld [vmem:[#allocation3 + $0x170] sm:$0xff]
  %v6345 = vld [vmem:[#allocation3 + $0x178] sm:$0xff]
  %6348 = vrot.lane.b32.xlu0 %v6344, 16
  %v6349 = vpop.permute.xlu0 %6348
  %6350 = vrot.lane.b32.xlu0 %v6345, 16
  %v6351 = vpop.permute.xlu0 %6350
  %v6352 = vsel %vm5184, %v6349, %v6351
  %v6354 = vadd.f32 %v6343, %v6352
  %v6355 = vld [vmem:[#allocation3 + $0x168] sm:$0xff]
  %6357 = vrot.lane.b32.xlu0 %v6355, 116
  %v6358 = vpop.permute.xlu0 %6357
  %v6360 = vadd.f32 %v6354, %v6358
  %v6361 = vld [vmem:[#allocation3 + $0x158] sm:$0xff]
  %6363 = vrot.lane.b32.xlu0 %v6361, 88
  %v6364 = vpop.permute.xlu0 %6363
  %v6366 = vadd.f32 %v6360, %v6364
  %v6367 = vadd.f32 %v6366, %v5207
  %v6368 = vxor.u32 %v6367, 2147483648
  %v6369 = vmul.f32 %v6368, 1.442695
  %v6370 = vpow.pop %v6369
  %v6371 = vadd.f32 %v6370, 1.0
  %v6372 = vrcp.pop %v6371
  %v6373 = vmul.f32 1.0, %v6372
  %6375 = vrot.lane.b32.xlu0 %v6373, 76
  %v6376 = vpop.permute.xlu0 %6375
  %vm6378 = vcmask 851552
  %6379 = vst.msk [vmem:[%s7 + $0x20] sm:$0xff] %vm6378, %v6376
  %v6380 = vld [vmem:[#allocation3 + $0x1c0] sm:$0xff]
  %v6381 = vld [vmem:[#allocation3 + $0x1b0] sm:$0xff]
  %6383 = vrot.lane.b32.xlu0 %v6381, 100
  %v6384 = vpop.permute.xlu0 %6383
  %v6386 = vadd.f32 %v6380, %v6384
  %v6387 = vld [vmem:[#allocation3 + $0x1a0] sm:$0xff]
  %6389 = vrot.lane.b32.xlu0 %v6387, 72
  %v6390 = vpop.permute.xlu0 %6389
  %v6392 = vadd.f32 %v6386, %v6390
  %v6393 = vld [vmem:[#allocation3 + $0x190] sm:$0xff]
  %6395 = vrot.lane.b32.xlu0 %v6393, 44
  %v6396 = vpop.permute.xlu0 %6395
  %v6398 = vadd.f32 %v6392, %v6396
  %v6399 = vld [vmem:[#allocation3 + $0x180] sm:$0xff]
  %v6400 = vld [vmem:[#allocation3 + $0x188] sm:$0xff]
  %6403 = vrot.lane.b32.xlu0 %v6399, 16
  %v6404 = vpop.permute.xlu0 %6403
  %6405 = vrot.lane.b32.xlu0 %v6400, 16
  %v6406 = vpop.permute.xlu0 %6405
  %v6407 = vsel %vm5184, %v6404, %v6406
  %v6409 = vadd.f32 %v6398, %v6407
  %v6410 = vld [vmem:[#allocation3 + $0x178] sm:$0xff]
  %6412 = vrot.lane.b32.xlu0 %v6410, 116
  %v6413 = vpop.permute.xlu0 %6412
  %v6415 = vadd.f32 %v6409, %v6413
  %v6416 = vld [vmem:[#allocation3 + $0x168] sm:$0xff]
  %6418 = vrot.lane.b32.xlu0 %v6416, 88
  %v6419 = vpop.permute.xlu0 %6418
  %v6421 = vadd.f32 %v6415, %v6419
  %v6422 = vadd.f32 %v6421, %v5207
  %v6423 = vxor.u32 %v6422, 2147483648
  %v6424 = vmul.f32 %v6423, 1.442695
  %v6425 = vpow.pop %v6424
  %v6426 = vadd.f32 %v6425, 1.0
  %v6427 = vrcp.pop %v6426
  %v6428 = vmul.f32 1.0, %v6427
  %6430 = vrot.lane.b32.xlu0 %v6428, 104
  %v6431 = vpop.permute.xlu0 %6430
  %vm6433 = vcmask 1048384
  %6434 = vst.msk [vmem:[%s7 + $0x20] sm:$0xff] %vm6433, %v6431
  %vm6435 = vcmask 31744
  %6436 = vst.msk [vmem:[%s7 + $0x28] sm:$0xff] %vm6435, %v6431
  %v6437 = vld [vmem:[#allocation3 + $0x1d0] sm:$0xff]
  %v6438 = vld [vmem:[#allocation3 + $0x1c0] sm:$0xff]
  %6440 = vrot.lane.b32.xlu0 %v6438, 100
  %v6441 = vpop.permute.xlu0 %6440
  %v6443 = vadd.f32 %v6437, %v6441
  %v6444 = vld [vmem:[#allocation3 + $0x1b0] sm:$0xff]
  %6446 = vrot.lane.b32.xlu0 %v6444, 72
  %v6447 = vpop.permute.xlu0 %6446
  %v6449 = vadd.f32 %v6443, %v6447
  %v6450 = vld [vmem:[#allocation3 + $0x1a0] sm:$0xff]
  %6452 = vrot.lane.b32.xlu0 %v6450, 44
  %v6453 = vpop.permute.xlu0 %6452
  %v6455 = vadd.f32 %v6449, %v6453
  %v6456 = vld [vmem:[#allocation3 + $0x190] sm:$0xff]
  %v6457 = vld [vmem:[#allocation3 + $0x198] sm:$0xff]
  %6460 = vrot.lane.b32.xlu0 %v6456, 16
  %v6461 = vpop.permute.xlu0 %6460
  %6462 = vrot.lane.b32.xlu0 %v6457, 16
  %v6463 = vpop.permute.xlu0 %6462
  %v6464 = vsel %vm5184, %v6461, %v6463
  %v6466 = vadd.f32 %v6455, %v6464
  %v6467 = vld [vmem:[#allocation3 + $0x188] sm:$0xff]
  %6469 = vrot.lane.b32.xlu0 %v6467, 116
  %v6470 = vpop.permute.xlu0 %6469
  %v6472 = vadd.f32 %v6466, %v6470
  %v6473 = vld [vmem:[#allocation3 + $0x178] sm:$0xff]
  %6475 = vrot.lane.b32.xlu0 %v6473, 88
  %v6476 = vpop.permute.xlu0 %6475
  %v6478 = vadd.f32 %v6472, %v6476
  %v6479 = vadd.f32 %v6478, %v5207
  %v6480 = vxor.u32 %v6479, 2147483648
  %v6481 = vmul.f32 %v6480, 1.442695
  %v6482 = vpow.pop %v6481
  %v6483 = vadd.f32 %v6482, 1.0
  %v6484 = vrcp.pop %v6483
  %v6485 = vmul.f32 1.0, %v6484
  %6487 = vrot.lane.b32.xlu0 %v6485, 4
  %v6488 = vpop.permute.xlu0 %6487
  %vm6490 = vcmask 261152
  %6491 = vst.msk [vmem:[%s7 + $0x28] sm:$0xff] %vm6490, %v6488
  %v6492 = vld [vmem:[#allocation3 + $0x1e0] sm:$0xff]
  %v6493 = vld [vmem:[#allocation3 + $0x1d0] sm:$0xff]
  %6495 = vrot.lane.b32.xlu0 %v6493, 100
  %v6496 = vpop.permute.xlu0 %6495
  %v6498 = vadd.f32 %v6492, %v6496
  %v6499 = vld [vmem:[#allocation3 + $0x1c0] sm:$0xff]
  %6501 = vrot.lane.b32.xlu0 %v6499, 72
  %v6502 = vpop.permute.xlu0 %6501
  %v6504 = vadd.f32 %v6498, %v6502
  %v6505 = vld [vmem:[#allocation3 + $0x1b0] sm:$0xff]
  %6507 = vrot.lane.b32.xlu0 %v6505, 44
  %v6508 = vpop.permute.xlu0 %6507
  %v6510 = vadd.f32 %v6504, %v6508
  %v6511 = vld [vmem:[#allocation3 + $0x1a0] sm:$0xff]
  %v6512 = vld [vmem:[#allocation3 + $0x1a8] sm:$0xff]
  %6515 = vrot.lane.b32.xlu0 %v6511, 16
  %v6516 = vpop.permute.xlu0 %6515
  %6517 = vrot.lane.b32.xlu0 %v6512, 16
  %v6518 = vpop.permute.xlu0 %6517
  %v6519 = vsel %vm5184, %v6516, %v6518
  %v6521 = vadd.f32 %v6510, %v6519
  %v6522 = vld [vmem:[#allocation3 + $0x198] sm:$0xff]
  %6524 = vrot.lane.b32.xlu0 %v6522, 116
  %v6525 = vpop.permute.xlu0 %6524
  %v6527 = vadd.f32 %v6521, %v6525
  %v6528 = vld [vmem:[#allocation3 + $0x188] sm:$0xff]
  %6530 = vrot.lane.b32.xlu0 %v6528, 88
  %v6531 = vpop.permute.xlu0 %6530
  %v6533 = vadd.f32 %v6527, %v6531
  %v6534 = vadd.f32 %v6533, %v5207
  %v6535 = vxor.u32 %v6534, 2147483648
  %v6536 = vmul.f32 %v6535, 1.442695
  %v6537 = vpow.pop %v6536
  %v6538 = vadd.f32 %v6537, 1.0
  %v6539 = vrcp.pop %v6538
  %v6540 = vmul.f32 1.0, %v6539
  %6542 = vrot.lane.b32.xlu0 %v6540, 32
  %v6543 = vpop.permute.xlu0 %6542
  %vm6545 = vcmask 490752
  %6546 = vst.msk [vmem:[%s7 + $0x28] sm:$0xff] %vm6545, %v6543
  %v6547 = vld [vmem:[#allocation3 + $0x1f0] sm:$0xff]
  %v6548 = vld [vmem:[#allocation3 + $0x1e0] sm:$0xff]
  %6550 = vrot.lane.b32.xlu0 %v6548, 100
  %v6551 = vpop.permute.xlu0 %6550
  %v6553 = vadd.f32 %v6547, %v6551
  %v6554 = vld [vmem:[#allocation3 + $0x1d0] sm:$0xff]
  %6556 = vrot.lane.b32.xlu0 %v6554, 72
  %v6557 = vpop.permute.xlu0 %6556
  %v6559 = vadd.f32 %v6553, %v6557
  %v6560 = vld [vmem:[#allocation3 + $0x1c0] sm:$0xff]
  %6562 = vrot.lane.b32.xlu0 %v6560, 44
  %v6563 = vpop.permute.xlu0 %6562
  %v6565 = vadd.f32 %v6559, %v6563
  %v6566 = vld [vmem:[#allocation3 + $0x1b0] sm:$0xff]
  %v6567 = vld [vmem:[#allocation3 + $0x1b8] sm:$0xff]
  %6570 = vrot.lane.b32.xlu0 %v6566, 16
  %v6571 = vpop.permute.xlu0 %6570
  %6572 = vrot.lane.b32.xlu0 %v6567, 16
  %v6573 = vpop.permute.xlu0 %6572
  %v6574 = vsel %vm5184, %v6571, %v6573
  %v6576 = vadd.f32 %v6565, %v6574
  %v6577 = vld [vmem:[#allocation3 + $0x1a8] sm:$0xff]
  %6579 = vrot.lane.b32.xlu0 %v6577, 116
  %v6580 = vpop.permute.xlu0 %6579
  %v6582 = vadd.f32 %v6576, %v6580
  %v6583 = vld [vmem:[#allocation3 + $0x198] sm:$0xff]
  %6585 = vrot.lane.b32.xlu0 %v6583, 88
  %v6586 = vpop.permute.xlu0 %6585
  %v6588 = vadd.f32 %v6582, %v6586
  %v6589 = vadd.f32 %v6588, %v5207
  %v6590 = vxor.u32 %v6589, 2147483648
  %v6591 = vmul.f32 %v6590, 1.442695
  %v6592 = vpow.pop %v6591
  %v6593 = vadd.f32 %v6592, 1.0
  %v6594 = vrcp.pop %v6593
  %v6595 = vmul.f32 1.0, %v6594
  %6597 = vrot.lane.b32.xlu0 %v6595, 60
  %v6598 = vpop.permute.xlu0 %6597
  %vm6600 = vcmask 720352
  %6601 = vst.msk [vmem:[%s7 + $0x28] sm:$0xff] %vm6600, %v6598
  %v6602 = vld [vmem:[#allocation3 + $0x200] sm:$0xff]
  %v6603 = vld [vmem:[#allocation3 + $0x1f0] sm:$0xff]
  %6605 = vrot.lane.b32.xlu0 %v6603, 100
  %v6606 = vpop.permute.xlu0 %6605
  %v6608 = vadd.f32 %v6602, %v6606
  %v6609 = vld [vmem:[#allocation3 + $0x1e0] sm:$0xff]
  %6611 = vrot.lane.b32.xlu0 %v6609, 72
  %v6612 = vpop.permute.xlu0 %6611
  %v6614 = vadd.f32 %v6608, %v6612
  %v6615 = vld [vmem:[#allocation3 + $0x1d0] sm:$0xff]
  %6617 = vrot.lane.b32.xlu0 %v6615, 44
  %v6618 = vpop.permute.xlu0 %6617
  %v6620 = vadd.f32 %v6614, %v6618
  %v6621 = vld [vmem:[#allocation3 + $0x1c0] sm:$0xff]
  %v6622 = vld [vmem:[#allocation3 + $0x1c8] sm:$0xff]
  %6625 = vrot.lane.b32.xlu0 %v6621, 16
  %v6626 = vpop.permute.xlu0 %6625
  %6627 = vrot.lane.b32.xlu0 %v6622, 16
  %v6628 = vpop.permute.xlu0 %6627
  %v6629 = vsel %vm5184, %v6626, %v6628
  %v6631 = vadd.f32 %v6620, %v6629
  %v6632 = vld [vmem:[#allocation3 + $0x1b8] sm:$0xff]
  %6634 = vrot.lane.b32.xlu0 %v6632, 116
  %v6635 = vpop.permute.xlu0 %6634
  %v6637 = vadd.f32 %v6631, %v6635
  %v6638 = vld [vmem:[#allocation3 + $0x1a8] sm:$0xff]
  %6640 = vrot.lane.b32.xlu0 %v6638, 88
  %v6641 = vpop.permute.xlu0 %6640
  %v6643 = vadd.f32 %v6637, %v6641
  %v6644 = vadd.f32 %v6643, %v5207
  %v6645 = vxor.u32 %v6644, 2147483648
  %v6646 = vmul.f32 %v6645, 1.442695
  %v6647 = vpow.pop %v6646
  %v6648 = vadd.f32 %v6647, 1.0
  %v6649 = vrcp.pop %v6648
  %v6650 = vmul.f32 1.0, %v6649
  %6652 = vrot.lane.b32.xlu0 %v6650, 88
  %v6653 = vpop.permute.xlu0 %6652
  %vm6655 = vcmask 949952
  %6656 = vst.msk [vmem:[%s7 + $0x28] sm:$0xff] %vm6655, %v6653
  %v6657 = vld [vmem:[#allocation3 + $0x210] sm:$0xff]
  %v6658 = vld [vmem:[#allocation3 + $0x200] sm:$0xff]
  %6660 = vrot.lane.b32.xlu0 %v6658, 100
  %v6661 = vpop.permute.xlu0 %6660
  %v6663 = vadd.f32 %v6657, %v6661
  %v6664 = vld [vmem:[#allocation3 + $0x1f0] sm:$0xff]
  %6666 = vrot.lane.b32.xlu0 %v6664, 72
  %v6667 = vpop.permute.xlu0 %6666
  %v6669 = vadd.f32 %v6663, %v6667
  %v6670 = vld [vmem:[#allocation3 + $0x1e0] sm:$0xff]
  %6672 = vrot.lane.b32.xlu0 %v6670, 44
  %v6673 = vpop.permute.xlu0 %6672
  %v6675 = vadd.f32 %v6669, %v6673
  %v6676 = vld [vmem:[#allocation3 + $0x1d0] sm:$0xff]
  %v6677 = vld [vmem:[#allocation3 + $0x1d8] sm:$0xff]
  %6680 = vrot.lane.b32.xlu0 %v6676, 16
  %v6681 = vpop.permute.xlu0 %6680
  %6682 = vrot.lane.b32.xlu0 %v6677, 16
  %v6683 = vpop.permute.xlu0 %6682
  %v6684 = vsel %vm5184, %v6681, %v6683
  %v6686 = vadd.f32 %v6675, %v6684
  %v6687 = vld [vmem:[#allocation3 + $0x1c8] sm:$0xff]
  %6689 = vrot.lane.b32.xlu0 %v6687, 116
  %v6690 = vpop.permute.xlu0 %6689
  %v6692 = vadd.f32 %v6686, %v6690
  %v6693 = vld [vmem:[#allocation3 + $0x1b8] sm:$0xff]
  %6695 = vrot.lane.b32.xlu0 %v6693, 88
  %v6696 = vpop.permute.xlu0 %6695
  %v6698 = vadd.f32 %v6692, %v6696
  %v6699 = vadd.f32 %v6698, %v5207
  %v6700 = vxor.u32 %v6699, 2147483648
  %v6701 = vmul.f32 %v6700, 1.442695
  %v6702 = vpow.pop %v6701
  %v6703 = vadd.f32 %v6702, 1.0
  %v6704 = vrcp.pop %v6703
  %v6705 = vmul.f32 1.0, %v6704
  %6707 = vrot.lane.b32.xlu0 %v6705, 116
  %v6708 = vpop.permute.xlu0 %6707
  %vm6710 = vcmask 1048480
  %6711 = vst.msk [vmem:[%s7 + $0x28] sm:$0xff] %vm6710, %v6708
  %6712 = vst.msk [vmem:[%s7 + $0x30] sm:$0xff] %vm5184, %v6708
  // Predicated region
  $region30: #{vae_decoder_forward.1} parent=0 // pred_check
    _
  $region31: #{vae_decoder_forward.1} parent=0 // pred_check_branch
    %6714 = sbr.rel (0) target = $region33
  $region32: #{vae_decoder_forward.1} parent=0 // pred_region
    _
  $region33: #{vae_decoder_forward.1} parent=0 // pred_fallthru
    _
  // Predicated region
  $region34: #{vae_decoder_forward.1} parent=0 // pred_check
    _
  $region35: #{vae_decoder_forward.1} parent=0 // pred_check_branch
    %6716 = sbr.rel (0) target = $region37
  $region36: #{vae_decoder_forward.1} parent=0 // pred_region
    _
  $region37: #{vae_decoder_forward.1} parent=0 // pred_fallthru
    _

</llo_original>
